<compile_context>
chip_gen: v7x
topology: tpu7x:2x2x1
jax: 0.10.0
libtpu: 0.0.40
codegen_flags: <defaults>
</compile_context>

<pallas_src>
import functools

import jax
import jax.numpy as jnp
from jax import lax
from jax.experimental import pallas as pl
from jax.experimental.pallas import tpu as pltpu

_EPS = 1e-5

# MXU operand dtype (bf16 is MXU-native on v6e/v7x; f32 kept for the strict
# f32 numerical check at demo scale — see header comment).
_MXU_DTYPE = jnp.float32


def _full_spec(shape):
    """BlockSpec covering the whole array (grid=(1,))."""
    nd = len(shape)
    return pl.BlockSpec(shape, lambda i, _nd=nd: (0,) * _nd)


# ----------------------------------------------------------------------------
# One fused ConvBlock level (whole batch at once):
#   pad -> im2col -> single MXU matmul -> single-pass BN stats -> BN+ReLU
#   -> store -> optional 2x2 max-pool.
# ----------------------------------------------------------------------------
def _conv_bn_relu_pool(x, pad_ref, w_ref, g_ref, b_ref, out_ref,
                       S, Cin, Cout, do_pool):
    """
    x       : (N, S, S, Cin) f32 value, channels-last
    pad_ref : VMEM scratch (N, S+2, S+2, Cin)
    w_ref   : (9*Cin, Cout)  im2col-flattened weights, row = (kh*3+kw)*Cin + c
    g_ref   : (1, Cout) BN gamma        b_ref : (1, Cout) BN beta
    out_ref : (N*S*S, Cout) feature output (activation-major, no transposes)
    returns : (N, S//2, S//2, Cout) pooled activations if do_pool else None
    """
    N = x.shape[0]
    HW = S * S
    f32 = jnp.float32

    # --- zero padding: border-only zero fill + ONE interior store.
    pad_ref[:, 0:1, :, :] = jnp.zeros((N, 1, S + 2, Cin), f32)
    pad_ref[:, S + 1:S + 2, :, :] = jnp.zeros((N, 1, S + 2, Cin), f32)
    pad_ref[:, 1:S + 1, 0:1, :] = jnp.zeros((N, S, 1, Cin), f32)
    pad_ref[:, 1:S + 1, S + 1:S + 2, :] = jnp.zeros((N, S, 1, Cin), f32)
    pad_ref[:, 1:S + 1, 1:S + 1, :] = x

    # --- im2col: ONE batched MXU matmul for the whole level.
    #     contraction depth K = 9*Cin (instead of 9 separate K=Cin matmuls).
    slabs = [pad_ref[:, kh:kh + S, kw:kw + S, :]           # 9 x (N, S, S, Cin)
             for kh in range(3) for kw in range(3)]
    patches = jnp.concatenate(slabs, axis=-1).reshape(N * HW, 9 * Cin)
    y = jnp.dot(patches.astype(w_ref.dtype), w_ref[...],
                preferred_element_type=jnp.float32)         # (N*HW, Cout) f32
    # conv bias intentionally omitted: absorbed by train-mode BatchNorm mean.

    # --- single-pass BatchNorm batch statistics (train mode, biased var).
    inv_cnt = 1.0 / float(N * HW)
    mean = jnp.sum(y, axis=0, keepdims=True) * inv_cnt               # (1, Cout)
    ex2 = jnp.sum(y * y, axis=0, keepdims=True) * inv_cnt            # (1, Cout)
    var = jnp.maximum(ex2 - mean * mean, 0.0)
    scale = g_ref[...] * lax.rsqrt(var + _EPS)                       # (1, Cout)
    shift = b_ref[...] - mean * scale

    # --- BN + ReLU once for the whole batch; activation-major store
    #     (no per-image XLU transposes; scale/shift broadcast exactly once).
    a = jnp.maximum(y * scale + shift, 0.0)                          # (N*HW, Cout)
    out_ref[...] = a

    if not do_pool:
        return None

    # --- 2x2 max-pool: max of even/odd column slices, then even/odd row
    #     slices (pair-split views + plain slices; no per-image loops).
    a4 = a.reshape(N, S, S // 2, 2, Cout)
    aw = jnp.maximum(a4[:, :, :, 0, :], a4[:, :, :, 1, :])           # pool W
    a5 = aw.reshape(N, S // 2, 2, S // 2, Cout)                      # free split
    return jnp.maximum(a5[:, :, 0, :, :], a5[:, :, 1, :, :])         # pool H


def _encoder_kernel(N, C0, chans, S1,
                    x_ref,
                    w1_ref, g1_ref, b1_ref,
                    w2_ref, g2_ref, b2_ref,
                    w3_ref, g3_ref, b3_ref,
                    w4_ref, g4_ref, b4_ref,
                    o1_ref, o2_ref, o3_ref, o4_ref,
                    pad1_ref, pad2_ref, pad3_ref, pad4_ref):
    C1, C2, C3, C4 = chans
    S2, S3, S4 = S1 // 2, S1 // 4, S1 // 8

    x = x_ref[...]                                           # (N, S1, S1, C0)
    x = _conv_bn_relu_pool(x, pad1_ref, w1_ref, g1_ref, b1_ref, o1_ref,
                           S1, C0, C1, True)
    x = _conv_bn_relu_pool(x, pad2_ref, w2_ref, g2_ref, b2_ref, o2_ref,
                           S2, C1, C2, True)
    x = _conv_bn_relu_pool(x, pad3_ref, w3_ref, g3_ref, b3_ref, o3_ref,
                           S3, C2, C3, True)
    _conv_bn_relu_pool(x, pad4_ref, w4_ref, g4_ref, b4_ref, o4_ref,
                       S4, C3, C4, False)


# ----------------------------------------------------------------------------
# Wrapper: single fused pallas_call for the whole encoder.
# ----------------------------------------------------------------------------
def encoder_forward(x_nchw, params):
    N, C0, H, W = x_nchw.shape
    assert H == W and H % 8 == 0, "demo wrapper assumes square, /8 spatial"

    ws = [params[f"w{i}"] for i in range(1, 5)]              # OIHW
    chans = tuple(int(w.shape[0]) for w in ws)
    cins = (C0,) + chans[:3]
    S = (H, H // 2, H // 4, H // 8)

    # Parameter-sized layout prep + one tiny input transpose (NCHW->NHWC).
    # Weights are pre-flattened for im2col: row index = (kh*3+kw)*Cin + cin.
    # Conv biases are NOT passed (absorbed by train-mode BN).
    x_nhwc = jnp.transpose(x_nchw, (0, 2, 3, 1)).astype(jnp.float32)
    w_flat = [jnp.transpose(w, (2, 3, 1, 0))
              .reshape(9 * w.shape[1], w.shape[0]).astype(_MXU_DTYPE)
              for w in ws]
    gs = [params[f"g{i}"].reshape(1, -1).astype(jnp.float32) for i in range(1, 5)]
    bts = [params[f"bt{i}"].reshape(1, -1).astype(jnp.float32) for i in range(1, 5)]

    inputs = [x_nhwc]
    for i in range(4):
        inputs += [w_flat[i], gs[i], bts[i]]

    out_shape = tuple(jax.ShapeDtypeStruct((N * S[i] * S[i], chans[i]),
                                           jnp.float32) for i in range(4))
    out_specs = tuple(_full_spec((N * S[i] * S[i], chans[i])) for i in range(4))
    in_specs = [_full_spec(tuple(a.shape)) for a in inputs]
    scratch = [pltpu.VMEM((N, S[i] + 2, S[i] + 2, cins[i]), jnp.float32)
               for i in range(4)]

    kern = functools.partial(_encoder_kernel, N, C0, chans, S[0])
    outs = pl.pallas_call(
        kern,
        grid=(1,),
        in_specs=in_specs,
        out_specs=out_specs,
        out_shape=out_shape,
        scratch_shapes=scratch,
        compiler_params=pltpu.CompilerParams(
            dimension_semantics=("arbitrary",),
            vmem_limit_bytes=32 * 1024 * 1024),
    )(*inputs)

    # Tiny output-only fixups: (N*HW, C) -> (N, C, H, W).
    feats = []
    for i in range(4):
        f = outs[i].reshape(N, S[i] * S[i], chans[i])
        f = jnp.transpose(f, (0, 2, 1)).reshape(N, chans[i], S[i], S[i])
        feats.append(f)
    return feats[-1], feats


# ----------------------------------------------------------------------------
# Pure-JAX reference (mirrors the PyTorch module: conv(+bias) -> train-mode
# BatchNorm -> ReLU, with 2x2 max-pools between levels).
# ----------------------------------------------------------------------------
def _ref_forward(x, params, eps=_EPS):
    def conv(h, w, b):
        y = lax.conv_general_dilated(
            h, w, window_strides=(1, 1), padding=((1, 1), (1, 1)),
            dimension_numbers=("NCHW", "OIHW", "NCHW"))
        return y + b[None, :, None, None]

    def bn_relu(y, g, bt):
        m = jnp.mean(y, axis=(0, 2, 3), keepdims=True)
        v = jnp.mean((y - m) ** 2, axis=(0, 2, 3), keepdims=True)
        yn = (y - m) / jnp.sqrt(v + eps)
        return jnp.maximum(yn * g[None, :, None, None]
                           + bt[None, :, None, None], 0.0)

    def pool(y):
        return lax.reduce_window(y, -jnp.inf, lax.max,
                                 (1, 1, 2, 2), (1, 1, 2, 2), "VALID")

    feats = []
    h = x
    for i in range(1, 5):
        y = bn_relu(conv(h, params[f"w{i}"], params[f"b{i}"]),
                    params[f"g{i}"], params[f"bt{i}"])
        feats.append(y)
        if i < 4:
            h = pool(y)
    return feats[-1], feats


if __name__ == "__main__":
    key = jax.random.PRNGKey(0)
    N, C0, H, W = 2, 4, 16, 16          # small demo shapes
    bf = 8                              # base_filters (small for the demo)
    chans = (bf, 2 * bf, 4 * bf, 8 * bf)
    cins = (C0,) + chans[:3]

    keys = jax.random.split(key, 20)
    x = jax.random.normal(keys[0], (N, C0, H, W), jnp.float32)

    params = {}
    ki = 1
    for i in range(4):
        cin, cout = cins[i], chans[i]
        params[f"w{i+1}"] = 0.3 * jax.random.normal(
            keys[ki], (cout, cin, 3, 3), jnp.float32); ki += 1
        params[f"b{i+1}"] = 0.1 * jax.random.normal(
            keys[ki], (cout,), jnp.float32); ki += 1
        params[f"g{i+1}"] = 1.0 + 0.1 * jax.random.normal(
            keys[ki], (cout,), jnp.float32); ki += 1
        params[f"bt{i+1}"] = 0.1 * jax.random.normal(
            keys[ki], (cout,), jnp.float32); ki += 1

    x4, feats = encoder_forward(x, params)
    x4 = jax.block_until_ready(x4)

    x4_ref, feats_ref = _ref_forward(x, params)
    assert x4.shape == x4_ref.shape == (N, chans[-1], H // 8, W // 8), x4.shape
    for a, b in zip(feats, feats_ref):
        assert a.shape == b.shape, (a.shape, b.shape)
        assert jnp.allclose(a, b, atol=2e-3, rtol=2e-3), \
            float(jnp.max(jnp.abs(a - b)))

    print("KERNEL_OK")
</pallas_src>

<mosaic_0001>
module attributes {stable_mosaic.version = 11 : i64} {
  func.func @_encoder_kernel(%arg0: i32, %arg1: memref<2x16x16x4xf32, #tpu.memory_space<vmem>>, %arg2: memref<36x8xf32, #tpu.memory_space<vmem>>, %arg3: memref<1x8xf32, #tpu.memory_space<vmem>>, %arg4: memref<1x8xf32, #tpu.memory_space<vmem>>, %arg5: memref<72x16xf32, #tpu.memory_space<vmem>>, %arg6: memref<1x16xf32, #tpu.memory_space<vmem>>, %arg7: memref<1x16xf32, #tpu.memory_space<vmem>>, %arg8: memref<144x32xf32, #tpu.memory_space<vmem>>, %arg9: memref<1x32xf32, #tpu.memory_space<vmem>>, %arg10: memref<1x32xf32, #tpu.memory_space<vmem>>, %arg11: memref<288x64xf32, #tpu.memory_space<vmem>>, %arg12: memref<1x64xf32, #tpu.memory_space<vmem>>, %arg13: memref<1x64xf32, #tpu.memory_space<vmem>>, %arg14: memref<512x8xf32, #tpu.memory_space<vmem>>, %arg15: memref<128x16xf32, #tpu.memory_space<vmem>>, %arg16: memref<32x32xf32, #tpu.memory_space<vmem>>, %arg17: memref<8x64xf32, #tpu.memory_space<vmem>>, %arg18: memref<2x18x18x4xf32, #tpu.memory_space<vmem>>, %arg19: memref<2x10x10x8xf32, #tpu.memory_space<vmem>>, %arg20: memref<2x6x6x16xf32, #tpu.memory_space<vmem>>, %arg21: memref<2x4x4x32xf32, #tpu.memory_space<vmem>>) attributes {dimension_semantics = [#tpu.dimension_semantics<arbitrary>], iteration_bounds = array<i64: 1>, scalar_prefetch = 0 : i64, scratch_operands = 4 : i64, tpu.core_type = #tpu.core_type<tc>, window_params = [{pipeline_mode = #tpu.pipeline_mode<synchronous>, transform_indices = @transform_0, window_bounds = array<i64: 2, 16, 16, 4>}, {pipeline_mode = #tpu.pipeline_mode<synchronous>, transform_indices = @transform_1, window_bounds = array<i64: 36, 8>}, {pipeline_mode = #tpu.pipeline_mode<synchronous>, transform_indices = @transform_2, window_bounds = array<i64: 1, 8>}, {pipeline_mode = #tpu.pipeline_mode<synchronous>, transform_indices = @transform_3, window_bounds = array<i64: 1, 8>}, {pipeline_mode = #tpu.pipeline_mode<synchronous>, transform_indices = @transform_4, window_bounds = array<i64: 72, 16>}, {pipeline_mode = #tpu.pipeline_mode<synchronous>, transform_indices = @transform_5, window_bounds = array<i64: 1, 16>}, {pipeline_mode = #tpu.pipeline_mode<synchronous>, transform_indices = @transform_6, window_bounds = array<i64: 1, 16>}, {pipeline_mode = #tpu.pipeline_mode<synchronous>, transform_indices = @transform_7, window_bounds = array<i64: 144, 32>}, {pipeline_mode = #tpu.pipeline_mode<synchronous>, transform_indices = @transform_8, window_bounds = array<i64: 1, 32>}, {pipeline_mode = #tpu.pipeline_mode<synchronous>, transform_indices = @transform_9, window_bounds = array<i64: 1, 32>}, {pipeline_mode = #tpu.pipeline_mode<synchronous>, transform_indices = @transform_10, window_bounds = array<i64: 288, 64>}, {pipeline_mode = #tpu.pipeline_mode<synchronous>, transform_indices = @transform_11, window_bounds = array<i64: 1, 64>}, {pipeline_mode = #tpu.pipeline_mode<synchronous>, transform_indices = @transform_12, window_bounds = array<i64: 1, 64>}, {pipeline_mode = #tpu.pipeline_mode<synchronous>, transform_indices = @transform_13, window_bounds = array<i64: 512, 8>}, {pipeline_mode = #tpu.pipeline_mode<synchronous>, transform_indices = @transform_14, window_bounds = array<i64: 128, 16>}, {pipeline_mode = #tpu.pipeline_mode<synchronous>, transform_indices = @transform_15, window_bounds = array<i64: 32, 32>}, {pipeline_mode = #tpu.pipeline_mode<synchronous>, transform_indices = @transform_16, window_bounds = array<i64: 8, 64>}]} {
    %c0 = arith.constant 0 : index
    %c0_0 = arith.constant 0 : index
    %c0_1 = arith.constant 0 : index
    %c0_2 = arith.constant 0 : index
    %0 = vector.load %arg1[%c0, %c0_0, %c0_1, %c0_2] : memref<2x16x16x4xf32, #tpu.memory_space<vmem>>, vector<2x16x16x4xf32>
    %cst = arith.constant 0.000000e+00 : f32
    %1 = vector.broadcast %cst : f32 to vector<2x1x18x4xf32>
    %c0_3 = arith.constant 0 : index
    %c0_4 = arith.constant 0 : index
    %c0_5 = arith.constant 0 : index
    %c0_6 = arith.constant 0 : index
    %2 = vector.load %arg18[%c0_3, %c0_4, %c0_5, %c0_6] : memref<2x18x18x4xf32, #tpu.memory_space<vmem>>, vector<2x1x18x4xf32>
    tpu.vector_store %arg18[%c0_3, %c0_4, %c0_5, %c0_6], %1 {strides = array<i32>} : memref<2x18x18x4xf32, #tpu.memory_space<vmem>>, vector<2x1x18x4xf32>,
    %cst_7 = arith.constant 0.000000e+00 : f32
    %3 = vector.broadcast %cst_7 : f32 to vector<2x1x18x4xf32>
    %c0_8 = arith.constant 0 : index
    %c17 = arith.constant 17 : index
    %c0_9 = arith.constant 0 : index
    %c0_10 = arith.constant 0 : index
    %4 = vector.load %arg18[%c0_8, %c17, %c0_9, %c0_10] : memref<2x18x18x4xf32, #tpu.memory_space<vmem>>, vector<2x1x18x4xf32>
    tpu.vector_store %arg18[%c0_8, %c17, %c0_9, %c0_10], %3 {strides = array<i32>} : memref<2x18x18x4xf32, #tpu.memory_space<vmem>>, vector<2x1x18x4xf32>,
    %cst_11 = arith.constant 0.000000e+00 : f32
    %5 = vector.broadcast %cst_11 : f32 to vector<2x16x1x4xf32>
    %c0_12 = arith.constant 0 : index
    %c1 = arith.constant 1 : index
    %c0_13 = arith.constant 0 : index
    %c0_14 = arith.constant 0 : index
    %6 = vector.load %arg18[%c0_12, %c1, %c0_13, %c0_14] : memref<2x18x18x4xf32, #tpu.memory_space<vmem>>, vector<2x16x1x4xf32>
    tpu.vector_store %arg18[%c0_12, %c1, %c0_13, %c0_14], %5 {strides = array<i32>} : memref<2x18x18x4xf32, #tpu.memory_space<vmem>>, vector<2x16x1x4xf32>,
    %cst_15 = arith.constant 0.000000e+00 : f32
    %7 = vector.broadcast %cst_15 : f32 to vector<2x16x1x4xf32>
    %c0_16 = arith.constant 0 : index
    %c1_17 = arith.constant 1 : index
    %c17_18 = arith.constant 17 : index
    %c0_19 = arith.constant 0 : index
    %8 = vector.load %arg18[%c0_16, %c1_17, %c17_18, %c0_19] : memref<2x18x18x4xf32, #tpu.memory_space<vmem>>, vector<2x16x1x4xf32>
    tpu.vector_store %arg18[%c0_16, %c1_17, %c17_18, %c0_19], %7 {strides = array<i32>} : memref<2x18x18x4xf32, #tpu.memory_space<vmem>>, vector<2x16x1x4xf32>,
    %c0_20 = arith.constant 0 : index
    %c1_21 = arith.constant 1 : index
    %c1_22 = arith.constant 1 : index
    %c0_23 = arith.constant 0 : index
    %9 = vector.load %arg18[%c0_20, %c1_21, %c1_22, %c0_23] : memref<2x18x18x4xf32, #tpu.memory_space<vmem>>, vector<2x16x16x4xf32>
    tpu.vector_store %arg18[%c0_20, %c1_21, %c1_22, %c0_23], %0 {strides = array<i32>} : memref<2x18x18x4xf32, #tpu.memory_space<vmem>>, vector<2x16x16x4xf32>,
    %c0_24 = arith.constant 0 : index
    %c0_25 = arith.constant 0 : index
    %c0_26 = arith.constant 0 : index
    %c0_27 = arith.constant 0 : index
    %10 = vector.load %arg18[%c0_24, %c0_25, %c0_26, %c0_27] : memref<2x18x18x4xf32, #tpu.memory_space<vmem>>, vector<2x16x16x4xf32>
    %c0_28 = arith.constant 0 : index
    %c0_29 = arith.constant 0 : index
    %c1_30 = arith.constant 1 : index
    %c0_31 = arith.constant 0 : index
    %11 = vector.load %arg18[%c0_28, %c0_29, %c1_30, %c0_31] : memref<2x18x18x4xf32, #tpu.memory_space<vmem>>, vector<2x16x16x4xf32>
    %c0_32 = arith.constant 0 : index
    %c0_33 = arith.constant 0 : index
    %c2 = arith.constant 2 : index
    %c0_34 = arith.constant 0 : index
    %12 = vector.load %arg18[%c0_32, %c0_33, %c2, %c0_34] : memref<2x18x18x4xf32, #tpu.memory_space<vmem>>, vector<2x16x16x4xf32>
    %c0_35 = arith.constant 0 : index
    %c1_36 = arith.constant 1 : index
    %c0_37 = arith.constant 0 : index
    %c0_38 = arith.constant 0 : index
    %13 = vector.load %arg18[%c0_35, %c1_36, %c0_37, %c0_38] : memref<2x18x18x4xf32, #tpu.memory_space<vmem>>, vector<2x16x16x4xf32>
    %c0_39 = arith.constant 0 : index
    %c1_40 = arith.constant 1 : index
    %c1_41 = arith.constant 1 : index
    %c0_42 = arith.constant 0 : index
    %14 = vector.load %arg18[%c0_39, %c1_40, %c1_41, %c0_42] : memref<2x18x18x4xf32, #tpu.memory_space<vmem>>, vector<2x16x16x4xf32>
    %c0_43 = arith.constant 0 : index
    %c1_44 = arith.constant 1 : index
    %c2_45 = arith.constant 2 : index
    %c0_46 = arith.constant 0 : index
    %15 = vector.load %arg18[%c0_43, %c1_44, %c2_45, %c0_46] : memref<2x18x18x4xf32, #tpu.memory_space<vmem>>, vector<2x16x16x4xf32>
    %c0_47 = arith.constant 0 : index
    %c2_48 = arith.constant 2 : index
    %c0_49 = arith.constant 0 : index
    %c0_50 = arith.constant 0 : index
    %16 = vector.load %arg18[%c0_47, %c2_48, %c0_49, %c0_50] : memref<2x18x18x4xf32, #tpu.memory_space<vmem>>, vector<2x16x16x4xf32>
    %c0_51 = arith.constant 0 : index
    %c2_52 = arith.constant 2 : index
    %c1_53 = arith.constant 1 : index
    %c0_54 = arith.constant 0 : index
    %17 = vector.load %arg18[%c0_51, %c2_52, %c1_53, %c0_54] : memref<2x18x18x4xf32, #tpu.memory_space<vmem>>, vector<2x16x16x4xf32>
    %c0_55 = arith.constant 0 : index
    %c2_56 = arith.constant 2 : index
    %c2_57 = arith.constant 2 : index
    %c0_58 = arith.constant 0 : index
    %18 = vector.load %arg18[%c0_55, %c2_56, %c2_57, %c0_58] : memref<2x18x18x4xf32, #tpu.memory_space<vmem>>, vector<2x16x16x4xf32>
    %19 = tpu.concatenate %10, %11, %12, %13, %14, %15, %16, %17, %18 in 3 : vector<2x16x16x4xf32>, vector<2x16x16x4xf32>, vector<2x16x16x4xf32>, vector<2x16x16x4xf32>, vector<2x16x16x4xf32>, vector<2x16x16x4xf32>, vector<2x16x16x4xf32>, vector<2x16x16x4xf32>, vector<2x16x16x4xf32> -> vector<2x16x16x36xf32>
    %20 = vector.shape_cast %19 : vector<2x16x16x36xf32> to vector<512x36xf32>
    %c0_59 = arith.constant 0 : index
    %c0_60 = arith.constant 0 : index
    %21 = vector.load %arg2[%c0_59, %c0_60] : memref<36x8xf32, #tpu.memory_space<vmem>>, vector<36x8xf32>
    %cst_61 = arith.constant dense<0.000000e+00> : vector<512x8xf32>
    %22 = tpu.matmul %20, %21, %cst_61 {dimension_numbers = #tpu.dot_dimension_numbers<[1], [0], [0], [1], [0, 0, 1, 1], [], []>} : vector<512x36xf32>, vector<36x8xf32>, vector<512x8xf32> -> vector<512x8xf32>
    %cst_62 = arith.constant dense<0.000000e+00> : vector<8xf32>
    %23 = vector.multi_reduction <add>, %22, %cst_62 [0] : vector<512x8xf32> to vector<8xf32>
    %24 = vector.shape_cast %23 : vector<8xf32> to vector<1x8xf32>
    %cst_63 = arith.constant 0.001953125 : f32
    %25 = vector.broadcast %cst_63 : f32 to vector<1x8xf32>
    %26 = arith.mulf %24, %25 : vector<1x8xf32>
    %27 = arith.mulf %22, %22 : vector<512x8xf32>
    %cst_64 = arith.constant dense<0.000000e+00> : vector<8xf32>
    %28 = vector.multi_reduction <add>, %27, %cst_64 [0] : vector<512x8xf32> to vector<8xf32>
    %29 = vector.shape_cast %28 : vector<8xf32> to vector<1x8xf32>
    %cst_65 = arith.constant 0.001953125 : f32
    %30 = vector.broadcast %cst_65 : f32 to vector<1x8xf32>
    %31 = arith.mulf %29, %30 : vector<1x8xf32>
    %32 = arith.mulf %26, %26 : vector<1x8xf32>
    %33 = arith.subf %31, %32 : vector<1x8xf32>
    %cst_66 = arith.constant 0.000000e+00 : f32
    %34 = vector.broadcast %cst_66 : f32 to vector<1x8xf32>
    %35 = arith.maximumf %33, %34 : vector<1x8xf32>
    %c0_67 = arith.constant 0 : index
    %c0_68 = arith.constant 0 : index
    %36 = vector.load %arg3[%c0_67, %c0_68] : memref<1x8xf32, #tpu.memory_space<vmem>>, vector<1x8xf32>
    %cst_69 = arith.constant 9.99999974E-6 : f32
    %37 = vector.broadcast %cst_69 : f32 to vector<1x8xf32>
    %38 = arith.addf %35, %37 : vector<1x8xf32>
    %39 = math.rsqrt %38 : vector<1x8xf32>
    %40 = arith.mulf %36, %39 : vector<1x8xf32>
    %c0_70 = arith.constant 0 : index
    %c0_71 = arith.constant 0 : index
    %41 = vector.load %arg4[%c0_70, %c0_71] : memref<1x8xf32, #tpu.memory_space<vmem>>, vector<1x8xf32>
    %42 = arith.mulf %26, %40 : vector<1x8xf32>
    %43 = arith.subf %41, %42 : vector<1x8xf32>
    %44 = vector.broadcast %40 : vector<1x8xf32> to vector<512x8xf32>
    %45 = arith.mulf %22, %44 : vector<512x8xf32>
    %46 = vector.broadcast %43 : vector<1x8xf32> to vector<512x8xf32>
    %47 = arith.addf %45, %46 : vector<512x8xf32>
    %cst_72 = arith.constant 0.000000e+00 : f32
    %48 = vector.broadcast %cst_72 : f32 to vector<512x8xf32>
    %49 = arith.maximumf %47, %48 : vector<512x8xf32>
    %c0_73 = arith.constant 0 : index
    %c0_74 = arith.constant 0 : index
    %50 = vector.load %arg14[%c0_73, %c0_74] : memref<512x8xf32, #tpu.memory_space<vmem>>, vector<512x8xf32>
    tpu.vector_store %arg14[%c0_73, %c0_74], %49 {strides = array<i32>} : memref<512x8xf32, #tpu.memory_space<vmem>>, vector<512x8xf32>,
    %51 = vector.shape_cast %49 : vector<512x8xf32> to vector<2x16x8x2x8xf32>
    %52 = vector.extract_strided_slice %51 {offsets = [0, 0, 0, 0, 0], sizes = [2, 16, 8, 1, 8], strides = [1, 1, 1, 1, 1]} : vector<2x16x8x2x8xf32> to vector<2x16x8x1x8xf32>
    %53 = vector.shape_cast %52 : vector<2x16x8x1x8xf32> to vector<2x16x8x8xf32>
    %54 = vector.extract_strided_slice %51 {offsets = [0, 0, 0, 1, 0], sizes = [2, 16, 8, 1, 8], strides = [1, 1, 1, 1, 1]} : vector<2x16x8x2x8xf32> to vector<2x16x8x1x8xf32>
    %55 = vector.shape_cast %54 : vector<2x16x8x1x8xf32> to vector<2x16x8x8xf32>
    %56 = arith.maximumf %53, %55 : vector<2x16x8x8xf32>
    %57 = vector.shape_cast %56 : vector<2x16x8x8xf32> to vector<2x8x2x8x8xf32>
    %58 = vector.extract_strided_slice %57 {offsets = [0, 0, 0, 0, 0], sizes = [2, 8, 1, 8, 8], strides = [1, 1, 1, 1, 1]} : vector<2x8x2x8x8xf32> to vector<2x8x1x8x8xf32>
    %59 = vector.shape_cast %58 : vector<2x8x1x8x8xf32> to vector<2x8x8x8xf32>
    %60 = vector.extract_strided_slice %57 {offsets = [0, 0, 1, 0, 0], sizes = [2, 8, 1, 8, 8], strides = [1, 1, 1, 1, 1]} : vector<2x8x2x8x8xf32> to vector<2x8x1x8x8xf32>
    %61 = vector.shape_cast %60 : vector<2x8x1x8x8xf32> to vector<2x8x8x8xf32>
    %62 = arith.maximumf %59, %61 : vector<2x8x8x8xf32>
    %cst_75 = arith.constant 0.000000e+00 : f32
    %63 = vector.broadcast %cst_75 : f32 to vector<2x1x10x8xf32>
    %c0_76 = arith.constant 0 : index
    %c0_77 = arith.constant 0 : index
    %c0_78 = arith.constant 0 : index
    %c0_79 = arith.constant 0 : index
    %64 = vector.load %arg19[%c0_76, %c0_77, %c0_78, %c0_79] : memref<2x10x10x8xf32, #tpu.memory_space<vmem>>, vector<2x1x10x8xf32>
    tpu.vector_store %arg19[%c0_76, %c0_77, %c0_78, %c0_79], %63 {strides = array<i32>} : memref<2x10x10x8xf32, #tpu.memory_space<vmem>>, vector<2x1x10x8xf32>,
    %cst_80 = arith.constant 0.000000e+00 : f32
    %65 = vector.broadcast %cst_80 : f32 to vector<2x1x10x8xf32>
    %c0_81 = arith.constant 0 : index
    %c9 = arith.constant 9 : index
    %c0_82 = arith.constant 0 : index
    %c0_83 = arith.constant 0 : index
    %66 = vector.load %arg19[%c0_81, %c9, %c0_82, %c0_83] : memref<2x10x10x8xf32, #tpu.memory_space<vmem>>, vector<2x1x10x8xf32>
    tpu.vector_store %arg19[%c0_81, %c9, %c0_82, %c0_83], %65 {strides = array<i32>} : memref<2x10x10x8xf32, #tpu.memory_space<vmem>>, vector<2x1x10x8xf32>,
    %cst_84 = arith.constant 0.000000e+00 : f32
    %67 = vector.broadcast %cst_84 : f32 to vector<2x8x1x8xf32>
    %c0_85 = arith.constant 0 : index
    %c1_86 = arith.constant 1 : index
    %c0_87 = arith.constant 0 : index
    %c0_88 = arith.constant 0 : index
    %68 = vector.load %arg19[%c0_85, %c1_86, %c0_87, %c0_88] : memref<2x10x10x8xf32, #tpu.memory_space<vmem>>, vector<2x8x1x8xf32>
    tpu.vector_store %arg19[%c0_85, %c1_86, %c0_87, %c0_88], %67 {strides = array<i32>} : memref<2x10x10x8xf32, #tpu.memory_space<vmem>>, vector<2x8x1x8xf32>,
    %cst_89 = arith.constant 0.000000e+00 : f32
    %69 = vector.broadcast %cst_89 : f32 to vector<2x8x1x8xf32>
    %c0_90 = arith.constant 0 : index
    %c1_91 = arith.constant 1 : index
    %c9_92 = arith.constant 9 : index
    %c0_93 = arith.constant 0 : index
    %70 = vector.load %arg19[%c0_90, %c1_91, %c9_92, %c0_93] : memref<2x10x10x8xf32, #tpu.memory_space<vmem>>, vector<2x8x1x8xf32>
    tpu.vector_store %arg19[%c0_90, %c1_91, %c9_92, %c0_93], %69 {strides = array<i32>} : memref<2x10x10x8xf32, #tpu.memory_space<vmem>>, vector<2x8x1x8xf32>,
    %c0_94 = arith.constant 0 : index
    %c1_95 = arith.constant 1 : index
    %c1_96 = arith.constant 1 : index
    %c0_97 = arith.constant 0 : index
    %71 = vector.load %arg19[%c0_94, %c1_95, %c1_96, %c0_97] : memref<2x10x10x8xf32, #tpu.memory_space<vmem>>, vector<2x8x8x8xf32>
    tpu.vector_store %arg19[%c0_94, %c1_95, %c1_96, %c0_97], %62 {strides = array<i32>} : memref<2x10x10x8xf32, #tpu.memory_space<vmem>>, vector<2x8x8x8xf32>,
    %c0_98 = arith.constant 0 : index
    %c0_99 = arith.constant 0 : index
    %c0_100 = arith.constant 0 : index
    %c0_101 = arith.constant 0 : index
    %72 = vector.load %arg19[%c0_98, %c0_99, %c0_100, %c0_101] : memref<2x10x10x8xf32, #tpu.memory_space<vmem>>, vector<2x8x8x8xf32>
    %c0_102 = arith.constant 0 : index
    %c0_103 = arith.constant 0 : index
    %c1_104 = arith.constant 1 : index
    %c0_105 = arith.constant 0 : index
    %73 = vector.load %arg19[%c0_102, %c0_103, %c1_104, %c0_105] : memref<2x10x10x8xf32, #tpu.memory_space<vmem>>, vector<2x8x8x8xf32>
    %c0_106 = arith.constant 0 : index
    %c0_107 = arith.constant 0 : index
    %c2_108 = arith.constant 2 : index
    %c0_109 = arith.constant 0 : index
    %74 = vector.load %arg19[%c0_106, %c0_107, %c2_108, %c0_109] : memref<2x10x10x8xf32, #tpu.memory_space<vmem>>, vector<2x8x8x8xf32>
    %c0_110 = arith.constant 0 : index
    %c1_111 = arith.constant 1 : index
    %c0_112 = arith.constant 0 : index
    %c0_113 = arith.constant 0 : index
    %75 = vector.load %arg19[%c0_110, %c1_111, %c0_112, %c0_113] : memref<2x10x10x8xf32, #tpu.memory_space<vmem>>, vector<2x8x8x8xf32>
    %c0_114 = arith.constant 0 : index
    %c1_115 = arith.constant 1 : index
    %c1_116 = arith.constant 1 : index
    %c0_117 = arith.constant 0 : index
    %76 = vector.load %arg19[%c0_114, %c1_115, %c1_116, %c0_117] : memref<2x10x10x8xf32, #tpu.memory_space<vmem>>, vector<2x8x8x8xf32>
    %c0_118 = arith.constant 0 : index
    %c1_119 = arith.constant 1 : index
    %c2_120 = arith.constant 2 : index
    %c0_121 = arith.constant 0 : index
    %77 = vector.load %arg19[%c0_118, %c1_119, %c2_120, %c0_121] : memref<2x10x10x8xf32, #tpu.memory_space<vmem>>, vector<2x8x8x8xf32>
    %c0_122 = arith.constant 0 : index
    %c2_123 = arith.constant 2 : index
    %c0_124 = arith.constant 0 : index
    %c0_125 = arith.constant 0 : index
    %78 = vector.load %arg19[%c0_122, %c2_123, %c0_124, %c0_125] : memref<2x10x10x8xf32, #tpu.memory_space<vmem>>, vector<2x8x8x8xf32>
    %c0_126 = arith.constant 0 : index
    %c2_127 = arith.constant 2 : index
    %c1_128 = arith.constant 1 : index
    %c0_129 = arith.constant 0 : index
    %79 = vector.load %arg19[%c0_126, %c2_127, %c1_128, %c0_129] : memref<2x10x10x8xf32, #tpu.memory_space<vmem>>, vector<2x8x8x8xf32>
    %c0_130 = arith.constant 0 : index
    %c2_131 = arith.constant 2 : index
    %c2_132 = arith.constant 2 : index
    %c0_133 = arith.constant 0 : index
    %80 = vector.load %arg19[%c0_130, %c2_131, %c2_132, %c0_133] : memref<2x10x10x8xf32, #tpu.memory_space<vmem>>, vector<2x8x8x8xf32>
    %81 = tpu.concatenate %72, %73, %74, %75, %76, %77, %78, %79, %80 in 3 : vector<2x8x8x8xf32>, vector<2x8x8x8xf32>, vector<2x8x8x8xf32>, vector<2x8x8x8xf32>, vector<2x8x8x8xf32>, vector<2x8x8x8xf32>, vector<2x8x8x8xf32>, vector<2x8x8x8xf32>, vector<2x8x8x8xf32> -> vector<2x8x8x72xf32>
    %82 = vector.shape_cast %81 : vector<2x8x8x72xf32> to vector<128x72xf32>
    %c0_134 = arith.constant 0 : index
    %c0_135 = arith.constant 0 : index
    %83 = vector.load %arg5[%c0_134, %c0_135] : memref<72x16xf32, #tpu.memory_space<vmem>>, vector<72x16xf32>
    %cst_136 = arith.constant dense<0.000000e+00> : vector<128x16xf32>
    %84 = tpu.matmul %82, %83, %cst_136 {dimension_numbers = #tpu.dot_dimension_numbers<[1], [0], [0], [1], [0, 0, 1, 1], [], []>} : vector<128x72xf32>, vector<72x16xf32>, vector<128x16xf32> -> vector<128x16xf32>
    %cst_137 = arith.constant dense<0.000000e+00> : vector<16xf32>
    %85 = vector.multi_reduction <add>, %84, %cst_137 [0] : vector<128x16xf32> to vector<16xf32>
    %86 = vector.shape_cast %85 : vector<16xf32> to vector<1x16xf32>
    %cst_138 = arith.constant 7.812500e-03 : f32
    %87 = vector.broadcast %cst_138 : f32 to vector<1x16xf32>
    %88 = arith.mulf %86, %87 : vector<1x16xf32>
    %89 = arith.mulf %84, %84 : vector<128x16xf32>
    %cst_139 = arith.constant dense<0.000000e+00> : vector<16xf32>
    %90 = vector.multi_reduction <add>, %89, %cst_139 [0] : vector<128x16xf32> to vector<16xf32>
    %91 = vector.shape_cast %90 : vector<16xf32> to vector<1x16xf32>
    %cst_140 = arith.constant 7.812500e-03 : f32
    %92 = vector.broadcast %cst_140 : f32 to vector<1x16xf32>
    %93 = arith.mulf %91, %92 : vector<1x16xf32>
    %94 = arith.mulf %88, %88 : vector<1x16xf32>
    %95 = arith.subf %93, %94 : vector<1x16xf32>
    %cst_141 = arith.constant 0.000000e+00 : f32
    %96 = vector.broadcast %cst_141 : f32 to vector<1x16xf32>
    %97 = arith.maximumf %95, %96 : vector<1x16xf32>
    %c0_142 = arith.constant 0 : index
    %c0_143 = arith.constant 0 : index
    %98 = vector.load %arg6[%c0_142, %c0_143] : memref<1x16xf32, #tpu.memory_space<vmem>>, vector<1x16xf32>
    %cst_144 = arith.constant 9.99999974E-6 : f32
    %99 = vector.broadcast %cst_144 : f32 to vector<1x16xf32>
    %100 = arith.addf %97, %99 : vector<1x16xf32>
    %101 = math.rsqrt %100 : vector<1x16xf32>
    %102 = arith.mulf %98, %101 : vector<1x16xf32>
    %c0_145 = arith.constant 0 : index
    %c0_146 = arith.constant 0 : index
    %103 = vector.load %arg7[%c0_145, %c0_146] : memref<1x16xf32, #tpu.memory_space<vmem>>, vector<1x16xf32>
    %104 = arith.mulf %88, %102 : vector<1x16xf32>
    %105 = arith.subf %103, %104 : vector<1x16xf32>
    %106 = vector.broadcast %102 : vector<1x16xf32> to vector<128x16xf32>
    %107 = arith.mulf %84, %106 : vector<128x16xf32>
    %108 = vector.broadcast %105 : vector<1x16xf32> to vector<128x16xf32>
    %109 = arith.addf %107, %108 : vector<128x16xf32>
    %cst_147 = arith.constant 0.000000e+00 : f32
    %110 = vector.broadcast %cst_147 : f32 to vector<128x16xf32>
    %111 = arith.maximumf %109, %110 : vector<128x16xf32>
    %c0_148 = arith.constant 0 : index
    %c0_149 = arith.constant 0 : index
    %112 = vector.load %arg15[%c0_148, %c0_149] : memref<128x16xf32, #tpu.memory_space<vmem>>, vector<128x16xf32>
    tpu.vector_store %arg15[%c0_148, %c0_149], %111 {strides = array<i32>} : memref<128x16xf32, #tpu.memory_space<vmem>>, vector<128x16xf32>,
    %113 = vector.shape_cast %111 : vector<128x16xf32> to vector<2x8x4x2x16xf32>
    %114 = vector.extract_strided_slice %113 {offsets = [0, 0, 0, 0, 0], sizes = [2, 8, 4, 1, 16], strides = [1, 1, 1, 1, 1]} : vector<2x8x4x2x16xf32> to vector<2x8x4x1x16xf32>
    %115 = vector.shape_cast %114 : vector<2x8x4x1x16xf32> to vector<2x8x4x16xf32>
    %116 = vector.extract_strided_slice %113 {offsets = [0, 0, 0, 1, 0], sizes = [2, 8, 4, 1, 16], strides = [1, 1, 1, 1, 1]} : vector<2x8x4x2x16xf32> to vector<2x8x4x1x16xf32>
    %117 = vector.shape_cast %116 : vector<2x8x4x1x16xf32> to vector<2x8x4x16xf32>
    %118 = arith.maximumf %115, %117 : vector<2x8x4x16xf32>
    %119 = vector.shape_cast %118 : vector<2x8x4x16xf32> to vector<2x4x2x4x16xf32>
    %120 = vector.extract_strided_slice %119 {offsets = [0, 0, 0, 0, 0], sizes = [2, 4, 1, 4, 16], strides = [1, 1, 1, 1, 1]} : vector<2x4x2x4x16xf32> to vector<2x4x1x4x16xf32>
    %121 = vector.shape_cast %120 : vector<2x4x1x4x16xf32> to vector<2x4x4x16xf32>
    %122 = vector.extract_strided_slice %119 {offsets = [0, 0, 1, 0, 0], sizes = [2, 4, 1, 4, 16], strides = [1, 1, 1, 1, 1]} : vector<2x4x2x4x16xf32> to vector<2x4x1x4x16xf32>
    %123 = vector.shape_cast %122 : vector<2x4x1x4x16xf32> to vector<2x4x4x16xf32>
    %124 = arith.maximumf %121, %123 : vector<2x4x4x16xf32>
    %cst_150 = arith.constant 0.000000e+00 : f32
    %125 = vector.broadcast %cst_150 : f32 to vector<2x1x6x16xf32>
    %c0_151 = arith.constant 0 : index
    %c0_152 = arith.constant 0 : index
    %c0_153 = arith.constant 0 : index
    %c0_154 = arith.constant 0 : index
    %126 = vector.load %arg20[%c0_151, %c0_152, %c0_153, %c0_154] : memref<2x6x6x16xf32, #tpu.memory_space<vmem>>, vector<2x1x6x16xf32>
    tpu.vector_store %arg20[%c0_151, %c0_152, %c0_153, %c0_154], %125 {strides = array<i32>} : memref<2x6x6x16xf32, #tpu.memory_space<vmem>>, vector<2x1x6x16xf32>,
    %cst_155 = arith.constant 0.000000e+00 : f32
    %127 = vector.broadcast %cst_155 : f32 to vector<2x1x6x16xf32>
    %c0_156 = arith.constant 0 : index
    %c5 = arith.constant 5 : index
    %c0_157 = arith.constant 0 : index
    %c0_158 = arith.constant 0 : index
    %128 = vector.load %arg20[%c0_156, %c5, %c0_157, %c0_158] : memref<2x6x6x16xf32, #tpu.memory_space<vmem>>, vector<2x1x6x16xf32>
    tpu.vector_store %arg20[%c0_156, %c5, %c0_157, %c0_158], %127 {strides = array<i32>} : memref<2x6x6x16xf32, #tpu.memory_space<vmem>>, vector<2x1x6x16xf32>,
    %cst_159 = arith.constant 0.000000e+00 : f32
    %129 = vector.broadcast %cst_159 : f32 to vector<2x4x1x16xf32>
    %c0_160 = arith.constant 0 : index
    %c1_161 = arith.constant 1 : index
    %c0_162 = arith.constant 0 : index
    %c0_163 = arith.constant 0 : index
    %130 = vector.load %arg20[%c0_160, %c1_161, %c0_162, %c0_163] : memref<2x6x6x16xf32, #tpu.memory_space<vmem>>, vector<2x4x1x16xf32>
    tpu.vector_store %arg20[%c0_160, %c1_161, %c0_162, %c0_163], %129 {strides = array<i32>} : memref<2x6x6x16xf32, #tpu.memory_space<vmem>>, vector<2x4x1x16xf32>,
    %cst_164 = arith.constant 0.000000e+00 : f32
    %131 = vector.broadcast %cst_164 : f32 to vector<2x4x1x16xf32>
    %c0_165 = arith.constant 0 : index
    %c1_166 = arith.constant 1 : index
    %c5_167 = arith.constant 5 : index
    %c0_168 = arith.constant 0 : index
    %132 = vector.load %arg20[%c0_165, %c1_166, %c5_167, %c0_168] : memref<2x6x6x16xf32, #tpu.memory_space<vmem>>, vector<2x4x1x16xf32>
    tpu.vector_store %arg20[%c0_165, %c1_166, %c5_167, %c0_168], %131 {strides = array<i32>} : memref<2x6x6x16xf32, #tpu.memory_space<vmem>>, vector<2x4x1x16xf32>,
    %c0_169 = arith.constant 0 : index
    %c1_170 = arith.constant 1 : index
    %c1_171 = arith.constant 1 : index
    %c0_172 = arith.constant 0 : index
    %133 = vector.load %arg20[%c0_169, %c1_170, %c1_171, %c0_172] : memref<2x6x6x16xf32, #tpu.memory_space<vmem>>, vector<2x4x4x16xf32>
    tpu.vector_store %arg20[%c0_169, %c1_170, %c1_171, %c0_172], %124 {strides = array<i32>} : memref<2x6x6x16xf32, #tpu.memory_space<vmem>>, vector<2x4x4x16xf32>,
    %c0_173 = arith.constant 0 : index
    %c0_174 = arith.constant 0 : index
    %c0_175 = arith.constant 0 : index
    %c0_176 = arith.constant 0 : index
    %134 = vector.load %arg20[%c0_173, %c0_174, %c0_175, %c0_176] : memref<2x6x6x16xf32, #tpu.memory_space<vmem>>, vector<2x4x4x16xf32>
    %c0_177 = arith.constant 0 : index
    %c0_178 = arith.constant 0 : index
    %c1_179 = arith.constant 1 : index
    %c0_180 = arith.constant 0 : index
    %135 = vector.load %arg20[%c0_177, %c0_178, %c1_179, %c0_180] : memref<2x6x6x16xf32, #tpu.memory_space<vmem>>, vector<2x4x4x16xf32>
    %c0_181 = arith.constant 0 : index
    %c0_182 = arith.constant 0 : index
    %c2_183 = arith.constant 2 : index
    %c0_184 = arith.constant 0 : index
    %136 = vector.load %arg20[%c0_181, %c0_182, %c2_183, %c0_184] : memref<2x6x6x16xf32, #tpu.memory_space<vmem>>, vector<2x4x4x16xf32>
    %c0_185 = arith.constant 0 : index
    %c1_186 = arith.constant 1 : index
    %c0_187 = arith.constant 0 : index
    %c0_188 = arith.constant 0 : index
    %137 = vector.load %arg20[%c0_185, %c1_186, %c0_187, %c0_188] : memref<2x6x6x16xf32, #tpu.memory_space<vmem>>, vector<2x4x4x16xf32>
    %c0_189 = arith.constant 0 : index
    %c1_190 = arith.constant 1 : index
    %c1_191 = arith.constant 1 : index
    %c0_192 = arith.constant 0 : index
    %138 = vector.load %arg20[%c0_189, %c1_190, %c1_191, %c0_192] : memref<2x6x6x16xf32, #tpu.memory_space<vmem>>, vector<2x4x4x16xf32>
    %c0_193 = arith.constant 0 : index
    %c1_194 = arith.constant 1 : index
    %c2_195 = arith.constant 2 : index
    %c0_196 = arith.constant 0 : index
    %139 = vector.load %arg20[%c0_193, %c1_194, %c2_195, %c0_196] : memref<2x6x6x16xf32, #tpu.memory_space<vmem>>, vector<2x4x4x16xf32>
    %c0_197 = arith.constant 0 : index
    %c2_198 = arith.constant 2 : index
    %c0_199 = arith.constant 0 : index
    %c0_200 = arith.constant 0 : index
    %140 = vector.load %arg20[%c0_197, %c2_198, %c0_199, %c0_200] : memref<2x6x6x16xf32, #tpu.memory_space<vmem>>, vector<2x4x4x16xf32>
    %c0_201 = arith.constant 0 : index
    %c2_202 = arith.constant 2 : index
    %c1_203 = arith.constant 1 : index
    %c0_204 = arith.constant 0 : index
    %141 = vector.load %arg20[%c0_201, %c2_202, %c1_203, %c0_204] : memref<2x6x6x16xf32, #tpu.memory_space<vmem>>, vector<2x4x4x16xf32>
    %c0_205 = arith.constant 0 : index
    %c2_206 = arith.constant 2 : index
    %c2_207 = arith.constant 2 : index
    %c0_208 = arith.constant 0 : index
    %142 = vector.load %arg20[%c0_205, %c2_206, %c2_207, %c0_208] : memref<2x6x6x16xf32, #tpu.memory_space<vmem>>, vector<2x4x4x16xf32>
    %143 = tpu.concatenate %134, %135, %136, %137, %138, %139, %140, %141, %142 in 3 : vector<2x4x4x16xf32>, vector<2x4x4x16xf32>, vector<2x4x4x16xf32>, vector<2x4x4x16xf32>, vector<2x4x4x16xf32>, vector<2x4x4x16xf32>, vector<2x4x4x16xf32>, vector<2x4x4x16xf32>, vector<2x4x4x16xf32> -> vector<2x4x4x144xf32>
    %144 = vector.shape_cast %143 : vector<2x4x4x144xf32> to vector<32x144xf32>
    %c0_209 = arith.constant 0 : index
    %c0_210 = arith.constant 0 : index
    %145 = vector.load %arg8[%c0_209, %c0_210] : memref<144x32xf32, #tpu.memory_space<vmem>>, vector<144x32xf32>
    %cst_211 = arith.constant dense<0.000000e+00> : vector<32x32xf32>
    %146 = tpu.matmul %144, %145, %cst_211 {dimension_numbers = #tpu.dot_dimension_numbers<[1], [0], [0], [1], [0, 0, 1, 1], [], []>} : vector<32x144xf32>, vector<144x32xf32>, vector<32x32xf32> -> vector<32x32xf32>
    %cst_212 = arith.constant dense<0.000000e+00> : vector<32xf32>
    %147 = vector.multi_reduction <add>, %146, %cst_212 [0] : vector<32x32xf32> to vector<32xf32>
    %148 = vector.shape_cast %147 : vector<32xf32> to vector<1x32xf32>
    %cst_213 = arith.constant 3.125000e-02 : f32
    %149 = vector.broadcast %cst_213 : f32 to vector<1x32xf32>
    %150 = arith.mulf %148, %149 : vector<1x32xf32>
    %151 = arith.mulf %146, %146 : vector<32x32xf32>
    %cst_214 = arith.constant dense<0.000000e+00> : vector<32xf32>
    %152 = vector.multi_reduction <add>, %151, %cst_214 [0] : vector<32x32xf32> to vector<32xf32>
    %153 = vector.shape_cast %152 : vector<32xf32> to vector<1x32xf32>
    %cst_215 = arith.constant 3.125000e-02 : f32
    %154 = vector.broadcast %cst_215 : f32 to vector<1x32xf32>
    %155 = arith.mulf %153, %154 : vector<1x32xf32>
    %156 = arith.mulf %150, %150 : vector<1x32xf32>
    %157 = arith.subf %155, %156 : vector<1x32xf32>
    %cst_216 = arith.constant 0.000000e+00 : f32
    %158 = vector.broadcast %cst_216 : f32 to vector<1x32xf32>
    %159 = arith.maximumf %157, %158 : vector<1x32xf32>
    %c0_217 = arith.constant 0 : index
    %c0_218 = arith.constant 0 : index
    %160 = vector.load %arg9[%c0_217, %c0_218] : memref<1x32xf32, #tpu.memory_space<vmem>>, vector<1x32xf32>
    %cst_219 = arith.constant 9.99999974E-6 : f32
    %161 = vector.broadcast %cst_219 : f32 to vector<1x32xf32>
    %162 = arith.addf %159, %161 : vector<1x32xf32>
    %163 = math.rsqrt %162 : vector<1x32xf32>
    %164 = arith.mulf %160, %163 : vector<1x32xf32>
    %c0_220 = arith.constant 0 : index
    %c0_221 = arith.constant 0 : index
    %165 = vector.load %arg10[%c0_220, %c0_221] : memref<1x32xf32, #tpu.memory_space<vmem>>, vector<1x32xf32>
    %166 = arith.mulf %150, %164 : vector<1x32xf32>
    %167 = arith.subf %165, %166 : vector<1x32xf32>
    %168 = vector.broadcast %164 : vector<1x32xf32> to vector<32x32xf32>
    %169 = arith.mulf %146, %168 : vector<32x32xf32>
    %170 = vector.broadcast %167 : vector<1x32xf32> to vector<32x32xf32>
    %171 = arith.addf %169, %170 : vector<32x32xf32>
    %cst_222 = arith.constant 0.000000e+00 : f32
    %172 = vector.broadcast %cst_222 : f32 to vector<32x32xf32>
    %173 = arith.maximumf %171, %172 : vector<32x32xf32>
    %c0_223 = arith.constant 0 : index
    %c0_224 = arith.constant 0 : index
    %174 = vector.load %arg16[%c0_223, %c0_224] : memref<32x32xf32, #tpu.memory_space<vmem>>, vector<32x32xf32>
    tpu.vector_store %arg16[%c0_223, %c0_224], %173 {strides = array<i32>} : memref<32x32xf32, #tpu.memory_space<vmem>>, vector<32x32xf32>,
    %175 = vector.shape_cast %173 : vector<32x32xf32> to vector<2x4x2x2x32xf32>
    %176 = vector.extract_strided_slice %175 {offsets = [0, 0, 0, 0, 0], sizes = [2, 4, 2, 1, 32], strides = [1, 1, 1, 1, 1]} : vector<2x4x2x2x32xf32> to vector<2x4x2x1x32xf32>
    %177 = vector.shape_cast %176 : vector<2x4x2x1x32xf32> to vector<2x4x2x32xf32>
    %178 = vector.extract_strided_slice %175 {offsets = [0, 0, 0, 1, 0], sizes = [2, 4, 2, 1, 32], strides = [1, 1, 1, 1, 1]} : vector<2x4x2x2x32xf32> to vector<2x4x2x1x32xf32>
    %179 = vector.shape_cast %178 : vector<2x4x2x1x32xf32> to vector<2x4x2x32xf32>
    %180 = arith.maximumf %177, %179 : vector<2x4x2x32xf32>
    %181 = vector.shape_cast %180 : vector<2x4x2x32xf32> to vector<2x2x2x2x32xf32>
    %182 = vector.extract_strided_slice %181 {offsets = [0, 0, 0, 0, 0], sizes = [2, 2, 1, 2, 32], strides = [1, 1, 1, 1, 1]} : vector<2x2x2x2x32xf32> to vector<2x2x1x2x32xf32>
    %183 = vector.shape_cast %182 : vector<2x2x1x2x32xf32> to vector<2x2x2x32xf32>
    %184 = vector.extract_strided_slice %181 {offsets = [0, 0, 1, 0, 0], sizes = [2, 2, 1, 2, 32], strides = [1, 1, 1, 1, 1]} : vector<2x2x2x2x32xf32> to vector<2x2x1x2x32xf32>
    %185 = vector.shape_cast %184 : vector<2x2x1x2x32xf32> to vector<2x2x2x32xf32>
    %186 = arith.maximumf %183, %185 : vector<2x2x2x32xf32>
    %cst_225 = arith.constant 0.000000e+00 : f32
    %187 = vector.broadcast %cst_225 : f32 to vector<2x1x4x32xf32>
    %c0_226 = arith.constant 0 : index
    %c0_227 = arith.constant 0 : index
    %c0_228 = arith.constant 0 : index
    %c0_229 = arith.constant 0 : index
    %188 = vector.load %arg21[%c0_226, %c0_227, %c0_228, %c0_229] : memref<2x4x4x32xf32, #tpu.memory_space<vmem>>, vector<2x1x4x32xf32>
    tpu.vector_store %arg21[%c0_226, %c0_227, %c0_228, %c0_229], %187 {strides = array<i32>} : memref<2x4x4x32xf32, #tpu.memory_space<vmem>>, vector<2x1x4x32xf32>,
    %cst_230 = arith.constant 0.000000e+00 : f32
    %189 = vector.broadcast %cst_230 : f32 to vector<2x1x4x32xf32>
    %c0_231 = arith.constant 0 : index
    %c3 = arith.constant 3 : index
    %c0_232 = arith.constant 0 : index
    %c0_233 = arith.constant 0 : index
    %190 = vector.load %arg21[%c0_231, %c3, %c0_232, %c0_233] : memref<2x4x4x32xf32, #tpu.memory_space<vmem>>, vector<2x1x4x32xf32>
    tpu.vector_store %arg21[%c0_231, %c3, %c0_232, %c0_233], %189 {strides = array<i32>} : memref<2x4x4x32xf32, #tpu.memory_space<vmem>>, vector<2x1x4x32xf32>,
    %cst_234 = arith.constant 0.000000e+00 : f32
    %191 = vector.broadcast %cst_234 : f32 to vector<2x2x1x32xf32>
    %c0_235 = arith.constant 0 : index
    %c1_236 = arith.constant 1 : index
    %c0_237 = arith.constant 0 : index
    %c0_238 = arith.constant 0 : index
    %192 = vector.load %arg21[%c0_235, %c1_236, %c0_237, %c0_238] : memref<2x4x4x32xf32, #tpu.memory_space<vmem>>, vector<2x2x1x32xf32>
    tpu.vector_store %arg21[%c0_235, %c1_236, %c0_237, %c0_238], %191 {strides = array<i32>} : memref<2x4x4x32xf32, #tpu.memory_space<vmem>>, vector<2x2x1x32xf32>,
    %cst_239 = arith.constant 0.000000e+00 : f32
    %193 = vector.broadcast %cst_239 : f32 to vector<2x2x1x32xf32>
    %c0_240 = arith.constant 0 : index
    %c1_241 = arith.constant 1 : index
    %c3_242 = arith.constant 3 : index
    %c0_243 = arith.constant 0 : index
    %194 = vector.load %arg21[%c0_240, %c1_241, %c3_242, %c0_243] : memref<2x4x4x32xf32, #tpu.memory_space<vmem>>, vector<2x2x1x32xf32>
    tpu.vector_store %arg21[%c0_240, %c1_241, %c3_242, %c0_243], %193 {strides = array<i32>} : memref<2x4x4x32xf32, #tpu.memory_space<vmem>>, vector<2x2x1x32xf32>,
    %c0_244 = arith.constant 0 : index
    %c1_245 = arith.constant 1 : index
    %c1_246 = arith.constant 1 : index
    %c0_247 = arith.constant 0 : index
    %195 = vector.load %arg21[%c0_244, %c1_245, %c1_246, %c0_247] : memref<2x4x4x32xf32, #tpu.memory_space<vmem>>, vector<2x2x2x32xf32>
    tpu.vector_store %arg21[%c0_244, %c1_245, %c1_246, %c0_247], %186 {strides = array<i32>} : memref<2x4x4x32xf32, #tpu.memory_space<vmem>>, vector<2x2x2x32xf32>,
    %c0_248 = arith.constant 0 : index
    %c0_249 = arith.constant 0 : index
    %c0_250 = arith.constant 0 : index
    %c0_251 = arith.constant 0 : index
    %196 = vector.load %arg21[%c0_248, %c0_249, %c0_250, %c0_251] : memref<2x4x4x32xf32, #tpu.memory_space<vmem>>, vector<2x2x2x32xf32>
    %c0_252 = arith.constant 0 : index
    %c0_253 = arith.constant 0 : index
    %c1_254 = arith.constant 1 : index
    %c0_255 = arith.constant 0 : index
    %197 = vector.load %arg21[%c0_252, %c0_253, %c1_254, %c0_255] : memref<2x4x4x32xf32, #tpu.memory_space<vmem>>, vector<2x2x2x32xf32>
    %c0_256 = arith.constant 0 : index
    %c0_257 = arith.constant 0 : index
    %c2_258 = arith.constant 2 : index
    %c0_259 = arith.constant 0 : index
    %198 = vector.load %arg21[%c0_256, %c0_257, %c2_258, %c0_259] : memref<2x4x4x32xf32, #tpu.memory_space<vmem>>, vector<2x2x2x32xf32>
    %c0_260 = arith.constant 0 : index
    %c1_261 = arith.constant 1 : index
    %c0_262 = arith.constant 0 : index
    %c0_263 = arith.constant 0 : index
    %199 = vector.load %arg21[%c0_260, %c1_261, %c0_262, %c0_263] : memref<2x4x4x32xf32, #tpu.memory_space<vmem>>, vector<2x2x2x32xf32>
    %c0_264 = arith.constant 0 : index
    %c1_265 = arith.constant 1 : index
    %c1_266 = arith.constant 1 : index
    %c0_267 = arith.constant 0 : index
    %200 = vector.load %arg21[%c0_264, %c1_265, %c1_266, %c0_267] : memref<2x4x4x32xf32, #tpu.memory_space<vmem>>, vector<2x2x2x32xf32>
    %c0_268 = arith.constant 0 : index
    %c1_269 = arith.constant 1 : index
    %c2_270 = arith.constant 2 : index
    %c0_271 = arith.constant 0 : index
    %201 = vector.load %arg21[%c0_268, %c1_269, %c2_270, %c0_271] : memref<2x4x4x32xf32, #tpu.memory_space<vmem>>, vector<2x2x2x32xf32>
    %c0_272 = arith.constant 0 : index
    %c2_273 = arith.constant 2 : index
    %c0_274 = arith.constant 0 : index
    %c0_275 = arith.constant 0 : index
    %202 = vector.load %arg21[%c0_272, %c2_273, %c0_274, %c0_275] : memref<2x4x4x32xf32, #tpu.memory_space<vmem>>, vector<2x2x2x32xf32>
    %c0_276 = arith.constant 0 : index
    %c2_277 = arith.constant 2 : index
    %c1_278 = arith.constant 1 : index
    %c0_279 = arith.constant 0 : index
    %203 = vector.load %arg21[%c0_276, %c2_277, %c1_278, %c0_279] : memref<2x4x4x32xf32, #tpu.memory_space<vmem>>, vector<2x2x2x32xf32>
    %c0_280 = arith.constant 0 : index
    %c2_281 = arith.constant 2 : index
    %c2_282 = arith.constant 2 : index
    %c0_283 = arith.constant 0 : index
    %204 = vector.load %arg21[%c0_280, %c2_281, %c2_282, %c0_283] : memref<2x4x4x32xf32, #tpu.memory_space<vmem>>, vector<2x2x2x32xf32>
    %205 = tpu.concatenate %196, %197, %198, %199, %200, %201, %202, %203, %204 in 3 : vector<2x2x2x32xf32>, vector<2x2x2x32xf32>, vector<2x2x2x32xf32>, vector<2x2x2x32xf32>, vector<2x2x2x32xf32>, vector<2x2x2x32xf32>, vector<2x2x2x32xf32>, vector<2x2x2x32xf32>, vector<2x2x2x32xf32> -> vector<2x2x2x288xf32>
    %206 = vector.shape_cast %205 : vector<2x2x2x288xf32> to vector<8x288xf32>
    %c0_284 = arith.constant 0 : index
    %c0_285 = arith.constant 0 : index
    %207 = vector.load %arg11[%c0_284, %c0_285] : memref<288x64xf32, #tpu.memory_space<vmem>>, vector<288x64xf32>
    %cst_286 = arith.constant dense<0.000000e+00> : vector<8x64xf32>
    %208 = tpu.matmul %206, %207, %cst_286 {dimension_numbers = #tpu.dot_dimension_numbers<[1], [0], [0], [1], [0, 0, 1, 1], [], []>} : vector<8x288xf32>, vector<288x64xf32>, vector<8x64xf32> -> vector<8x64xf32>
    %cst_287 = arith.constant dense<0.000000e+00> : vector<64xf32>
    %209 = vector.multi_reduction <add>, %208, %cst_287 [0] : vector<8x64xf32> to vector<64xf32>
    %210 = vector.shape_cast %209 : vector<64xf32> to vector<1x64xf32>
    %cst_288 = arith.constant 1.250000e-01 : f32
    %211 = vector.broadcast %cst_288 : f32 to vector<1x64xf32>
    %212 = arith.mulf %210, %211 : vector<1x64xf32>
    %213 = arith.mulf %208, %208 : vector<8x64xf32>
    %cst_289 = arith.constant dense<0.000000e+00> : vector<64xf32>
    %214 = vector.multi_reduction <add>, %213, %cst_289 [0] : vector<8x64xf32> to vector<64xf32>
    %215 = vector.shape_cast %214 : vector<64xf32> to vector<1x64xf32>
    %cst_290 = arith.constant 1.250000e-01 : f32
    %216 = vector.broadcast %cst_290 : f32 to vector<1x64xf32>
    %217 = arith.mulf %215, %216 : vector<1x64xf32>
    %218 = arith.mulf %212, %212 : vector<1x64xf32>
    %219 = arith.subf %217, %218 : vector<1x64xf32>
    %cst_291 = arith.constant 0.000000e+00 : f32
    %220 = vector.broadcast %cst_291 : f32 to vector<1x64xf32>
    %221 = arith.maximumf %219, %220 : vector<1x64xf32>
    %c0_292 = arith.constant 0 : index
    %c0_293 = arith.constant 0 : index
    %222 = vector.load %arg12[%c0_292, %c0_293] : memref<1x64xf32, #tpu.memory_space<vmem>>, vector<1x64xf32>
    %cst_294 = arith.constant 9.99999974E-6 : f32
    %223 = vector.broadcast %cst_294 : f32 to vector<1x64xf32>
    %224 = arith.addf %221, %223 : vector<1x64xf32>
    %225 = math.rsqrt %224 : vector<1x64xf32>
    %226 = arith.mulf %222, %225 : vector<1x64xf32>
    %c0_295 = arith.constant 0 : index
    %c0_296 = arith.constant 0 : index
    %227 = vector.load %arg13[%c0_295, %c0_296] : memref<1x64xf32, #tpu.memory_space<vmem>>, vector<1x64xf32>
    %228 = arith.mulf %212, %226 : vector<1x64xf32>
    %229 = arith.subf %227, %228 : vector<1x64xf32>
    %230 = vector.broadcast %226 : vector<1x64xf32> to vector<8x64xf32>
    %231 = arith.mulf %208, %230 : vector<8x64xf32>
    %232 = vector.broadcast %229 : vector<1x64xf32> to vector<8x64xf32>
    %233 = arith.addf %231, %232 : vector<8x64xf32>
    %cst_297 = arith.constant 0.000000e+00 : f32
    %234 = vector.broadcast %cst_297 : f32 to vector<8x64xf32>
    %235 = arith.maximumf %233, %234 : vector<8x64xf32>
    %c0_298 = arith.constant 0 : index
    %c0_299 = arith.constant 0 : index
    %236 = vector.load %arg17[%c0_298, %c0_299] : memref<8x64xf32, #tpu.memory_space<vmem>>, vector<8x64xf32>
    tpu.vector_store %arg17[%c0_298, %c0_299], %235 {strides = array<i32>} : memref<8x64xf32, #tpu.memory_space<vmem>>, vector<8x64xf32>,
    return
  }
  func.func @transform_0(%arg0: i32) -> (i32, i32, i32, i32) {
    %c0_i32 = arith.constant 0 : i32
    %c0_i32_0 = arith.constant 0 : i32
    %c0_i32_1 = arith.constant 0 : i32
    %c0_i32_2 = arith.constant 0 : i32
    %c0_i32_3 = arith.constant 0 : i32
    return %c0_i32, %c0_i32_0, %c0_i32_1, %c0_i32_2 : i32, i32, i32, i32
  }
  func.func @transform_1(%arg0: i32) -> (i32, i32) {
    %c0_i32 = arith.constant 0 : i32
    %c0_i32_0 = arith.constant 0 : i32
    %c0_i32_1 = arith.constant 0 : i32
    return %c0_i32, %c0_i32_0 : i32, i32
  }
  func.func @transform_2(%arg0: i32) -> (i32, i32) {
    %c0_i32 = arith.constant 0 : i32
    %c0_i32_0 = arith.constant 0 : i32
    %c0_i32_1 = arith.constant 0 : i32
    return %c0_i32, %c0_i32_0 : i32, i32
  }
  func.func @transform_3(%arg0: i32) -> (i32, i32) {
    %c0_i32 = arith.constant 0 : i32
    %c0_i32_0 = arith.constant 0 : i32
    %c0_i32_1 = arith.constant 0 : i32
    return %c0_i32, %c0_i32_0 : i32, i32
  }
  func.func @transform_4(%arg0: i32) -> (i32, i32) {
    %c0_i32 = arith.constant 0 : i32
    %c0_i32_0 = arith.constant 0 : i32
    %c0_i32_1 = arith.constant 0 : i32
    return %c0_i32, %c0_i32_0 : i32, i32
  }
  func.func @transform_5(%arg0: i32) -> (i32, i32) {
    %c0_i32 = arith.constant 0 : i32
    %c0_i32_0 = arith.constant 0 : i32
    %c0_i32_1 = arith.constant 0 : i32
    return %c0_i32, %c0_i32_0 : i32, i32
  }
  func.func @transform_6(%arg0: i32) -> (i32, i32) {
    %c0_i32 = arith.constant 0 : i32
    %c0_i32_0 = arith.constant 0 : i32
    %c0_i32_1 = arith.constant 0 : i32
    return %c0_i32, %c0_i32_0 : i32, i32
  }
  func.func @transform_7(%arg0: i32) -> (i32, i32) {
    %c0_i32 = arith.constant 0 : i32
    %c0_i32_0 = arith.constant 0 : i32
    %c0_i32_1 = arith.constant 0 : i32
    return %c0_i32, %c0_i32_0 : i32, i32
  }
  func.func @transform_8(%arg0: i32) -> (i32, i32) {
    %c0_i32 = arith.constant 0 : i32
    %c0_i32_0 = arith.constant 0 : i32
    %c0_i32_1 = arith.constant 0 : i32
    return %c0_i32, %c0_i32_0 : i32, i32
  }
  func.func @transform_9(%arg0: i32) -> (i32, i32) {
    %c0_i32 = arith.constant 0 : i32
    %c0_i32_0 = arith.constant 0 : i32
    %c0_i32_1 = arith.constant 0 : i32
    return %c0_i32, %c0_i32_0 : i32, i32
  }
  func.func @transform_10(%arg0: i32) -> (i32, i32) {
    %c0_i32 = arith.constant 0 : i32
    %c0_i32_0 = arith.constant 0 : i32
    %c0_i32_1 = arith.constant 0 : i32
    return %c0_i32, %c0_i32_0 : i32, i32
  }
  func.func @transform_11(%arg0: i32) -> (i32, i32) {
    %c0_i32 = arith.constant 0 : i32
    %c0_i32_0 = arith.constant 0 : i32
    %c0_i32_1 = arith.constant 0 : i32
    return %c0_i32, %c0_i32_0 : i32, i32
  }
  func.func @transform_12(%arg0: i32) -> (i32, i32) {
    %c0_i32 = arith.constant 0 : i32
    %c0_i32_0 = arith.constant 0 : i32
    %c0_i32_1 = arith.constant 0 : i32
    return %c0_i32, %c0_i32_0 : i32, i32
  }
  func.func @transform_13(%arg0: i32) -> (i32, i32) {
    %c0_i32 = arith.constant 0 : i32
    %c0_i32_0 = arith.constant 0 : i32
    %c0_i32_1 = arith.constant 0 : i32
    return %c0_i32, %c0_i32_0 : i32, i32
  }
  func.func @transform_14(%arg0: i32) -> (i32, i32) {
    %c0_i32 = arith.constant 0 : i32
    %c0_i32_0 = arith.constant 0 : i32
    %c0_i32_1 = arith.constant 0 : i32
    return %c0_i32, %c0_i32_0 : i32, i32
  }
  func.func @transform_15(%arg0: i32) -> (i32, i32) {
    %c0_i32 = arith.constant 0 : i32
    %c0_i32_0 = arith.constant 0 : i32
    %c0_i32_1 = arith.constant 0 : i32
    return %c0_i32, %c0_i32_0 : i32, i32
  }
  func.func @transform_16(%arg0: i32) -> (i32, i32) {
    %c0_i32 = arith.constant 0 : i32
    %c0_i32_0 = arith.constant 0 : i32
    %c0_i32_1 = arith.constant 0 : i32
    return %c0_i32, %c0_i32_0 : i32, i32
  }
}

</mosaic_0001>

<llo_original>
// kernel: tpu_custom_call.1
$region0: #{tpu_custom_call.1}
  #allocation0 [shape = 'u32[]', space=smem, size = 0x4, offset = 0x4, fixed_abs, tag = 'smem constant byte address 0x4 - core index']
  #allocation1 [shape = 'u32[144,128]{1,0:T(1,128)}', space=vmem, size = 0x12000, scoped, tag = 'internal scratch']
  #allocation2 [shape = 'f32[2,18,18,4]{3,2,1,0:T(8,128)}', space=vmem, size = 0x6c000, scoped, tag = 'scratch operand']
  #allocation3 [shape = 'f32[2,10,10,8]{3,2,1,0:T(8,128)}', space=vmem, size = 0x28000, scoped, tag = 'scratch operand']
  #allocation4 [shape = 'f32[2,6,6,16]{3,2,1,0:T(8,128)}', space=vmem, size = 0xc000, scoped, tag = 'scratch operand']
  #allocation5 [shape = 'f32[2,4,4,32]{3,2,1,0:T(4,128)}', space=vmem, size = 0x4000, scoped, tag = 'scratch operand']
  %s0 = inlined_call_operand.vmem [shape: f32[2,16,16,4], index: 0, kind: input, shape index: {}]
  %s1 = inlined_call_operand.vmem [shape: f32[36,8], index: 1, kind: input, shape index: {}]
  %s2 = inlined_call_operand.vmem [shape: f32[1,8], index: 2, kind: input, shape index: {}]
  %s3 = inlined_call_operand.vmem [shape: f32[1,8], index: 3, kind: input, shape index: {}]
  %s4 = inlined_call_operand.vmem [shape: f32[72,16], index: 4, kind: input, shape index: {}]
  %s5 = inlined_call_operand.vmem [shape: f32[1,16], index: 5, kind: input, shape index: {}]
  %s6 = inlined_call_operand.vmem [shape: f32[1,16], index: 6, kind: input, shape index: {}]
  %s7 = inlined_call_operand.vmem [shape: f32[144,32], index: 7, kind: input, shape index: {}]
  %s8 = inlined_call_operand.vmem [shape: f32[1,32], index: 8, kind: input, shape index: {}]
  %s9 = inlined_call_operand.vmem [shape: f32[1,32], index: 9, kind: input, shape index: {}]
  %s10 = inlined_call_operand.vmem [shape: f32[288,64], index: 10, kind: input, shape index: {}]
  %s11 = inlined_call_operand.vmem [shape: f32[1,64], index: 11, kind: input, shape index: {}]
  %s12 = inlined_call_operand.vmem [shape: f32[1,64], index: 12, kind: input, shape index: {}]
  %s13 = inlined_call_operand.vmem [shape: f32[512,8], index: 13, kind: output, shape index: {0}]
  %s14 = inlined_call_operand.vmem [shape: f32[128,16], index: 14, kind: output, shape index: {1}]
  %s15 = inlined_call_operand.hbm [shape: f32[32,32], index: 15, kind: output, shape index: {2}]
  %s16 = inlined_call_operand.hbm [shape: f32[8,64], index: 16, kind: output, shape index: {3}]
  %17 = xla_tuple %s13, %s14, %s15, %s16
  %s18 = sld [smem:[#allocation0]]
  $region86: #{tpu_custom_call.1} parent=0
    _
  %s20 = ssub.s32 1, %s18
  %s21 = scalar_select 0, %s20, %s18
  $region1: #{tpu_custom_call.1} parent=0
    #allocation6 [shape = 'u8[16384]{0}', space=vmem, size = 0x4000, scoped, tag = 'output window, operand 2, single buffered']
    #allocation7 [shape = 's32[1]{0}', space=sflag, size = 0x4, scoped, tag = 'scoped memory for tpu_custom_call.1']
    #allocation8 [shape = 'u8[4096]{0}', space=vmem, size = 0x1000, scoped, tag = 'output window, operand 3, single buffered']
    #allocation9 [shape = 's32[1]{0}', space=sflag, size = 0x4, scoped, tag = 'scoped memory for tpu_custom_call.1']
    %22 = vsyncpa [#allocation7], 0
    %23 = vsyncpa [#allocation9], 0
    // Predicated region
    $region2: #{tpu_custom_call.1} parent=1 // pred_check
      _
    $region3: #{tpu_custom_call.1} parent=1 // pred_check_branch
      %25 = sbr.rel (0) target = $region5
    $region4: #{tpu_custom_call.1} parent=1 // pred_region
      _
    $region5: #{tpu_custom_call.1} parent=1 // pred_fallthru
      _
    // Predicated region
    $region6: #{tpu_custom_call.1} parent=1 // pred_check
      _
    $region7: #{tpu_custom_call.1} parent=1 // pred_check_branch
      %27 = sbr.rel (0) target = $region9
    $region8: #{tpu_custom_call.1} parent=1 // pred_region
      _
    $region9: #{tpu_custom_call.1} parent=1 // pred_fallthru
      _
    // Predicated region
    $region10: #{tpu_custom_call.1} parent=1 // pred_check
      _
    $region11: #{tpu_custom_call.1} parent=1 // pred_check_branch
      %29 = sbr.rel (0) target = $region13
    $region12: #{tpu_custom_call.1} parent=1 // pred_region
      _
    $region13: #{tpu_custom_call.1} parent=1 // pred_fallthru
      _
    // Predicated region
    $region14: #{tpu_custom_call.1} parent=1 // pred_check
      _
    $region15: #{tpu_custom_call.1} parent=1 // pred_check_branch
      %31 = sbr.rel (0) target = $region17
    $region16: #{tpu_custom_call.1} parent=1 // pred_region
      _
    $region17: #{tpu_custom_call.1} parent=1 // pred_fallthru
      _
    // Predicated region
    $region18: #{tpu_custom_call.1} parent=1 // pred_check
      _
    $region19: #{tpu_custom_call.1} parent=1 // pred_check_branch
      %33 = sbr.rel (0) target = $region21
    $region20: #{tpu_custom_call.1} parent=1 // pred_region
      _
    $region21: #{tpu_custom_call.1} parent=1 // pred_fallthru
      _
    // Predicated region
    $region22: #{tpu_custom_call.1} parent=1 // pred_check
      _
    $region23: #{tpu_custom_call.1} parent=1 // pred_check_branch
      %35 = sbr.rel (0) target = $region25
    $region24: #{tpu_custom_call.1} parent=1 // pred_region
      _
    $region25: #{tpu_custom_call.1} parent=1 // pred_fallthru
      _
    // Predicated region
    $region26: #{tpu_custom_call.1} parent=1 // pred_check
      _
    $region27: #{tpu_custom_call.1} parent=1 // pred_check_branch
      %37 = sbr.rel (0) target = $region29
    $region28: #{tpu_custom_call.1} parent=1 // pred_region
      _
    $region29: #{tpu_custom_call.1} parent=1 // pred_fallthru
      _
    // Predicated region
    $region30: #{tpu_custom_call.1} parent=1 // pred_check
      _
    $region31: #{tpu_custom_call.1} parent=1 // pred_check_branch
      %39 = sbr.rel (0) target = $region33
    $region32: #{tpu_custom_call.1} parent=1 // pred_region
      _
    $region33: #{tpu_custom_call.1} parent=1 // pred_fallthru
      _
    // Predicated region
    $region34: #{tpu_custom_call.1} parent=1 // pred_check
      _
    $region35: #{tpu_custom_call.1} parent=1 // pred_check_branch
      %41 = sbr.rel (0) target = $region37
    $region36: #{tpu_custom_call.1} parent=1 // pred_region
      _
    $region37: #{tpu_custom_call.1} parent=1 // pred_fallthru
      _
    // Predicated region
    $region38: #{tpu_custom_call.1} parent=1 // pred_check
      _
    $region39: #{tpu_custom_call.1} parent=1 // pred_check_branch
      %43 = sbr.rel (0) target = $region41
    $region40: #{tpu_custom_call.1} parent=1 // pred_region
      _
    $region41: #{tpu_custom_call.1} parent=1 // pred_fallthru
      _
    // Predicated region
    $region42: #{tpu_custom_call.1} parent=1 // pred_check
      _
    $region43: #{tpu_custom_call.1} parent=1 // pred_check_branch
      %45 = sbr.rel (0) target = $region45
    $region44: #{tpu_custom_call.1} parent=1 // pred_region
      _
    $region45: #{tpu_custom_call.1} parent=1 // pred_fallthru
      _
    // Predicated region
    $region46: #{tpu_custom_call.1} parent=1 // pred_check
      _
    $region47: #{tpu_custom_call.1} parent=1 // pred_check_branch
      %47 = sbr.rel (0) target = $region49
    $region48: #{tpu_custom_call.1} parent=1 // pred_region
      _
    $region49: #{tpu_custom_call.1} parent=1 // pred_fallthru
      _
    // Predicated region
    $region50: #{tpu_custom_call.1} parent=1 // pred_check
      _
    $region51: #{tpu_custom_call.1} parent=1 // pred_check_branch
      %49 = sbr.rel (0) target = $region53
    $region52: #{tpu_custom_call.1} parent=1 // pred_region
      _
    $region53: #{tpu_custom_call.1} parent=1 // pred_fallthru
      _
    %v50 = vld [vmem:[%s0] sm:$0xff]
    %v51 = vld [vmem:[%s0 + $0x8] sm:$0xff]
    %v52 = vld [vmem:[%s0 + $0x10] sm:$0xff]
    %v53 = vld [vmem:[%s0 + $0x18] sm:$0xff]
    %v54 = vld [vmem:[%s0 + $0x20] sm:$0xff]
    %v55 = vld [vmem:[%s0 + $0x28] sm:$0xff]
    %v56 = vld [vmem:[%s0 + $0x30] sm:$0xff]
    %v57 = vld [vmem:[%s0 + $0x38] sm:$0xff]
    %v58 = vld [vmem:[%s0 + $0x40] sm:$0xff]
    %v59 = vld [vmem:[%s0 + $0x48] sm:$0xff]
    %v60 = vld [vmem:[%s0 + $0x50] sm:$0xff]
    %v61 = vld [vmem:[%s0 + $0x58] sm:$0xff]
    %v62 = vld [vmem:[%s0 + $0x60] sm:$0xff]
    %v63 = vld [vmem:[%s0 + $0x68] sm:$0xff]
    %v64 = vld [vmem:[%s0 + $0x70] sm:$0xff]
    %v65 = vld [vmem:[%s0 + $0x78] sm:$0xff]
    %v66 = vld [vmem:[%s0 + $0x80] sm:$0xff]
    %v67 = vld [vmem:[%s0 + $0x88] sm:$0xff]
    %v68 = vld [vmem:[%s0 + $0x90] sm:$0xff]
    %v69 = vld [vmem:[%s0 + $0x98] sm:$0xff]
    %v70 = vld [vmem:[%s0 + $0xa0] sm:$0xff]
    %v71 = vld [vmem:[%s0 + $0xa8] sm:$0xff]
    %v72 = vld [vmem:[%s0 + $0xb0] sm:$0xff]
    %v73 = vld [vmem:[%s0 + $0xb8] sm:$0xff]
    %v74 = vld [vmem:[%s0 + $0xc0] sm:$0xff]
    %v75 = vld [vmem:[%s0 + $0xc8] sm:$0xff]
    %v76 = vld [vmem:[%s0 + $0xd0] sm:$0xff]
    %v77 = vld [vmem:[%s0 + $0xd8] sm:$0xff]
    %v78 = vld [vmem:[%s0 + $0xe0] sm:$0xff]
    %v79 = vld [vmem:[%s0 + $0xe8] sm:$0xff]
    %v80 = vld [vmem:[%s0 + $0xf0] sm:$0xff]
    %v81 = vld [vmem:[%s0 + $0xf8] sm:$0xff]
    %v82 = vld [vmem:[%s0 + $0x100] sm:$0xff]
    %v83 = vld [vmem:[%s0 + $0x108] sm:$0xff]
    %v84 = vld [vmem:[%s0 + $0x110] sm:$0xff]
    %v85 = vld [vmem:[%s0 + $0x118] sm:$0xff]
    %v86 = vld [vmem:[%s0 + $0x120] sm:$0xff]
    %v87 = vld [vmem:[%s0 + $0x128] sm:$0xff]
    %v88 = vld [vmem:[%s0 + $0x130] sm:$0xff]
    %v89 = vld [vmem:[%s0 + $0x138] sm:$0xff]
    %v90 = vld [vmem:[%s0 + $0x140] sm:$0xff]
    %v91 = vld [vmem:[%s0 + $0x148] sm:$0xff]
    %v92 = vld [vmem:[%s0 + $0x150] sm:$0xff]
    %v93 = vld [vmem:[%s0 + $0x158] sm:$0xff]
    %v94 = vld [vmem:[%s0 + $0x160] sm:$0xff]
    %v95 = vld [vmem:[%s0 + $0x168] sm:$0xff]
    %v96 = vld [vmem:[%s0 + $0x170] sm:$0xff]
    %v97 = vld [vmem:[%s0 + $0x178] sm:$0xff]
    %v98 = vld [vmem:[%s0 + $0x180] sm:$0xff]
    %v99 = vld [vmem:[%s0 + $0x188] sm:$0xff]
    %v100 = vld [vmem:[%s0 + $0x190] sm:$0xff]
    %v101 = vld [vmem:[%s0 + $0x198] sm:$0xff]
    %v102 = vld [vmem:[%s0 + $0x1a0] sm:$0xff]
    %v103 = vld [vmem:[%s0 + $0x1a8] sm:$0xff]
    %v104 = vld [vmem:[%s0 + $0x1b0] sm:$0xff]
    %v105 = vld [vmem:[%s0 + $0x1b8] sm:$0xff]
    %v106 = vld [vmem:[%s0 + $0x1c0] sm:$0xff]
    %v107 = vld [vmem:[%s0 + $0x1c8] sm:$0xff]
    %v108 = vld [vmem:[%s0 + $0x1d0] sm:$0xff]
    %v109 = vld [vmem:[%s0 + $0x1d8] sm:$0xff]
    %v110 = vld [vmem:[%s0 + $0x1e0] sm:$0xff]
    %v111 = vld [vmem:[%s0 + $0x1e8] sm:$0xff]
    %v112 = vld [vmem:[%s0 + $0x1f0] sm:$0xff]
    %v113 = vld [vmem:[%s0 + $0x1f8] sm:$0xff]
    %vm114 = vcmask 31744
    %115 = vst.msk [vmem:[#allocation2] sm:$0xff] %vm114, 0.0
    %116 = vst.msk [vmem:[#allocation2 + $0x8] sm:$0xff] %vm114, 0.0
    %vm117 = vcmask 25600
    %118 = vst.msk [vmem:[#allocation2 + $0x10] sm:$0x3] %vm117, 0.0
    %119 = vst.msk [vmem:[#allocation2 + $0x1b0] sm:$0xff] %vm114, 0.0
    %120 = vst.msk [vmem:[#allocation2 + $0x1b8] sm:$0xff] %vm114, 0.0
    %121 = vst.msk [vmem:[#allocation2 + $0x1c0] sm:$0x3] %vm117, 0.0
    %s122 = scalar_lea.vmem [#allocation2], 408
    %123 = vst.msk [vmem:[%s122] sm:$0xff] %vm114, 0.0
    %124 = vst.msk [vmem:[%s122 + $0x8] sm:$0xff] %vm114, 0.0
    %125 = vst.msk [vmem:[%s122 + $0x10] sm:$0x3] %vm117, 0.0
    %126 = vst.msk [vmem:[%s122 + $0x1b0] sm:$0xff] %vm114, 0.0
    %127 = vst.msk [vmem:[%s122 + $0x1b8] sm:$0xff] %vm114, 0.0
    %128 = vst.msk [vmem:[%s122 + $0x1c0] sm:$0x3] %vm117, 0.0
    %s129 = scalar_lea.vmem [#allocation2], 24
    %vm130 = vcmask 24576
    %131 = vst.msk [vmem:[%s129] sm:$0x1] %vm130, 0.0
    %132 = vst.msk [vmem:[%s129 + $0x18] sm:$0x1] %vm130, 0.0
    %133 = vst.msk [vmem:[%s129 + $0x30] sm:$0x1] %vm130, 0.0
    %134 = vst.msk [vmem:[%s129 + $0x48] sm:$0x1] %vm130, 0.0
    %135 = vst.msk [vmem:[%s129 + $0x60] sm:$0x1] %vm130, 0.0
    %136 = vst.msk [vmem:[%s129 + $0x78] sm:$0x1] %vm130, 0.0
    %137 = vst.msk [vmem:[%s129 + $0x90] sm:$0x1] %vm130, 0.0
    %138 = vst.msk [vmem:[%s129 + $0xa8] sm:$0x1] %vm130, 0.0
    %139 = vst.msk [vmem:[%s129 + $0xc0] sm:$0x1] %vm130, 0.0
    %140 = vst.msk [vmem:[%s129 + $0xd8] sm:$0x1] %vm130, 0.0
    %141 = vst.msk [vmem:[%s129 + $0xf0] sm:$0x1] %vm130, 0.0
    %142 = vst.msk [vmem:[%s129 + $0x108] sm:$0x1] %vm130, 0.0
    %143 = vst.msk [vmem:[%s129 + $0x120] sm:$0x1] %vm130, 0.0
    %144 = vst.msk [vmem:[%s129 + $0x138] sm:$0x1] %vm130, 0.0
    %145 = vst.msk [vmem:[%s129 + $0x150] sm:$0x1] %vm130, 0.0
    %146 = vst.msk [vmem:[%s129 + $0x168] sm:$0x1] %vm130, 0.0
    %147 = vst.msk [vmem:[%s129 + $0x1b0] sm:$0x1] %vm130, 0.0
    %148 = vst.msk [vmem:[%s129 + $0x1c8] sm:$0x1] %vm130, 0.0
    %149 = vst.msk [vmem:[%s129 + $0x1e0] sm:$0x1] %vm130, 0.0
    %150 = vst.msk [vmem:[%s129 + $0x1f8] sm:$0x1] %vm130, 0.0
    %151 = vst.msk [vmem:[%s129 + $0x210] sm:$0x1] %vm130, 0.0
    %152 = vst.msk [vmem:[%s129 + $0x228] sm:$0x1] %vm130, 0.0
    %153 = vst.msk [vmem:[%s129 + $0x240] sm:$0x1] %vm130, 0.0
    %154 = vst.msk [vmem:[%s129 + $0x258] sm:$0x1] %vm130, 0.0
    %155 = vst.msk [vmem:[%s129 + $0x270] sm:$0x1] %vm130, 0.0
    %156 = vst.msk [vmem:[%s129 + $0x288] sm:$0x1] %vm130, 0.0
    %157 = vst.msk [vmem:[%s129 + $0x2a0] sm:$0x1] %vm130, 0.0
    %158 = vst.msk [vmem:[%s129 + $0x2b8] sm:$0x1] %vm130, 0.0
    %159 = vst.msk [vmem:[%s129 + $0x2d0] sm:$0x1] %vm130, 0.0
    %160 = vst.msk [vmem:[%s129 + $0x2e8] sm:$0x1] %vm130, 0.0
    %161 = vst.msk [vmem:[%s129 + $0x300] sm:$0x1] %vm130, 0.0
    %162 = vst.msk [vmem:[%s129 + $0x318] sm:$0x1] %vm130, 0.0
    %163 = vst.msk [vmem:[%s129 + $0x11] sm:$0x1] %vm130, 0.0
    %164 = vst.msk [vmem:[%s129 + $0x29] sm:$0x1] %vm130, 0.0
    %165 = vst.msk [vmem:[%s129 + $0x41] sm:$0x1] %vm130, 0.0
    %166 = vst.msk [vmem:[%s129 + $0x59] sm:$0x1] %vm130, 0.0
    %167 = vst.msk [vmem:[%s129 + $0x71] sm:$0x1] %vm130, 0.0
    %168 = vst.msk [vmem:[%s129 + $0x89] sm:$0x1] %vm130, 0.0
    %169 = vst.msk [vmem:[%s129 + $0xa1] sm:$0x1] %vm130, 0.0
    %170 = vst.msk [vmem:[%s129 + $0xb9] sm:$0x1] %vm130, 0.0
    %171 = vst.msk [vmem:[%s129 + $0xd1] sm:$0x1] %vm130, 0.0
    %172 = vst.msk [vmem:[%s129 + $0xe9] sm:$0x1] %vm130, 0.0
    %173 = vst.msk [vmem:[%s129 + $0x101] sm:$0x1] %vm130, 0.0
    %174 = vst.msk [vmem:[%s129 + $0x119] sm:$0x1] %vm130, 0.0
    %175 = vst.msk [vmem:[%s129 + $0x131] sm:$0x1] %vm130, 0.0
    %176 = vst.msk [vmem:[%s129 + $0x149] sm:$0x1] %vm130, 0.0
    %177 = vst.msk [vmem:[%s129 + $0x161] sm:$0x1] %vm130, 0.0
    %178 = vst.msk [vmem:[%s129 + $0x179] sm:$0x1] %vm130, 0.0
    %179 = vst.msk [vmem:[%s129 + $0x1c1] sm:$0x1] %vm130, 0.0
    %180 = vst.msk [vmem:[%s129 + $0x1d9] sm:$0x1] %vm130, 0.0
    %181 = vst.msk [vmem:[%s129 + $0x1f1] sm:$0x1] %vm130, 0.0
    %182 = vst.msk [vmem:[%s129 + $0x209] sm:$0x1] %vm130, 0.0
    %183 = vst.msk [vmem:[%s129 + $0x221] sm:$0x1] %vm130, 0.0
    %184 = vst.msk [vmem:[%s129 + $0x239] sm:$0x1] %vm130, 0.0
    %185 = vst.msk [vmem:[%s129 + $0x251] sm:$0x1] %vm130, 0.0
    %186 = vst.msk [vmem:[%s129 + $0x269] sm:$0x1] %vm130, 0.0
    %187 = vst.msk [vmem:[%s129 + $0x281] sm:$0x1] %vm130, 0.0
    %188 = vst.msk [vmem:[%s129 + $0x299] sm:$0x1] %vm130, 0.0
    %189 = vst.msk [vmem:[%s129 + $0x2b1] sm:$0x1] %vm130, 0.0
    %190 = vst.msk [vmem:[%s129 + $0x2c9] sm:$0x1] %vm130, 0.0
    %191 = vst.msk [vmem:[%s129 + $0x2e1] sm:$0x1] %vm130, 0.0
    %192 = vst.msk [vmem:[%s129 + $0x2f9] sm:$0x1] %vm130, 0.0
    %193 = vst.msk [vmem:[%s129 + $0x311] sm:$0x1] %vm130, 0.0
    %194 = vst.msk [vmem:[%s129 + $0x329] sm:$0x1] %vm130, 0.0
    %195 = vst.msk [vmem:[%s129 + $0x1] sm:$0xff] %vm114, %v50
    %196 = vst.msk [vmem:[%s129 + $0x9] sm:$0xff] %vm114, %v51
    %197 = vst.msk [vmem:[%s129 + $0x19] sm:$0xff] %vm114, %v52
    %198 = vst.msk [vmem:[%s129 + $0x21] sm:$0xff] %vm114, %v53
    %199 = vst.msk [vmem:[%s129 + $0x31] sm:$0xff] %vm114, %v54
    %200 = vst.msk [vmem:[%s129 + $0x39] sm:$0xff] %vm114, %v55
    %201 = vst.msk [vmem:[%s129 + $0x49] sm:$0xff] %vm114, %v56
    %202 = vst.msk [vmem:[%s129 + $0x51] sm:$0xff] %vm114, %v57
    %203 = vst.msk [vmem:[%s129 + $0x61] sm:$0xff] %vm114, %v58
    %204 = vst.msk [vmem:[%s129 + $0x69] sm:$0xff] %vm114, %v59
    %205 = vst.msk [vmem:[%s129 + $0x79] sm:$0xff] %vm114, %v60
    %206 = vst.msk [vmem:[%s129 + $0x81] sm:$0xff] %vm114, %v61
    %207 = vst.msk [vmem:[%s129 + $0x91] sm:$0xff] %vm114, %v62
    %208 = vst.msk [vmem:[%s129 + $0x99] sm:$0xff] %vm114, %v63
    %209 = vst.msk [vmem:[%s129 + $0xa9] sm:$0xff] %vm114, %v64
    %210 = vst.msk [vmem:[%s129 + $0xb1] sm:$0xff] %vm114, %v65
    %211 = vst.msk [vmem:[%s129 + $0xc1] sm:$0xff] %vm114, %v66
    %212 = vst.msk [vmem:[%s129 + $0xc9] sm:$0xff] %vm114, %v67
    %213 = vst.msk [vmem:[%s129 + $0xd9] sm:$0xff] %vm114, %v68
    %214 = vst.msk [vmem:[%s129 + $0xe1] sm:$0xff] %vm114, %v69
    %215 = vst.msk [vmem:[%s129 + $0xf1] sm:$0xff] %vm114, %v70
    %216 = vst.msk [vmem:[%s129 + $0xf9] sm:$0xff] %vm114, %v71
    %217 = vst.msk [vmem:[%s129 + $0x109] sm:$0xff] %vm114, %v72
    %218 = vst.msk [vmem:[%s129 + $0x111] sm:$0xff] %vm114, %v73
    %219 = vst.msk [vmem:[%s129 + $0x121] sm:$0xff] %vm114, %v74
    %220 = vst.msk [vmem:[%s129 + $0x129] sm:$0xff] %vm114, %v75
    %221 = vst.msk [vmem:[%s129 + $0x139] sm:$0xff] %vm114, %v76
    %222 = vst.msk [vmem:[%s129 + $0x141] sm:$0xff] %vm114, %v77
    %223 = vst.msk [vmem:[%s129 + $0x151] sm:$0xff] %vm114, %v78
    %224 = vst.msk [vmem:[%s129 + $0x159] sm:$0xff] %vm114, %v79
    %225 = vst.msk [vmem:[%s129 + $0x169] sm:$0xff] %vm114, %v80
    %226 = vst.msk [vmem:[%s129 + $0x171] sm:$0xff] %vm114, %v81
    %227 = vst.msk [vmem:[%s129 + $0x1b1] sm:$0xff] %vm114, %v82
    %228 = vst.msk [vmem:[%s129 + $0x1b9] sm:$0xff] %vm114, %v83
    %229 = vst.msk [vmem:[%s129 + $0x1c9] sm:$0xff] %vm114, %v84
    %230 = vst.msk [vmem:[%s129 + $0x1d1] sm:$0xff] %vm114, %v85
    %231 = vst.msk [vmem:[%s129 + $0x1e1] sm:$0xff] %vm114, %v86
    %232 = vst.msk [vmem:[%s129 + $0x1e9] sm:$0xff] %vm114, %v87
    %233 = vst.msk [vmem:[%s129 + $0x1f9] sm:$0xff] %vm114, %v88
    %234 = vst.msk [vmem:[%s129 + $0x201] sm:$0xff] %vm114, %v89
    %235 = vst.msk [vmem:[%s129 + $0x211] sm:$0xff] %vm114, %v90
    %236 = vst.msk [vmem:[%s129 + $0x219] sm:$0xff] %vm114, %v91
    %237 = vst.msk [vmem:[%s129 + $0x229] sm:$0xff] %vm114, %v92
    %238 = vst.msk [vmem:[%s129 + $0x231] sm:$0xff] %vm114, %v93
    %239 = vst.msk [vmem:[%s129 + $0x241] sm:$0xff] %vm114, %v94
    %240 = vst.msk [vmem:[%s129 + $0x249] sm:$0xff] %vm114, %v95
    %241 = vst.msk [vmem:[%s129 + $0x259] sm:$0xff] %vm114, %v96
    %242 = vst.msk [vmem:[%s129 + $0x261] sm:$0xff] %vm114, %v97
    %243 = vst.msk [vmem:[%s129 + $0x271] sm:$0xff] %vm114, %v98
    %244 = vst.msk [vmem:[%s129 + $0x279] sm:$0xff] %vm114, %v99
    %245 = vst.msk [vmem:[%s129 + $0x289] sm:$0xff] %vm114, %v100
    %246 = vst.msk [vmem:[%s129 + $0x291] sm:$0xff] %vm114, %v101
    %247 = vst.msk [vmem:[%s129 + $0x2a1] sm:$0xff] %vm114, %v102
    %248 = vst.msk [vmem:[%s129 + $0x2a9] sm:$0xff] %vm114, %v103
    %249 = vst.msk [vmem:[%s129 + $0x2b9] sm:$0xff] %vm114, %v104
    %250 = vst.msk [vmem:[%s129 + $0x2c1] sm:$0xff] %vm114, %v105
    %251 = vst.msk [vmem:[%s129 + $0x2d1] sm:$0xff] %vm114, %v106
    %252 = vst.msk [vmem:[%s129 + $0x2d9] sm:$0xff] %vm114, %v107
    %253 = vst.msk [vmem:[%s129 + $0x2e9] sm:$0xff] %vm114, %v108
    %254 = vst.msk [vmem:[%s129 + $0x2f1] sm:$0xff] %vm114, %v109
    %255 = vst.msk [vmem:[%s129 + $0x301] sm:$0xff] %vm114, %v110
    %256 = vst.msk [vmem:[%s129 + $0x309] sm:$0xff] %vm114, %v111
    %257 = vst.msk [vmem:[%s129 + $0x319] sm:$0xff] %vm114, %v112
    %258 = vst.msk [vmem:[%s129 + $0x321] sm:$0xff] %vm114, %v113
    %v259 = vld [vmem:[#allocation2] sm:$0xff]
    %v260 = vld [vmem:[#allocation2 + $0x8] sm:$0xff]
    %v261 = vld [vmem:[#allocation2 + $0x18] sm:$0xff]
    %v262 = vld [vmem:[#allocation2 + $0x20] sm:$0xff]
    %v263 = vld [vmem:[#allocation2 + $0x30] sm:$0xff]
    %v264 = vld [vmem:[#allocation2 + $0x38] sm:$0xff]
    %v265 = vld [vmem:[#allocation2 + $0x48] sm:$0xff]
    %v266 = vld [vmem:[#allocation2 + $0x50] sm:$0xff]
    %v267 = vld [vmem:[#allocation2 + $0x60] sm:$0xff]
    %v268 = vld [vmem:[#allocation2 + $0x68] sm:$0xff]
    %v269 = vld [vmem:[#allocation2 + $0x78] sm:$0xff]
    %v270 = vld [vmem:[#allocation2 + $0x80] sm:$0xff]
    %v271 = vld [vmem:[#allocation2 + $0x90] sm:$0xff]
    %v272 = vld [vmem:[#allocation2 + $0x98] sm:$0xff]
    %v273 = vld [vmem:[#allocation2 + $0xa8] sm:$0xff]
    %v274 = vld [vmem:[#allocation2 + $0xb0] sm:$0xff]
    %v275 = vld [vmem:[#allocation2 + $0xc0] sm:$0xff]
    %v276 = vld [vmem:[#allocation2 + $0xc8] sm:$0xff]
    %v277 = vld [vmem:[#allocation2 + $0xd8] sm:$0xff]
    %v278 = vld [vmem:[#allocation2 + $0xe0] sm:$0xff]
    %v279 = vld [vmem:[#allocation2 + $0xf0] sm:$0xff]
    %v280 = vld [vmem:[#allocation2 + $0xf8] sm:$0xff]
    %v281 = vld [vmem:[#allocation2 + $0x108] sm:$0xff]
    %v282 = vld [vmem:[#allocation2 + $0x110] sm:$0xff]
    %v283 = vld [vmem:[#allocation2 + $0x120] sm:$0xff]
    %v284 = vld [vmem:[#allocation2 + $0x128] sm:$0xff]
    %v285 = vld [vmem:[#allocation2 + $0x138] sm:$0xff]
    %v286 = vld [vmem:[#allocation2 + $0x140] sm:$0xff]
    %v287 = vld [vmem:[#allocation2 + $0x150] sm:$0xff]
    %v288 = vld [vmem:[#allocation2 + $0x158] sm:$0xff]
    %v289 = vld [vmem:[#allocation2 + $0x168] sm:$0xff]
    %v290 = vld [vmem:[#allocation2 + $0x170] sm:$0xff]
    %v291 = vld [vmem:[#allocation2 + $0x1b0] sm:$0xff]
    %v292 = vld [vmem:[#allocation2 + $0x1b8] sm:$0xff]
    %v293 = vld [vmem:[#allocation2 + $0x1c8] sm:$0xff]
    %v294 = vld [vmem:[#allocation2 + $0x1d0] sm:$0xff]
    %v295 = vld [vmem:[#allocation2 + $0x1e0] sm:$0xff]
    %v296 = vld [vmem:[#allocation2 + $0x1e8] sm:$0xff]
    %v297 = vld [vmem:[#allocation2 + $0x1f8] sm:$0xff]
    %v298 = vld [vmem:[#allocation2 + $0x200] sm:$0xff]
    %v299 = vld [vmem:[#allocation2 + $0x210] sm:$0xff]
    %v300 = vld [vmem:[#allocation2 + $0x218] sm:$0xff]
    %v301 = vld [vmem:[#allocation2 + $0x228] sm:$0xff]
    %v302 = vld [vmem:[#allocation2 + $0x230] sm:$0xff]
    %v303 = vld [vmem:[#allocation2 + $0x240] sm:$0xff]
    %v304 = vld [vmem:[#allocation2 + $0x248] sm:$0xff]
    %v305 = vld [vmem:[#allocation2 + $0x258] sm:$0xff]
    %v306 = vld [vmem:[#allocation2 + $0x260] sm:$0xff]
    %v307 = vld [vmem:[#allocation2 + $0x270] sm:$0xff]
    %v308 = vld [vmem:[#allocation2 + $0x278] sm:$0xff]
    %v309 = vld [vmem:[#allocation2 + $0x288] sm:$0xff]
    %v310 = vld [vmem:[#allocation2 + $0x290] sm:$0xff]
    %v311 = vld [vmem:[#allocation2 + $0x2a0] sm:$0xff]
    %v312 = vld [vmem:[#allocation2 + $0x2a8] sm:$0xff]
    %v313 = vld [vmem:[#allocation2 + $0x2b8] sm:$0xff]
    %v314 = vld [vmem:[#allocation2 + $0x2c0] sm:$0xff]
    %v315 = vld [vmem:[#allocation2 + $0x2d0] sm:$0xff]
    %v316 = vld [vmem:[#allocation2 + $0x2d8] sm:$0xff]
    %v317 = vld [vmem:[#allocation2 + $0x2e8] sm:$0xff]
    %v318 = vld [vmem:[#allocation2 + $0x2f0] sm:$0xff]
    %v319 = vld [vmem:[#allocation2 + $0x300] sm:$0xff]
    %v320 = vld [vmem:[#allocation2 + $0x308] sm:$0xff]
    %v321 = vld [vmem:[#allocation2 + $0x318] sm:$0xff]
    %v322 = vld [vmem:[#allocation2 + $0x320] sm:$0xff]
    %v323 = vld [vmem:[#allocation2 + $0x1] sm:$0xff]
    %v324 = vld [vmem:[#allocation2 + $0x9] sm:$0xff]
    %v325 = vld [vmem:[#allocation2 + $0x19] sm:$0xff]
    %v326 = vld [vmem:[#allocation2 + $0x21] sm:$0xff]
    %v327 = vld [vmem:[#allocation2 + $0x31] sm:$0xff]
    %v328 = vld [vmem:[#allocation2 + $0x39] sm:$0xff]
    %v329 = vld [vmem:[#allocation2 + $0x49] sm:$0xff]
    %v330 = vld [vmem:[#allocation2 + $0x51] sm:$0xff]
    %v331 = vld [vmem:[#allocation2 + $0x61] sm:$0xff]
    %v332 = vld [vmem:[#allocation2 + $0x69] sm:$0xff]
    %v333 = vld [vmem:[#allocation2 + $0x79] sm:$0xff]
    %v334 = vld [vmem:[#allocation2 + $0x81] sm:$0xff]
    %v335 = vld [vmem:[#allocation2 + $0x91] sm:$0xff]
    %v336 = vld [vmem:[#allocation2 + $0x99] sm:$0xff]
    %v337 = vld [vmem:[#allocation2 + $0xa9] sm:$0xff]
    %v338 = vld [vmem:[#allocation2 + $0xb1] sm:$0xff]
    %v339 = vld [vmem:[#allocation2 + $0xc1] sm:$0xff]
    %v340 = vld [vmem:[#allocation2 + $0xc9] sm:$0xff]
    %v341 = vld [vmem:[#allocation2 + $0xd9] sm:$0xff]
    %v342 = vld [vmem:[#allocation2 + $0xe1] sm:$0xff]
    %v343 = vld [vmem:[#allocation2 + $0xf1] sm:$0xff]
    %v344 = vld [vmem:[#allocation2 + $0xf9] sm:$0xff]
    %v345 = vld [vmem:[#allocation2 + $0x109] sm:$0xff]
    %v346 = vld [vmem:[#allocation2 + $0x111] sm:$0xff]
    %v347 = vld [vmem:[#allocation2 + $0x121] sm:$0xff]
    %v348 = vld [vmem:[#allocation2 + $0x129] sm:$0xff]
    %v349 = vld [vmem:[#allocation2 + $0x139] sm:$0xff]
    %v350 = vld [vmem:[#allocation2 + $0x141] sm:$0xff]
    %v351 = vld [vmem:[#allocation2 + $0x151] sm:$0xff]
    %v352 = vld [vmem:[#allocation2 + $0x159] sm:$0xff]
    %v353 = vld [vmem:[#allocation2 + $0x169] sm:$0xff]
    %v354 = vld [vmem:[#allocation2 + $0x171] sm:$0xff]
    %v355 = vld [vmem:[#allocation2 + $0x1b1] sm:$0xff]
    %v356 = vld [vmem:[#allocation2 + $0x1b9] sm:$0xff]
    %v357 = vld [vmem:[#allocation2 + $0x1c9] sm:$0xff]
    %v358 = vld [vmem:[#allocation2 + $0x1d1] sm:$0xff]
    %v359 = vld [vmem:[#allocation2 + $0x1e1] sm:$0xff]
    %v360 = vld [vmem:[#allocation2 + $0x1e9] sm:$0xff]
    %v361 = vld [vmem:[#allocation2 + $0x1f9] sm:$0xff]
    %v362 = vld [vmem:[#allocation2 + $0x201] sm:$0xff]
    %v363 = vld [vmem:[#allocation2 + $0x211] sm:$0xff]
    %v364 = vld [vmem:[#allocation2 + $0x219] sm:$0xff]
    %v365 = vld [vmem:[#allocation2 + $0x229] sm:$0xff]
    %v366 = vld [vmem:[#allocation2 + $0x231] sm:$0xff]
    %v367 = vld [vmem:[#allocation2 + $0x241] sm:$0xff]
    %v368 = vld [vmem:[#allocation2 + $0x249] sm:$0xff]
    %v369 = vld [vmem:[#allocation2 + $0x259] sm:$0xff]
    %v370 = vld [vmem:[#allocation2 + $0x261] sm:$0xff]
    %v371 = vld [vmem:[#allocation2 + $0x271] sm:$0xff]
    %v372 = vld [vmem:[#allocation2 + $0x279] sm:$0xff]
    %v373 = vld [vmem:[#allocation2 + $0x289] sm:$0xff]
    %v374 = vld [vmem:[#allocation2 + $0x291] sm:$0xff]
    %v375 = vld [vmem:[#allocation2 + $0x2a1] sm:$0xff]
    %v376 = vld [vmem:[#allocation2 + $0x2a9] sm:$0xff]
    %v377 = vld [vmem:[#allocation2 + $0x2b9] sm:$0xff]
    %v378 = vld [vmem:[#allocation2 + $0x2c1] sm:$0xff]
    %v379 = vld [vmem:[#allocation2 + $0x2d1] sm:$0xff]
    %v380 = vld [vmem:[#allocation2 + $0x2d9] sm:$0xff]
    %v381 = vld [vmem:[#allocation2 + $0x2e9] sm:$0xff]
    %v382 = vld [vmem:[#allocation2 + $0x2f1] sm:$0xff]
    %v383 = vld [vmem:[#allocation2 + $0x301] sm:$0xff]
    %v384 = vld [vmem:[#allocation2 + $0x309] sm:$0xff]
    %v385 = vld [vmem:[#allocation2 + $0x319] sm:$0xff]
    %v386 = vld [vmem:[#allocation2 + $0x321] sm:$0xff]
    %v387 = vld [vmem:[#allocation2 + $0x2] sm:$0xff]
    %v388 = vld [vmem:[#allocation2 + $0xa] sm:$0xff]
    %v389 = vld [vmem:[#allocation2 + $0x1a] sm:$0xff]
    %v390 = vld [vmem:[#allocation2 + $0x22] sm:$0xff]
    %v391 = vld [vmem:[#allocation2 + $0x32] sm:$0xff]
    %v392 = vld [vmem:[#allocation2 + $0x3a] sm:$0xff]
    %v393 = vld [vmem:[#allocation2 + $0x4a] sm:$0xff]
    %v394 = vld [vmem:[#allocation2 + $0x52] sm:$0xff]
    %v395 = vld [vmem:[#allocation2 + $0x62] sm:$0xff]
    %v396 = vld [vmem:[#allocation2 + $0x6a] sm:$0xff]
    %v397 = vld [vmem:[#allocation2 + $0x7a] sm:$0xff]
    %v398 = vld [vmem:[#allocation2 + $0x82] sm:$0xff]
    %v399 = vld [vmem:[#allocation2 + $0x92] sm:$0xff]
    %v400 = vld [vmem:[#allocation2 + $0x9a] sm:$0xff]
    %v401 = vld [vmem:[#allocation2 + $0xaa] sm:$0xff]
    %v402 = vld [vmem:[#allocation2 + $0xb2] sm:$0xff]
    %v403 = vld [vmem:[#allocation2 + $0xc2] sm:$0xff]
    %v404 = vld [vmem:[#allocation2 + $0xca] sm:$0xff]
    %v405 = vld [vmem:[#allocation2 + $0xda] sm:$0xff]
    %v406 = vld [vmem:[#allocation2 + $0xe2] sm:$0xff]
    %v407 = vld [vmem:[#allocation2 + $0xf2] sm:$0xff]
    %v408 = vld [vmem:[#allocation2 + $0xfa] sm:$0xff]
    %v409 = vld [vmem:[#allocation2 + $0x10a] sm:$0xff]
    %v410 = vld [vmem:[#allocation2 + $0x112] sm:$0xff]
    %v411 = vld [vmem:[#allocation2 + $0x122] sm:$0xff]
    %v412 = vld [vmem:[#allocation2 + $0x12a] sm:$0xff]
    %v413 = vld [vmem:[#allocation2 + $0x13a] sm:$0xff]
    %v414 = vld [vmem:[#allocation2 + $0x142] sm:$0xff]
    %v415 = vld [vmem:[#allocation2 + $0x152] sm:$0xff]
    %v416 = vld [vmem:[#allocation2 + $0x15a] sm:$0xff]
    %v417 = vld [vmem:[#allocation2 + $0x16a] sm:$0xff]
    %v418 = vld [vmem:[#allocation2 + $0x172] sm:$0xff]
    %v419 = vld [vmem:[#allocation2 + $0x1b2] sm:$0xff]
    %v420 = vld [vmem:[#allocation2 + $0x1ba] sm:$0xff]
    %v421 = vld [vmem:[#allocation2 + $0x1ca] sm:$0xff]
    %v422 = vld [vmem:[#allocation2 + $0x1d2] sm:$0xff]
    %v423 = vld [vmem:[#allocation2 + $0x1e2] sm:$0xff]
    %v424 = vld [vmem:[#allocation2 + $0x1ea] sm:$0xff]
    %v425 = vld [vmem:[#allocation2 + $0x1fa] sm:$0xff]
    %v426 = vld [vmem:[#allocation2 + $0x202] sm:$0xff]
    %v427 = vld [vmem:[#allocation2 + $0x212] sm:$0xff]
    %v428 = vld [vmem:[#allocation2 + $0x21a] sm:$0xff]
    %v429 = vld [vmem:[#allocation2 + $0x22a] sm:$0xff]
    %v430 = vld [vmem:[#allocation2 + $0x232] sm:$0xff]
    %v431 = vld [vmem:[#allocation2 + $0x242] sm:$0xff]
    %v432 = vld [vmem:[#allocation2 + $0x24a] sm:$0xff]
    %v433 = vld [vmem:[#allocation2 + $0x25a] sm:$0xff]
    %v434 = vld [vmem:[#allocation2 + $0x262] sm:$0xff]
    %v435 = vld [vmem:[#allocation2 + $0x272] sm:$0xff]
    %v436 = vld [vmem:[#allocation2 + $0x27a] sm:$0xff]
    %v437 = vld [vmem:[#allocation2 + $0x28a] sm:$0xff]
    %v438 = vld [vmem:[#allocation2 + $0x292] sm:$0xff]
    %v439 = vld [vmem:[#allocation2 + $0x2a2] sm:$0xff]
    %v440 = vld [vmem:[#allocation2 + $0x2aa] sm:$0xff]
    %v441 = vld [vmem:[#allocation2 + $0x2ba] sm:$0xff]
    %v442 = vld [vmem:[#allocation2 + $0x2c2] sm:$0xff]
    %v443 = vld [vmem:[#allocation2 + $0x2d2] sm:$0xff]
    %v444 = vld [vmem:[#allocation2 + $0x2da] sm:$0xff]
    %v445 = vld [vmem:[#allocation2 + $0x2ea] sm:$0xff]
    %v446 = vld [vmem:[#allocation2 + $0x2f2] sm:$0xff]
    %v447 = vld [vmem:[#allocation2 + $0x302] sm:$0xff]
    %v448 = vld [vmem:[#allocation2 + $0x30a] sm:$0xff]
    %v449 = vld [vmem:[#allocation2 + $0x31a] sm:$0xff]
    %v450 = vld [vmem:[#allocation2 + $0x322] sm:$0xff]
    %v451 = vld [vmem:[%s129] sm:$0xff]
    %v452 = vld [vmem:[%s129 + $0x8] sm:$0xff]
    %v453 = vld [vmem:[%s129 + $0x18] sm:$0xff]
    %v454 = vld [vmem:[%s129 + $0x20] sm:$0xff]
    %v455 = vld [vmem:[%s129 + $0x30] sm:$0xff]
    %v456 = vld [vmem:[%s129 + $0x38] sm:$0xff]
    %v457 = vld [vmem:[%s129 + $0x48] sm:$0xff]
    %v458 = vld [vmem:[%s129 + $0x50] sm:$0xff]
    %v459 = vld [vmem:[%s129 + $0x60] sm:$0xff]
    %v460 = vld [vmem:[%s129 + $0x68] sm:$0xff]
    %v461 = vld [vmem:[%s129 + $0x78] sm:$0xff]
    %v462 = vld [vmem:[%s129 + $0x80] sm:$0xff]
    %v463 = vld [vmem:[%s129 + $0x90] sm:$0xff]
    %v464 = vld [vmem:[%s129 + $0x98] sm:$0xff]
    %v465 = vld [vmem:[%s129 + $0xa8] sm:$0xff]
    %v466 = vld [vmem:[%s129 + $0xb0] sm:$0xff]
    %v467 = vld [vmem:[%s129 + $0xc0] sm:$0xff]
    %v468 = vld [vmem:[%s129 + $0xc8] sm:$0xff]
    %v469 = vld [vmem:[%s129 + $0xd8] sm:$0xff]
    %v470 = vld [vmem:[%s129 + $0xe0] sm:$0xff]
    %v471 = vld [vmem:[%s129 + $0xf0] sm:$0xff]
    %v472 = vld [vmem:[%s129 + $0xf8] sm:$0xff]
    %v473 = vld [vmem:[%s129 + $0x108] sm:$0xff]
    %v474 = vld [vmem:[%s129 + $0x110] sm:$0xff]
    %v475 = vld [vmem:[%s129 + $0x120] sm:$0xff]
    %v476 = vld [vmem:[%s129 + $0x128] sm:$0xff]
    %v477 = vld [vmem:[%s129 + $0x138] sm:$0xff]
    %v478 = vld [vmem:[%s129 + $0x140] sm:$0xff]
    %v479 = vld [vmem:[%s129 + $0x150] sm:$0xff]
    %v480 = vld [vmem:[%s129 + $0x158] sm:$0xff]
    %v481 = vld [vmem:[%s129 + $0x168] sm:$0xff]
    %v482 = vld [vmem:[%s129 + $0x170] sm:$0xff]
    %v483 = vld [vmem:[%s129 + $0x1b0] sm:$0xff]
    %v484 = vld [vmem:[%s129 + $0x1b8] sm:$0xff]
    %v485 = vld [vmem:[%s129 + $0x1c8] sm:$0xff]
    %v486 = vld [vmem:[%s129 + $0x1d0] sm:$0xff]
    %v487 = vld [vmem:[%s129 + $0x1e0] sm:$0xff]
    %v488 = vld [vmem:[%s129 + $0x1e8] sm:$0xff]
    %v489 = vld [vmem:[%s129 + $0x1f8] sm:$0xff]
    %v490 = vld [vmem:[%s129 + $0x200] sm:$0xff]
    %v491 = vld [vmem:[%s129 + $0x210] sm:$0xff]
    %v492 = vld [vmem:[%s129 + $0x218] sm:$0xff]
    %v493 = vld [vmem:[%s129 + $0x228] sm:$0xff]
    %v494 = vld [vmem:[%s129 + $0x230] sm:$0xff]
    %v495 = vld [vmem:[%s129 + $0x240] sm:$0xff]
    %v496 = vld [vmem:[%s129 + $0x248] sm:$0xff]
    %v497 = vld [vmem:[%s129 + $0x258] sm:$0xff]
    %v498 = vld [vmem:[%s129 + $0x260] sm:$0xff]
    %v499 = vld [vmem:[%s129 + $0x270] sm:$0xff]
    %v500 = vld [vmem:[%s129 + $0x278] sm:$0xff]
    %v501 = vld [vmem:[%s129 + $0x288] sm:$0xff]
    %v502 = vld [vmem:[%s129 + $0x290] sm:$0xff]
    %v503 = vld [vmem:[%s129 + $0x2a0] sm:$0xff]
    %v504 = vld [vmem:[%s129 + $0x2a8] sm:$0xff]
    %v505 = vld [vmem:[%s129 + $0x2b8] sm:$0xff]
    %v506 = vld [vmem:[%s129 + $0x2c0] sm:$0xff]
    %v507 = vld [vmem:[%s129 + $0x2d0] sm:$0xff]
    %v508 = vld [vmem:[%s129 + $0x2d8] sm:$0xff]
    %v509 = vld [vmem:[%s129 + $0x2e8] sm:$0xff]
    %v510 = vld [vmem:[%s129 + $0x2f0] sm:$0xff]
    %v511 = vld [vmem:[%s129 + $0x300] sm:$0xff]
    %v512 = vld [vmem:[%s129 + $0x308] sm:$0xff]
    %v513 = vld [vmem:[%s129 + $0x318] sm:$0xff]
    %v514 = vld [vmem:[%s129 + $0x320] sm:$0xff]
    %v515 = vld [vmem:[%s129 + $0x1] sm:$0xff]
    %v516 = vld [vmem:[%s129 + $0x9] sm:$0xff]
    %v517 = vld [vmem:[%s129 + $0x19] sm:$0xff]
    %v518 = vld [vmem:[%s129 + $0x21] sm:$0xff]
    %v519 = vld [vmem:[%s129 + $0x31] sm:$0xff]
    %v520 = vld [vmem:[%s129 + $0x39] sm:$0xff]
    %v521 = vld [vmem:[%s129 + $0x49] sm:$0xff]
    %v522 = vld [vmem:[%s129 + $0x51] sm:$0xff]
    %v523 = vld [vmem:[%s129 + $0x61] sm:$0xff]
    %v524 = vld [vmem:[%s129 + $0x69] sm:$0xff]
    %v525 = vld [vmem:[%s129 + $0x79] sm:$0xff]
    %v526 = vld [vmem:[%s129 + $0x81] sm:$0xff]
    %v527 = vld [vmem:[%s129 + $0x91] sm:$0xff]
    %v528 = vld [vmem:[%s129 + $0x99] sm:$0xff]
    %v529 = vld [vmem:[%s129 + $0xa9] sm:$0xff]
    %v530 = vld [vmem:[%s129 + $0xb1] sm:$0xff]
    %v531 = vld [vmem:[%s129 + $0xc1] sm:$0xff]
    %v532 = vld [vmem:[%s129 + $0xc9] sm:$0xff]
    %v533 = vld [vmem:[%s129 + $0xd9] sm:$0xff]
    %v534 = vld [vmem:[%s129 + $0xe1] sm:$0xff]
    %v535 = vld [vmem:[%s129 + $0xf1] sm:$0xff]
    %v536 = vld [vmem:[%s129 + $0xf9] sm:$0xff]
    %v537 = vld [vmem:[%s129 + $0x109] sm:$0xff]
    %v538 = vld [vmem:[%s129 + $0x111] sm:$0xff]
    %v539 = vld [vmem:[%s129 + $0x121] sm:$0xff]
    %v540 = vld [vmem:[%s129 + $0x129] sm:$0xff]
    %v541 = vld [vmem:[%s129 + $0x139] sm:$0xff]
    %v542 = vld [vmem:[%s129 + $0x141] sm:$0xff]
    %v543 = vld [vmem:[%s129 + $0x151] sm:$0xff]
    %v544 = vld [vmem:[%s129 + $0x159] sm:$0xff]
    %v545 = vld [vmem:[%s129 + $0x169] sm:$0xff]
    %v546 = vld [vmem:[%s129 + $0x171] sm:$0xff]
    %v547 = vld [vmem:[%s129 + $0x1b1] sm:$0xff]
    %v548 = vld [vmem:[%s129 + $0x1b9] sm:$0xff]
    %v549 = vld [vmem:[%s129 + $0x1c9] sm:$0xff]
    %v550 = vld [vmem:[%s129 + $0x1d1] sm:$0xff]
    %v551 = vld [vmem:[%s129 + $0x1e1] sm:$0xff]
    %v552 = vld [vmem:[%s129 + $0x1e9] sm:$0xff]
    %v553 = vld [vmem:[%s129 + $0x1f9] sm:$0xff]
    %v554 = vld [vmem:[%s129 + $0x201] sm:$0xff]
    %v555 = vld [vmem:[%s129 + $0x211] sm:$0xff]
    %v556 = vld [vmem:[%s129 + $0x219] sm:$0xff]
    %v557 = vld [vmem:[%s129 + $0x229] sm:$0xff]
    %v558 = vld [vmem:[%s129 + $0x231] sm:$0xff]
    %v559 = vld [vmem:[%s129 + $0x241] sm:$0xff]
    %v560 = vld [vmem:[%s129 + $0x249] sm:$0xff]
    %v561 = vld [vmem:[%s129 + $0x259] sm:$0xff]
    %v562 = vld [vmem:[%s129 + $0x261] sm:$0xff]
    %v563 = vld [vmem:[%s129 + $0x271] sm:$0xff]
    %v564 = vld [vmem:[%s129 + $0x279] sm:$0xff]
    %v565 = vld [vmem:[%s129 + $0x289] sm:$0xff]
    %v566 = vld [vmem:[%s129 + $0x291] sm:$0xff]
    %v567 = vld [vmem:[%s129 + $0x2a1] sm:$0xff]
    %v568 = vld [vmem:[%s129 + $0x2a9] sm:$0xff]
    %v569 = vld [vmem:[%s129 + $0x2b9] sm:$0xff]
    %v570 = vld [vmem:[%s129 + $0x2c1] sm:$0xff]
    %v571 = vld [vmem:[%s129 + $0x2d1] sm:$0xff]
    %v572 = vld [vmem:[%s129 + $0x2d9] sm:$0xff]
    %v573 = vld [vmem:[%s129 + $0x2e9] sm:$0xff]
    %v574 = vld [vmem:[%s129 + $0x2f1] sm:$0xff]
    %v575 = vld [vmem:[%s129 + $0x301] sm:$0xff]
    %v576 = vld [vmem:[%s129 + $0x309] sm:$0xff]
    %v577 = vld [vmem:[%s129 + $0x319] sm:$0xff]
    %v578 = vld [vmem:[%s129 + $0x321] sm:$0xff]
    %v579 = vld [vmem:[%s129 + $0x2] sm:$0xff]
    %v580 = vld [vmem:[%s129 + $0xa] sm:$0xff]
    %v581 = vld [vmem:[%s129 + $0x1a] sm:$0xff]
    %v582 = vld [vmem:[%s129 + $0x22] sm:$0xff]
    %v583 = vld [vmem:[%s129 + $0x32] sm:$0xff]
    %v584 = vld [vmem:[%s129 + $0x3a] sm:$0xff]
    %v585 = vld [vmem:[%s129 + $0x4a] sm:$0xff]
    %v586 = vld [vmem:[%s129 + $0x52] sm:$0xff]
    %v587 = vld [vmem:[%s129 + $0x62] sm:$0xff]
    %v588 = vld [vmem:[%s129 + $0x6a] sm:$0xff]
    %v589 = vld [vmem:[%s129 + $0x7a] sm:$0xff]
    %v590 = vld [vmem:[%s129 + $0x82] sm:$0xff]
    %v591 = vld [vmem:[%s129 + $0x92] sm:$0xff]
    %v592 = vld [vmem:[%s129 + $0x9a] sm:$0xff]
    %v593 = vld [vmem:[%s129 + $0xaa] sm:$0xff]
    %v594 = vld [vmem:[%s129 + $0xb2] sm:$0xff]
    %v595 = vld [vmem:[%s129 + $0xc2] sm:$0xff]
    %v596 = vld [vmem:[%s129 + $0xca] sm:$0xff]
    %v597 = vld [vmem:[%s129 + $0xda] sm:$0xff]
    %v598 = vld [vmem:[%s129 + $0xe2] sm:$0xff]
    %v599 = vld [vmem:[%s129 + $0xf2] sm:$0xff]
    %v600 = vld [vmem:[%s129 + $0xfa] sm:$0xff]
    %v601 = vld [vmem:[%s129 + $0x10a] sm:$0xff]
    %v602 = vld [vmem:[%s129 + $0x112] sm:$0xff]
    %v603 = vld [vmem:[%s129 + $0x122] sm:$0xff]
    %v604 = vld [vmem:[%s129 + $0x12a] sm:$0xff]
    %v605 = vld [vmem:[%s129 + $0x13a] sm:$0xff]
    %v606 = vld [vmem:[%s129 + $0x142] sm:$0xff]
    %v607 = vld [vmem:[%s129 + $0x152] sm:$0xff]
    %v608 = vld [vmem:[%s129 + $0x15a] sm:$0xff]
    %v609 = vld [vmem:[%s129 + $0x16a] sm:$0xff]
    %v610 = vld [vmem:[%s129 + $0x172] sm:$0xff]
    %v611 = vld [vmem:[%s129 + $0x1b2] sm:$0xff]
    %v612 = vld [vmem:[%s129 + $0x1ba] sm:$0xff]
    %v613 = vld [vmem:[%s129 + $0x1ca] sm:$0xff]
    %v614 = vld [vmem:[%s129 + $0x1d2] sm:$0xff]
    %v615 = vld [vmem:[%s129 + $0x1e2] sm:$0xff]
    %v616 = vld [vmem:[%s129 + $0x1ea] sm:$0xff]
    %v617 = vld [vmem:[%s129 + $0x1fa] sm:$0xff]
    %v618 = vld [vmem:[%s129 + $0x202] sm:$0xff]
    %v619 = vld [vmem:[%s129 + $0x212] sm:$0xff]
    %v620 = vld [vmem:[%s129 + $0x21a] sm:$0xff]
    %v621 = vld [vmem:[%s129 + $0x22a] sm:$0xff]
    %v622 = vld [vmem:[%s129 + $0x232] sm:$0xff]
    %v623 = vld [vmem:[%s129 + $0x242] sm:$0xff]
    %v624 = vld [vmem:[%s129 + $0x24a] sm:$0xff]
    %v625 = vld [vmem:[%s129 + $0x25a] sm:$0xff]
    %v626 = vld [vmem:[%s129 + $0x262] sm:$0xff]
    %v627 = vld [vmem:[%s129 + $0x272] sm:$0xff]
    %v628 = vld [vmem:[%s129 + $0x27a] sm:$0xff]
    %v629 = vld [vmem:[%s129 + $0x28a] sm:$0xff]
    %v630 = vld [vmem:[%s129 + $0x292] sm:$0xff]
    %v631 = vld [vmem:[%s129 + $0x2a2] sm:$0xff]
    %v632 = vld [vmem:[%s129 + $0x2aa] sm:$0xff]
    %v633 = vld [vmem:[%s129 + $0x2ba] sm:$0xff]
    %v634 = vld [vmem:[%s129 + $0x2c2] sm:$0xff]
    %v635 = vld [vmem:[%s129 + $0x2d2] sm:$0xff]
    %v636 = vld [vmem:[%s129 + $0x2da] sm:$0xff]
    %v637 = vld [vmem:[%s129 + $0x2ea] sm:$0xff]
    %v638 = vld [vmem:[%s129 + $0x2f2] sm:$0xff]
    %v639 = vld [vmem:[%s129 + $0x302] sm:$0xff]
    %v640 = vld [vmem:[%s129 + $0x30a] sm:$0xff]
    %v641 = vld [vmem:[%s129 + $0x31a] sm:$0xff]
    %v642 = vld [vmem:[%s129 + $0x322] sm:$0xff]
    %s643 = scalar_lea.vmem [#allocation2], 48
    %v644 = vld [vmem:[%s643] sm:$0xff]
    %v645 = vld [vmem:[%s643 + $0x8] sm:$0xff]
    %v646 = vld [vmem:[%s643 + $0x18] sm:$0xff]
    %v647 = vld [vmem:[%s643 + $0x20] sm:$0xff]
    %v648 = vld [vmem:[%s643 + $0x30] sm:$0xff]
    %v649 = vld [vmem:[%s643 + $0x38] sm:$0xff]
    %v650 = vld [vmem:[%s643 + $0x48] sm:$0xff]
    %v651 = vld [vmem:[%s643 + $0x50] sm:$0xff]
    %v652 = vld [vmem:[%s643 + $0x60] sm:$0xff]
    %v653 = vld [vmem:[%s643 + $0x68] sm:$0xff]
    %v654 = vld [vmem:[%s643 + $0x78] sm:$0xff]
    %v655 = vld [vmem:[%s643 + $0x80] sm:$0xff]
    %v656 = vld [vmem:[%s643 + $0x90] sm:$0xff]
    %v657 = vld [vmem:[%s643 + $0x98] sm:$0xff]
    %v658 = vld [vmem:[%s643 + $0xa8] sm:$0xff]
    %v659 = vld [vmem:[%s643 + $0xb0] sm:$0xff]
    %v660 = vld [vmem:[%s643 + $0xc0] sm:$0xff]
    %v661 = vld [vmem:[%s643 + $0xc8] sm:$0xff]
    %v662 = vld [vmem:[%s643 + $0xd8] sm:$0xff]
    %v663 = vld [vmem:[%s643 + $0xe0] sm:$0xff]
    %v664 = vld [vmem:[%s643 + $0xf0] sm:$0xff]
    %v665 = vld [vmem:[%s643 + $0xf8] sm:$0xff]
    %v666 = vld [vmem:[%s643 + $0x108] sm:$0xff]
    %v667 = vld [vmem:[%s643 + $0x110] sm:$0xff]
    %v668 = vld [vmem:[%s643 + $0x120] sm:$0xff]
    %v669 = vld [vmem:[%s643 + $0x128] sm:$0xff]
    %v670 = vld [vmem:[%s643 + $0x138] sm:$0xff]
    %v671 = vld [vmem:[%s643 + $0x140] sm:$0xff]
    %v672 = vld [vmem:[%s643 + $0x150] sm:$0xff]
    %v673 = vld [vmem:[%s643 + $0x158] sm:$0xff]
    %v674 = vld [vmem:[%s643 + $0x168] sm:$0xff]
    %v675 = vld [vmem:[%s643 + $0x170] sm:$0xff]
    %v676 = vld [vmem:[%s643 + $0x1b0] sm:$0xff]
    %v677 = vld [vmem:[%s643 + $0x1b8] sm:$0xff]
    %v678 = vld [vmem:[%s643 + $0x1c8] sm:$0xff]
    %v679 = vld [vmem:[%s643 + $0x1d0] sm:$0xff]
    %v680 = vld [vmem:[%s643 + $0x1e0] sm:$0xff]
    %v681 = vld [vmem:[%s643 + $0x1e8] sm:$0xff]
    %v682 = vld [vmem:[%s643 + $0x1f8] sm:$0xff]
    %v683 = vld [vmem:[%s643 + $0x200] sm:$0xff]
    %v684 = vld [vmem:[%s643 + $0x210] sm:$0xff]
    %v685 = vld [vmem:[%s643 + $0x218] sm:$0xff]
    %v686 = vld [vmem:[%s643 + $0x228] sm:$0xff]
    %v687 = vld [vmem:[%s643 + $0x230] sm:$0xff]
    %v688 = vld [vmem:[%s643 + $0x240] sm:$0xff]
    %v689 = vld [vmem:[%s643 + $0x248] sm:$0xff]
    %v690 = vld [vmem:[%s643 + $0x258] sm:$0xff]
    %v691 = vld [vmem:[%s643 + $0x260] sm:$0xff]
    %v692 = vld [vmem:[%s643 + $0x270] sm:$0xff]
    %v693 = vld [vmem:[%s643 + $0x278] sm:$0xff]
    %v694 = vld [vmem:[%s643 + $0x288] sm:$0xff]
    %v695 = vld [vmem:[%s643 + $0x290] sm:$0xff]
    %v696 = vld [vmem:[%s643 + $0x2a0] sm:$0xff]
    %v697 = vld [vmem:[%s643 + $0x2a8] sm:$0xff]
    %v698 = vld [vmem:[%s643 + $0x2b8] sm:$0xff]
    %v699 = vld [vmem:[%s643 + $0x2c0] sm:$0xff]
    %v700 = vld [vmem:[%s643 + $0x2d0] sm:$0xff]
    %v701 = vld [vmem:[%s643 + $0x2d8] sm:$0xff]
    %v702 = vld [vmem:[%s643 + $0x2e8] sm:$0xff]
    %v703 = vld [vmem:[%s643 + $0x2f0] sm:$0xff]
    %v704 = vld [vmem:[%s643 + $0x300] sm:$0xff]
    %v705 = vld [vmem:[%s643 + $0x308] sm:$0xff]
    %v706 = vld [vmem:[%s643 + $0x318] sm:$0xff]
    %v707 = vld [vmem:[%s643 + $0x320] sm:$0xff]
    %v708 = vld [vmem:[%s643 + $0x1] sm:$0xff]
    %v709 = vld [vmem:[%s643 + $0x9] sm:$0xff]
    %v710 = vld [vmem:[%s643 + $0x19] sm:$0xff]
    %v711 = vld [vmem:[%s643 + $0x21] sm:$0xff]
    %v712 = vld [vmem:[%s643 + $0x31] sm:$0xff]
    %v713 = vld [vmem:[%s643 + $0x39] sm:$0xff]
    %v714 = vld [vmem:[%s643 + $0x49] sm:$0xff]
    %v715 = vld [vmem:[%s643 + $0x51] sm:$0xff]
    %v716 = vld [vmem:[%s643 + $0x61] sm:$0xff]
    %v717 = vld [vmem:[%s643 + $0x69] sm:$0xff]
    %v718 = vld [vmem:[%s643 + $0x79] sm:$0xff]
    %v719 = vld [vmem:[%s643 + $0x81] sm:$0xff]
    %v720 = vld [vmem:[%s643 + $0x91] sm:$0xff]
    %v721 = vld [vmem:[%s643 + $0x99] sm:$0xff]
    %v722 = vld [vmem:[%s643 + $0xa9] sm:$0xff]
    %v723 = vld [vmem:[%s643 + $0xb1] sm:$0xff]
    %v724 = vld [vmem:[%s643 + $0xc1] sm:$0xff]
    %v725 = vld [vmem:[%s643 + $0xc9] sm:$0xff]
    %v726 = vld [vmem:[%s643 + $0xd9] sm:$0xff]
    %v727 = vld [vmem:[%s643 + $0xe1] sm:$0xff]
    %v728 = vld [vmem:[%s643 + $0xf1] sm:$0xff]
    %v729 = vld [vmem:[%s643 + $0xf9] sm:$0xff]
    %v730 = vld [vmem:[%s643 + $0x109] sm:$0xff]
    %v731 = vld [vmem:[%s643 + $0x111] sm:$0xff]
    %v732 = vld [vmem:[%s643 + $0x121] sm:$0xff]
    %v733 = vld [vmem:[%s643 + $0x129] sm:$0xff]
    %v734 = vld [vmem:[%s643 + $0x139] sm:$0xff]
    %v735 = vld [vmem:[%s643 + $0x141] sm:$0xff]
    %v736 = vld [vmem:[%s643 + $0x151] sm:$0xff]
    %v737 = vld [vmem:[%s643 + $0x159] sm:$0xff]
    %v738 = vld [vmem:[%s643 + $0x169] sm:$0xff]
    %v739 = vld [vmem:[%s643 + $0x171] sm:$0xff]
    %v740 = vld [vmem:[%s643 + $0x1b1] sm:$0xff]
    %v741 = vld [vmem:[%s643 + $0x1b9] sm:$0xff]
    %v742 = vld [vmem:[%s643 + $0x1c9] sm:$0xff]
    %v743 = vld [vmem:[%s643 + $0x1d1] sm:$0xff]
    %v744 = vld [vmem:[%s643 + $0x1e1] sm:$0xff]
    %v745 = vld [vmem:[%s643 + $0x1e9] sm:$0xff]
    %v746 = vld [vmem:[%s643 + $0x1f9] sm:$0xff]
    %v747 = vld [vmem:[%s643 + $0x201] sm:$0xff]
    %v748 = vld [vmem:[%s643 + $0x211] sm:$0xff]
    %v749 = vld [vmem:[%s643 + $0x219] sm:$0xff]
    %v750 = vld [vmem:[%s643 + $0x229] sm:$0xff]
    %v751 = vld [vmem:[%s643 + $0x231] sm:$0xff]
    %v752 = vld [vmem:[%s643 + $0x241] sm:$0xff]
    %v753 = vld [vmem:[%s643 + $0x249] sm:$0xff]
    %v754 = vld [vmem:[%s643 + $0x259] sm:$0xff]
    %v755 = vld [vmem:[%s643 + $0x261] sm:$0xff]
    %v756 = vld [vmem:[%s643 + $0x271] sm:$0xff]
    %v757 = vld [vmem:[%s643 + $0x279] sm:$0xff]
    %v758 = vld [vmem:[%s643 + $0x289] sm:$0xff]
    %v759 = vld [vmem:[%s643 + $0x291] sm:$0xff]
    %v760 = vld [vmem:[%s643 + $0x2a1] sm:$0xff]
    %v761 = vld [vmem:[%s643 + $0x2a9] sm:$0xff]
    %v762 = vld [vmem:[%s643 + $0x2b9] sm:$0xff]
    %v763 = vld [vmem:[%s643 + $0x2c1] sm:$0xff]
    %v764 = vld [vmem:[%s643 + $0x2d1] sm:$0xff]
    %v765 = vld [vmem:[%s643 + $0x2d9] sm:$0xff]
    %v766 = vld [vmem:[%s643 + $0x2e9] sm:$0xff]
    %v767 = vld [vmem:[%s643 + $0x2f1] sm:$0xff]
    %v768 = vld [vmem:[%s643 + $0x301] sm:$0xff]
    %v769 = vld [vmem:[%s643 + $0x309] sm:$0xff]
    %v770 = vld [vmem:[%s643 + $0x319] sm:$0xff]
    %v771 = vld [vmem:[%s643 + $0x321] sm:$0xff]
    %v772 = vld [vmem:[%s643 + $0x2] sm:$0xff]
    %v773 = vld [vmem:[%s643 + $0xa] sm:$0xff]
    %v774 = vld [vmem:[%s643 + $0x1a] sm:$0xff]
    %v775 = vld [vmem:[%s643 + $0x22] sm:$0xff]
    %v776 = vld [vmem:[%s643 + $0x32] sm:$0xff]
    %v777 = vld [vmem:[%s643 + $0x3a] sm:$0xff]
    %v778 = vld [vmem:[%s643 + $0x4a] sm:$0xff]
    %v779 = vld [vmem:[%s643 + $0x52] sm:$0xff]
    %v780 = vld [vmem:[%s643 + $0x62] sm:$0xff]
    %v781 = vld [vmem:[%s643 + $0x6a] sm:$0xff]
    %v782 = vld [vmem:[%s643 + $0x7a] sm:$0xff]
    %v783 = vld [vmem:[%s643 + $0x82] sm:$0xff]
    %v784 = vld [vmem:[%s643 + $0x92] sm:$0xff]
    %v785 = vld [vmem:[%s643 + $0x9a] sm:$0xff]
    %v786 = vld [vmem:[%s643 + $0xaa] sm:$0xff]
    %v787 = vld [vmem:[%s643 + $0xb2] sm:$0xff]
    %v788 = vld [vmem:[%s643 + $0xc2] sm:$0xff]
    %v789 = vld [vmem:[%s643 + $0xca] sm:$0xff]
    %v790 = vld [vmem:[%s643 + $0xda] sm:$0xff]
    %v791 = vld [vmem:[%s643 + $0xe2] sm:$0xff]
    %v792 = vld [vmem:[%s643 + $0xf2] sm:$0xff]
    %v793 = vld [vmem:[%s643 + $0xfa] sm:$0xff]
    %v794 = vld [vmem:[%s643 + $0x10a] sm:$0xff]
    %v795 = vld [vmem:[%s643 + $0x112] sm:$0xff]
    %v796 = vld [vmem:[%s643 + $0x122] sm:$0xff]
    %v797 = vld [vmem:[%s643 + $0x12a] sm:$0xff]
    %v798 = vld [vmem:[%s643 + $0x13a] sm:$0xff]
    %v799 = vld [vmem:[%s643 + $0x142] sm:$0xff]
    %v800 = vld [vmem:[%s643 + $0x152] sm:$0xff]
    %v801 = vld [vmem:[%s643 + $0x15a] sm:$0xff]
    %v802 = vld [vmem:[%s643 + $0x16a] sm:$0xff]
    %v803 = vld [vmem:[%s643 + $0x172] sm:$0xff]
    %v804 = vld [vmem:[%s643 + $0x1b2] sm:$0xff]
    %v805 = vld [vmem:[%s643 + $0x1ba] sm:$0xff]
    %v806 = vld [vmem:[%s643 + $0x1ca] sm:$0xff]
    %v807 = vld [vmem:[%s643 + $0x1d2] sm:$0xff]
    %v808 = vld [vmem:[%s643 + $0x1e2] sm:$0xff]
    %v809 = vld [vmem:[%s643 + $0x1ea] sm:$0xff]
    %v810 = vld [vmem:[%s643 + $0x1fa] sm:$0xff]
    %v811 = vld [vmem:[%s643 + $0x202] sm:$0xff]
    %v812 = vld [vmem:[%s643 + $0x212] sm:$0xff]
    %v813 = vld [vmem:[%s643 + $0x21a] sm:$0xff]
    %v814 = vld [vmem:[%s643 + $0x22a] sm:$0xff]
    %v815 = vld [vmem:[%s643 + $0x232] sm:$0xff]
    %v816 = vld [vmem:[%s643 + $0x242] sm:$0xff]
    %v817 = vld [vmem:[%s643 + $0x24a] sm:$0xff]
    %v818 = vld [vmem:[%s643 + $0x25a] sm:$0xff]
    %v819 = vld [vmem:[%s643 + $0x262] sm:$0xff]
    %v820 = vld [vmem:[%s643 + $0x272] sm:$0xff]
    %v821 = vld [vmem:[%s643 + $0x27a] sm:$0xff]
    %v822 = vld [vmem:[%s643 + $0x28a] sm:$0xff]
    %v823 = vld [vmem:[%s643 + $0x292] sm:$0xff]
    %v824 = vld [vmem:[%s643 + $0x2a2] sm:$0xff]
    %v825 = vld [vmem:[%s643 + $0x2aa] sm:$0xff]
    %v826 = vld [vmem:[%s643 + $0x2ba] sm:$0xff]
    %v827 = vld [vmem:[%s643 + $0x2c2] sm:$0xff]
    %v828 = vld [vmem:[%s643 + $0x2d2] sm:$0xff]
    %v829 = vld [vmem:[%s643 + $0x2da] sm:$0xff]
    %v830 = vld [vmem:[%s643 + $0x2ea] sm:$0xff]
    %v831 = vld [vmem:[%s643 + $0x2f2] sm:$0xff]
    %v832 = vld [vmem:[%s643 + $0x302] sm:$0xff]
    %v833 = vld [vmem:[%s643 + $0x30a] sm:$0xff]
    %v834 = vld [vmem:[%s643 + $0x31a] sm:$0xff]
    %v835 = vld [vmem:[%s643 + $0x322] sm:$0xff]
    %900 = vrot.lane.b32.xlu0 %v323, 4
    %v901 = vpop.permute.xlu0 %900
    %902 = vrot.lane.b32.xlu0 %v324, 4
    %v903 = vpop.permute.xlu0 %902
    %904 = vrot.lane.b32.xlu0 %v325, 4
    %v905 = vpop.permute.xlu0 %904
    %906 = vrot.lane.b32.xlu0 %v326, 4
    %v907 = vpop.permute.xlu0 %906
    %908 = vrot.lane.b32.xlu0 %v327, 4
    %v909 = vpop.permute.xlu0 %908
    %910 = vrot.lane.b32.xlu0 %v328, 4
    %v911 = vpop.permute.xlu0 %910
    %912 = vrot.lane.b32.xlu0 %v329, 4
    %v913 = vpop.permute.xlu0 %912
    %914 = vrot.lane.b32.xlu0 %v330, 4
    %v915 = vpop.permute.xlu0 %914
    %916 = vrot.lane.b32.xlu0 %v331, 4
    %v917 = vpop.permute.xlu0 %916
    %918 = vrot.lane.b32.xlu0 %v332, 4
    %v919 = vpop.permute.xlu0 %918
    %920 = vrot.lane.b32.xlu0 %v333, 4
    %v921 = vpop.permute.xlu0 %920
    %922 = vrot.lane.b32.xlu0 %v334, 4
    %v923 = vpop.permute.xlu0 %922
    %924 = vrot.lane.b32.xlu0 %v335, 4
    %v925 = vpop.permute.xlu0 %924
    %926 = vrot.lane.b32.xlu0 %v336, 4
    %v927 = vpop.permute.xlu0 %926
    %928 = vrot.lane.b32.xlu0 %v337, 4
    %v929 = vpop.permute.xlu0 %928
    %930 = vrot.lane.b32.xlu0 %v338, 4
    %v931 = vpop.permute.xlu0 %930
    %932 = vrot.lane.b32.xlu0 %v339, 4
    %v933 = vpop.permute.xlu0 %932
    %934 = vrot.lane.b32.xlu0 %v340, 4
    %v935 = vpop.permute.xlu0 %934
    %936 = vrot.lane.b32.xlu0 %v341, 4
    %v937 = vpop.permute.xlu0 %936
    %938 = vrot.lane.b32.xlu0 %v342, 4
    %v939 = vpop.permute.xlu0 %938
    %940 = vrot.lane.b32.xlu0 %v343, 4
    %v941 = vpop.permute.xlu0 %940
    %942 = vrot.lane.b32.xlu0 %v344, 4
    %v943 = vpop.permute.xlu0 %942
    %944 = vrot.lane.b32.xlu0 %v345, 4
    %v945 = vpop.permute.xlu0 %944
    %946 = vrot.lane.b32.xlu0 %v346, 4
    %v947 = vpop.permute.xlu0 %946
    %948 = vrot.lane.b32.xlu0 %v347, 4
    %v949 = vpop.permute.xlu0 %948
    %950 = vrot.lane.b32.xlu0 %v348, 4
    %v951 = vpop.permute.xlu0 %950
    %952 = vrot.lane.b32.xlu0 %v349, 4
    %v953 = vpop.permute.xlu0 %952
    %954 = vrot.lane.b32.xlu0 %v350, 4
    %v955 = vpop.permute.xlu0 %954
    %956 = vrot.lane.b32.xlu0 %v351, 4
    %v957 = vpop.permute.xlu0 %956
    %958 = vrot.lane.b32.xlu0 %v352, 4
    %v959 = vpop.permute.xlu0 %958
    %960 = vrot.lane.b32.xlu0 %v353, 4
    %v961 = vpop.permute.xlu0 %960
    %962 = vrot.lane.b32.xlu0 %v354, 4
    %v963 = vpop.permute.xlu0 %962
    %964 = vrot.lane.b32.xlu0 %v355, 4
    %v965 = vpop.permute.xlu0 %964
    %966 = vrot.lane.b32.xlu0 %v356, 4
    %v967 = vpop.permute.xlu0 %966
    %968 = vrot.lane.b32.xlu0 %v357, 4
    %v969 = vpop.permute.xlu0 %968
    %970 = vrot.lane.b32.xlu0 %v358, 4
    %v971 = vpop.permute.xlu0 %970
    %972 = vrot.lane.b32.xlu0 %v359, 4
    %v973 = vpop.permute.xlu0 %972
    %974 = vrot.lane.b32.xlu0 %v360, 4
    %v975 = vpop.permute.xlu0 %974
    %976 = vrot.lane.b32.xlu0 %v361, 4
    %v977 = vpop.permute.xlu0 %976
    %978 = vrot.lane.b32.xlu0 %v362, 4
    %v979 = vpop.permute.xlu0 %978
    %980 = vrot.lane.b32.xlu0 %v363, 4
    %v981 = vpop.permute.xlu0 %980
    %982 = vrot.lane.b32.xlu0 %v364, 4
    %v983 = vpop.permute.xlu0 %982
    %984 = vrot.lane.b32.xlu0 %v365, 4
    %v985 = vpop.permute.xlu0 %984
    %986 = vrot.lane.b32.xlu0 %v366, 4
    %v987 = vpop.permute.xlu0 %986
    %988 = vrot.lane.b32.xlu0 %v367, 4
    %v989 = vpop.permute.xlu0 %988
    %990 = vrot.lane.b32.xlu0 %v368, 4
    %v991 = vpop.permute.xlu0 %990
    %992 = vrot.lane.b32.xlu0 %v369, 4
    %v993 = vpop.permute.xlu0 %992
    %994 = vrot.lane.b32.xlu0 %v370, 4
    %v995 = vpop.permute.xlu0 %994
    %996 = vrot.lane.b32.xlu0 %v371, 4
    %v997 = vpop.permute.xlu0 %996
    %998 = vrot.lane.b32.xlu0 %v372, 4
    %v999 = vpop.permute.xlu0 %998
    %1000 = vrot.lane.b32.xlu0 %v373, 4
    %v1001 = vpop.permute.xlu0 %1000
    %1002 = vrot.lane.b32.xlu0 %v374, 4
    %v1003 = vpop.permute.xlu0 %1002
    %1004 = vrot.lane.b32.xlu0 %v375, 4
    %v1005 = vpop.permute.xlu0 %1004
    %1006 = vrot.lane.b32.xlu0 %v376, 4
    %v1007 = vpop.permute.xlu0 %1006
    %1008 = vrot.lane.b32.xlu0 %v377, 4
    %v1009 = vpop.permute.xlu0 %1008
    %1010 = vrot.lane.b32.xlu0 %v378, 4
    %v1011 = vpop.permute.xlu0 %1010
    %1012 = vrot.lane.b32.xlu0 %v379, 4
    %v1013 = vpop.permute.xlu0 %1012
    %1014 = vrot.lane.b32.xlu0 %v380, 4
    %v1015 = vpop.permute.xlu0 %1014
    %1016 = vrot.lane.b32.xlu0 %v381, 4
    %v1017 = vpop.permute.xlu0 %1016
    %1018 = vrot.lane.b32.xlu0 %v382, 4
    %v1019 = vpop.permute.xlu0 %1018
    %1020 = vrot.lane.b32.xlu0 %v383, 4
    %v1021 = vpop.permute.xlu0 %1020
    %1022 = vrot.lane.b32.xlu0 %v384, 4
    %v1023 = vpop.permute.xlu0 %1022
    %1024 = vrot.lane.b32.xlu0 %v385, 4
    %v1025 = vpop.permute.xlu0 %1024
    %1026 = vrot.lane.b32.xlu0 %v386, 4
    %v1027 = vpop.permute.xlu0 %1026
    %1156 = vrot.lane.b32.xlu0 %v387, 8
    %v1157 = vpop.permute.xlu0 %1156
    %1158 = vrot.lane.b32.xlu0 %v388, 8
    %v1159 = vpop.permute.xlu0 %1158
    %1160 = vrot.lane.b32.xlu0 %v389, 8
    %v1161 = vpop.permute.xlu0 %1160
    %1162 = vrot.lane.b32.xlu0 %v390, 8
    %v1163 = vpop.permute.xlu0 %1162
    %1164 = vrot.lane.b32.xlu0 %v391, 8
    %v1165 = vpop.permute.xlu0 %1164
    %1166 = vrot.lane.b32.xlu0 %v392, 8
    %v1167 = vpop.permute.xlu0 %1166
    %1168 = vrot.lane.b32.xlu0 %v393, 8
    %v1169 = vpop.permute.xlu0 %1168
    %1170 = vrot.lane.b32.xlu0 %v394, 8
    %v1171 = vpop.permute.xlu0 %1170
    %1172 = vrot.lane.b32.xlu0 %v395, 8
    %v1173 = vpop.permute.xlu0 %1172
    %1174 = vrot.lane.b32.xlu0 %v396, 8
    %v1175 = vpop.permute.xlu0 %1174
    %1176 = vrot.lane.b32.xlu0 %v397, 8
    %v1177 = vpop.permute.xlu0 %1176
    %1178 = vrot.lane.b32.xlu0 %v398, 8
    %v1179 = vpop.permute.xlu0 %1178
    %1180 = vrot.lane.b32.xlu0 %v399, 8
    %v1181 = vpop.permute.xlu0 %1180
    %1182 = vrot.lane.b32.xlu0 %v400, 8
    %v1183 = vpop.permute.xlu0 %1182
    %1184 = vrot.lane.b32.xlu0 %v401, 8
    %v1185 = vpop.permute.xlu0 %1184
    %1186 = vrot.lane.b32.xlu0 %v402, 8
    %v1187 = vpop.permute.xlu0 %1186
    %1188 = vrot.lane.b32.xlu0 %v403, 8
    %v1189 = vpop.permute.xlu0 %1188
    %1190 = vrot.lane.b32.xlu0 %v404, 8
    %v1191 = vpop.permute.xlu0 %1190
    %1192 = vrot.lane.b32.xlu0 %v405, 8
    %v1193 = vpop.permute.xlu0 %1192
    %1194 = vrot.lane.b32.xlu0 %v406, 8
    %v1195 = vpop.permute.xlu0 %1194
    %1196 = vrot.lane.b32.xlu0 %v407, 8
    %v1197 = vpop.permute.xlu0 %1196
    %1198 = vrot.lane.b32.xlu0 %v408, 8
    %v1199 = vpop.permute.xlu0 %1198
    %1200 = vrot.lane.b32.xlu0 %v409, 8
    %v1201 = vpop.permute.xlu0 %1200
    %1202 = vrot.lane.b32.xlu0 %v410, 8
    %v1203 = vpop.permute.xlu0 %1202
    %1204 = vrot.lane.b32.xlu0 %v411, 8
    %v1205 = vpop.permute.xlu0 %1204
    %1206 = vrot.lane.b32.xlu0 %v412, 8
    %v1207 = vpop.permute.xlu0 %1206
    %1208 = vrot.lane.b32.xlu0 %v413, 8
    %v1209 = vpop.permute.xlu0 %1208
    %1210 = vrot.lane.b32.xlu0 %v414, 8
    %v1211 = vpop.permute.xlu0 %1210
    %1212 = vrot.lane.b32.xlu0 %v415, 8
    %v1213 = vpop.permute.xlu0 %1212
    %1214 = vrot.lane.b32.xlu0 %v416, 8
    %v1215 = vpop.permute.xlu0 %1214
    %1216 = vrot.lane.b32.xlu0 %v417, 8
    %v1217 = vpop.permute.xlu0 %1216
    %1218 = vrot.lane.b32.xlu0 %v418, 8
    %v1219 = vpop.permute.xlu0 %1218
    %1220 = vrot.lane.b32.xlu0 %v419, 8
    %v1221 = vpop.permute.xlu0 %1220
    %1222 = vrot.lane.b32.xlu0 %v420, 8
    %v1223 = vpop.permute.xlu0 %1222
    %1224 = vrot.lane.b32.xlu0 %v421, 8
    %v1225 = vpop.permute.xlu0 %1224
    %1226 = vrot.lane.b32.xlu0 %v422, 8
    %v1227 = vpop.permute.xlu0 %1226
    %1228 = vrot.lane.b32.xlu0 %v423, 8
    %v1229 = vpop.permute.xlu0 %1228
    %1230 = vrot.lane.b32.xlu0 %v424, 8
    %v1231 = vpop.permute.xlu0 %1230
    %1232 = vrot.lane.b32.xlu0 %v425, 8
    %v1233 = vpop.permute.xlu0 %1232
    %1234 = vrot.lane.b32.xlu0 %v426, 8
    %v1235 = vpop.permute.xlu0 %1234
    %1236 = vrot.lane.b32.xlu0 %v427, 8
    %v1237 = vpop.permute.xlu0 %1236
    %1238 = vrot.lane.b32.xlu0 %v428, 8
    %v1239 = vpop.permute.xlu0 %1238
    %1240 = vrot.lane.b32.xlu0 %v429, 8
    %v1241 = vpop.permute.xlu0 %1240
    %1242 = vrot.lane.b32.xlu0 %v430, 8
    %v1243 = vpop.permute.xlu0 %1242
    %1244 = vrot.lane.b32.xlu0 %v431, 8
    %v1245 = vpop.permute.xlu0 %1244
    %1246 = vrot.lane.b32.xlu0 %v432, 8
    %v1247 = vpop.permute.xlu0 %1246
    %1248 = vrot.lane.b32.xlu0 %v433, 8
    %v1249 = vpop.permute.xlu0 %1248
    %1250 = vrot.lane.b32.xlu0 %v434, 8
    %v1251 = vpop.permute.xlu0 %1250
    %1252 = vrot.lane.b32.xlu0 %v435, 8
    %v1253 = vpop.permute.xlu0 %1252
    %1254 = vrot.lane.b32.xlu0 %v436, 8
    %v1255 = vpop.permute.xlu0 %1254
    %1256 = vrot.lane.b32.xlu0 %v437, 8
    %v1257 = vpop.permute.xlu0 %1256
    %1258 = vrot.lane.b32.xlu0 %v438, 8
    %v1259 = vpop.permute.xlu0 %1258
    %1260 = vrot.lane.b32.xlu0 %v439, 8
    %v1261 = vpop.permute.xlu0 %1260
    %1262 = vrot.lane.b32.xlu0 %v440, 8
    %v1263 = vpop.permute.xlu0 %1262
    %1264 = vrot.lane.b32.xlu0 %v441, 8
    %v1265 = vpop.permute.xlu0 %1264
    %1266 = vrot.lane.b32.xlu0 %v442, 8
    %v1267 = vpop.permute.xlu0 %1266
    %1268 = vrot.lane.b32.xlu0 %v443, 8
    %v1269 = vpop.permute.xlu0 %1268
    %1270 = vrot.lane.b32.xlu0 %v444, 8
    %v1271 = vpop.permute.xlu0 %1270
    %1272 = vrot.lane.b32.xlu0 %v445, 8
    %v1273 = vpop.permute.xlu0 %1272
    %1274 = vrot.lane.b32.xlu0 %v446, 8
    %v1275 = vpop.permute.xlu0 %1274
    %1276 = vrot.lane.b32.xlu0 %v447, 8
    %v1277 = vpop.permute.xlu0 %1276
    %1278 = vrot.lane.b32.xlu0 %v448, 8
    %v1279 = vpop.permute.xlu0 %1278
    %1280 = vrot.lane.b32.xlu0 %v449, 8
    %v1281 = vpop.permute.xlu0 %1280
    %1282 = vrot.lane.b32.xlu0 %v450, 8
    %v1283 = vpop.permute.xlu0 %1282
    %1412 = vrot.lane.b32.xlu0 %v451, 12
    %v1413 = vpop.permute.xlu0 %1412
    %1414 = vrot.lane.b32.xlu0 %v452, 12
    %v1415 = vpop.permute.xlu0 %1414
    %1416 = vrot.lane.b32.xlu0 %v453, 12
    %v1417 = vpop.permute.xlu0 %1416
    %1418 = vrot.lane.b32.xlu0 %v454, 12
    %v1419 = vpop.permute.xlu0 %1418
    %1420 = vrot.lane.b32.xlu0 %v455, 12
    %v1421 = vpop.permute.xlu0 %1420
    %1422 = vrot.lane.b32.xlu0 %v456, 12
    %v1423 = vpop.permute.xlu0 %1422
    %1424 = vrot.lane.b32.xlu0 %v457, 12
    %v1425 = vpop.permute.xlu0 %1424
    %1426 = vrot.lane.b32.xlu0 %v458, 12
    %v1427 = vpop.permute.xlu0 %1426
    %1428 = vrot.lane.b32.xlu0 %v459, 12
    %v1429 = vpop.permute.xlu0 %1428
    %1430 = vrot.lane.b32.xlu0 %v460, 12
    %v1431 = vpop.permute.xlu0 %1430
    %1432 = vrot.lane.b32.xlu0 %v461, 12
    %v1433 = vpop.permute.xlu0 %1432
    %1434 = vrot.lane.b32.xlu0 %v462, 12
    %v1435 = vpop.permute.xlu0 %1434
    %1436 = vrot.lane.b32.xlu0 %v463, 12
    %v1437 = vpop.permute.xlu0 %1436
    %1438 = vrot.lane.b32.xlu0 %v464, 12
    %v1439 = vpop.permute.xlu0 %1438
    %1440 = vrot.lane.b32.xlu0 %v465, 12
    %v1441 = vpop.permute.xlu0 %1440
    %1442 = vrot.lane.b32.xlu0 %v466, 12
    %v1443 = vpop.permute.xlu0 %1442
    %1444 = vrot.lane.b32.xlu0 %v467, 12
    %v1445 = vpop.permute.xlu0 %1444
    %1446 = vrot.lane.b32.xlu0 %v468, 12
    %v1447 = vpop.permute.xlu0 %1446
    %1448 = vrot.lane.b32.xlu0 %v469, 12
    %v1449 = vpop.permute.xlu0 %1448
    %1450 = vrot.lane.b32.xlu0 %v470, 12
    %v1451 = vpop.permute.xlu0 %1450
    %1452 = vrot.lane.b32.xlu0 %v471, 12
    %v1453 = vpop.permute.xlu0 %1452
    %1454 = vrot.lane.b32.xlu0 %v472, 12
    %v1455 = vpop.permute.xlu0 %1454
    %1456 = vrot.lane.b32.xlu0 %v473, 12
    %v1457 = vpop.permute.xlu0 %1456
    %1458 = vrot.lane.b32.xlu0 %v474, 12
    %v1459 = vpop.permute.xlu0 %1458
    %1460 = vrot.lane.b32.xlu0 %v475, 12
    %v1461 = vpop.permute.xlu0 %1460
    %1462 = vrot.lane.b32.xlu0 %v476, 12
    %v1463 = vpop.permute.xlu0 %1462
    %1464 = vrot.lane.b32.xlu0 %v477, 12
    %v1465 = vpop.permute.xlu0 %1464
    %1466 = vrot.lane.b32.xlu0 %v478, 12
    %v1467 = vpop.permute.xlu0 %1466
    %1468 = vrot.lane.b32.xlu0 %v479, 12
    %v1469 = vpop.permute.xlu0 %1468
    %1470 = vrot.lane.b32.xlu0 %v480, 12
    %v1471 = vpop.permute.xlu0 %1470
    %1472 = vrot.lane.b32.xlu0 %v481, 12
    %v1473 = vpop.permute.xlu0 %1472
    %1474 = vrot.lane.b32.xlu0 %v482, 12
    %v1475 = vpop.permute.xlu0 %1474
    %1476 = vrot.lane.b32.xlu0 %v483, 12
    %v1477 = vpop.permute.xlu0 %1476
    %1478 = vrot.lane.b32.xlu0 %v484, 12
    %v1479 = vpop.permute.xlu0 %1478
    %1480 = vrot.lane.b32.xlu0 %v485, 12
    %v1481 = vpop.permute.xlu0 %1480
    %1482 = vrot.lane.b32.xlu0 %v486, 12
    %v1483 = vpop.permute.xlu0 %1482
    %1484 = vrot.lane.b32.xlu0 %v487, 12
    %v1485 = vpop.permute.xlu0 %1484
    %1486 = vrot.lane.b32.xlu0 %v488, 12
    %v1487 = vpop.permute.xlu0 %1486
    %1488 = vrot.lane.b32.xlu0 %v489, 12
    %v1489 = vpop.permute.xlu0 %1488
    %1490 = vrot.lane.b32.xlu0 %v490, 12
    %v1491 = vpop.permute.xlu0 %1490
    %1492 = vrot.lane.b32.xlu0 %v491, 12
    %v1493 = vpop.permute.xlu0 %1492
    %1494 = vrot.lane.b32.xlu0 %v492, 12
    %v1495 = vpop.permute.xlu0 %1494
    %1496 = vrot.lane.b32.xlu0 %v493, 12
    %v1497 = vpop.permute.xlu0 %1496
    %1498 = vrot.lane.b32.xlu0 %v494, 12
    %v1499 = vpop.permute.xlu0 %1498
    %1500 = vrot.lane.b32.xlu0 %v495, 12
    %v1501 = vpop.permute.xlu0 %1500
    %1502 = vrot.lane.b32.xlu0 %v496, 12
    %v1503 = vpop.permute.xlu0 %1502
    %1504 = vrot.lane.b32.xlu0 %v497, 12
    %v1505 = vpop.permute.xlu0 %1504
    %1506 = vrot.lane.b32.xlu0 %v498, 12
    %v1507 = vpop.permute.xlu0 %1506
    %1508 = vrot.lane.b32.xlu0 %v499, 12
    %v1509 = vpop.permute.xlu0 %1508
    %1510 = vrot.lane.b32.xlu0 %v500, 12
    %v1511 = vpop.permute.xlu0 %1510
    %1512 = vrot.lane.b32.xlu0 %v501, 12
    %v1513 = vpop.permute.xlu0 %1512
    %1514 = vrot.lane.b32.xlu0 %v502, 12
    %v1515 = vpop.permute.xlu0 %1514
    %1516 = vrot.lane.b32.xlu0 %v503, 12
    %v1517 = vpop.permute.xlu0 %1516
    %1518 = vrot.lane.b32.xlu0 %v504, 12
    %v1519 = vpop.permute.xlu0 %1518
    %1520 = vrot.lane.b32.xlu0 %v505, 12
    %v1521 = vpop.permute.xlu0 %1520
    %1522 = vrot.lane.b32.xlu0 %v506, 12
    %v1523 = vpop.permute.xlu0 %1522
    %1524 = vrot.lane.b32.xlu0 %v507, 12
    %v1525 = vpop.permute.xlu0 %1524
    %1526 = vrot.lane.b32.xlu0 %v508, 12
    %v1527 = vpop.permute.xlu0 %1526
    %1528 = vrot.lane.b32.xlu0 %v509, 12
    %v1529 = vpop.permute.xlu0 %1528
    %1530 = vrot.lane.b32.xlu0 %v510, 12
    %v1531 = vpop.permute.xlu0 %1530
    %1532 = vrot.lane.b32.xlu0 %v511, 12
    %v1533 = vpop.permute.xlu0 %1532
    %1534 = vrot.lane.b32.xlu0 %v512, 12
    %v1535 = vpop.permute.xlu0 %1534
    %1536 = vrot.lane.b32.xlu0 %v513, 12
    %v1537 = vpop.permute.xlu0 %1536
    %1538 = vrot.lane.b32.xlu0 %v514, 12
    %v1539 = vpop.permute.xlu0 %1538
    %1668 = vrot.lane.b32.xlu0 %v515, 16
    %v1669 = vpop.permute.xlu0 %1668
    %1670 = vrot.lane.b32.xlu0 %v516, 16
    %v1671 = vpop.permute.xlu0 %1670
    %1672 = vrot.lane.b32.xlu0 %v517, 16
    %v1673 = vpop.permute.xlu0 %1672
    %1674 = vrot.lane.b32.xlu0 %v518, 16
    %v1675 = vpop.permute.xlu0 %1674
    %1676 = vrot.lane.b32.xlu0 %v519, 16
    %v1677 = vpop.permute.xlu0 %1676
    %1678 = vrot.lane.b32.xlu0 %v520, 16
    %v1679 = vpop.permute.xlu0 %1678
    %1680 = vrot.lane.b32.xlu0 %v521, 16
    %v1681 = vpop.permute.xlu0 %1680
    %1682 = vrot.lane.b32.xlu0 %v522, 16
    %v1683 = vpop.permute.xlu0 %1682
    %1684 = vrot.lane.b32.xlu0 %v523, 16
    %v1685 = vpop.permute.xlu0 %1684
    %1686 = vrot.lane.b32.xlu0 %v524, 16
    %v1687 = vpop.permute.xlu0 %1686
    %1688 = vrot.lane.b32.xlu0 %v525, 16
    %v1689 = vpop.permute.xlu0 %1688
    %1690 = vrot.lane.b32.xlu0 %v526, 16
    %v1691 = vpop.permute.xlu0 %1690
    %1692 = vrot.lane.b32.xlu0 %v527, 16
    %v1693 = vpop.permute.xlu0 %1692
    %1694 = vrot.lane.b32.xlu0 %v528, 16
    %v1695 = vpop.permute.xlu0 %1694
    %1696 = vrot.lane.b32.xlu0 %v529, 16
    %v1697 = vpop.permute.xlu0 %1696
    %1698 = vrot.lane.b32.xlu0 %v530, 16
    %v1699 = vpop.permute.xlu0 %1698
    %1700 = vrot.lane.b32.xlu0 %v531, 16
    %v1701 = vpop.permute.xlu0 %1700
    %1702 = vrot.lane.b32.xlu0 %v532, 16
    %v1703 = vpop.permute.xlu0 %1702
    %1704 = vrot.lane.b32.xlu0 %v533, 16
    %v1705 = vpop.permute.xlu0 %1704
    %1706 = vrot.lane.b32.xlu0 %v534, 16
    %v1707 = vpop.permute.xlu0 %1706
    %1708 = vrot.lane.b32.xlu0 %v535, 16
    %v1709 = vpop.permute.xlu0 %1708
    %1710 = vrot.lane.b32.xlu0 %v536, 16
    %v1711 = vpop.permute.xlu0 %1710
    %1712 = vrot.lane.b32.xlu0 %v537, 16
    %v1713 = vpop.permute.xlu0 %1712
    %1714 = vrot.lane.b32.xlu0 %v538, 16
    %v1715 = vpop.permute.xlu0 %1714
    %1716 = vrot.lane.b32.xlu0 %v539, 16
    %v1717 = vpop.permute.xlu0 %1716
    %1718 = vrot.lane.b32.xlu0 %v540, 16
    %v1719 = vpop.permute.xlu0 %1718
    %1720 = vrot.lane.b32.xlu0 %v541, 16
    %v1721 = vpop.permute.xlu0 %1720
    %1722 = vrot.lane.b32.xlu0 %v542, 16
    %v1723 = vpop.permute.xlu0 %1722
    %1724 = vrot.lane.b32.xlu0 %v543, 16
    %v1725 = vpop.permute.xlu0 %1724
    %1726 = vrot.lane.b32.xlu0 %v544, 16
    %v1727 = vpop.permute.xlu0 %1726
    %1728 = vrot.lane.b32.xlu0 %v545, 16
    %v1729 = vpop.permute.xlu0 %1728
    %1730 = vrot.lane.b32.xlu0 %v546, 16
    %v1731 = vpop.permute.xlu0 %1730
    %1732 = vrot.lane.b32.xlu0 %v547, 16
    %v1733 = vpop.permute.xlu0 %1732
    %1734 = vrot.lane.b32.xlu0 %v548, 16
    %v1735 = vpop.permute.xlu0 %1734
    %1736 = vrot.lane.b32.xlu0 %v549, 16
    %v1737 = vpop.permute.xlu0 %1736
    %1738 = vrot.lane.b32.xlu0 %v550, 16
    %v1739 = vpop.permute.xlu0 %1738
    %1740 = vrot.lane.b32.xlu0 %v551, 16
    %v1741 = vpop.permute.xlu0 %1740
    %1742 = vrot.lane.b32.xlu0 %v552, 16
    %v1743 = vpop.permute.xlu0 %1742
    %1744 = vrot.lane.b32.xlu0 %v553, 16
    %v1745 = vpop.permute.xlu0 %1744
    %1746 = vrot.lane.b32.xlu0 %v554, 16
    %v1747 = vpop.permute.xlu0 %1746
    %1748 = vrot.lane.b32.xlu0 %v555, 16
    %v1749 = vpop.permute.xlu0 %1748
    %1750 = vrot.lane.b32.xlu0 %v556, 16
    %v1751 = vpop.permute.xlu0 %1750
    %1752 = vrot.lane.b32.xlu0 %v557, 16
    %v1753 = vpop.permute.xlu0 %1752
    %1754 = vrot.lane.b32.xlu0 %v558, 16
    %v1755 = vpop.permute.xlu0 %1754
    %1756 = vrot.lane.b32.xlu0 %v559, 16
    %v1757 = vpop.permute.xlu0 %1756
    %1758 = vrot.lane.b32.xlu0 %v560, 16
    %v1759 = vpop.permute.xlu0 %1758
    %1760 = vrot.lane.b32.xlu0 %v561, 16
    %v1761 = vpop.permute.xlu0 %1760
    %1762 = vrot.lane.b32.xlu0 %v562, 16
    %v1763 = vpop.permute.xlu0 %1762
    %1764 = vrot.lane.b32.xlu0 %v563, 16
    %v1765 = vpop.permute.xlu0 %1764
    %1766 = vrot.lane.b32.xlu0 %v564, 16
    %v1767 = vpop.permute.xlu0 %1766
    %1768 = vrot.lane.b32.xlu0 %v565, 16
    %v1769 = vpop.permute.xlu0 %1768
    %1770 = vrot.lane.b32.xlu0 %v566, 16
    %v1771 = vpop.permute.xlu0 %1770
    %1772 = vrot.lane.b32.xlu0 %v567, 16
    %v1773 = vpop.permute.xlu0 %1772
    %1774 = vrot.lane.b32.xlu0 %v568, 16
    %v1775 = vpop.permute.xlu0 %1774
    %1776 = vrot.lane.b32.xlu0 %v569, 16
    %v1777 = vpop.permute.xlu0 %1776
    %1778 = vrot.lane.b32.xlu0 %v570, 16
    %v1779 = vpop.permute.xlu0 %1778
    %1780 = vrot.lane.b32.xlu0 %v571, 16
    %v1781 = vpop.permute.xlu0 %1780
    %1782 = vrot.lane.b32.xlu0 %v572, 16
    %v1783 = vpop.permute.xlu0 %1782
    %1784 = vrot.lane.b32.xlu0 %v573, 16
    %v1785 = vpop.permute.xlu0 %1784
    %1786 = vrot.lane.b32.xlu0 %v574, 16
    %v1787 = vpop.permute.xlu0 %1786
    %1788 = vrot.lane.b32.xlu0 %v575, 16
    %v1789 = vpop.permute.xlu0 %1788
    %1790 = vrot.lane.b32.xlu0 %v576, 16
    %v1791 = vpop.permute.xlu0 %1790
    %1792 = vrot.lane.b32.xlu0 %v577, 16
    %v1793 = vpop.permute.xlu0 %1792
    %1794 = vrot.lane.b32.xlu0 %v578, 16
    %v1795 = vpop.permute.xlu0 %1794
    %1924 = vrot.lane.b32.xlu0 %v579, 20
    %v1925 = vpop.permute.xlu0 %1924
    %1926 = vrot.lane.b32.xlu0 %v580, 20
    %v1927 = vpop.permute.xlu0 %1926
    %1928 = vrot.lane.b32.xlu0 %v581, 20
    %v1929 = vpop.permute.xlu0 %1928
    %1930 = vrot.lane.b32.xlu0 %v582, 20
    %v1931 = vpop.permute.xlu0 %1930
    %1932 = vrot.lane.b32.xlu0 %v583, 20
    %v1933 = vpop.permute.xlu0 %1932
    %1934 = vrot.lane.b32.xlu0 %v584, 20
    %v1935 = vpop.permute.xlu0 %1934
    %1936 = vrot.lane.b32.xlu0 %v585, 20
    %v1937 = vpop.permute.xlu0 %1936
    %1938 = vrot.lane.b32.xlu0 %v586, 20
    %v1939 = vpop.permute.xlu0 %1938
    %1940 = vrot.lane.b32.xlu0 %v587, 20
    %v1941 = vpop.permute.xlu0 %1940
    %1942 = vrot.lane.b32.xlu0 %v588, 20
    %v1943 = vpop.permute.xlu0 %1942
    %1944 = vrot.lane.b32.xlu0 %v589, 20
    %v1945 = vpop.permute.xlu0 %1944
    %1946 = vrot.lane.b32.xlu0 %v590, 20
    %v1947 = vpop.permute.xlu0 %1946
    %1948 = vrot.lane.b32.xlu0 %v591, 20
    %v1949 = vpop.permute.xlu0 %1948
    %1950 = vrot.lane.b32.xlu0 %v592, 20
    %v1951 = vpop.permute.xlu0 %1950
    %1952 = vrot.lane.b32.xlu0 %v593, 20
    %v1953 = vpop.permute.xlu0 %1952
    %1954 = vrot.lane.b32.xlu0 %v594, 20
    %v1955 = vpop.permute.xlu0 %1954
    %1956 = vrot.lane.b32.xlu0 %v595, 20
    %v1957 = vpop.permute.xlu0 %1956
    %1958 = vrot.lane.b32.xlu0 %v596, 20
    %v1959 = vpop.permute.xlu0 %1958
    %1960 = vrot.lane.b32.xlu0 %v597, 20
    %v1961 = vpop.permute.xlu0 %1960
    %1962 = vrot.lane.b32.xlu0 %v598, 20
    %v1963 = vpop.permute.xlu0 %1962
    %1964 = vrot.lane.b32.xlu0 %v599, 20
    %v1965 = vpop.permute.xlu0 %1964
    %1966 = vrot.lane.b32.xlu0 %v600, 20
    %v1967 = vpop.permute.xlu0 %1966
    %1968 = vrot.lane.b32.xlu0 %v601, 20
    %v1969 = vpop.permute.xlu0 %1968
    %1970 = vrot.lane.b32.xlu0 %v602, 20
    %v1971 = vpop.permute.xlu0 %1970
    %1972 = vrot.lane.b32.xlu0 %v603, 20
    %v1973 = vpop.permute.xlu0 %1972
    %1974 = vrot.lane.b32.xlu0 %v604, 20
    %v1975 = vpop.permute.xlu0 %1974
    %1976 = vrot.lane.b32.xlu0 %v605, 20
    %v1977 = vpop.permute.xlu0 %1976
    %1978 = vrot.lane.b32.xlu0 %v606, 20
    %v1979 = vpop.permute.xlu0 %1978
    %1980 = vrot.lane.b32.xlu0 %v607, 20
    %v1981 = vpop.permute.xlu0 %1980
    %1982 = vrot.lane.b32.xlu0 %v608, 20
    %v1983 = vpop.permute.xlu0 %1982
    %1984 = vrot.lane.b32.xlu0 %v609, 20
    %v1985 = vpop.permute.xlu0 %1984
    %1986 = vrot.lane.b32.xlu0 %v610, 20
    %v1987 = vpop.permute.xlu0 %1986
    %1988 = vrot.lane.b32.xlu0 %v611, 20
    %v1989 = vpop.permute.xlu0 %1988
    %1990 = vrot.lane.b32.xlu0 %v612, 20
    %v1991 = vpop.permute.xlu0 %1990
    %1992 = vrot.lane.b32.xlu0 %v613, 20
    %v1993 = vpop.permute.xlu0 %1992
    %1994 = vrot.lane.b32.xlu0 %v614, 20
    %v1995 = vpop.permute.xlu0 %1994
    %1996 = vrot.lane.b32.xlu0 %v615, 20
    %v1997 = vpop.permute.xlu0 %1996
    %1998 = vrot.lane.b32.xlu0 %v616, 20
    %v1999 = vpop.permute.xlu0 %1998
    %2000 = vrot.lane.b32.xlu0 %v617, 20
    %v2001 = vpop.permute.xlu0 %2000
    %2002 = vrot.lane.b32.xlu0 %v618, 20
    %v2003 = vpop.permute.xlu0 %2002
    %2004 = vrot.lane.b32.xlu0 %v619, 20
    %v2005 = vpop.permute.xlu0 %2004
    %2006 = vrot.lane.b32.xlu0 %v620, 20
    %v2007 = vpop.permute.xlu0 %2006
    %2008 = vrot.lane.b32.xlu0 %v621, 20
    %v2009 = vpop.permute.xlu0 %2008
    %2010 = vrot.lane.b32.xlu0 %v622, 20
    %v2011 = vpop.permute.xlu0 %2010
    %2012 = vrot.lane.b32.xlu0 %v623, 20
    %v2013 = vpop.permute.xlu0 %2012
    %2014 = vrot.lane.b32.xlu0 %v624, 20
    %v2015 = vpop.permute.xlu0 %2014
    %2016 = vrot.lane.b32.xlu0 %v625, 20
    %v2017 = vpop.permute.xlu0 %2016
    %2018 = vrot.lane.b32.xlu0 %v626, 20
    %v2019 = vpop.permute.xlu0 %2018
    %2020 = vrot.lane.b32.xlu0 %v627, 20
    %v2021 = vpop.permute.xlu0 %2020
    %2022 = vrot.lane.b32.xlu0 %v628, 20
    %v2023 = vpop.permute.xlu0 %2022
    %2024 = vrot.lane.b32.xlu0 %v629, 20
    %v2025 = vpop.permute.xlu0 %2024
    %2026 = vrot.lane.b32.xlu0 %v630, 20
    %v2027 = vpop.permute.xlu0 %2026
    %2028 = vrot.lane.b32.xlu0 %v631, 20
    %v2029 = vpop.permute.xlu0 %2028
    %2030 = vrot.lane.b32.xlu0 %v632, 20
    %v2031 = vpop.permute.xlu0 %2030
    %2032 = vrot.lane.b32.xlu0 %v633, 20
    %v2033 = vpop.permute.xlu0 %2032
    %2034 = vrot.lane.b32.xlu0 %v634, 20
    %v2035 = vpop.permute.xlu0 %2034
    %2036 = vrot.lane.b32.xlu0 %v635, 20
    %v2037 = vpop.permute.xlu0 %2036
    %2038 = vrot.lane.b32.xlu0 %v636, 20
    %v2039 = vpop.permute.xlu0 %2038
    %2040 = vrot.lane.b32.xlu0 %v637, 20
    %v2041 = vpop.permute.xlu0 %2040
    %2042 = vrot.lane.b32.xlu0 %v638, 20
    %v2043 = vpop.permute.xlu0 %2042
    %2044 = vrot.lane.b32.xlu0 %v639, 20
    %v2045 = vpop.permute.xlu0 %2044
    %2046 = vrot.lane.b32.xlu0 %v640, 20
    %v2047 = vpop.permute.xlu0 %2046
    %2048 = vrot.lane.b32.xlu0 %v641, 20
    %v2049 = vpop.permute.xlu0 %2048
    %2050 = vrot.lane.b32.xlu0 %v642, 20
    %v2051 = vpop.permute.xlu0 %2050
    %2180 = vrot.lane.b32.xlu0 %v644, 24
    %v2181 = vpop.permute.xlu0 %2180
    %2182 = vrot.lane.b32.xlu0 %v645, 24
    %v2183 = vpop.permute.xlu0 %2182
    %2184 = vrot.lane.b32.xlu0 %v646, 24
    %v2185 = vpop.permute.xlu0 %2184
    %2186 = vrot.lane.b32.xlu0 %v647, 24
    %v2187 = vpop.permute.xlu0 %2186
    %2188 = vrot.lane.b32.xlu0 %v648, 24
    %v2189 = vpop.permute.xlu0 %2188
    %2190 = vrot.lane.b32.xlu0 %v649, 24
    %v2191 = vpop.permute.xlu0 %2190
    %2192 = vrot.lane.b32.xlu0 %v650, 24
    %v2193 = vpop.permute.xlu0 %2192
    %2194 = vrot.lane.b32.xlu0 %v651, 24
    %v2195 = vpop.permute.xlu0 %2194
    %2196 = vrot.lane.b32.xlu0 %v652, 24
    %v2197 = vpop.permute.xlu0 %2196
    %2198 = vrot.lane.b32.xlu0 %v653, 24
    %v2199 = vpop.permute.xlu0 %2198
    %2200 = vrot.lane.b32.xlu0 %v654, 24
    %v2201 = vpop.permute.xlu0 %2200
    %2202 = vrot.lane.b32.xlu0 %v655, 24
    %v2203 = vpop.permute.xlu0 %2202
    %2204 = vrot.lane.b32.xlu0 %v656, 24
    %v2205 = vpop.permute.xlu0 %2204
    %2206 = vrot.lane.b32.xlu0 %v657, 24
    %v2207 = vpop.permute.xlu0 %2206
    %2208 = vrot.lane.b32.xlu0 %v658, 24
    %v2209 = vpop.permute.xlu0 %2208
    %2210 = vrot.lane.b32.xlu0 %v659, 24
    %v2211 = vpop.permute.xlu0 %2210
    %2212 = vrot.lane.b32.xlu0 %v660, 24
    %v2213 = vpop.permute.xlu0 %2212
    %2214 = vrot.lane.b32.xlu0 %v661, 24
    %v2215 = vpop.permute.xlu0 %2214
    %2216 = vrot.lane.b32.xlu0 %v662, 24
    %v2217 = vpop.permute.xlu0 %2216
    %2218 = vrot.lane.b32.xlu0 %v663, 24
    %v2219 = vpop.permute.xlu0 %2218
    %2220 = vrot.lane.b32.xlu0 %v664, 24
    %v2221 = vpop.permute.xlu0 %2220
    %2222 = vrot.lane.b32.xlu0 %v665, 24
    %v2223 = vpop.permute.xlu0 %2222
    %2224 = vrot.lane.b32.xlu0 %v666, 24
    %v2225 = vpop.permute.xlu0 %2224
    %2226 = vrot.lane.b32.xlu0 %v667, 24
    %v2227 = vpop.permute.xlu0 %2226
    %2228 = vrot.lane.b32.xlu0 %v668, 24
    %v2229 = vpop.permute.xlu0 %2228
    %2230 = vrot.lane.b32.xlu0 %v669, 24
    %v2231 = vpop.permute.xlu0 %2230
    %2232 = vrot.lane.b32.xlu0 %v670, 24
    %v2233 = vpop.permute.xlu0 %2232
    %2234 = vrot.lane.b32.xlu0 %v671, 24
    %v2235 = vpop.permute.xlu0 %2234
    %2236 = vrot.lane.b32.xlu0 %v672, 24
    %v2237 = vpop.permute.xlu0 %2236
    %2238 = vrot.lane.b32.xlu0 %v673, 24
    %v2239 = vpop.permute.xlu0 %2238
    %2240 = vrot.lane.b32.xlu0 %v674, 24
    %v2241 = vpop.permute.xlu0 %2240
    %2242 = vrot.lane.b32.xlu0 %v675, 24
    %v2243 = vpop.permute.xlu0 %2242
    %2244 = vrot.lane.b32.xlu0 %v676, 24
    %v2245 = vpop.permute.xlu0 %2244
    %2246 = vrot.lane.b32.xlu0 %v677, 24
    %v2247 = vpop.permute.xlu0 %2246
    %2248 = vrot.lane.b32.xlu0 %v678, 24
    %v2249 = vpop.permute.xlu0 %2248
    %2250 = vrot.lane.b32.xlu0 %v679, 24
    %v2251 = vpop.permute.xlu0 %2250
    %2252 = vrot.lane.b32.xlu0 %v680, 24
    %v2253 = vpop.permute.xlu0 %2252
    %2254 = vrot.lane.b32.xlu0 %v681, 24
    %v2255 = vpop.permute.xlu0 %2254
    %2256 = vrot.lane.b32.xlu0 %v682, 24
    %v2257 = vpop.permute.xlu0 %2256
    %2258 = vrot.lane.b32.xlu0 %v683, 24
    %v2259 = vpop.permute.xlu0 %2258
    %2260 = vrot.lane.b32.xlu0 %v684, 24
    %v2261 = vpop.permute.xlu0 %2260
    %2262 = vrot.lane.b32.xlu0 %v685, 24
    %v2263 = vpop.permute.xlu0 %2262
    %2264 = vrot.lane.b32.xlu0 %v686, 24
    %v2265 = vpop.permute.xlu0 %2264
    %2266 = vrot.lane.b32.xlu0 %v687, 24
    %v2267 = vpop.permute.xlu0 %2266
    %2268 = vrot.lane.b32.xlu0 %v688, 24
    %v2269 = vpop.permute.xlu0 %2268
    %2270 = vrot.lane.b32.xlu0 %v689, 24
    %v2271 = vpop.permute.xlu0 %2270
    %2272 = vrot.lane.b32.xlu0 %v690, 24
    %v2273 = vpop.permute.xlu0 %2272
    %2274 = vrot.lane.b32.xlu0 %v691, 24
    %v2275 = vpop.permute.xlu0 %2274
    %2276 = vrot.lane.b32.xlu0 %v692, 24
    %v2277 = vpop.permute.xlu0 %2276
    %2278 = vrot.lane.b32.xlu0 %v693, 24
    %v2279 = vpop.permute.xlu0 %2278
    %2280 = vrot.lane.b32.xlu0 %v694, 24
    %v2281 = vpop.permute.xlu0 %2280
    %2282 = vrot.lane.b32.xlu0 %v695, 24
    %v2283 = vpop.permute.xlu0 %2282
    %2284 = vrot.lane.b32.xlu0 %v696, 24
    %v2285 = vpop.permute.xlu0 %2284
    %2286 = vrot.lane.b32.xlu0 %v697, 24
    %v2287 = vpop.permute.xlu0 %2286
    %2288 = vrot.lane.b32.xlu0 %v698, 24
    %v2289 = vpop.permute.xlu0 %2288
    %2290 = vrot.lane.b32.xlu0 %v699, 24
    %v2291 = vpop.permute.xlu0 %2290
    %2292 = vrot.lane.b32.xlu0 %v700, 24
    %v2293 = vpop.permute.xlu0 %2292
    %2294 = vrot.lane.b32.xlu0 %v701, 24
    %v2295 = vpop.permute.xlu0 %2294
    %2296 = vrot.lane.b32.xlu0 %v702, 24
    %v2297 = vpop.permute.xlu0 %2296
    %2298 = vrot.lane.b32.xlu0 %v703, 24
    %v2299 = vpop.permute.xlu0 %2298
    %2300 = vrot.lane.b32.xlu0 %v704, 24
    %v2301 = vpop.permute.xlu0 %2300
    %2302 = vrot.lane.b32.xlu0 %v705, 24
    %v2303 = vpop.permute.xlu0 %2302
    %2304 = vrot.lane.b32.xlu0 %v706, 24
    %v2305 = vpop.permute.xlu0 %2304
    %2306 = vrot.lane.b32.xlu0 %v707, 24
    %v2307 = vpop.permute.xlu0 %2306
    %2436 = vrot.lane.b32.xlu0 %v708, 28
    %v2437 = vpop.permute.xlu0 %2436
    %2438 = vrot.lane.b32.xlu0 %v709, 28
    %v2439 = vpop.permute.xlu0 %2438
    %2440 = vrot.lane.b32.xlu0 %v710, 28
    %v2441 = vpop.permute.xlu0 %2440
    %2442 = vrot.lane.b32.xlu0 %v711, 28
    %v2443 = vpop.permute.xlu0 %2442
    %2444 = vrot.lane.b32.xlu0 %v712, 28
    %v2445 = vpop.permute.xlu0 %2444
    %2446 = vrot.lane.b32.xlu0 %v713, 28
    %v2447 = vpop.permute.xlu0 %2446
    %2448 = vrot.lane.b32.xlu0 %v714, 28
    %v2449 = vpop.permute.xlu0 %2448
    %2450 = vrot.lane.b32.xlu0 %v715, 28
    %v2451 = vpop.permute.xlu0 %2450
    %2452 = vrot.lane.b32.xlu0 %v716, 28
    %v2453 = vpop.permute.xlu0 %2452
    %2454 = vrot.lane.b32.xlu0 %v717, 28
    %v2455 = vpop.permute.xlu0 %2454
    %2456 = vrot.lane.b32.xlu0 %v718, 28
    %v2457 = vpop.permute.xlu0 %2456
    %2458 = vrot.lane.b32.xlu0 %v719, 28
    %v2459 = vpop.permute.xlu0 %2458
    %2460 = vrot.lane.b32.xlu0 %v720, 28
    %v2461 = vpop.permute.xlu0 %2460
    %2462 = vrot.lane.b32.xlu0 %v721, 28
    %v2463 = vpop.permute.xlu0 %2462
    %2464 = vrot.lane.b32.xlu0 %v722, 28
    %v2465 = vpop.permute.xlu0 %2464
    %2466 = vrot.lane.b32.xlu0 %v723, 28
    %v2467 = vpop.permute.xlu0 %2466
    %2468 = vrot.lane.b32.xlu0 %v724, 28
    %v2469 = vpop.permute.xlu0 %2468
    %2470 = vrot.lane.b32.xlu0 %v725, 28
    %v2471 = vpop.permute.xlu0 %2470
    %2472 = vrot.lane.b32.xlu0 %v726, 28
    %v2473 = vpop.permute.xlu0 %2472
    %2474 = vrot.lane.b32.xlu0 %v727, 28
    %v2475 = vpop.permute.xlu0 %2474
    %2476 = vrot.lane.b32.xlu0 %v728, 28
    %v2477 = vpop.permute.xlu0 %2476
    %2478 = vrot.lane.b32.xlu0 %v729, 28
    %v2479 = vpop.permute.xlu0 %2478
    %2480 = vrot.lane.b32.xlu0 %v730, 28
    %v2481 = vpop.permute.xlu0 %2480
    %2482 = vrot.lane.b32.xlu0 %v731, 28
    %v2483 = vpop.permute.xlu0 %2482
    %2484 = vrot.lane.b32.xlu0 %v732, 28
    %v2485 = vpop.permute.xlu0 %2484
    %2486 = vrot.lane.b32.xlu0 %v733, 28
    %v2487 = vpop.permute.xlu0 %2486
    %2488 = vrot.lane.b32.xlu0 %v734, 28
    %v2489 = vpop.permute.xlu0 %2488
    %2490 = vrot.lane.b32.xlu0 %v735, 28
    %v2491 = vpop.permute.xlu0 %2490
    %2492 = vrot.lane.b32.xlu0 %v736, 28
    %v2493 = vpop.permute.xlu0 %2492
    %2494 = vrot.lane.b32.xlu0 %v737, 28
    %v2495 = vpop.permute.xlu0 %2494
    %2496 = vrot.lane.b32.xlu0 %v738, 28
    %v2497 = vpop.permute.xlu0 %2496
    %2498 = vrot.lane.b32.xlu0 %v739, 28
    %v2499 = vpop.permute.xlu0 %2498
    %2500 = vrot.lane.b32.xlu0 %v740, 28
    %v2501 = vpop.permute.xlu0 %2500
    %2502 = vrot.lane.b32.xlu0 %v741, 28
    %v2503 = vpop.permute.xlu0 %2502
    %2504 = vrot.lane.b32.xlu0 %v742, 28
    %v2505 = vpop.permute.xlu0 %2504
    %2506 = vrot.lane.b32.xlu0 %v743, 28
    %v2507 = vpop.permute.xlu0 %2506
    %2508 = vrot.lane.b32.xlu0 %v744, 28
    %v2509 = vpop.permute.xlu0 %2508
    %2510 = vrot.lane.b32.xlu0 %v745, 28
    %v2511 = vpop.permute.xlu0 %2510
    %2512 = vrot.lane.b32.xlu0 %v746, 28
    %v2513 = vpop.permute.xlu0 %2512
    %2514 = vrot.lane.b32.xlu0 %v747, 28
    %v2515 = vpop.permute.xlu0 %2514
    %2516 = vrot.lane.b32.xlu0 %v748, 28
    %v2517 = vpop.permute.xlu0 %2516
    %2518 = vrot.lane.b32.xlu0 %v749, 28
    %v2519 = vpop.permute.xlu0 %2518
    %2520 = vrot.lane.b32.xlu0 %v750, 28
    %v2521 = vpop.permute.xlu0 %2520
    %2522 = vrot.lane.b32.xlu0 %v751, 28
    %v2523 = vpop.permute.xlu0 %2522
    %2524 = vrot.lane.b32.xlu0 %v752, 28
    %v2525 = vpop.permute.xlu0 %2524
    %2526 = vrot.lane.b32.xlu0 %v753, 28
    %v2527 = vpop.permute.xlu0 %2526
    %2528 = vrot.lane.b32.xlu0 %v754, 28
    %v2529 = vpop.permute.xlu0 %2528
    %2530 = vrot.lane.b32.xlu0 %v755, 28
    %v2531 = vpop.permute.xlu0 %2530
    %2532 = vrot.lane.b32.xlu0 %v756, 28
    %v2533 = vpop.permute.xlu0 %2532
    %2534 = vrot.lane.b32.xlu0 %v757, 28
    %v2535 = vpop.permute.xlu0 %2534
    %2536 = vrot.lane.b32.xlu0 %v758, 28
    %v2537 = vpop.permute.xlu0 %2536
    %2538 = vrot.lane.b32.xlu0 %v759, 28
    %v2539 = vpop.permute.xlu0 %2538
    %2540 = vrot.lane.b32.xlu0 %v760, 28
    %v2541 = vpop.permute.xlu0 %2540
    %2542 = vrot.lane.b32.xlu0 %v761, 28
    %v2543 = vpop.permute.xlu0 %2542
    %2544 = vrot.lane.b32.xlu0 %v762, 28
    %v2545 = vpop.permute.xlu0 %2544
    %2546 = vrot.lane.b32.xlu0 %v763, 28
    %v2547 = vpop.permute.xlu0 %2546
    %2548 = vrot.lane.b32.xlu0 %v764, 28
    %v2549 = vpop.permute.xlu0 %2548
    %2550 = vrot.lane.b32.xlu0 %v765, 28
    %v2551 = vpop.permute.xlu0 %2550
    %2552 = vrot.lane.b32.xlu0 %v766, 28
    %v2553 = vpop.permute.xlu0 %2552
    %2554 = vrot.lane.b32.xlu0 %v767, 28
    %v2555 = vpop.permute.xlu0 %2554
    %2556 = vrot.lane.b32.xlu0 %v768, 28
    %v2557 = vpop.permute.xlu0 %2556
    %2558 = vrot.lane.b32.xlu0 %v769, 28
    %v2559 = vpop.permute.xlu0 %2558
    %2560 = vrot.lane.b32.xlu0 %v770, 28
    %v2561 = vpop.permute.xlu0 %2560
    %2562 = vrot.lane.b32.xlu0 %v771, 28
    %v2563 = vpop.permute.xlu0 %2562
    %2692 = vrot.lane.b32.xlu0 %v772, 32
    %v2693 = vpop.permute.xlu0 %2692
    %2694 = vrot.lane.b32.xlu0 %v773, 32
    %v2695 = vpop.permute.xlu0 %2694
    %2696 = vrot.lane.b32.xlu0 %v774, 32
    %v2697 = vpop.permute.xlu0 %2696
    %2698 = vrot.lane.b32.xlu0 %v775, 32
    %v2699 = vpop.permute.xlu0 %2698
    %2700 = vrot.lane.b32.xlu0 %v776, 32
    %v2701 = vpop.permute.xlu0 %2700
    %2702 = vrot.lane.b32.xlu0 %v777, 32
    %v2703 = vpop.permute.xlu0 %2702
    %2704 = vrot.lane.b32.xlu0 %v778, 32
    %v2705 = vpop.permute.xlu0 %2704
    %2706 = vrot.lane.b32.xlu0 %v779, 32
    %v2707 = vpop.permute.xlu0 %2706
    %2708 = vrot.lane.b32.xlu0 %v780, 32
    %v2709 = vpop.permute.xlu0 %2708
    %2710 = vrot.lane.b32.xlu0 %v781, 32
    %v2711 = vpop.permute.xlu0 %2710
    %2712 = vrot.lane.b32.xlu0 %v782, 32
    %v2713 = vpop.permute.xlu0 %2712
    %2714 = vrot.lane.b32.xlu0 %v783, 32
    %v2715 = vpop.permute.xlu0 %2714
    %2716 = vrot.lane.b32.xlu0 %v784, 32
    %v2717 = vpop.permute.xlu0 %2716
    %2718 = vrot.lane.b32.xlu0 %v785, 32
    %v2719 = vpop.permute.xlu0 %2718
    %2720 = vrot.lane.b32.xlu0 %v786, 32
    %v2721 = vpop.permute.xlu0 %2720
    %2722 = vrot.lane.b32.xlu0 %v787, 32
    %v2723 = vpop.permute.xlu0 %2722
    %2724 = vrot.lane.b32.xlu0 %v788, 32
    %v2725 = vpop.permute.xlu0 %2724
    %2726 = vrot.lane.b32.xlu0 %v789, 32
    %v2727 = vpop.permute.xlu0 %2726
    %2728 = vrot.lane.b32.xlu0 %v790, 32
    %v2729 = vpop.permute.xlu0 %2728
    %2730 = vrot.lane.b32.xlu0 %v791, 32
    %v2731 = vpop.permute.xlu0 %2730
    %2732 = vrot.lane.b32.xlu0 %v792, 32
    %v2733 = vpop.permute.xlu0 %2732
    %2734 = vrot.lane.b32.xlu0 %v793, 32
    %v2735 = vpop.permute.xlu0 %2734
    %2736 = vrot.lane.b32.xlu0 %v794, 32
    %v2737 = vpop.permute.xlu0 %2736
    %2738 = vrot.lane.b32.xlu0 %v795, 32
    %v2739 = vpop.permute.xlu0 %2738
    %2740 = vrot.lane.b32.xlu0 %v796, 32
    %v2741 = vpop.permute.xlu0 %2740
    %2742 = vrot.lane.b32.xlu0 %v797, 32
    %v2743 = vpop.permute.xlu0 %2742
    %2744 = vrot.lane.b32.xlu0 %v798, 32
    %v2745 = vpop.permute.xlu0 %2744
    %2746 = vrot.lane.b32.xlu0 %v799, 32
    %v2747 = vpop.permute.xlu0 %2746
    %2748 = vrot.lane.b32.xlu0 %v800, 32
    %v2749 = vpop.permute.xlu0 %2748
    %2750 = vrot.lane.b32.xlu0 %v801, 32
    %v2751 = vpop.permute.xlu0 %2750
    %2752 = vrot.lane.b32.xlu0 %v802, 32
    %v2753 = vpop.permute.xlu0 %2752
    %2754 = vrot.lane.b32.xlu0 %v803, 32
    %v2755 = vpop.permute.xlu0 %2754
    %2756 = vrot.lane.b32.xlu0 %v804, 32
    %v2757 = vpop.permute.xlu0 %2756
    %2758 = vrot.lane.b32.xlu0 %v805, 32
    %v2759 = vpop.permute.xlu0 %2758
    %2760 = vrot.lane.b32.xlu0 %v806, 32
    %v2761 = vpop.permute.xlu0 %2760
    %2762 = vrot.lane.b32.xlu0 %v807, 32
    %v2763 = vpop.permute.xlu0 %2762
    %2764 = vrot.lane.b32.xlu0 %v808, 32
    %v2765 = vpop.permute.xlu0 %2764
    %2766 = vrot.lane.b32.xlu0 %v809, 32
    %v2767 = vpop.permute.xlu0 %2766
    %2768 = vrot.lane.b32.xlu0 %v810, 32
    %v2769 = vpop.permute.xlu0 %2768
    %2770 = vrot.lane.b32.xlu0 %v811, 32
    %v2771 = vpop.permute.xlu0 %2770
    %2772 = vrot.lane.b32.xlu0 %v812, 32
    %v2773 = vpop.permute.xlu0 %2772
    %2774 = vrot.lane.b32.xlu0 %v813, 32
    %v2775 = vpop.permute.xlu0 %2774
    %2776 = vrot.lane.b32.xlu0 %v814, 32
    %v2777 = vpop.permute.xlu0 %2776
    %2778 = vrot.lane.b32.xlu0 %v815, 32
    %v2779 = vpop.permute.xlu0 %2778
    %2780 = vrot.lane.b32.xlu0 %v816, 32
    %v2781 = vpop.permute.xlu0 %2780
    %2782 = vrot.lane.b32.xlu0 %v817, 32
    %v2783 = vpop.permute.xlu0 %2782
    %2784 = vrot.lane.b32.xlu0 %v818, 32
    %v2785 = vpop.permute.xlu0 %2784
    %2786 = vrot.lane.b32.xlu0 %v819, 32
    %v2787 = vpop.permute.xlu0 %2786
    %2788 = vrot.lane.b32.xlu0 %v820, 32
    %v2789 = vpop.permute.xlu0 %2788
    %2790 = vrot.lane.b32.xlu0 %v821, 32
    %v2791 = vpop.permute.xlu0 %2790
    %2792 = vrot.lane.b32.xlu0 %v822, 32
    %v2793 = vpop.permute.xlu0 %2792
    %2794 = vrot.lane.b32.xlu0 %v823, 32
    %v2795 = vpop.permute.xlu0 %2794
    %2796 = vrot.lane.b32.xlu0 %v824, 32
    %v2797 = vpop.permute.xlu0 %2796
    %2798 = vrot.lane.b32.xlu0 %v825, 32
    %v2799 = vpop.permute.xlu0 %2798
    %2800 = vrot.lane.b32.xlu0 %v826, 32
    %v2801 = vpop.permute.xlu0 %2800
    %2802 = vrot.lane.b32.xlu0 %v827, 32
    %v2803 = vpop.permute.xlu0 %2802
    %2804 = vrot.lane.b32.xlu0 %v828, 32
    %v2805 = vpop.permute.xlu0 %2804
    %2806 = vrot.lane.b32.xlu0 %v829, 32
    %v2807 = vpop.permute.xlu0 %2806
    %2808 = vrot.lane.b32.xlu0 %v830, 32
    %v2809 = vpop.permute.xlu0 %2808
    %2810 = vrot.lane.b32.xlu0 %v831, 32
    %v2811 = vpop.permute.xlu0 %2810
    %2812 = vrot.lane.b32.xlu0 %v832, 32
    %v2813 = vpop.permute.xlu0 %2812
    %2814 = vrot.lane.b32.xlu0 %v833, 32
    %v2815 = vpop.permute.xlu0 %2814
    %2816 = vrot.lane.b32.xlu0 %v834, 32
    %v2817 = vpop.permute.xlu0 %2816
    %2818 = vrot.lane.b32.xlu0 %v835, 32
    %v2819 = vpop.permute.xlu0 %2818
    %v2884 = vsel %vm114, %v259, %v901
    %v2885 = vsel %vm114, %v260, %v903
    %v2886 = vsel %vm114, %v261, %v905
    %v2887 = vsel %vm114, %v262, %v907
    %v2888 = vsel %vm114, %v263, %v909
    %v2889 = vsel %vm114, %v264, %v911
    %v2890 = vsel %vm114, %v265, %v913
    %v2891 = vsel %vm114, %v266, %v915
    %v2892 = vsel %vm114, %v267, %v917
    %v2893 = vsel %vm114, %v268, %v919
    %v2894 = vsel %vm114, %v269, %v921
    %v2895 = vsel %vm114, %v270, %v923
    %v2896 = vsel %vm114, %v271, %v925
    %v2897 = vsel %vm114, %v272, %v927
    %v2898 = vsel %vm114, %v273, %v929
    %v2899 = vsel %vm114, %v274, %v931
    %v2900 = vsel %vm114, %v275, %v933
    %v2901 = vsel %vm114, %v276, %v935
    %v2902 = vsel %vm114, %v277, %v937
    %v2903 = vsel %vm114, %v278, %v939
    %v2904 = vsel %vm114, %v279, %v941
    %v2905 = vsel %vm114, %v280, %v943
    %v2906 = vsel %vm114, %v281, %v945
    %v2907 = vsel %vm114, %v282, %v947
    %v2908 = vsel %vm114, %v283, %v949
    %v2909 = vsel %vm114, %v284, %v951
    %v2910 = vsel %vm114, %v285, %v953
    %v2911 = vsel %vm114, %v286, %v955
    %v2912 = vsel %vm114, %v287, %v957
    %v2913 = vsel %vm114, %v288, %v959
    %v2914 = vsel %vm114, %v289, %v961
    %v2915 = vsel %vm114, %v290, %v963
    %v2916 = vsel %vm114, %v291, %v965
    %v2917 = vsel %vm114, %v292, %v967
    %v2918 = vsel %vm114, %v293, %v969
    %v2919 = vsel %vm114, %v294, %v971
    %v2920 = vsel %vm114, %v295, %v973
    %v2921 = vsel %vm114, %v296, %v975
    %v2922 = vsel %vm114, %v297, %v977
    %v2923 = vsel %vm114, %v298, %v979
    %v2924 = vsel %vm114, %v299, %v981
    %v2925 = vsel %vm114, %v300, %v983
    %v2926 = vsel %vm114, %v301, %v985
    %v2927 = vsel %vm114, %v302, %v987
    %v2928 = vsel %vm114, %v303, %v989
    %v2929 = vsel %vm114, %v304, %v991
    %v2930 = vsel %vm114, %v305, %v993
    %v2931 = vsel %vm114, %v306, %v995
    %v2932 = vsel %vm114, %v307, %v997
    %v2933 = vsel %vm114, %v308, %v999
    %v2934 = vsel %vm114, %v309, %v1001
    %v2935 = vsel %vm114, %v310, %v1003
    %v2936 = vsel %vm114, %v311, %v1005
    %v2937 = vsel %vm114, %v312, %v1007
    %v2938 = vsel %vm114, %v313, %v1009
    %v2939 = vsel %vm114, %v314, %v1011
    %v2940 = vsel %vm114, %v315, %v1013
    %v2941 = vsel %vm114, %v316, %v1015
    %v2942 = vsel %vm114, %v317, %v1017
    %v2943 = vsel %vm114, %v318, %v1019
    %v2944 = vsel %vm114, %v319, %v1021
    %v2945 = vsel %vm114, %v320, %v1023
    %v2946 = vsel %vm114, %v321, %v1025
    %v2947 = vsel %vm114, %v322, %v1027
    %vm2948 = vcmask 64512
    %v2949 = vsel %vm2948, %v2884, %v1157
    %v2950 = vsel %vm2948, %v2885, %v1159
    %v2951 = vsel %vm2948, %v2886, %v1161
    %v2952 = vsel %vm2948, %v2887, %v1163
    %v2953 = vsel %vm2948, %v2888, %v1165
    %v2954 = vsel %vm2948, %v2889, %v1167
    %v2955 = vsel %vm2948, %v2890, %v1169
    %v2956 = vsel %vm2948, %v2891, %v1171
    %v2957 = vsel %vm2948, %v2892, %v1173
    %v2958 = vsel %vm2948, %v2893, %v1175
    %v2959 = vsel %vm2948, %v2894, %v1177
    %v2960 = vsel %vm2948, %v2895, %v1179
    %v2961 = vsel %vm2948, %v2896, %v1181
    %v2962 = vsel %vm2948, %v2897, %v1183
    %v2963 = vsel %vm2948, %v2898, %v1185
    %v2964 = vsel %vm2948, %v2899, %v1187
    %v2965 = vsel %vm2948, %v2900, %v1189
    %v2966 = vsel %vm2948, %v2901, %v1191
    %v2967 = vsel %vm2948, %v2902, %v1193
    %v2968 = vsel %vm2948, %v2903, %v1195
    %v2969 = vsel %vm2948, %v2904, %v1197
    %v2970 = vsel %vm2948, %v2905, %v1199
    %v2971 = vsel %vm2948, %v2906, %v1201
    %v2972 = vsel %vm2948, %v2907, %v1203
    %v2973 = vsel %vm2948, %v2908, %v1205
    %v2974 = vsel %vm2948, %v2909, %v1207
    %v2975 = vsel %vm2948, %v2910, %v1209
    %v2976 = vsel %vm2948, %v2911, %v1211
    %v2977 = vsel %vm2948, %v2912, %v1213
    %v2978 = vsel %vm2948, %v2913, %v1215
    %v2979 = vsel %vm2948, %v2914, %v1217
    %v2980 = vsel %vm2948, %v2915, %v1219
    %v2981 = vsel %vm2948, %v2916, %v1221
    %v2982 = vsel %vm2948, %v2917, %v1223
    %v2983 = vsel %vm2948, %v2918, %v1225
    %v2984 = vsel %vm2948, %v2919, %v1227
    %v2985 = vsel %vm2948, %v2920, %v1229
    %v2986 = vsel %vm2948, %v2921, %v1231
    %v2987 = vsel %vm2948, %v2922, %v1233
    %v2988 = vsel %vm2948, %v2923, %v1235
    %v2989 = vsel %vm2948, %v2924, %v1237
    %v2990 = vsel %vm2948, %v2925, %v1239
    %v2991 = vsel %vm2948, %v2926, %v1241
    %v2992 = vsel %vm2948, %v2927, %v1243
    %v2993 = vsel %vm2948, %v2928, %v1245
    %v2994 = vsel %vm2948, %v2929, %v1247
    %v2995 = vsel %vm2948, %v2930, %v1249
    %v2996 = vsel %vm2948, %v2931, %v1251
    %v2997 = vsel %vm2948, %v2932, %v1253
    %v2998 = vsel %vm2948, %v2933, %v1255
    %v2999 = vsel %vm2948, %v2934, %v1257
    %v3000 = vsel %vm2948, %v2935, %v1259
    %v3001 = vsel %vm2948, %v2936, %v1261
    %v3002 = vsel %vm2948, %v2937, %v1263
    %v3003 = vsel %vm2948, %v2938, %v1265
    %v3004 = vsel %vm2948, %v2939, %v1267
    %v3005 = vsel %vm2948, %v2940, %v1269
    %v3006 = vsel %vm2948, %v2941, %v1271
    %v3007 = vsel %vm2948, %v2942, %v1273
    %v3008 = vsel %vm2948, %v2943, %v1275
    %v3009 = vsel %vm2948, %v2944, %v1277
    %v3010 = vsel %vm2948, %v2945, %v1279
    %v3011 = vsel %vm2948, %v2946, %v1281
    %v3012 = vsel %vm2948, %v2947, %v1283
    %vm3013 = vcmask 97280
    %v3014 = vsel %vm3013, %v2949, %v1413
    %v3015 = vsel %vm3013, %v2950, %v1415
    %v3016 = vsel %vm3013, %v2951, %v1417
    %v3017 = vsel %vm3013, %v2952, %v1419
    %v3018 = vsel %vm3013, %v2953, %v1421
    %v3019 = vsel %vm3013, %v2954, %v1423
    %v3020 = vsel %vm3013, %v2955, %v1425
    %v3021 = vsel %vm3013, %v2956, %v1427
    %v3022 = vsel %vm3013, %v2957, %v1429
    %v3023 = vsel %vm3013, %v2958, %v1431
    %v3024 = vsel %vm3013, %v2959, %v1433
    %v3025 = vsel %vm3013, %v2960, %v1435
    %v3026 = vsel %vm3013, %v2961, %v1437
    %v3027 = vsel %vm3013, %v2962, %v1439
    %v3028 = vsel %vm3013, %v2963, %v1441
    %v3029 = vsel %vm3013, %v2964, %v1443
    %v3030 = vsel %vm3013, %v2965, %v1445
    %v3031 = vsel %vm3013, %v2966, %v1447
    %v3032 = vsel %vm3013, %v2967, %v1449
    %v3033 = vsel %vm3013, %v2968, %v1451
    %v3034 = vsel %vm3013, %v2969, %v1453
    %v3035 = vsel %vm3013, %v2970, %v1455
    %v3036 = vsel %vm3013, %v2971, %v1457
    %v3037 = vsel %vm3013, %v2972, %v1459
    %v3038 = vsel %vm3013, %v2973, %v1461
    %v3039 = vsel %vm3013, %v2974, %v1463
    %v3040 = vsel %vm3013, %v2975, %v1465
    %v3041 = vsel %vm3013, %v2976, %v1467
    %v3042 = vsel %vm3013, %v2977, %v1469
    %v3043 = vsel %vm3013, %v2978, %v1471
    %v3044 = vsel %vm3013, %v2979, %v1473
    %v3045 = vsel %vm3013, %v2980, %v1475
    %v3046 = vsel %vm3013, %v2981, %v1477
    %v3047 = vsel %vm3013, %v2982, %v1479
    %v3048 = vsel %vm3013, %v2983, %v1481
    %v3049 = vsel %vm3013, %v2984, %v1483
    %v3050 = vsel %vm3013, %v2985, %v1485
    %v3051 = vsel %vm3013, %v2986, %v1487
    %v3052 = vsel %vm3013, %v2987, %v1489
    %v3053 = vsel %vm3013, %v2988, %v1491
    %v3054 = vsel %vm3013, %v2989, %v1493
    %v3055 = vsel %vm3013, %v2990, %v1495
    %v3056 = vsel %vm3013, %v2991, %v1497
    %v3057 = vsel %vm3013, %v2992, %v1499
    %v3058 = vsel %vm3013, %v2993, %v1501
    %v3059 = vsel %vm3013, %v2994, %v1503
    %v3060 = vsel %vm3013, %v2995, %v1505
    %v3061 = vsel %vm3013, %v2996, %v1507
    %v3062 = vsel %vm3013, %v2997, %v1509
    %v3063 = vsel %vm3013, %v2998, %v1511
    %v3064 = vsel %vm3013, %v2999, %v1513
    %v3065 = vsel %vm3013, %v3000, %v1515
    %v3066 = vsel %vm3013, %v3001, %v1517
    %v3067 = vsel %vm3013, %v3002, %v1519
    %v3068 = vsel %vm3013, %v3003, %v1521
    %v3069 = vsel %vm3013, %v3004, %v1523
    %v3070 = vsel %vm3013, %v3005, %v1525
    %v3071 = vsel %vm3013, %v3006, %v1527
    %v3072 = vsel %vm3013, %v3007, %v1529
    %v3073 = vsel %vm3013, %v3008, %v1531
    %v3074 = vsel %vm3013, %v3009, %v1533
    %v3075 = vsel %vm3013, %v3010, %v1535
    %v3076 = vsel %vm3013, %v3011, %v1537
    %v3077 = vsel %vm3013, %v3012, %v1539
    %vm3078 = vcmask 130048
    %v3079 = vsel %vm3078, %v3014, %v1669
    %v3080 = vsel %vm3078, %v3015, %v1671
    %v3081 = vsel %vm3078, %v3016, %v1673
    %v3082 = vsel %vm3078, %v3017, %v1675
    %v3083 = vsel %vm3078, %v3018, %v1677
    %v3084 = vsel %vm3078, %v3019, %v1679
    %v3085 = vsel %vm3078, %v3020, %v1681
    %v3086 = vsel %vm3078, %v3021, %v1683
    %v3087 = vsel %vm3078, %v3022, %v1685
    %v3088 = vsel %vm3078, %v3023, %v1687
    %v3089 = vsel %vm3078, %v3024, %v1689
    %v3090 = vsel %vm3078, %v3025, %v1691
    %v3091 = vsel %vm3078, %v3026, %v1693
    %v3092 = vsel %vm3078, %v3027, %v1695
    %v3093 = vsel %vm3078, %v3028, %v1697
    %v3094 = vsel %vm3078, %v3029, %v1699
    %v3095 = vsel %vm3078, %v3030, %v1701
    %v3096 = vsel %vm3078, %v3031, %v1703
    %v3097 = vsel %vm3078, %v3032, %v1705
    %v3098 = vsel %vm3078, %v3033, %v1707
    %v3099 = vsel %vm3078, %v3034, %v1709
    %v3100 = vsel %vm3078, %v3035, %v1711
    %v3101 = vsel %vm3078, %v3036, %v1713
    %v3102 = vsel %vm3078, %v3037, %v1715
    %v3103 = vsel %vm3078, %v3038, %v1717
    %v3104 = vsel %vm3078, %v3039, %v1719
    %v3105 = vsel %vm3078, %v3040, %v1721
    %v3106 = vsel %vm3078, %v3041, %v1723
    %v3107 = vsel %vm3078, %v3042, %v1725
    %v3108 = vsel %vm3078, %v3043, %v1727
    %v3109 = vsel %vm3078, %v3044, %v1729
    %v3110 = vsel %vm3078, %v3045, %v1731
    %v3111 = vsel %vm3078, %v3046, %v1733
    %v3112 = vsel %vm3078, %v3047, %v1735
    %v3113 = vsel %vm3078, %v3048, %v1737
    %v3114 = vsel %vm3078, %v3049, %v1739
    %v3115 = vsel %vm3078, %v3050, %v1741
    %v3116 = vsel %vm3078, %v3051, %v1743
    %v3117 = vsel %vm3078, %v3052, %v1745
    %v3118 = vsel %vm3078, %v3053, %v1747
    %v3119 = vsel %vm3078, %v3054, %v1749
    %v3120 = vsel %vm3078, %v3055, %v1751
    %v3121 = vsel %vm3078, %v3056, %v1753
    %v3122 = vsel %vm3078, %v3057, %v1755
    %v3123 = vsel %vm3078, %v3058, %v1757
    %v3124 = vsel %vm3078, %v3059, %v1759
    %v3125 = vsel %vm3078, %v3060, %v1761
    %v3126 = vsel %vm3078, %v3061, %v1763
    %v3127 = vsel %vm3078, %v3062, %v1765
    %v3128 = vsel %vm3078, %v3063, %v1767
    %v3129 = vsel %vm3078, %v3064, %v1769
    %v3130 = vsel %vm3078, %v3065, %v1771
    %v3131 = vsel %vm3078, %v3066, %v1773
    %v3132 = vsel %vm3078, %v3067, %v1775
    %v3133 = vsel %vm3078, %v3068, %v1777
    %v3134 = vsel %vm3078, %v3069, %v1779
    %v3135 = vsel %vm3078, %v3070, %v1781
    %v3136 = vsel %vm3078, %v3071, %v1783
    %v3137 = vsel %vm3078, %v3072, %v1785
    %v3138 = vsel %vm3078, %v3073, %v1787
    %v3139 = vsel %vm3078, %v3074, %v1789
    %v3140 = vsel %vm3078, %v3075, %v1791
    %v3141 = vsel %vm3078, %v3076, %v1793
    %v3142 = vsel %vm3078, %v3077, %v1795
    %vm3143 = vcmask 162816
    %v3144 = vsel %vm3143, %v3079, %v1925
    %v3145 = vsel %vm3143, %v3080, %v1927
    %v3146 = vsel %vm3143, %v3081, %v1929
    %v3147 = vsel %vm3143, %v3082, %v1931
    %v3148 = vsel %vm3143, %v3083, %v1933
    %v3149 = vsel %vm3143, %v3084, %v1935
    %v3150 = vsel %vm3143, %v3085, %v1937
    %v3151 = vsel %vm3143, %v3086, %v1939
    %v3152 = vsel %vm3143, %v3087, %v1941
    %v3153 = vsel %vm3143, %v3088, %v1943
    %v3154 = vsel %vm3143, %v3089, %v1945
    %v3155 = vsel %vm3143, %v3090, %v1947
    %v3156 = vsel %vm3143, %v3091, %v1949
    %v3157 = vsel %vm3143, %v3092, %v1951
    %v3158 = vsel %vm3143, %v3093, %v1953
    %v3159 = vsel %vm3143, %v3094, %v1955
    %v3160 = vsel %vm3143, %v3095, %v1957
    %v3161 = vsel %vm3143, %v3096, %v1959
    %v3162 = vsel %vm3143, %v3097, %v1961
    %v3163 = vsel %vm3143, %v3098, %v1963
    %v3164 = vsel %vm3143, %v3099, %v1965
    %v3165 = vsel %vm3143, %v3100, %v1967
    %v3166 = vsel %vm3143, %v3101, %v1969
    %v3167 = vsel %vm3143, %v3102, %v1971
    %v3168 = vsel %vm3143, %v3103, %v1973
    %v3169 = vsel %vm3143, %v3104, %v1975
    %v3170 = vsel %vm3143, %v3105, %v1977
    %v3171 = vsel %vm3143, %v3106, %v1979
    %v3172 = vsel %vm3143, %v3107, %v1981
    %v3173 = vsel %vm3143, %v3108, %v1983
    %v3174 = vsel %vm3143, %v3109, %v1985
    %v3175 = vsel %vm3143, %v3110, %v1987
    %v3176 = vsel %vm3143, %v3111, %v1989
    %v3177 = vsel %vm3143, %v3112, %v1991
    %v3178 = vsel %vm3143, %v3113, %v1993
    %v3179 = vsel %vm3143, %v3114, %v1995
    %v3180 = vsel %vm3143, %v3115, %v1997
    %v3181 = vsel %vm3143, %v3116, %v1999
    %v3182 = vsel %vm3143, %v3117, %v2001
    %v3183 = vsel %vm3143, %v3118, %v2003
    %v3184 = vsel %vm3143, %v3119, %v2005
    %v3185 = vsel %vm3143, %v3120, %v2007
    %v3186 = vsel %vm3143, %v3121, %v2009
    %v3187 = vsel %vm3143, %v3122, %v2011
    %v3188 = vsel %vm3143, %v3123, %v2013
    %v3189 = vsel %vm3143, %v3124, %v2015
    %v3190 = vsel %vm3143, %v3125, %v2017
    %v3191 = vsel %vm3143, %v3126, %v2019
    %v3192 = vsel %vm3143, %v3127, %v2021
    %v3193 = vsel %vm3143, %v3128, %v2023
    %v3194 = vsel %vm3143, %v3129, %v2025
    %v3195 = vsel %vm3143, %v3130, %v2027
    %v3196 = vsel %vm3143, %v3131, %v2029
    %v3197 = vsel %vm3143, %v3132, %v2031
    %v3198 = vsel %vm3143, %v3133, %v2033
    %v3199 = vsel %vm3143, %v3134, %v2035
    %v3200 = vsel %vm3143, %v3135, %v2037
    %v3201 = vsel %vm3143, %v3136, %v2039
    %v3202 = vsel %vm3143, %v3137, %v2041
    %v3203 = vsel %vm3143, %v3138, %v2043
    %v3204 = vsel %vm3143, %v3139, %v2045
    %v3205 = vsel %vm3143, %v3140, %v2047
    %v3206 = vsel %vm3143, %v3141, %v2049
    %v3207 = vsel %vm3143, %v3142, %v2051
    %vm3208 = vcmask 195584
    %v3209 = vsel %vm3208, %v3144, %v2181
    %v3210 = vsel %vm3208, %v3145, %v2183
    %v3211 = vsel %vm3208, %v3146, %v2185
    %v3212 = vsel %vm3208, %v3147, %v2187
    %v3213 = vsel %vm3208, %v3148, %v2189
    %v3214 = vsel %vm3208, %v3149, %v2191
    %v3215 = vsel %vm3208, %v3150, %v2193
    %v3216 = vsel %vm3208, %v3151, %v2195
    %v3217 = vsel %vm3208, %v3152, %v2197
    %v3218 = vsel %vm3208, %v3153, %v2199
    %v3219 = vsel %vm3208, %v3154, %v2201
    %v3220 = vsel %vm3208, %v3155, %v2203
    %v3221 = vsel %vm3208, %v3156, %v2205
    %v3222 = vsel %vm3208, %v3157, %v2207
    %v3223 = vsel %vm3208, %v3158, %v2209
    %v3224 = vsel %vm3208, %v3159, %v2211
    %v3225 = vsel %vm3208, %v3160, %v2213
    %v3226 = vsel %vm3208, %v3161, %v2215
    %v3227 = vsel %vm3208, %v3162, %v2217
    %v3228 = vsel %vm3208, %v3163, %v2219
    %v3229 = vsel %vm3208, %v3164, %v2221
    %v3230 = vsel %vm3208, %v3165, %v2223
    %v3231 = vsel %vm3208, %v3166, %v2225
    %v3232 = vsel %vm3208, %v3167, %v2227
    %v3233 = vsel %vm3208, %v3168, %v2229
    %v3234 = vsel %vm3208, %v3169, %v2231
    %v3235 = vsel %vm3208, %v3170, %v2233
    %v3236 = vsel %vm3208, %v3171, %v2235
    %v3237 = vsel %vm3208, %v3172, %v2237
    %v3238 = vsel %vm3208, %v3173, %v2239
    %v3239 = vsel %vm3208, %v3174, %v2241
    %v3240 = vsel %vm3208, %v3175, %v2243
    %v3241 = vsel %vm3208, %v3176, %v2245
    %v3242 = vsel %vm3208, %v3177, %v2247
    %v3243 = vsel %vm3208, %v3178, %v2249
    %v3244 = vsel %vm3208, %v3179, %v2251
    %v3245 = vsel %vm3208, %v3180, %v2253
    %v3246 = vsel %vm3208, %v3181, %v2255
    %v3247 = vsel %vm3208, %v3182, %v2257
    %v3248 = vsel %vm3208, %v3183, %v2259
    %v3249 = vsel %vm3208, %v3184, %v2261
    %v3250 = vsel %vm3208, %v3185, %v2263
    %v3251 = vsel %vm3208, %v3186, %v2265
    %v3252 = vsel %vm3208, %v3187, %v2267
    %v3253 = vsel %vm3208, %v3188, %v2269
    %v3254 = vsel %vm3208, %v3189, %v2271
    %v3255 = vsel %vm3208, %v3190, %v2273
    %v3256 = vsel %vm3208, %v3191, %v2275
    %v3257 = vsel %vm3208, %v3192, %v2277
    %v3258 = vsel %vm3208, %v3193, %v2279
    %v3259 = vsel %vm3208, %v3194, %v2281
    %v3260 = vsel %vm3208, %v3195, %v2283
    %v3261 = vsel %vm3208, %v3196, %v2285
    %v3262 = vsel %vm3208, %v3197, %v2287
    %v3263 = vsel %vm3208, %v3198, %v2289
    %v3264 = vsel %vm3208, %v3199, %v2291
    %v3265 = vsel %vm3208, %v3200, %v2293
    %v3266 = vsel %vm3208, %v3201, %v2295
    %v3267 = vsel %vm3208, %v3202, %v2297
    %v3268 = vsel %vm3208, %v3203, %v2299
    %v3269 = vsel %vm3208, %v3204, %v2301
    %v3270 = vsel %vm3208, %v3205, %v2303
    %v3271 = vsel %vm3208, %v3206, %v2305
    %v3272 = vsel %vm3208, %v3207, %v2307
    %vm3273 = vcmask 228352
    %v3274 = vsel %vm3273, %v3209, %v2437
    %v3275 = vsel %vm3273, %v3210, %v2439
    %v3276 = vsel %vm3273, %v3211, %v2441
    %v3277 = vsel %vm3273, %v3212, %v2443
    %v3278 = vsel %vm3273, %v3213, %v2445
    %v3279 = vsel %vm3273, %v3214, %v2447
    %v3280 = vsel %vm3273, %v3215, %v2449
    %v3281 = vsel %vm3273, %v3216, %v2451
    %v3282 = vsel %vm3273, %v3217, %v2453
    %v3283 = vsel %vm3273, %v3218, %v2455
    %v3284 = vsel %vm3273, %v3219, %v2457
    %v3285 = vsel %vm3273, %v3220, %v2459
    %v3286 = vsel %vm3273, %v3221, %v2461
    %v3287 = vsel %vm3273, %v3222, %v2463
    %v3288 = vsel %vm3273, %v3223, %v2465
    %v3289 = vsel %vm3273, %v3224, %v2467
    %v3290 = vsel %vm3273, %v3225, %v2469
    %v3291 = vsel %vm3273, %v3226, %v2471
    %v3292 = vsel %vm3273, %v3227, %v2473
    %v3293 = vsel %vm3273, %v3228, %v2475
    %v3294 = vsel %vm3273, %v3229, %v2477
    %v3295 = vsel %vm3273, %v3230, %v2479
    %v3296 = vsel %vm3273, %v3231, %v2481
    %v3297 = vsel %vm3273, %v3232, %v2483
    %v3298 = vsel %vm3273, %v3233, %v2485
    %v3299 = vsel %vm3273, %v3234, %v2487
    %v3300 = vsel %vm3273, %v3235, %v2489
    %v3301 = vsel %vm3273, %v3236, %v2491
    %v3302 = vsel %vm3273, %v3237, %v2493
    %v3303 = vsel %vm3273, %v3238, %v2495
    %v3304 = vsel %vm3273, %v3239, %v2497
    %v3305 = vsel %vm3273, %v3240, %v2499
    %v3306 = vsel %vm3273, %v3241, %v2501
    %v3307 = vsel %vm3273, %v3242, %v2503
    %v3308 = vsel %vm3273, %v3243, %v2505
    %v3309 = vsel %vm3273, %v3244, %v2507
    %v3310 = vsel %vm3273, %v3245, %v2509
    %v3311 = vsel %vm3273, %v3246, %v2511
    %v3312 = vsel %vm3273, %v3247, %v2513
    %v3313 = vsel %vm3273, %v3248, %v2515
    %v3314 = vsel %vm3273, %v3249, %v2517
    %v3315 = vsel %vm3273, %v3250, %v2519
    %v3316 = vsel %vm3273, %v3251, %v2521
    %v3317 = vsel %vm3273, %v3252, %v2523
    %v3318 = vsel %vm3273, %v3253, %v2525
    %v3319 = vsel %vm3273, %v3254, %v2527
    %v3320 = vsel %vm3273, %v3255, %v2529
    %v3321 = vsel %vm3273, %v3256, %v2531
    %v3322 = vsel %vm3273, %v3257, %v2533
    %v3323 = vsel %vm3273, %v3258, %v2535
    %v3324 = vsel %vm3273, %v3259, %v2537
    %v3325 = vsel %vm3273, %v3260, %v2539
    %v3326 = vsel %vm3273, %v3261, %v2541
    %v3327 = vsel %vm3273, %v3262, %v2543
    %v3328 = vsel %vm3273, %v3263, %v2545
    %v3329 = vsel %vm3273, %v3264, %v2547
    %v3330 = vsel %vm3273, %v3265, %v2549
    %v3331 = vsel %vm3273, %v3266, %v2551
    %v3332 = vsel %vm3273, %v3267, %v2553
    %v3333 = vsel %vm3273, %v3268, %v2555
    %v3334 = vsel %vm3273, %v3269, %v2557
    %v3335 = vsel %vm3273, %v3270, %v2559
    %v3336 = vsel %vm3273, %v3271, %v2561
    %v3337 = vsel %vm3273, %v3272, %v2563
    %vm3338 = vcmask 261120
    %v3339 = vsel %vm3338, %v3274, %v2693
    %v3340 = vsel %vm3338, %v3275, %v2695
    %v3341 = vsel %vm3338, %v3276, %v2697
    %v3342 = vsel %vm3338, %v3277, %v2699
    %v3343 = vsel %vm3338, %v3278, %v2701
    %v3344 = vsel %vm3338, %v3279, %v2703
    %v3345 = vsel %vm3338, %v3280, %v2705
    %v3346 = vsel %vm3338, %v3281, %v2707
    %v3347 = vsel %vm3338, %v3282, %v2709
    %v3348 = vsel %vm3338, %v3283, %v2711
    %v3349 = vsel %vm3338, %v3284, %v2713
    %v3350 = vsel %vm3338, %v3285, %v2715
    %v3351 = vsel %vm3338, %v3286, %v2717
    %v3352 = vsel %vm3338, %v3287, %v2719
    %v3353 = vsel %vm3338, %v3288, %v2721
    %v3354 = vsel %vm3338, %v3289, %v2723
    %v3355 = vsel %vm3338, %v3290, %v2725
    %v3356 = vsel %vm3338, %v3291, %v2727
    %v3357 = vsel %vm3338, %v3292, %v2729
    %v3358 = vsel %vm3338, %v3293, %v2731
    %v3359 = vsel %vm3338, %v3294, %v2733
    %v3360 = vsel %vm3338, %v3295, %v2735
    %v3361 = vsel %vm3338, %v3296, %v2737
    %v3362 = vsel %vm3338, %v3297, %v2739
    %v3363 = vsel %vm3338, %v3298, %v2741
    %v3364 = vsel %vm3338, %v3299, %v2743
    %v3365 = vsel %vm3338, %v3300, %v2745
    %v3366 = vsel %vm3338, %v3301, %v2747
    %v3367 = vsel %vm3338, %v3302, %v2749
    %v3368 = vsel %vm3338, %v3303, %v2751
    %v3369 = vsel %vm3338, %v3304, %v2753
    %v3370 = vsel %vm3338, %v3305, %v2755
    %v3371 = vsel %vm3338, %v3306, %v2757
    %v3372 = vsel %vm3338, %v3307, %v2759
    %v3373 = vsel %vm3338, %v3308, %v2761
    %v3374 = vsel %vm3338, %v3309, %v2763
    %v3375 = vsel %vm3338, %v3310, %v2765
    %v3376 = vsel %vm3338, %v3311, %v2767
    %v3377 = vsel %vm3338, %v3312, %v2769
    %v3378 = vsel %vm3338, %v3313, %v2771
    %v3379 = vsel %vm3338, %v3314, %v2773
    %v3380 = vsel %vm3338, %v3315, %v2775
    %v3381 = vsel %vm3338, %v3316, %v2777
    %v3382 = vsel %vm3338, %v3317, %v2779
    %v3383 = vsel %vm3338, %v3318, %v2781
    %v3384 = vsel %vm3338, %v3319, %v2783
    %v3385 = vsel %vm3338, %v3320, %v2785
    %v3386 = vsel %vm3338, %v3321, %v2787
    %v3387 = vsel %vm3338, %v3322, %v2789
    %v3388 = vsel %vm3338, %v3323, %v2791
    %v3389 = vsel %vm3338, %v3324, %v2793
    %v3390 = vsel %vm3338, %v3325, %v2795
    %v3391 = vsel %vm3338, %v3326, %v2797
    %v3392 = vsel %vm3338, %v3327, %v2799
    %v3393 = vsel %vm3338, %v3328, %v2801
    %v3394 = vsel %vm3338, %v3329, %v2803
    %v3395 = vsel %vm3338, %v3330, %v2805
    %v3396 = vsel %vm3338, %v3331, %v2807
    %v3397 = vsel %vm3338, %v3332, %v2809
    %v3398 = vsel %vm3338, %v3333, %v2811
    %v3399 = vsel %vm3338, %v3334, %v2813
    %v3400 = vsel %vm3338, %v3335, %v2815
    %v3401 = vsel %vm3338, %v3336, %v2817
    %v3402 = vsel %vm3338, %v3337, %v2819
    %v3403 = vld [vmem:[%s1] sm:$0xff]
    %v3404 = vld [vmem:[%s1 + $0x8] sm:$0xff]
    %v3405 = vld [vmem:[%s1 + $0x10] sm:$0xff]
    %v3406 = vld [vmem:[%s1 + $0x18] sm:$0xff]
    %v3407 = vld [vmem:[%s1 + $0x20] sm:$0xf]
    %vm3408 = vcmask 293888
    %v3410 = vsel %vm3408, %v3339, 0
    %v3413 = vsel %vm3408, %v3340, 0
    %v3416 = vsel %vm3408, %v3341, 0
    %v3419 = vsel %vm3408, %v3342, 0
    %v3422 = vsel %vm3408, %v3343, 0
    %v3425 = vsel %vm3408, %v3344, 0
    %v3428 = vsel %vm3408, %v3345, 0
    %v3431 = vsel %vm3408, %v3346, 0
    %v3434 = vsel %vm3408, %v3347, 0
    %v3437 = vsel %vm3408, %v3348, 0
    %v3440 = vsel %vm3408, %v3349, 0
    %v3443 = vsel %vm3408, %v3350, 0
    %v3446 = vsel %vm3408, %v3351, 0
    %v3449 = vsel %vm3408, %v3352, 0
    %v3452 = vsel %vm3408, %v3353, 0
    %v3455 = vsel %vm3408, %v3354, 0
    %v3458 = vsel %vm3408, %v3355, 0
    %v3461 = vsel %vm3408, %v3356, 0
    %v3464 = vsel %vm3408, %v3357, 0
    %v3467 = vsel %vm3408, %v3358, 0
    %v3470 = vsel %vm3408, %v3359, 0
    %v3473 = vsel %vm3408, %v3360, 0
    %v3476 = vsel %vm3408, %v3361, 0
    %v3479 = vsel %vm3408, %v3362, 0
    %v3482 = vsel %vm3408, %v3363, 0
    %v3485 = vsel %vm3408, %v3364, 0
    %v3488 = vsel %vm3408, %v3365, 0
    %v3491 = vsel %vm3408, %v3366, 0
    %v3494 = vsel %vm3408, %v3367, 0
    %v3497 = vsel %vm3408, %v3368, 0
    %v3500 = vsel %vm3408, %v3369, 0
    %v3503 = vsel %vm3408, %v3370, 0
    %v3506 = vsel %vm3408, %v3371, 0
    %v3509 = vsel %vm3408, %v3372, 0
    %v3512 = vsel %vm3408, %v3373, 0
    %v3515 = vsel %vm3408, %v3374, 0
    %v3518 = vsel %vm3408, %v3375, 0
    %v3521 = vsel %vm3408, %v3376, 0
    %v3524 = vsel %vm3408, %v3377, 0
    %v3527 = vsel %vm3408, %v3378, 0
    %v3530 = vsel %vm3408, %v3379, 0
    %v3533 = vsel %vm3408, %v3380, 0
    %v3536 = vsel %vm3408, %v3381, 0
    %v3539 = vsel %vm3408, %v3382, 0
    %v3542 = vsel %vm3408, %v3383, 0
    %v3545 = vsel %vm3408, %v3384, 0
    %v3548 = vsel %vm3408, %v3385, 0
    %v3551 = vsel %vm3408, %v3386, 0
    %v3554 = vsel %vm3408, %v3387, 0
    %v3557 = vsel %vm3408, %v3388, 0
    %v3560 = vsel %vm3408, %v3389, 0
    %v3563 = vsel %vm3408, %v3390, 0
    %v3566 = vsel %vm3408, %v3391, 0
    %v3569 = vsel %vm3408, %v3392, 0
    %v3572 = vsel %vm3408, %v3393, 0
    %v3575 = vsel %vm3408, %v3394, 0
    %v3578 = vsel %vm3408, %v3395, 0
    %v3581 = vsel %vm3408, %v3396, 0
    %v3584 = vsel %vm3408, %v3397, 0
    %v3587 = vsel %vm3408, %v3398, 0
    %v3590 = vsel %vm3408, %v3399, 0
    %v3593 = vsel %vm3408, %v3400, 0
    %v3596 = vsel %vm3408, %v3401, 0
    %v3599 = vsel %vm3408, %v3402, 0
    %vm3601 = vcmask 1043456
    %v3603 = vsel %vm3601, %v3407, 0
    %3605 = vmatprep.subr.mxu0 0.0
    %3606 = vmatpush1.msra.mxu0 %v3403
    %3607 = vmatprep.subr.mxu0 0.0
    %3608 = vmatpush1.msra.mxu0 %v3404
    %3609 = vmatprep.subr.mxu0 0.0
    %3610 = vmatpush1.msra.mxu0 %v3405
    %3611 = vmatprep.subr.mxu0 0.0
    %3612 = vmatpush1.msra.mxu0 %v3406
    %3613 = vmatprep.subr.mxu0 0.0
    %3614 = vmatpush1.msra.mxu0 %v3603
    %3615 = vmatprep.subr.mxu0 0.0
    %3616 = vmatpush1.msra.mxu0 0.0
    %3617 = vmatprep.subr.mxu0 0.0
    %3618 = vmatpush1.msra.mxu0 0.0
    %3619 = vmatprep.subr.mxu0 0.0
    %3620 = vmatpush1.msra.mxu0 0.0
    %3621 = vmatprep.subr.mxu0 0.0
    %3622 = vmatpush1.msra.mxu0 0.0
    %3623 = vmatprep.subr.mxu0 0.0
    %3624 = vmatpush1.msra.mxu0 0.0
    %3625 = vmatprep.subr.mxu0 0.0
    %3626 = vmatpush1.msra.mxu0 0.0
    %3627 = vmatprep.subr.mxu0 0.0
    %3628 = vmatpush1.msra.mxu0 0.0
    %3629 = vmatprep.subr.mxu0 0.0
    %3630 = vmatpush1.msra.mxu0 0.0
    %3631 = vmatprep.subr.mxu0 0.0
    %3632 = vmatpush1.msra.mxu0 0.0
    %3633 = vmatprep.subr.mxu0 0.0
    %3634 = vmatpush1.msra.mxu0 0.0
    %3635 = vmatprep.subr.mxu0 0.0
    %3636 = vmatpush1.msra.mxu0 0.0
    %3637 = vmatprep.subr.mxu0 0.0
    %3638 = vmatpush1.msra.mxu0 0.0
    %3639 = vmatprep.subr.mxu0 0.0
    %3640 = vmatpush1.msra.mxu0 0.0
    %3641 = vmatprep.subr.mxu0 0.0
    %3642 = vmatpush1.msra.mxu0 0.0
    %3643 = vmatprep.subr.mxu0 0.0
    %3644 = vmatpush1.msra.mxu0 0.0
    %3645 = vmatprep.subr.mxu0 0.0
    %3646 = vmatpush1.msra.mxu0 0.0
    %3647 = vmatprep.subr.mxu0 0.0
    %3648 = vmatpush1.msra.mxu0 0.0
    %3649 = vmatprep.subr.mxu0 0.0
    %3650 = vmatpush1.msra.mxu0 0.0
    %3651 = vmatprep.subr.mxu0 0.0
    %3652 = vmatpush1.msra.mxu0 0.0
    %3653 = vmatprep.subr.mxu0 0.0
    %3654 = vmatpush1.msra.mxu0 0.0
    %3655 = vmatprep.subr.mxu0 0.0
    %3656 = vmatpush1.msra.mxu0 0.0
    %3657 = vmatprep.subr.mxu0 0.0
    %3658 = vmatpush1.msra.mxu0 0.0
    %3659 = vmatprep.subr.mxu0 0.0
    %3660 = vmatpush1.msra.mxu0 0.0
    %3661 = vmatprep.subr.mxu0 0.0
    %3662 = vmatpush1.msra.mxu0 0.0
    %3663 = vmatprep.subr.mxu0 0.0
    %3664 = vmatpush1.msra.mxu0 0.0
    %3665 = vmatprep.subr.mxu0 0.0
    %3666 = vmatpush1.msra.mxu0 0.0
    %3667 = vmatprep.subr.mxu0 0.0
    %3668 = vmatpush1.msra.mxu0 0.0
    %3669 = vmatprep.mubr.f32.mxu0 0.0
    %3670 = vmatmul.mubr.f32.gmra.mrb[0].mxu0 %v3410
    %v3671 = vpop.f32.mrb[0].mxu0
    %v3672 = vadd.f32 0.0, %v3671
    %v3673 = vpop.f32.mrb[0].mxu0
    %3674 = vmatprep.mubr.f32.mxu0 0.0
    %3675 = vmatmul.mubr.f32.gmra.mrb[0].mxu0 %v3413
    %v3676 = vpop.f32.mrb[0].mxu0
    %v3677 = vadd.f32 0.0, %v3676
    %v3678 = vpop.f32.mrb[0].mxu0
    %3679 = vmatprep.mubr.f32.mxu0 0.0
    %3680 = vmatmul.mubr.f32.gmra.mrb[0].mxu0 %v3416
    %v3681 = vpop.f32.mrb[0].mxu0
    %v3682 = vadd.f32 0.0, %v3681
    %v3683 = vpop.f32.mrb[0].mxu0
    %3684 = vmatprep.mubr.f32.mxu0 0.0
    %3685 = vmatmul.mubr.f32.gmra.mrb[0].mxu0 %v3419
    %v3686 = vpop.f32.mrb[0].mxu0
    %v3687 = vadd.f32 0.0, %v3686
    %v3688 = vpop.f32.mrb[0].mxu0
    %3689 = vmatprep.mubr.f32.mxu0 0.0
    %3690 = vmatmul.mubr.f32.gmra.mrb[0].mxu0 %v3422
    %v3691 = vpop.f32.mrb[0].mxu0
    %v3692 = vadd.f32 0.0, %v3691
    %v3693 = vpop.f32.mrb[0].mxu0
    %3694 = vmatprep.mubr.f32.mxu0 0.0
    %3695 = vmatmul.mubr.f32.gmra.mrb[0].mxu0 %v3425
    %v3696 = vpop.f32.mrb[0].mxu0
    %v3697 = vadd.f32 0.0, %v3696
    %v3698 = vpop.f32.mrb[0].mxu0
    %3699 = vmatprep.mubr.f32.mxu0 0.0
    %3700 = vmatmul.mubr.f32.gmra.mrb[0].mxu0 %v3428
    %v3701 = vpop.f32.mrb[0].mxu0
    %v3702 = vadd.f32 0.0, %v3701
    %v3703 = vpop.f32.mrb[0].mxu0
    %3704 = vmatprep.mubr.f32.mxu0 0.0
    %3705 = vmatmul.mubr.f32.gmra.mrb[0].mxu0 %v3431
    %v3706 = vpop.f32.mrb[0].mxu0
    %v3707 = vadd.f32 0.0, %v3706
    %v3708 = vpop.f32.mrb[0].mxu0
    %3709 = vmatprep.mubr.f32.mxu0 0.0
    %3710 = vmatmul.mubr.f32.gmra.mrb[0].mxu0 %v3434
    %v3711 = vpop.f32.mrb[0].mxu0
    %v3712 = vadd.f32 0.0, %v3711
    %v3713 = vpop.f32.mrb[0].mxu0
    %3714 = vmatprep.mubr.f32.mxu0 0.0
    %3715 = vmatmul.mubr.f32.gmra.mrb[0].mxu0 %v3437
    %v3716 = vpop.f32.mrb[0].mxu0
    %v3717 = vadd.f32 0.0, %v3716
    %v3718 = vpop.f32.mrb[0].mxu0
    %3719 = vmatprep.mubr.f32.mxu0 0.0
    %3720 = vmatmul.mubr.f32.gmra.mrb[0].mxu0 %v3440
    %v3721 = vpop.f32.mrb[0].mxu0
    %v3722 = vadd.f32 0.0, %v3721
    %v3723 = vpop.f32.mrb[0].mxu0
    %3724 = vmatprep.mubr.f32.mxu0 0.0
    %3725 = vmatmul.mubr.f32.gmra.mrb[0].mxu0 %v3443
    %v3726 = vpop.f32.mrb[0].mxu0
    %v3727 = vadd.f32 0.0, %v3726
    %v3728 = vpop.f32.mrb[0].mxu0
    %3729 = vmatprep.mubr.f32.mxu0 0.0
    %3730 = vmatmul.mubr.f32.gmra.mrb[0].mxu0 %v3446
    %v3731 = vpop.f32.mrb[0].mxu0
    %v3732 = vadd.f32 0.0, %v3731
    %v3733 = vpop.f32.mrb[0].mxu0
    %3734 = vmatprep.mubr.f32.mxu0 0.0
    %3735 = vmatmul.mubr.f32.gmra.mrb[0].mxu0 %v3449
    %v3736 = vpop.f32.mrb[0].mxu0
    %v3737 = vadd.f32 0.0, %v3736
    %v3738 = vpop.f32.mrb[0].mxu0
    %3739 = vmatprep.mubr.f32.mxu0 0.0
    %3740 = vmatmul.mubr.f32.gmra.mrb[0].mxu0 %v3452
    %v3741 = vpop.f32.mrb[0].mxu0
    %v3742 = vadd.f32 0.0, %v3741
    %v3743 = vpop.f32.mrb[0].mxu0
    %3744 = vmatprep.mubr.f32.mxu0 0.0
    %3745 = vmatmul.mubr.f32.gmra.mrb[0].mxu0 %v3455
    %v3746 = vpop.f32.mrb[0].mxu0
    %v3747 = vadd.f32 0.0, %v3746
    %v3748 = vpop.f32.mrb[0].mxu0
    %3749 = vmatprep.mubr.f32.mxu0 0.0
    %3750 = vmatmul.mubr.f32.gmra.mrb[0].mxu0 %v3458
    %v3751 = vpop.f32.mrb[0].mxu0
    %v3752 = vadd.f32 0.0, %v3751
    %v3753 = vpop.f32.mrb[0].mxu0
    %3754 = vmatprep.mubr.f32.mxu0 0.0
    %3755 = vmatmul.mubr.f32.gmra.mrb[0].mxu0 %v3461
    %v3756 = vpop.f32.mrb[0].mxu0
    %v3757 = vadd.f32 0.0, %v3756
    %v3758 = vpop.f32.mrb[0].mxu0
    %3759 = vmatprep.mubr.f32.mxu0 0.0
    %3760 = vmatmul.mubr.f32.gmra.mrb[0].mxu0 %v3464
    %v3761 = vpop.f32.mrb[0].mxu0
    %v3762 = vadd.f32 0.0, %v3761
    %v3763 = vpop.f32.mrb[0].mxu0
    %3764 = vmatprep.mubr.f32.mxu0 0.0
    %3765 = vmatmul.mubr.f32.gmra.mrb[0].mxu0 %v3467
    %v3766 = vpop.f32.mrb[0].mxu0
    %v3767 = vadd.f32 0.0, %v3766
    %v3768 = vpop.f32.mrb[0].mxu0
    %3769 = vmatprep.mubr.f32.mxu0 0.0
    %3770 = vmatmul.mubr.f32.gmra.mrb[0].mxu0 %v3470
    %v3771 = vpop.f32.mrb[0].mxu0
    %v3772 = vadd.f32 0.0, %v3771
    %v3773 = vpop.f32.mrb[0].mxu0
    %3774 = vmatprep.mubr.f32.mxu0 0.0
    %3775 = vmatmul.mubr.f32.gmra.mrb[0].mxu0 %v3473
    %v3776 = vpop.f32.mrb[0].mxu0
    %v3777 = vadd.f32 0.0, %v3776
    %v3778 = vpop.f32.mrb[0].mxu0
    %3779 = vmatprep.mubr.f32.mxu0 0.0
    %3780 = vmatmul.mubr.f32.gmra.mrb[0].mxu0 %v3476
    %v3781 = vpop.f32.mrb[0].mxu0
    %v3782 = vadd.f32 0.0, %v3781
    %v3783 = vpop.f32.mrb[0].mxu0
    %3784 = vmatprep.mubr.f32.mxu0 0.0
    %3785 = vmatmul.mubr.f32.gmra.mrb[0].mxu0 %v3479
    %v3786 = vpop.f32.mrb[0].mxu0
    %v3787 = vadd.f32 0.0, %v3786
    %v3788 = vpop.f32.mrb[0].mxu0
    %3789 = vmatprep.mubr.f32.mxu0 0.0
    %3790 = vmatmul.mubr.f32.gmra.mrb[0].mxu0 %v3482
    %v3791 = vpop.f32.mrb[0].mxu0
    %v3792 = vadd.f32 0.0, %v3791
    %v3793 = vpop.f32.mrb[0].mxu0
    %3794 = vmatprep.mubr.f32.mxu0 0.0
    %3795 = vmatmul.mubr.f32.gmra.mrb[0].mxu0 %v3485
    %v3796 = vpop.f32.mrb[0].mxu0
    %v3797 = vadd.f32 0.0, %v3796
    %v3798 = vpop.f32.mrb[0].mxu0
    %3799 = vmatprep.mubr.f32.mxu0 0.0
    %3800 = vmatmul.mubr.f32.gmra.mrb[0].mxu0 %v3488
    %v3801 = vpop.f32.mrb[0].mxu0
    %v3802 = vadd.f32 0.0, %v3801
    %v3803 = vpop.f32.mrb[0].mxu0
    %3804 = vmatprep.mubr.f32.mxu0 0.0
    %3805 = vmatmul.mubr.f32.gmra.mrb[0].mxu0 %v3491
    %v3806 = vpop.f32.mrb[0].mxu0
    %v3807 = vadd.f32 0.0, %v3806
    %v3808 = vpop.f32.mrb[0].mxu0
    %3809 = vmatprep.mubr.f32.mxu0 0.0
    %3810 = vmatmul.mubr.f32.gmra.mrb[0].mxu0 %v3494
    %v3811 = vpop.f32.mrb[0].mxu0
    %v3812 = vadd.f32 0.0, %v3811
    %v3813 = vpop.f32.mrb[0].mxu0
    %3814 = vmatprep.mubr.f32.mxu0 0.0
    %3815 = vmatmul.mubr.f32.gmra.mrb[0].mxu0 %v3497
    %v3816 = vpop.f32.mrb[0].mxu0
    %v3817 = vadd.f32 0.0, %v3816
    %v3818 = vpop.f32.mrb[0].mxu0
    %3819 = vmatprep.mubr.f32.mxu0 0.0
    %3820 = vmatmul.mubr.f32.gmra.mrb[0].mxu0 %v3500
    %v3821 = vpop.f32.mrb[0].mxu0
    %v3822 = vadd.f32 0.0, %v3821
    %v3823 = vpop.f32.mrb[0].mxu0
    %3824 = vmatprep.mubr.f32.mxu0 0.0
    %3825 = vmatmul.mubr.f32.gmra.mrb[0].mxu0 %v3503
    %v3826 = vpop.f32.mrb[0].mxu0
    %v3827 = vadd.f32 0.0, %v3826
    %v3828 = vpop.f32.mrb[0].mxu0
    %3829 = vmatprep.mubr.f32.mxu0 0.0
    %3830 = vmatmul.mubr.f32.gmra.mrb[0].mxu0 %v3506
    %v3831 = vpop.f32.mrb[0].mxu0
    %v3832 = vadd.f32 0.0, %v3831
    %v3833 = vpop.f32.mrb[0].mxu0
    %3834 = vmatprep.mubr.f32.mxu0 0.0
    %3835 = vmatmul.mubr.f32.gmra.mrb[0].mxu0 %v3509
    %v3836 = vpop.f32.mrb[0].mxu0
    %v3837 = vadd.f32 0.0, %v3836
    %v3838 = vpop.f32.mrb[0].mxu0
    %3839 = vmatprep.mubr.f32.mxu0 0.0
    %3840 = vmatmul.mubr.f32.gmra.mrb[0].mxu0 %v3512
    %v3841 = vpop.f32.mrb[0].mxu0
    %v3842 = vadd.f32 0.0, %v3841
    %v3843 = vpop.f32.mrb[0].mxu0
    %3844 = vmatprep.mubr.f32.mxu0 0.0
    %3845 = vmatmul.mubr.f32.gmra.mrb[0].mxu0 %v3515
    %v3846 = vpop.f32.mrb[0].mxu0
    %v3847 = vadd.f32 0.0, %v3846
    %v3848 = vpop.f32.mrb[0].mxu0
    %3849 = vmatprep.mubr.f32.mxu0 0.0
    %3850 = vmatmul.mubr.f32.gmra.mrb[0].mxu0 %v3518
    %v3851 = vpop.f32.mrb[0].mxu0
    %v3852 = vadd.f32 0.0, %v3851
    %v3853 = vpop.f32.mrb[0].mxu0
    %3854 = vmatprep.mubr.f32.mxu0 0.0
    %3855 = vmatmul.mubr.f32.gmra.mrb[0].mxu0 %v3521
    %v3856 = vpop.f32.mrb[0].mxu0
    %v3857 = vadd.f32 0.0, %v3856
    %v3858 = vpop.f32.mrb[0].mxu0
    %3859 = vmatprep.mubr.f32.mxu0 0.0
    %3860 = vmatmul.mubr.f32.gmra.mrb[0].mxu0 %v3524
    %v3861 = vpop.f32.mrb[0].mxu0
    %v3862 = vadd.f32 0.0, %v3861
    %v3863 = vpop.f32.mrb[0].mxu0
    %3864 = vmatprep.mubr.f32.mxu0 0.0
    %3865 = vmatmul.mubr.f32.gmra.mrb[0].mxu0 %v3527
    %v3866 = vpop.f32.mrb[0].mxu0
    %v3867 = vadd.f32 0.0, %v3866
    %v3868 = vpop.f32.mrb[0].mxu0
    %3869 = vmatprep.mubr.f32.mxu0 0.0
    %3870 = vmatmul.mubr.f32.gmra.mrb[0].mxu0 %v3530
    %v3871 = vpop.f32.mrb[0].mxu0
    %v3872 = vadd.f32 0.0, %v3871
    %v3873 = vpop.f32.mrb[0].mxu0
    %3874 = vmatprep.mubr.f32.mxu0 0.0
    %3875 = vmatmul.mubr.f32.gmra.mrb[0].mxu0 %v3533
    %v3876 = vpop.f32.mrb[0].mxu0
    %v3877 = vadd.f32 0.0, %v3876
    %v3878 = vpop.f32.mrb[0].mxu0
    %3879 = vmatprep.mubr.f32.mxu0 0.0
    %3880 = vmatmul.mubr.f32.gmra.mrb[0].mxu0 %v3536
    %v3881 = vpop.f32.mrb[0].mxu0
    %v3882 = vadd.f32 0.0, %v3881
    %v3883 = vpop.f32.mrb[0].mxu0
    %3884 = vmatprep.mubr.f32.mxu0 0.0
    %3885 = vmatmul.mubr.f32.gmra.mrb[0].mxu0 %v3539
    %v3886 = vpop.f32.mrb[0].mxu0
    %v3887 = vadd.f32 0.0, %v3886
    %v3888 = vpop.f32.mrb[0].mxu0
    %3889 = vmatprep.mubr.f32.mxu0 0.0
    %3890 = vmatmul.mubr.f32.gmra.mrb[0].mxu0 %v3542
    %v3891 = vpop.f32.mrb[0].mxu0
    %v3892 = vadd.f32 0.0, %v3891
    %v3893 = vpop.f32.mrb[0].mxu0
    %3894 = vmatprep.mubr.f32.mxu0 0.0
    %3895 = vmatmul.mubr.f32.gmra.mrb[0].mxu0 %v3545
    %v3896 = vpop.f32.mrb[0].mxu0
    %v3897 = vadd.f32 0.0, %v3896
    %v3898 = vpop.f32.mrb[0].mxu0
    %3899 = vmatprep.mubr.f32.mxu0 0.0
    %3900 = vmatmul.mubr.f32.gmra.mrb[0].mxu0 %v3548
    %v3901 = vpop.f32.mrb[0].mxu0
    %v3902 = vadd.f32 0.0, %v3901
    %v3903 = vpop.f32.mrb[0].mxu0
    %3904 = vmatprep.mubr.f32.mxu0 0.0
    %3905 = vmatmul.mubr.f32.gmra.mrb[0].mxu0 %v3551
    %v3906 = vpop.f32.mrb[0].mxu0
    %v3907 = vadd.f32 0.0, %v3906
    %v3908 = vpop.f32.mrb[0].mxu0
    %3909 = vmatprep.mubr.f32.mxu0 0.0
    %3910 = vmatmul.mubr.f32.gmra.mrb[0].mxu0 %v3554
    %v3911 = vpop.f32.mrb[0].mxu0
    %v3912 = vadd.f32 0.0, %v3911
    %v3913 = vpop.f32.mrb[0].mxu0
    %3914 = vmatprep.mubr.f32.mxu0 0.0
    %3915 = vmatmul.mubr.f32.gmra.mrb[0].mxu0 %v3557
    %v3916 = vpop.f32.mrb[0].mxu0
    %v3917 = vadd.f32 0.0, %v3916
    %v3918 = vpop.f32.mrb[0].mxu0
    %3919 = vmatprep.mubr.f32.mxu0 0.0
    %3920 = vmatmul.mubr.f32.gmra.mrb[0].mxu0 %v3560
    %v3921 = vpop.f32.mrb[0].mxu0
    %v3922 = vadd.f32 0.0, %v3921
    %v3923 = vpop.f32.mrb[0].mxu0
    %3924 = vmatprep.mubr.f32.mxu0 0.0
    %3925 = vmatmul.mubr.f32.gmra.mrb[0].mxu0 %v3563
    %v3926 = vpop.f32.mrb[0].mxu0
    %v3927 = vadd.f32 0.0, %v3926
    %v3928 = vpop.f32.mrb[0].mxu0
    %3929 = vmatprep.mubr.f32.mxu0 0.0
    %3930 = vmatmul.mubr.f32.gmra.mrb[0].mxu0 %v3566
    %v3931 = vpop.f32.mrb[0].mxu0
    %v3932 = vadd.f32 0.0, %v3931
    %v3933 = vpop.f32.mrb[0].mxu0
    %3934 = vmatprep.mubr.f32.mxu0 0.0
    %3935 = vmatmul.mubr.f32.gmra.mrb[0].mxu0 %v3569
    %v3936 = vpop.f32.mrb[0].mxu0
    %v3937 = vadd.f32 0.0, %v3936
    %v3938 = vpop.f32.mrb[0].mxu0
    %3939 = vmatprep.mubr.f32.mxu0 0.0
    %3940 = vmatmul.mubr.f32.gmra.mrb[0].mxu0 %v3572
    %v3941 = vpop.f32.mrb[0].mxu0
    %v3942 = vadd.f32 0.0, %v3941
    %v3943 = vpop.f32.mrb[0].mxu0
    %3944 = vmatprep.mubr.f32.mxu0 0.0
    %3945 = vmatmul.mubr.f32.gmra.mrb[0].mxu0 %v3575
    %v3946 = vpop.f32.mrb[0].mxu0
    %v3947 = vadd.f32 0.0, %v3946
    %v3948 = vpop.f32.mrb[0].mxu0
    %3949 = vmatprep.mubr.f32.mxu0 0.0
    %3950 = vmatmul.mubr.f32.gmra.mrb[0].mxu0 %v3578
    %v3951 = vpop.f32.mrb[0].mxu0
    %v3952 = vadd.f32 0.0, %v3951
    %v3953 = vpop.f32.mrb[0].mxu0
    %3954 = vmatprep.mubr.f32.mxu0 0.0
    %3955 = vmatmul.mubr.f32.gmra.mrb[0].mxu0 %v3581
    %v3956 = vpop.f32.mrb[0].mxu0
    %v3957 = vadd.f32 0.0, %v3956
    %v3958 = vpop.f32.mrb[0].mxu0
    %3959 = vmatprep.mubr.f32.mxu0 0.0
    %3960 = vmatmul.mubr.f32.gmra.mrb[0].mxu0 %v3584
    %v3961 = vpop.f32.mrb[0].mxu0
    %v3962 = vadd.f32 0.0, %v3961
    %v3963 = vpop.f32.mrb[0].mxu0
    %3964 = vmatprep.mubr.f32.mxu0 0.0
    %3965 = vmatmul.mubr.f32.gmra.mrb[0].mxu0 %v3587
    %v3966 = vpop.f32.mrb[0].mxu0
    %v3967 = vadd.f32 0.0, %v3966
    %v3968 = vpop.f32.mrb[0].mxu0
    %3969 = vmatprep.mubr.f32.mxu0 0.0
    %3970 = vmatmul.mubr.f32.gmra.mrb[0].mxu0 %v3590
    %v3971 = vpop.f32.mrb[0].mxu0
    %v3972 = vadd.f32 0.0, %v3971
    %v3973 = vpop.f32.mrb[0].mxu0
    %3974 = vmatprep.mubr.f32.mxu0 0.0
    %3975 = vmatmul.mubr.f32.gmra.mrb[0].mxu0 %v3593
    %v3976 = vpop.f32.mrb[0].mxu0
    %v3977 = vadd.f32 0.0, %v3976
    %v3978 = vpop.f32.mrb[0].mxu0
    %3979 = vmatprep.mubr.f32.mxu0 0.0
    %3980 = vmatmul.mubr.f32.gmra.mrb[0].mxu0 %v3596
    %v3981 = vpop.f32.mrb[0].mxu0
    %v3982 = vadd.f32 0.0, %v3981
    %v3983 = vpop.f32.mrb[0].mxu0
    %3984 = vmatprep.mubr.f32.mxu0 0.0
    %3985 = vmatmul.mubr.f32.gmra.mrb[0].mxu0 %v3599
    %v3986 = vpop.f32.mrb[0].mxu0
    %v3987 = vadd.f32 0.0, %v3986
    %v3988 = vpop.f32.mrb[0].mxu0
    %3989 = vdwg.mxu0
    %v3990 = vsel %vm2948, %v3672, 0.0
    %v3991 = vsel %vm2948, %v3677, 0.0
    %v3992 = vadd.f32 %v3990, %v3991
    %v3993 = vsel %vm2948, %v3682, 0.0
    %v3994 = vadd.f32 %v3992, %v3993
    %v3995 = vsel %vm2948, %v3687, 0.0
    %v3996 = vadd.f32 %v3994, %v3995
    %v3997 = vsel %vm2948, %v3692, 0.0
    %v3998 = vadd.f32 %v3996, %v3997
    %v3999 = vsel %vm2948, %v3697, 0.0
    %v4000 = vadd.f32 %v3998, %v3999
    %v4001 = vsel %vm2948, %v3702, 0.0
    %v4002 = vadd.f32 %v4000, %v4001
    %v4003 = vsel %vm2948, %v3707, 0.0
    %v4004 = vadd.f32 %v4002, %v4003
    %v4005 = vsel %vm2948, %v3712, 0.0
    %v4006 = vadd.f32 %v4004, %v4005
    %v4007 = vsel %vm2948, %v3717, 0.0
    %v4008 = vadd.f32 %v4006, %v4007
    %v4009 = vsel %vm2948, %v3722, 0.0
    %v4010 = vadd.f32 %v4008, %v4009
    %v4011 = vsel %vm2948, %v3727, 0.0
    %v4012 = vadd.f32 %v4010, %v4011
    %v4013 = vsel %vm2948, %v3732, 0.0
    %v4014 = vadd.f32 %v4012, %v4013
    %v4015 = vsel %vm2948, %v3737, 0.0
    %v4016 = vadd.f32 %v4014, %v4015
    %v4017 = vsel %vm2948, %v3742, 0.0
    %v4018 = vadd.f32 %v4016, %v4017
    %v4019 = vsel %vm2948, %v3747, 0.0
    %v4020 = vadd.f32 %v4018, %v4019
    %v4021 = vsel %vm2948, %v3752, 0.0
    %v4022 = vadd.f32 %v4020, %v4021
    %v4023 = vsel %vm2948, %v3757, 0.0
    %v4024 = vadd.f32 %v4022, %v4023
    %v4025 = vsel %vm2948, %v3762, 0.0
    %v4026 = vadd.f32 %v4024, %v4025
    %v4027 = vsel %vm2948, %v3767, 0.0
    %v4028 = vadd.f32 %v4026, %v4027
    %v4029 = vsel %vm2948, %v3772, 0.0
    %v4030 = vadd.f32 %v4028, %v4029
    %v4031 = vsel %vm2948, %v3777, 0.0
    %v4032 = vadd.f32 %v4030, %v4031
    %v4033 = vsel %vm2948, %v3782, 0.0
    %v4034 = vadd.f32 %v4032, %v4033
    %v4035 = vsel %vm2948, %v3787, 0.0
    %v4036 = vadd.f32 %v4034, %v4035
    %v4037 = vsel %vm2948, %v3792, 0.0
    %v4038 = vadd.f32 %v4036, %v4037
    %v4039 = vsel %vm2948, %v3797, 0.0
    %v4040 = vadd.f32 %v4038, %v4039
    %v4041 = vsel %vm2948, %v3802, 0.0
    %v4042 = vadd.f32 %v4040, %v4041
    %v4043 = vsel %vm2948, %v3807, 0.0
    %v4044 = vadd.f32 %v4042, %v4043
    %v4045 = vsel %vm2948, %v3812, 0.0
    %v4046 = vadd.f32 %v4044, %v4045
    %v4047 = vsel %vm2948, %v3817, 0.0
    %v4048 = vadd.f32 %v4046, %v4047
    %v4049 = vsel %vm2948, %v3822, 0.0
    %v4050 = vadd.f32 %v4048, %v4049
    %v4051 = vsel %vm2948, %v3827, 0.0
    %v4052 = vadd.f32 %v4050, %v4051
    %v4053 = vsel %vm2948, %v3832, 0.0
    %v4054 = vadd.f32 %v4052, %v4053
    %v4055 = vsel %vm2948, %v3837, 0.0
    %v4056 = vadd.f32 %v4054, %v4055
    %v4057 = vsel %vm2948, %v3842, 0.0
    %v4058 = vadd.f32 %v4056, %v4057
    %v4059 = vsel %vm2948, %v3847, 0.0
    %v4060 = vadd.f32 %v4058, %v4059
    %v4061 = vsel %vm2948, %v3852, 0.0
    %v4062 = vadd.f32 %v4060, %v4061
    %v4063 = vsel %vm2948, %v3857, 0.0
    %v4064 = vadd.f32 %v4062, %v4063
    %v4065 = vsel %vm2948, %v3862, 0.0
    %v4066 = vadd.f32 %v4064, %v4065
    %v4067 = vsel %vm2948, %v3867, 0.0
    %v4068 = vadd.f32 %v4066, %v4067
    %v4069 = vsel %vm2948, %v3872, 0.0
    %v4070 = vadd.f32 %v4068, %v4069
    %v4071 = vsel %vm2948, %v3877, 0.0
    %v4072 = vadd.f32 %v4070, %v4071
    %v4073 = vsel %vm2948, %v3882, 0.0
    %v4074 = vadd.f32 %v4072, %v4073
    %v4075 = vsel %vm2948, %v3887, 0.0
    %v4076 = vadd.f32 %v4074, %v4075
    %v4077 = vsel %vm2948, %v3892, 0.0
    %v4078 = vadd.f32 %v4076, %v4077
    %v4079 = vsel %vm2948, %v3897, 0.0
    %v4080 = vadd.f32 %v4078, %v4079
    %v4081 = vsel %vm2948, %v3902, 0.0
    %v4082 = vadd.f32 %v4080, %v4081
    %v4083 = vsel %vm2948, %v3907, 0.0
    %v4084 = vadd.f32 %v4082, %v4083
    %v4085 = vsel %vm2948, %v3912, 0.0
    %v4086 = vadd.f32 %v4084, %v4085
    %v4087 = vsel %vm2948, %v3917, 0.0
    %v4088 = vadd.f32 %v4086, %v4087
    %v4089 = vsel %vm2948, %v3922, 0.0
    %v4090 = vadd.f32 %v4088, %v4089
    %v4091 = vsel %vm2948, %v3927, 0.0
    %v4092 = vadd.f32 %v4090, %v4091
    %v4093 = vsel %vm2948, %v3932, 0.0
    %v4094 = vadd.f32 %v4092, %v4093
    %v4095 = vsel %vm2948, %v3937, 0.0
    %v4096 = vadd.f32 %v4094, %v4095
    %v4097 = vsel %vm2948, %v3942, 0.0
    %v4098 = vadd.f32 %v4096, %v4097
    %v4099 = vsel %vm2948, %v3947, 0.0
    %v4100 = vadd.f32 %v4098, %v4099
    %v4101 = vsel %vm2948, %v3952, 0.0
    %v4102 = vadd.f32 %v4100, %v4101
    %v4103 = vsel %vm2948, %v3957, 0.0
    %v4104 = vadd.f32 %v4102, %v4103
    %v4105 = vsel %vm2948, %v3962, 0.0
    %v4106 = vadd.f32 %v4104, %v4105
    %v4107 = vsel %vm2948, %v3967, 0.0
    %v4108 = vadd.f32 %v4106, %v4107
    %v4109 = vsel %vm2948, %v3972, 0.0
    %v4110 = vadd.f32 %v4108, %v4109
    %v4111 = vsel %vm2948, %v3977, 0.0
    %v4112 = vadd.f32 %v4110, %v4111
    %v4113 = vsel %vm2948, %v3982, 0.0
    %v4114 = vadd.f32 %v4112, %v4113
    %v4115 = vsel %vm2948, %v3987, 0.0
    %v4116 = vadd.f32 %v4114, %v4115
    %v4117 = vrot.slane %v4116, 4
    %v4118 = vadd.f32 %v4116, %v4117
    %v4119 = vrot.slane %v4118, 2
    %v4120 = vadd.f32 %v4118, %v4119
    %v4121 = vrot.slane %v4120, 1
    %v4122 = vadd.f32 %v4120, %v4121
    %v4123 = vmul.f32 %v4122, 0.001953125
    %v4124 = vmul.f32 %v3672, %v3672
    %v4125 = vmul.f32 %v3677, %v3677
    %v4126 = vmul.f32 %v3682, %v3682
    %v4127 = vmul.f32 %v3687, %v3687
    %v4128 = vmul.f32 %v3692, %v3692
    %v4129 = vmul.f32 %v3697, %v3697
    %v4130 = vmul.f32 %v3702, %v3702
    %v4131 = vmul.f32 %v3707, %v3707
    %v4132 = vmul.f32 %v3712, %v3712
    %v4133 = vmul.f32 %v3717, %v3717
    %v4134 = vmul.f32 %v3722, %v3722
    %v4135 = vmul.f32 %v3727, %v3727
    %v4136 = vmul.f32 %v3732, %v3732
    %v4137 = vmul.f32 %v3737, %v3737
    %v4138 = vmul.f32 %v3742, %v3742
    %v4139 = vmul.f32 %v3747, %v3747
    %v4140 = vmul.f32 %v3752, %v3752
    %v4141 = vmul.f32 %v3757, %v3757
    %v4142 = vmul.f32 %v3762, %v3762
    %v4143 = vmul.f32 %v3767, %v3767
    %v4144 = vmul.f32 %v3772, %v3772
    %v4145 = vmul.f32 %v3777, %v3777
    %v4146 = vmul.f32 %v3782, %v3782
    %v4147 = vmul.f32 %v3787, %v3787
    %v4148 = vmul.f32 %v3792, %v3792
    %v4149 = vmul.f32 %v3797, %v3797
    %v4150 = vmul.f32 %v3802, %v3802
    %v4151 = vmul.f32 %v3807, %v3807
    %v4152 = vmul.f32 %v3812, %v3812
    %v4153 = vmul.f32 %v3817, %v3817
    %v4154 = vmul.f32 %v3822, %v3822
    %v4155 = vmul.f32 %v3827, %v3827
    %v4156 = vmul.f32 %v3832, %v3832
    %v4157 = vmul.f32 %v3837, %v3837
    %v4158 = vmul.f32 %v3842, %v3842
    %v4159 = vmul.f32 %v3847, %v3847
    %v4160 = vmul.f32 %v3852, %v3852
    %v4161 = vmul.f32 %v3857, %v3857
    %v4162 = vmul.f32 %v3862, %v3862
    %v4163 = vmul.f32 %v3867, %v3867
    %v4164 = vmul.f32 %v3872, %v3872
    %v4165 = vmul.f32 %v3877, %v3877
    %v4166 = vmul.f32 %v3882, %v3882
    %v4167 = vmul.f32 %v3887, %v3887
    %v4168 = vmul.f32 %v3892, %v3892
    %v4169 = vmul.f32 %v3897, %v3897
    %v4170 = vmul.f32 %v3902, %v3902
    %v4171 = vmul.f32 %v3907, %v3907
    %v4172 = vmul.f32 %v3912, %v3912
    %v4173 = vmul.f32 %v3917, %v3917
    %v4174 = vmul.f32 %v3922, %v3922
    %v4175 = vmul.f32 %v3927, %v3927
    %v4176 = vmul.f32 %v3932, %v3932
    %v4177 = vmul.f32 %v3937, %v3937
    %v4178 = vmul.f32 %v3942, %v3942
    %v4179 = vmul.f32 %v3947, %v3947
    %v4180 = vmul.f32 %v3952, %v3952
    %v4181 = vmul.f32 %v3957, %v3957
    %v4182 = vmul.f32 %v3962, %v3962
    %v4183 = vmul.f32 %v3967, %v3967
    %v4184 = vmul.f32 %v3972, %v3972
    %v4185 = vmul.f32 %v3977, %v3977
    %v4186 = vmul.f32 %v3982, %v3982
    %v4187 = vmul.f32 %v3987, %v3987
    %v4188 = vsel %vm2948, %v4124, 0.0
    %v4189 = vsel %vm2948, %v4125, 0.0
    %v4190 = vadd.f32 %v4188, %v4189
    %v4191 = vsel %vm2948, %v4126, 0.0
    %v4192 = vadd.f32 %v4190, %v4191
    %v4193 = vsel %vm2948, %v4127, 0.0
    %v4194 = vadd.f32 %v4192, %v4193
    %v4195 = vsel %vm2948, %v4128, 0.0
    %v4196 = vadd.f32 %v4194, %v4195
    %v4197 = vsel %vm2948, %v4129, 0.0
    %v4198 = vadd.f32 %v4196, %v4197
    %v4199 = vsel %vm2948, %v4130, 0.0
    %v4200 = vadd.f32 %v4198, %v4199
    %v4201 = vsel %vm2948, %v4131, 0.0
    %v4202 = vadd.f32 %v4200, %v4201
    %v4203 = vsel %vm2948, %v4132, 0.0
    %v4204 = vadd.f32 %v4202, %v4203
    %v4205 = vsel %vm2948, %v4133, 0.0
    %v4206 = vadd.f32 %v4204, %v4205
    %v4207 = vsel %vm2948, %v4134, 0.0
    %v4208 = vadd.f32 %v4206, %v4207
    %v4209 = vsel %vm2948, %v4135, 0.0
    %v4210 = vadd.f32 %v4208, %v4209
    %v4211 = vsel %vm2948, %v4136, 0.0
    %v4212 = vadd.f32 %v4210, %v4211
    %v4213 = vsel %vm2948, %v4137, 0.0
    %v4214 = vadd.f32 %v4212, %v4213
    %v4215 = vsel %vm2948, %v4138, 0.0
    %v4216 = vadd.f32 %v4214, %v4215
    %v4217 = vsel %vm2948, %v4139, 0.0
    %v4218 = vadd.f32 %v4216, %v4217
    %v4219 = vsel %vm2948, %v4140, 0.0
    %v4220 = vadd.f32 %v4218, %v4219
    %v4221 = vsel %vm2948, %v4141, 0.0
    %v4222 = vadd.f32 %v4220, %v4221
    %v4223 = vsel %vm2948, %v4142, 0.0
    %v4224 = vadd.f32 %v4222, %v4223
    %v4225 = vsel %vm2948, %v4143, 0.0
    %v4226 = vadd.f32 %v4224, %v4225
    %v4227 = vsel %vm2948, %v4144, 0.0
    %v4228 = vadd.f32 %v4226, %v4227
    %v4229 = vsel %vm2948, %v4145, 0.0
    %v4230 = vadd.f32 %v4228, %v4229
    %v4231 = vsel %vm2948, %v4146, 0.0
    %v4232 = vadd.f32 %v4230, %v4231
    %v4233 = vsel %vm2948, %v4147, 0.0
    %v4234 = vadd.f32 %v4232, %v4233
    %v4235 = vsel %vm2948, %v4148, 0.0
    %v4236 = vadd.f32 %v4234, %v4235
    %v4237 = vsel %vm2948, %v4149, 0.0
    %v4238 = vadd.f32 %v4236, %v4237
    %v4239 = vsel %vm2948, %v4150, 0.0
    %v4240 = vadd.f32 %v4238, %v4239
    %v4241 = vsel %vm2948, %v4151, 0.0
    %v4242 = vadd.f32 %v4240, %v4241
    %v4243 = vsel %vm2948, %v4152, 0.0
    %v4244 = vadd.f32 %v4242, %v4243
    %v4245 = vsel %vm2948, %v4153, 0.0
    %v4246 = vadd.f32 %v4244, %v4245
    %v4247 = vsel %vm2948, %v4154, 0.0
    %v4248 = vadd.f32 %v4246, %v4247
    %v4249 = vsel %vm2948, %v4155, 0.0
    %v4250 = vadd.f32 %v4248, %v4249
    %v4251 = vsel %vm2948, %v4156, 0.0
    %v4252 = vadd.f32 %v4250, %v4251
    %v4253 = vsel %vm2948, %v4157, 0.0
    %v4254 = vadd.f32 %v4252, %v4253
    %v4255 = vsel %vm2948, %v4158, 0.0
    %v4256 = vadd.f32 %v4254, %v4255
    %v4257 = vsel %vm2948, %v4159, 0.0
    %v4258 = vadd.f32 %v4256, %v4257
    %v4259 = vsel %vm2948, %v4160, 0.0
    %v4260 = vadd.f32 %v4258, %v4259
    %v4261 = vsel %vm2948, %v4161, 0.0
    %v4262 = vadd.f32 %v4260, %v4261
    %v4263 = vsel %vm2948, %v4162, 0.0
    %v4264 = vadd.f32 %v4262, %v4263
    %v4265 = vsel %vm2948, %v4163, 0.0
    %v4266 = vadd.f32 %v4264, %v4265
    %v4267 = vsel %vm2948, %v4164, 0.0
    %v4268 = vadd.f32 %v4266, %v4267
    %v4269 = vsel %vm2948, %v4165, 0.0
    %v4270 = vadd.f32 %v4268, %v4269
    %v4271 = vsel %vm2948, %v4166, 0.0
    %v4272 = vadd.f32 %v4270, %v4271
    %v4273 = vsel %vm2948, %v4167, 0.0
    %v4274 = vadd.f32 %v4272, %v4273
    %v4275 = vsel %vm2948, %v4168, 0.0
    %v4276 = vadd.f32 %v4274, %v4275
    %v4277 = vsel %vm2948, %v4169, 0.0
    %v4278 = vadd.f32 %v4276, %v4277
    %v4279 = vsel %vm2948, %v4170, 0.0
    %v4280 = vadd.f32 %v4278, %v4279
    %v4281 = vsel %vm2948, %v4171, 0.0
    %v4282 = vadd.f32 %v4280, %v4281
    %v4283 = vsel %vm2948, %v4172, 0.0
    %v4284 = vadd.f32 %v4282, %v4283
    %v4285 = vsel %vm2948, %v4173, 0.0
    %v4286 = vadd.f32 %v4284, %v4285
    %v4287 = vsel %vm2948, %v4174, 0.0
    %v4288 = vadd.f32 %v4286, %v4287
    %v4289 = vsel %vm2948, %v4175, 0.0
    %v4290 = vadd.f32 %v4288, %v4289
    %v4291 = vsel %vm2948, %v4176, 0.0
    %v4292 = vadd.f32 %v4290, %v4291
    %v4293 = vsel %vm2948, %v4177, 0.0
    %v4294 = vadd.f32 %v4292, %v4293
    %v4295 = vsel %vm2948, %v4178, 0.0
    %v4296 = vadd.f32 %v4294, %v4295
    %v4297 = vsel %vm2948, %v4179, 0.0
    %v4298 = vadd.f32 %v4296, %v4297
    %v4299 = vsel %vm2948, %v4180, 0.0
    %v4300 = vadd.f32 %v4298, %v4299
    %v4301 = vsel %vm2948, %v4181, 0.0
    %v4302 = vadd.f32 %v4300, %v4301
    %v4303 = vsel %vm2948, %v4182, 0.0
    %v4304 = vadd.f32 %v4302, %v4303
    %v4305 = vsel %vm2948, %v4183, 0.0
    %v4306 = vadd.f32 %v4304, %v4305
    %v4307 = vsel %vm2948, %v4184, 0.0
    %v4308 = vadd.f32 %v4306, %v4307
    %v4309 = vsel %vm2948, %v4185, 0.0
    %v4310 = vadd.f32 %v4308, %v4309
    %v4311 = vsel %vm2948, %v4186, 0.0
    %v4312 = vadd.f32 %v4310, %v4311
    %v4313 = vsel %vm2948, %v4187, 0.0
    %v4314 = vadd.f32 %v4312, %v4313
    %v4315 = vrot.slane %v4314, 4
    %v4316 = vadd.f32 %v4314, %v4315
    %v4317 = vrot.slane %v4316, 2
    %v4318 = vadd.f32 %v4316, %v4317
    %v4319 = vrot.slane %v4318, 1
    %v4320 = vadd.f32 %v4318, %v4319
    %v4321 = vmul.f32 %v4320, 0.001953125
    %v4322 = vmul.f32 %v4123, %v4123
    %v4323 = vsub.f32 %v4321, %v4322
    %v4324 = vmax.f32 %v4323, 0.0
    %v4325 = vld [vmem:[%s2] sm:$0x1]
    %v4326 = vadd.f32 %v4324, 1e-05
    %v4327 = vrsqrt.pop %v4326
    %v4328 = vmul.f32 %v4325, %v4327
    %v4329 = vld [vmem:[%s3] sm:$0x1]
    %v4330 = vmul.f32 %v4123, %v4328
    %v4331 = vsub.f32 %v4329, %v4330
    %v4333 = vlaneseq
    %v4334 = vshrl.u32 %v4333, 7
    %v4335 = vsub.s32 0, %v4334
    %v4336 = vrot.slane %v4328, %v4335
    %v4338 = vmul.f32 %v3672, %v4336
    %v4339 = vmul.f32 %v3677, %v4336
    %v4340 = vmul.f32 %v3682, %v4336
    %v4341 = vmul.f32 %v3687, %v4336
    %v4342 = vmul.f32 %v3692, %v4336
    %v4343 = vmul.f32 %v3697, %v4336
    %v4344 = vmul.f32 %v3702, %v4336
    %v4345 = vmul.f32 %v3707, %v4336
    %v4346 = vmul.f32 %v3712, %v4336
    %v4347 = vmul.f32 %v3717, %v4336
    %v4348 = vmul.f32 %v3722, %v4336
    %v4349 = vmul.f32 %v3727, %v4336
    %v4350 = vmul.f32 %v3732, %v4336
    %v4351 = vmul.f32 %v3737, %v4336
    %v4352 = vmul.f32 %v3742, %v4336
    %v4353 = vmul.f32 %v3747, %v4336
    %v4354 = vmul.f32 %v3752, %v4336
    %v4355 = vmul.f32 %v3757, %v4336
    %v4356 = vmul.f32 %v3762, %v4336
    %v4357 = vmul.f32 %v3767, %v4336
    %v4358 = vmul.f32 %v3772, %v4336
    %v4359 = vmul.f32 %v3777, %v4336
    %v4360 = vmul.f32 %v3782, %v4336
    %v4361 = vmul.f32 %v3787, %v4336
    %v4362 = vmul.f32 %v3792, %v4336
    %v4363 = vmul.f32 %v3797, %v4336
    %v4364 = vmul.f32 %v3802, %v4336
    %v4365 = vmul.f32 %v3807, %v4336
    %v4366 = vmul.f32 %v3812, %v4336
    %v4367 = vmul.f32 %v3817, %v4336
    %v4368 = vmul.f32 %v3822, %v4336
    %v4369 = vmul.f32 %v3827, %v4336
    %v4370 = vmul.f32 %v3832, %v4336
    %v4371 = vmul.f32 %v3837, %v4336
    %v4372 = vmul.f32 %v3842, %v4336
    %v4373 = vmul.f32 %v3847, %v4336
    %v4374 = vmul.f32 %v3852, %v4336
    %v4375 = vmul.f32 %v3857, %v4336
    %v4376 = vmul.f32 %v3862, %v4336
    %v4377 = vmul.f32 %v3867, %v4336
    %v4378 = vmul.f32 %v3872, %v4336
    %v4379 = vmul.f32 %v3877, %v4336
    %v4380 = vmul.f32 %v3882, %v4336
    %v4381 = vmul.f32 %v3887, %v4336
    %v4382 = vmul.f32 %v3892, %v4336
    %v4383 = vmul.f32 %v3897, %v4336
    %v4384 = vmul.f32 %v3902, %v4336
    %v4385 = vmul.f32 %v3907, %v4336
    %v4386 = vmul.f32 %v3912, %v4336
    %v4387 = vmul.f32 %v3917, %v4336
    %v4388 = vmul.f32 %v3922, %v4336
    %v4389 = vmul.f32 %v3927, %v4336
    %v4390 = vmul.f32 %v3932, %v4336
    %v4391 = vmul.f32 %v3937, %v4336
    %v4392 = vmul.f32 %v3942, %v4336
    %v4393 = vmul.f32 %v3947, %v4336
    %v4394 = vmul.f32 %v3952, %v4336
    %v4395 = vmul.f32 %v3957, %v4336
    %v4396 = vmul.f32 %v3962, %v4336
    %v4397 = vmul.f32 %v3967, %v4336
    %v4398 = vmul.f32 %v3972, %v4336
    %v4399 = vmul.f32 %v3977, %v4336
    %v4400 = vmul.f32 %v3982, %v4336
    %v4401 = vmul.f32 %v3987, %v4336
    %v4403 = vlaneseq
    %v4404 = vshrl.u32 %v4403, 7
    %v4405 = vsub.s32 0, %v4404
    %v4406 = vrot.slane %v4331, %v4405
    %v4408 = vadd.f32 %v4338, %v4406
    %v4409 = vadd.f32 %v4339, %v4406
    %v4410 = vadd.f32 %v4340, %v4406
    %v4411 = vadd.f32 %v4341, %v4406
    %v4412 = vadd.f32 %v4342, %v4406
    %v4413 = vadd.f32 %v4343, %v4406
    %v4414 = vadd.f32 %v4344, %v4406
    %v4415 = vadd.f32 %v4345, %v4406
    %v4416 = vadd.f32 %v4346, %v4406
    %v4417 = vadd.f32 %v4347, %v4406
    %v4418 = vadd.f32 %v4348, %v4406
    %v4419 = vadd.f32 %v4349, %v4406
    %v4420 = vadd.f32 %v4350, %v4406
    %v4421 = vadd.f32 %v4351, %v4406
    %v4422 = vadd.f32 %v4352, %v4406
    %v4423 = vadd.f32 %v4353, %v4406
    %v4424 = vadd.f32 %v4354, %v4406
    %v4425 = vadd.f32 %v4355, %v4406
    %v4426 = vadd.f32 %v4356, %v4406
    %v4427 = vadd.f32 %v4357, %v4406
    %v4428 = vadd.f32 %v4358, %v4406
    %v4429 = vadd.f32 %v4359, %v4406
    %v4430 = vadd.f32 %v4360, %v4406
    %v4431 = vadd.f32 %v4361, %v4406
    %v4432 = vadd.f32 %v4362, %v4406
    %v4433 = vadd.f32 %v4363, %v4406
    %v4434 = vadd.f32 %v4364, %v4406
    %v4435 = vadd.f32 %v4365, %v4406
    %v4436 = vadd.f32 %v4366, %v4406
    %v4437 = vadd.f32 %v4367, %v4406
    %v4438 = vadd.f32 %v4368, %v4406
    %v4439 = vadd.f32 %v4369, %v4406
    %v4440 = vadd.f32 %v4370, %v4406
    %v4441 = vadd.f32 %v4371, %v4406
    %v4442 = vadd.f32 %v4372, %v4406
    %v4443 = vadd.f32 %v4373, %v4406
    %v4444 = vadd.f32 %v4374, %v4406
    %v4445 = vadd.f32 %v4375, %v4406
    %v4446 = vadd.f32 %v4376, %v4406
    %v4447 = vadd.f32 %v4377, %v4406
    %v4448 = vadd.f32 %v4378, %v4406
    %v4449 = vadd.f32 %v4379, %v4406
    %v4450 = vadd.f32 %v4380, %v4406
    %v4451 = vadd.f32 %v4381, %v4406
    %v4452 = vadd.f32 %v4382, %v4406
    %v4453 = vadd.f32 %v4383, %v4406
    %v4454 = vadd.f32 %v4384, %v4406
    %v4455 = vadd.f32 %v4385, %v4406
    %v4456 = vadd.f32 %v4386, %v4406
    %v4457 = vadd.f32 %v4387, %v4406
    %v4458 = vadd.f32 %v4388, %v4406
    %v4459 = vadd.f32 %v4389, %v4406
    %v4460 = vadd.f32 %v4390, %v4406
    %v4461 = vadd.f32 %v4391, %v4406
    %v4462 = vadd.f32 %v4392, %v4406
    %v4463 = vadd.f32 %v4393, %v4406
    %v4464 = vadd.f32 %v4394, %v4406
    %v4465 = vadd.f32 %v4395, %v4406
    %v4466 = vadd.f32 %v4396, %v4406
    %v4467 = vadd.f32 %v4397, %v4406
    %v4468 = vadd.f32 %v4398, %v4406
    %v4469 = vadd.f32 %v4399, %v4406
    %v4470 = vadd.f32 %v4400, %v4406
    %v4471 = vadd.f32 %v4401, %v4406
    %v4472 = vmax.f32 %v4408, 0.0
    %v4473 = vmax.f32 %v4409, 0.0
    %v4474 = vmax.f32 %v4410, 0.0
    %v4475 = vmax.f32 %v4411, 0.0
    %v4476 = vmax.f32 %v4412, 0.0
    %v4477 = vmax.f32 %v4413, 0.0
    %v4478 = vmax.f32 %v4414, 0.0
    %v4479 = vmax.f32 %v4415, 0.0
    %v4480 = vmax.f32 %v4416, 0.0
    %v4481 = vmax.f32 %v4417, 0.0
    %v4482 = vmax.f32 %v4418, 0.0
    %v4483 = vmax.f32 %v4419, 0.0
    %v4484 = vmax.f32 %v4420, 0.0
    %v4485 = vmax.f32 %v4421, 0.0
    %v4486 = vmax.f32 %v4422, 0.0
    %v4487 = vmax.f32 %v4423, 0.0
    %v4488 = vmax.f32 %v4424, 0.0
    %v4489 = vmax.f32 %v4425, 0.0
    %v4490 = vmax.f32 %v4426, 0.0
    %v4491 = vmax.f32 %v4427, 0.0
    %v4492 = vmax.f32 %v4428, 0.0
    %v4493 = vmax.f32 %v4429, 0.0
    %v4494 = vmax.f32 %v4430, 0.0
    %v4495 = vmax.f32 %v4431, 0.0
    %v4496 = vmax.f32 %v4432, 0.0
    %v4497 = vmax.f32 %v4433, 0.0
    %v4498 = vmax.f32 %v4434, 0.0
    %v4499 = vmax.f32 %v4435, 0.0
    %v4500 = vmax.f32 %v4436, 0.0
    %v4501 = vmax.f32 %v4437, 0.0
    %v4502 = vmax.f32 %v4438, 0.0
    %v4503 = vmax.f32 %v4439, 0.0
    %v4504 = vmax.f32 %v4440, 0.0
    %v4505 = vmax.f32 %v4441, 0.0
    %v4506 = vmax.f32 %v4442, 0.0
    %v4507 = vmax.f32 %v4443, 0.0
    %v4508 = vmax.f32 %v4444, 0.0
    %v4509 = vmax.f32 %v4445, 0.0
    %v4510 = vmax.f32 %v4446, 0.0
    %v4511 = vmax.f32 %v4447, 0.0
    %v4512 = vmax.f32 %v4448, 0.0
    %v4513 = vmax.f32 %v4449, 0.0
    %v4514 = vmax.f32 %v4450, 0.0
    %v4515 = vmax.f32 %v4451, 0.0
    %v4516 = vmax.f32 %v4452, 0.0
    %v4517 = vmax.f32 %v4453, 0.0
    %v4518 = vmax.f32 %v4454, 0.0
    %v4519 = vmax.f32 %v4455, 0.0
    %v4520 = vmax.f32 %v4456, 0.0
    %v4521 = vmax.f32 %v4457, 0.0
    %v4522 = vmax.f32 %v4458, 0.0
    %v4523 = vmax.f32 %v4459, 0.0
    %v4524 = vmax.f32 %v4460, 0.0
    %v4525 = vmax.f32 %v4461, 0.0
    %v4526 = vmax.f32 %v4462, 0.0
    %v4527 = vmax.f32 %v4463, 0.0
    %v4528 = vmax.f32 %v4464, 0.0
    %v4529 = vmax.f32 %v4465, 0.0
    %v4530 = vmax.f32 %v4466, 0.0
    %v4531 = vmax.f32 %v4467, 0.0
    %v4532 = vmax.f32 %v4468, 0.0
    %v4533 = vmax.f32 %v4469, 0.0
    %v4534 = vmax.f32 %v4470, 0.0
    %v4535 = vmax.f32 %v4471, 0.0
    %4536 = vst.msk [vmem:[%s13] sm:$0xff] %vm2948, %v4472
    %4537 = vst.msk [vmem:[%s13 + $0x8] sm:$0xff] %vm2948, %v4473
    %4538 = vst.msk [vmem:[%s13 + $0x10] sm:$0xff] %vm2948, %v4474
    %4539 = vst.msk [vmem:[%s13 + $0x18] sm:$0xff] %vm2948, %v4475
    %4540 = vst.msk [vmem:[%s13 + $0x20] sm:$0xff] %vm2948, %v4476
    %4541 = vst.msk [vmem:[%s13 + $0x28] sm:$0xff] %vm2948, %v4477
    %4542 = vst.msk [vmem:[%s13 + $0x30] sm:$0xff] %vm2948, %v4478
    %4543 = vst.msk [vmem:[%s13 + $0x38] sm:$0xff] %vm2948, %v4479
    %4544 = vst.msk [vmem:[%s13 + $0x40] sm:$0xff] %vm2948, %v4480
    %4545 = vst.msk [vmem:[%s13 + $0x48] sm:$0xff] %vm2948, %v4481
    %4546 = vst.msk [vmem:[%s13 + $0x50] sm:$0xff] %vm2948, %v4482
    %4547 = vst.msk [vmem:[%s13 + $0x58] sm:$0xff] %vm2948, %v4483
    %4548 = vst.msk [vmem:[%s13 + $0x60] sm:$0xff] %vm2948, %v4484
    %4549 = vst.msk [vmem:[%s13 + $0x68] sm:$0xff] %vm2948, %v4485
    %4550 = vst.msk [vmem:[%s13 + $0x70] sm:$0xff] %vm2948, %v4486
    %4551 = vst.msk [vmem:[%s13 + $0x78] sm:$0xff] %vm2948, %v4487
    %4552 = vst.msk [vmem:[%s13 + $0x80] sm:$0xff] %vm2948, %v4488
    %4553 = vst.msk [vmem:[%s13 + $0x88] sm:$0xff] %vm2948, %v4489
    %4554 = vst.msk [vmem:[%s13 + $0x90] sm:$0xff] %vm2948, %v4490
    %4555 = vst.msk [vmem:[%s13 + $0x98] sm:$0xff] %vm2948, %v4491
    %4556 = vst.msk [vmem:[%s13 + $0xa0] sm:$0xff] %vm2948, %v4492
    %4557 = vst.msk [vmem:[%s13 + $0xa8] sm:$0xff] %vm2948, %v4493
    %4558 = vst.msk [vmem:[%s13 + $0xb0] sm:$0xff] %vm2948, %v4494
    %4559 = vst.msk [vmem:[%s13 + $0xb8] sm:$0xff] %vm2948, %v4495
    %4560 = vst.msk [vmem:[%s13 + $0xc0] sm:$0xff] %vm2948, %v4496
    %4561 = vst.msk [vmem:[%s13 + $0xc8] sm:$0xff] %vm2948, %v4497
    %4562 = vst.msk [vmem:[%s13 + $0xd0] sm:$0xff] %vm2948, %v4498
    %4563 = vst.msk [vmem:[%s13 + $0xd8] sm:$0xff] %vm2948, %v4499
    %4564 = vst.msk [vmem:[%s13 + $0xe0] sm:$0xff] %vm2948, %v4500
    %4565 = vst.msk [vmem:[%s13 + $0xe8] sm:$0xff] %vm2948, %v4501
    %4566 = vst.msk [vmem:[%s13 + $0xf0] sm:$0xff] %vm2948, %v4502
    %4567 = vst.msk [vmem:[%s13 + $0xf8] sm:$0xff] %vm2948, %v4503
    %4568 = vst.msk [vmem:[%s13 + $0x100] sm:$0xff] %vm2948, %v4504
    %4569 = vst.msk [vmem:[%s13 + $0x108] sm:$0xff] %vm2948, %v4505
    %4570 = vst.msk [vmem:[%s13 + $0x110] sm:$0xff] %vm2948, %v4506
    %4571 = vst.msk [vmem:[%s13 + $0x118] sm:$0xff] %vm2948, %v4507
    %4572 = vst.msk [vmem:[%s13 + $0x120] sm:$0xff] %vm2948, %v4508
    %4573 = vst.msk [vmem:[%s13 + $0x128] sm:$0xff] %vm2948, %v4509
    %4574 = vst.msk [vmem:[%s13 + $0x130] sm:$0xff] %vm2948, %v4510
    %4575 = vst.msk [vmem:[%s13 + $0x138] sm:$0xff] %vm2948, %v4511
    %4576 = vst.msk [vmem:[%s13 + $0x140] sm:$0xff] %vm2948, %v4512
    %4577 = vst.msk [vmem:[%s13 + $0x148] sm:$0xff] %vm2948, %v4513
    %4578 = vst.msk [vmem:[%s13 + $0x150] sm:$0xff] %vm2948, %v4514
    %4579 = vst.msk [vmem:[%s13 + $0x158] sm:$0xff] %vm2948, %v4515
    %4580 = vst.msk [vmem:[%s13 + $0x160] sm:$0xff] %vm2948, %v4516
    %4581 = vst.msk [vmem:[%s13 + $0x168] sm:$0xff] %vm2948, %v4517
    %4582 = vst.msk [vmem:[%s13 + $0x170] sm:$0xff] %vm2948, %v4518
    %4583 = vst.msk [vmem:[%s13 + $0x178] sm:$0xff] %vm2948, %v4519
    %4584 = vst.msk [vmem:[%s13 + $0x180] sm:$0xff] %vm2948, %v4520
    %4585 = vst.msk [vmem:[%s13 + $0x188] sm:$0xff] %vm2948, %v4521
    %4586 = vst.msk [vmem:[%s13 + $0x190] sm:$0xff] %vm2948, %v4522
    %4587 = vst.msk [vmem:[%s13 + $0x198] sm:$0xff] %vm2948, %v4523
    %4588 = vst.msk [vmem:[%s13 + $0x1a0] sm:$0xff] %vm2948, %v4524
    %4589 = vst.msk [vmem:[%s13 + $0x1a8] sm:$0xff] %vm2948, %v4525
    %4590 = vst.msk [vmem:[%s13 + $0x1b0] sm:$0xff] %vm2948, %v4526
    %4591 = vst.msk [vmem:[%s13 + $0x1b8] sm:$0xff] %vm2948, %v4527
    %4592 = vst.msk [vmem:[%s13 + $0x1c0] sm:$0xff] %vm2948, %v4528
    %4593 = vst.msk [vmem:[%s13 + $0x1c8] sm:$0xff] %vm2948, %v4529
    %4594 = vst.msk [vmem:[%s13 + $0x1d0] sm:$0xff] %vm2948, %v4530
    %4595 = vst.msk [vmem:[%s13 + $0x1d8] sm:$0xff] %vm2948, %v4531
    %4596 = vst.msk [vmem:[%s13 + $0x1e0] sm:$0xff] %vm2948, %v4532
    %4597 = vst.msk [vmem:[%s13 + $0x1e8] sm:$0xff] %vm2948, %v4533
    %4598 = vst.msk [vmem:[%s13 + $0x1f0] sm:$0xff] %vm2948, %v4534
    %4599 = vst.msk [vmem:[%s13 + $0x1f8] sm:$0xff] %vm2948, %v4535
    %v4664 = vcombine.high %v4472, %v4472
    %v4666 = vunpack.c.l.s4 1983009808
    %v4667 = vunpack.c.0.s8 %v4666
    %v4668 = vlaneseq
    %v4669 = vshrl.u32 %v4668, 7
    %v4670 = vsub.s32 %v4667, %v4669
    %v4671 = vrot.slane %v4472, %v4670
    %v4673 = vunpack.c.l.s4 1983009808
    %v4674 = vunpack.c.0.s8 %v4673
    %v4675 = vlaneseq
    %v4676 = vshrl.u32 %v4675, 7
    %v4677 = vsub.s32 %v4674, %v4676
    %v4678 = vrot.slane %v4664, %v4677
    %v4679 = vcombine.high %v4671, %v4671
    %v4680 = vcombine.high %v4678, %v4678
    %v4681 = vcombine.high %v4473, %v4473
    %v4683 = vunpack.c.l.s4 1983009808
    %v4684 = vunpack.c.0.s8 %v4683
    %v4685 = vlaneseq
    %v4686 = vshrl.u32 %v4685, 7
    %v4687 = vsub.s32 %v4684, %v4686
    %v4688 = vrot.slane %v4473, %v4687
    %v4690 = vunpack.c.l.s4 1983009808
    %v4691 = vunpack.c.0.s8 %v4690
    %v4692 = vlaneseq
    %v4693 = vshrl.u32 %v4692, 7
    %v4694 = vsub.s32 %v4691, %v4693
    %v4695 = vrot.slane %v4681, %v4694
    %v4696 = vcombine.high %v4688, %v4688
    %v4697 = vcombine.high %v4695, %v4695
    %v4698 = vcombine.high %v4474, %v4474
    %v4700 = vunpack.c.l.s4 1983009808
    %v4701 = vunpack.c.0.s8 %v4700
    %v4702 = vlaneseq
    %v4703 = vshrl.u32 %v4702, 7
    %v4704 = vsub.s32 %v4701, %v4703
    %v4705 = vrot.slane %v4474, %v4704
    %v4707 = vunpack.c.l.s4 1983009808
    %v4708 = vunpack.c.0.s8 %v4707
    %v4709 = vlaneseq
    %v4710 = vshrl.u32 %v4709, 7
    %v4711 = vsub.s32 %v4708, %v4710
    %v4712 = vrot.slane %v4698, %v4711
    %v4713 = vcombine.high %v4705, %v4705
    %v4714 = vcombine.high %v4712, %v4712
    %v4715 = vcombine.high %v4475, %v4475
    %v4717 = vunpack.c.l.s4 1983009808
    %v4718 = vunpack.c.0.s8 %v4717
    %v4719 = vlaneseq
    %v4720 = vshrl.u32 %v4719, 7
    %v4721 = vsub.s32 %v4718, %v4720
    %v4722 = vrot.slane %v4475, %v4721
    %v4724 = vunpack.c.l.s4 1983009808
    %v4725 = vunpack.c.0.s8 %v4724
    %v4726 = vlaneseq
    %v4727 = vshrl.u32 %v4726, 7
    %v4728 = vsub.s32 %v4725, %v4727
    %v4729 = vrot.slane %v4715, %v4728
    %v4730 = vcombine.high %v4722, %v4722
    %v4731 = vcombine.high %v4729, %v4729
    %v4732 = vcombine.high %v4476, %v4476
    %v4734 = vunpack.c.l.s4 1983009808
    %v4735 = vunpack.c.0.s8 %v4734
    %v4736 = vlaneseq
    %v4737 = vshrl.u32 %v4736, 7
    %v4738 = vsub.s32 %v4735, %v4737
    %v4739 = vrot.slane %v4476, %v4738
    %v4741 = vunpack.c.l.s4 1983009808
    %v4742 = vunpack.c.0.s8 %v4741
    %v4743 = vlaneseq
    %v4744 = vshrl.u32 %v4743, 7
    %v4745 = vsub.s32 %v4742, %v4744
    %v4746 = vrot.slane %v4732, %v4745
    %v4747 = vcombine.high %v4739, %v4739
    %v4748 = vcombine.high %v4746, %v4746
    %v4749 = vcombine.high %v4477, %v4477
    %v4751 = vunpack.c.l.s4 1983009808
    %v4752 = vunpack.c.0.s8 %v4751
    %v4753 = vlaneseq
    %v4754 = vshrl.u32 %v4753, 7
    %v4755 = vsub.s32 %v4752, %v4754
    %v4756 = vrot.slane %v4477, %v4755
    %v4758 = vunpack.c.l.s4 1983009808
    %v4759 = vunpack.c.0.s8 %v4758
    %v4760 = vlaneseq
    %v4761 = vshrl.u32 %v4760, 7
    %v4762 = vsub.s32 %v4759, %v4761
    %v4763 = vrot.slane %v4749, %v4762
    %v4764 = vcombine.high %v4756, %v4756
    %v4765 = vcombine.high %v4763, %v4763
    %v4766 = vcombine.high %v4478, %v4478
    %v4768 = vunpack.c.l.s4 1983009808
    %v4769 = vunpack.c.0.s8 %v4768
    %v4770 = vlaneseq
    %v4771 = vshrl.u32 %v4770, 7
    %v4772 = vsub.s32 %v4769, %v4771
    %v4773 = vrot.slane %v4478, %v4772
    %v4775 = vunpack.c.l.s4 1983009808
    %v4776 = vunpack.c.0.s8 %v4775
    %v4777 = vlaneseq
    %v4778 = vshrl.u32 %v4777, 7
    %v4779 = vsub.s32 %v4776, %v4778
    %v4780 = vrot.slane %v4766, %v4779
    %v4781 = vcombine.high %v4773, %v4773
    %v4782 = vcombine.high %v4780, %v4780
    %v4783 = vcombine.high %v4479, %v4479
    %v4785 = vunpack.c.l.s4 1983009808
    %v4786 = vunpack.c.0.s8 %v4785
    %v4787 = vlaneseq
    %v4788 = vshrl.u32 %v4787, 7
    %v4789 = vsub.s32 %v4786, %v4788
    %v4790 = vrot.slane %v4479, %v4789
    %v4792 = vunpack.c.l.s4 1983009808
    %v4793 = vunpack.c.0.s8 %v4792
    %v4794 = vlaneseq
    %v4795 = vshrl.u32 %v4794, 7
    %v4796 = vsub.s32 %v4793, %v4795
    %v4797 = vrot.slane %v4783, %v4796
    %v4798 = vcombine.high %v4790, %v4790
    %v4799 = vcombine.high %v4797, %v4797
    %v4800 = vcombine.high %v4480, %v4480
    %v4802 = vunpack.c.l.s4 1983009808
    %v4803 = vunpack.c.0.s8 %v4802
    %v4804 = vlaneseq
    %v4805 = vshrl.u32 %v4804, 7
    %v4806 = vsub.s32 %v4803, %v4805
    %v4807 = vrot.slane %v4480, %v4806
    %v4809 = vunpack.c.l.s4 1983009808
    %v4810 = vunpack.c.0.s8 %v4809
    %v4811 = vlaneseq
    %v4812 = vshrl.u32 %v4811, 7
    %v4813 = vsub.s32 %v4810, %v4812
    %v4814 = vrot.slane %v4800, %v4813
    %v4815 = vcombine.high %v4807, %v4807
    %v4816 = vcombine.high %v4814, %v4814
    %v4817 = vcombine.high %v4481, %v4481
    %v4819 = vunpack.c.l.s4 1983009808
    %v4820 = vunpack.c.0.s8 %v4819
    %v4821 = vlaneseq
    %v4822 = vshrl.u32 %v4821, 7
    %v4823 = vsub.s32 %v4820, %v4822
    %v4824 = vrot.slane %v4481, %v4823
    %v4826 = vunpack.c.l.s4 1983009808
    %v4827 = vunpack.c.0.s8 %v4826
    %v4828 = vlaneseq
    %v4829 = vshrl.u32 %v4828, 7
    %v4830 = vsub.s32 %v4827, %v4829
    %v4831 = vrot.slane %v4817, %v4830
    %v4832 = vcombine.high %v4824, %v4824
    %v4833 = vcombine.high %v4831, %v4831
    %v4834 = vcombine.high %v4482, %v4482
    %v4836 = vunpack.c.l.s4 1983009808
    %v4837 = vunpack.c.0.s8 %v4836
    %v4838 = vlaneseq
    %v4839 = vshrl.u32 %v4838, 7
    %v4840 = vsub.s32 %v4837, %v4839
    %v4841 = vrot.slane %v4482, %v4840
    %v4843 = vunpack.c.l.s4 1983009808
    %v4844 = vunpack.c.0.s8 %v4843
    %v4845 = vlaneseq
    %v4846 = vshrl.u32 %v4845, 7
    %v4847 = vsub.s32 %v4844, %v4846
    %v4848 = vrot.slane %v4834, %v4847
    %v4849 = vcombine.high %v4841, %v4841
    %v4850 = vcombine.high %v4848, %v4848
    %v4851 = vcombine.high %v4483, %v4483
    %v4853 = vunpack.c.l.s4 1983009808
    %v4854 = vunpack.c.0.s8 %v4853
    %v4855 = vlaneseq
    %v4856 = vshrl.u32 %v4855, 7
    %v4857 = vsub.s32 %v4854, %v4856
    %v4858 = vrot.slane %v4483, %v4857
    %v4860 = vunpack.c.l.s4 1983009808
    %v4861 = vunpack.c.0.s8 %v4860
    %v4862 = vlaneseq
    %v4863 = vshrl.u32 %v4862, 7
    %v4864 = vsub.s32 %v4861, %v4863
    %v4865 = vrot.slane %v4851, %v4864
    %v4866 = vcombine.high %v4858, %v4858
    %v4867 = vcombine.high %v4865, %v4865
    %v4868 = vcombine.high %v4484, %v4484
    %v4870 = vunpack.c.l.s4 1983009808
    %v4871 = vunpack.c.0.s8 %v4870
    %v4872 = vlaneseq
    %v4873 = vshrl.u32 %v4872, 7
    %v4874 = vsub.s32 %v4871, %v4873
    %v4875 = vrot.slane %v4484, %v4874
    %v4877 = vunpack.c.l.s4 1983009808
    %v4878 = vunpack.c.0.s8 %v4877
    %v4879 = vlaneseq
    %v4880 = vshrl.u32 %v4879, 7
    %v4881 = vsub.s32 %v4878, %v4880
    %v4882 = vrot.slane %v4868, %v4881
    %v4883 = vcombine.high %v4875, %v4875
    %v4884 = vcombine.high %v4882, %v4882
    %v4885 = vcombine.high %v4485, %v4485
    %v4887 = vunpack.c.l.s4 1983009808
    %v4888 = vunpack.c.0.s8 %v4887
    %v4889 = vlaneseq
    %v4890 = vshrl.u32 %v4889, 7
    %v4891 = vsub.s32 %v4888, %v4890
    %v4892 = vrot.slane %v4485, %v4891
    %v4894 = vunpack.c.l.s4 1983009808
    %v4895 = vunpack.c.0.s8 %v4894
    %v4896 = vlaneseq
    %v4897 = vshrl.u32 %v4896, 7
    %v4898 = vsub.s32 %v4895, %v4897
    %v4899 = vrot.slane %v4885, %v4898
    %v4900 = vcombine.high %v4892, %v4892
    %v4901 = vcombine.high %v4899, %v4899
    %v4902 = vcombine.high %v4486, %v4486
    %v4904 = vunpack.c.l.s4 1983009808
    %v4905 = vunpack.c.0.s8 %v4904
    %v4906 = vlaneseq
    %v4907 = vshrl.u32 %v4906, 7
    %v4908 = vsub.s32 %v4905, %v4907
    %v4909 = vrot.slane %v4486, %v4908
    %v4911 = vunpack.c.l.s4 1983009808
    %v4912 = vunpack.c.0.s8 %v4911
    %v4913 = vlaneseq
    %v4914 = vshrl.u32 %v4913, 7
    %v4915 = vsub.s32 %v4912, %v4914
    %v4916 = vrot.slane %v4902, %v4915
    %v4917 = vcombine.high %v4909, %v4909
    %v4918 = vcombine.high %v4916, %v4916
    %v4919 = vcombine.high %v4487, %v4487
    %v4921 = vunpack.c.l.s4 1983009808
    %v4922 = vunpack.c.0.s8 %v4921
    %v4923 = vlaneseq
    %v4924 = vshrl.u32 %v4923, 7
    %v4925 = vsub.s32 %v4922, %v4924
    %v4926 = vrot.slane %v4487, %v4925
    %v4928 = vunpack.c.l.s4 1983009808
    %v4929 = vunpack.c.0.s8 %v4928
    %v4930 = vlaneseq
    %v4931 = vshrl.u32 %v4930, 7
    %v4932 = vsub.s32 %v4929, %v4931
    %v4933 = vrot.slane %v4919, %v4932
    %v4934 = vcombine.high %v4926, %v4926
    %v4935 = vcombine.high %v4933, %v4933
    %v4936 = vcombine.high %v4488, %v4488
    %v4938 = vunpack.c.l.s4 1983009808
    %v4939 = vunpack.c.0.s8 %v4938
    %v4940 = vlaneseq
    %v4941 = vshrl.u32 %v4940, 7
    %v4942 = vsub.s32 %v4939, %v4941
    %v4943 = vrot.slane %v4488, %v4942
    %v4945 = vunpack.c.l.s4 1983009808
    %v4946 = vunpack.c.0.s8 %v4945
    %v4947 = vlaneseq
    %v4948 = vshrl.u32 %v4947, 7
    %v4949 = vsub.s32 %v4946, %v4948
    %v4950 = vrot.slane %v4936, %v4949
    %v4951 = vcombine.high %v4943, %v4943
    %v4952 = vcombine.high %v4950, %v4950
    %v4953 = vcombine.high %v4489, %v4489
    %v4955 = vunpack.c.l.s4 1983009808
    %v4956 = vunpack.c.0.s8 %v4955
    %v4957 = vlaneseq
    %v4958 = vshrl.u32 %v4957, 7
    %v4959 = vsub.s32 %v4956, %v4958
    %v4960 = vrot.slane %v4489, %v4959
    %v4962 = vunpack.c.l.s4 1983009808
    %v4963 = vunpack.c.0.s8 %v4962
    %v4964 = vlaneseq
    %v4965 = vshrl.u32 %v4964, 7
    %v4966 = vsub.s32 %v4963, %v4965
    %v4967 = vrot.slane %v4953, %v4966
    %v4968 = vcombine.high %v4960, %v4960
    %v4969 = vcombine.high %v4967, %v4967
    %v4970 = vcombine.high %v4490, %v4490
    %v4972 = vunpack.c.l.s4 1983009808
    %v4973 = vunpack.c.0.s8 %v4972
    %v4974 = vlaneseq
    %v4975 = vshrl.u32 %v4974, 7
    %v4976 = vsub.s32 %v4973, %v4975
    %v4977 = vrot.slane %v4490, %v4976
    %v4979 = vunpack.c.l.s4 1983009808
    %v4980 = vunpack.c.0.s8 %v4979
    %v4981 = vlaneseq
    %v4982 = vshrl.u32 %v4981, 7
    %v4983 = vsub.s32 %v4980, %v4982
    %v4984 = vrot.slane %v4970, %v4983
    %v4985 = vcombine.high %v4977, %v4977
    %v4986 = vcombine.high %v4984, %v4984
    %v4987 = vcombine.high %v4491, %v4491
    %v4989 = vunpack.c.l.s4 1983009808
    %v4990 = vunpack.c.0.s8 %v4989
    %v4991 = vlaneseq
    %v4992 = vshrl.u32 %v4991, 7
    %v4993 = vsub.s32 %v4990, %v4992
    %v4994 = vrot.slane %v4491, %v4993
    %v4996 = vunpack.c.l.s4 1983009808
    %v4997 = vunpack.c.0.s8 %v4996
    %v4998 = vlaneseq
    %v4999 = vshrl.u32 %v4998, 7
    %v5000 = vsub.s32 %v4997, %v4999
    %v5001 = vrot.slane %v4987, %v5000
    %v5002 = vcombine.high %v4994, %v4994
    %v5003 = vcombine.high %v5001, %v5001
    %v5004 = vcombine.high %v4492, %v4492
    %v5006 = vunpack.c.l.s4 1983009808
    %v5007 = vunpack.c.0.s8 %v5006
    %v5008 = vlaneseq
    %v5009 = vshrl.u32 %v5008, 7
    %v5010 = vsub.s32 %v5007, %v5009
    %v5011 = vrot.slane %v4492, %v5010
    %v5013 = vunpack.c.l.s4 1983009808
    %v5014 = vunpack.c.0.s8 %v5013
    %v5015 = vlaneseq
    %v5016 = vshrl.u32 %v5015, 7
    %v5017 = vsub.s32 %v5014, %v5016
    %v5018 = vrot.slane %v5004, %v5017
    %v5019 = vcombine.high %v5011, %v5011
    %v5020 = vcombine.high %v5018, %v5018
    %v5021 = vcombine.high %v4493, %v4493
    %v5023 = vunpack.c.l.s4 1983009808
    %v5024 = vunpack.c.0.s8 %v5023
    %v5025 = vlaneseq
    %v5026 = vshrl.u32 %v5025, 7
    %v5027 = vsub.s32 %v5024, %v5026
    %v5028 = vrot.slane %v4493, %v5027
    %v5030 = vunpack.c.l.s4 1983009808
    %v5031 = vunpack.c.0.s8 %v5030
    %v5032 = vlaneseq
    %v5033 = vshrl.u32 %v5032, 7
    %v5034 = vsub.s32 %v5031, %v5033
    %v5035 = vrot.slane %v5021, %v5034
    %v5036 = vcombine.high %v5028, %v5028
    %v5037 = vcombine.high %v5035, %v5035
    %v5038 = vcombine.high %v4494, %v4494
    %v5040 = vunpack.c.l.s4 1983009808
    %v5041 = vunpack.c.0.s8 %v5040
    %v5042 = vlaneseq
    %v5043 = vshrl.u32 %v5042, 7
    %v5044 = vsub.s32 %v5041, %v5043
    %v5045 = vrot.slane %v4494, %v5044
    %v5047 = vunpack.c.l.s4 1983009808
    %v5048 = vunpack.c.0.s8 %v5047
    %v5049 = vlaneseq
    %v5050 = vshrl.u32 %v5049, 7
    %v5051 = vsub.s32 %v5048, %v5050
    %v5052 = vrot.slane %v5038, %v5051
    %v5053 = vcombine.high %v5045, %v5045
    %v5054 = vcombine.high %v5052, %v5052
    %v5055 = vcombine.high %v4495, %v4495
    %v5057 = vunpack.c.l.s4 1983009808
    %v5058 = vunpack.c.0.s8 %v5057
    %v5059 = vlaneseq
    %v5060 = vshrl.u32 %v5059, 7
    %v5061 = vsub.s32 %v5058, %v5060
    %v5062 = vrot.slane %v4495, %v5061
    %v5064 = vunpack.c.l.s4 1983009808
    %v5065 = vunpack.c.0.s8 %v5064
    %v5066 = vlaneseq
    %v5067 = vshrl.u32 %v5066, 7
    %v5068 = vsub.s32 %v5065, %v5067
    %v5069 = vrot.slane %v5055, %v5068
    %v5070 = vcombine.high %v5062, %v5062
    %v5071 = vcombine.high %v5069, %v5069
    %v5072 = vcombine.high %v4496, %v4496
    %v5074 = vunpack.c.l.s4 1983009808
    %v5075 = vunpack.c.0.s8 %v5074
    %v5076 = vlaneseq
    %v5077 = vshrl.u32 %v5076, 7
    %v5078 = vsub.s32 %v5075, %v5077
    %v5079 = vrot.slane %v4496, %v5078
    %v5081 = vunpack.c.l.s4 1983009808
    %v5082 = vunpack.c.0.s8 %v5081
    %v5083 = vlaneseq
    %v5084 = vshrl.u32 %v5083, 7
    %v5085 = vsub.s32 %v5082, %v5084
    %v5086 = vrot.slane %v5072, %v5085
    %v5087 = vcombine.high %v5079, %v5079
    %v5088 = vcombine.high %v5086, %v5086
    %v5089 = vcombine.high %v4497, %v4497
    %v5091 = vunpack.c.l.s4 1983009808
    %v5092 = vunpack.c.0.s8 %v5091
    %v5093 = vlaneseq
    %v5094 = vshrl.u32 %v5093, 7
    %v5095 = vsub.s32 %v5092, %v5094
    %v5096 = vrot.slane %v4497, %v5095
    %v5098 = vunpack.c.l.s4 1983009808
    %v5099 = vunpack.c.0.s8 %v5098
    %v5100 = vlaneseq
    %v5101 = vshrl.u32 %v5100, 7
    %v5102 = vsub.s32 %v5099, %v5101
    %v5103 = vrot.slane %v5089, %v5102
    %v5104 = vcombine.high %v5096, %v5096
    %v5105 = vcombine.high %v5103, %v5103
    %v5106 = vcombine.high %v4498, %v4498
    %v5108 = vunpack.c.l.s4 1983009808
    %v5109 = vunpack.c.0.s8 %v5108
    %v5110 = vlaneseq
    %v5111 = vshrl.u32 %v5110, 7
    %v5112 = vsub.s32 %v5109, %v5111
    %v5113 = vrot.slane %v4498, %v5112
    %v5115 = vunpack.c.l.s4 1983009808
    %v5116 = vunpack.c.0.s8 %v5115
    %v5117 = vlaneseq
    %v5118 = vshrl.u32 %v5117, 7
    %v5119 = vsub.s32 %v5116, %v5118
    %v5120 = vrot.slane %v5106, %v5119
    %v5121 = vcombine.high %v5113, %v5113
    %v5122 = vcombine.high %v5120, %v5120
    %v5123 = vcombine.high %v4499, %v4499
    %v5125 = vunpack.c.l.s4 1983009808
    %v5126 = vunpack.c.0.s8 %v5125
    %v5127 = vlaneseq
    %v5128 = vshrl.u32 %v5127, 7
    %v5129 = vsub.s32 %v5126, %v5128
    %v5130 = vrot.slane %v4499, %v5129
    %v5132 = vunpack.c.l.s4 1983009808
    %v5133 = vunpack.c.0.s8 %v5132
    %v5134 = vlaneseq
    %v5135 = vshrl.u32 %v5134, 7
    %v5136 = vsub.s32 %v5133, %v5135
    %v5137 = vrot.slane %v5123, %v5136
    %v5138 = vcombine.high %v5130, %v5130
    %v5139 = vcombine.high %v5137, %v5137
    %v5140 = vcombine.high %v4500, %v4500
    %v5142 = vunpack.c.l.s4 1983009808
    %v5143 = vunpack.c.0.s8 %v5142
    %v5144 = vlaneseq
    %v5145 = vshrl.u32 %v5144, 7
    %v5146 = vsub.s32 %v5143, %v5145
    %v5147 = vrot.slane %v4500, %v5146
    %v5149 = vunpack.c.l.s4 1983009808
    %v5150 = vunpack.c.0.s8 %v5149
    %v5151 = vlaneseq
    %v5152 = vshrl.u32 %v5151, 7
    %v5153 = vsub.s32 %v5150, %v5152
    %v5154 = vrot.slane %v5140, %v5153
    %v5155 = vcombine.high %v5147, %v5147
    %v5156 = vcombine.high %v5154, %v5154
    %v5157 = vcombine.high %v4501, %v4501
    %v5159 = vunpack.c.l.s4 1983009808
    %v5160 = vunpack.c.0.s8 %v5159
    %v5161 = vlaneseq
    %v5162 = vshrl.u32 %v5161, 7
    %v5163 = vsub.s32 %v5160, %v5162
    %v5164 = vrot.slane %v4501, %v5163
    %v5166 = vunpack.c.l.s4 1983009808
    %v5167 = vunpack.c.0.s8 %v5166
    %v5168 = vlaneseq
    %v5169 = vshrl.u32 %v5168, 7
    %v5170 = vsub.s32 %v5167, %v5169
    %v5171 = vrot.slane %v5157, %v5170
    %v5172 = vcombine.high %v5164, %v5164
    %v5173 = vcombine.high %v5171, %v5171
    %v5174 = vcombine.high %v4502, %v4502
    %v5176 = vunpack.c.l.s4 1983009808
    %v5177 = vunpack.c.0.s8 %v5176
    %v5178 = vlaneseq
    %v5179 = vshrl.u32 %v5178, 7
    %v5180 = vsub.s32 %v5177, %v5179
    %v5181 = vrot.slane %v4502, %v5180
    %v5183 = vunpack.c.l.s4 1983009808
    %v5184 = vunpack.c.0.s8 %v5183
    %v5185 = vlaneseq
    %v5186 = vshrl.u32 %v5185, 7
    %v5187 = vsub.s32 %v5184, %v5186
    %v5188 = vrot.slane %v5174, %v5187
    %v5189 = vcombine.high %v5181, %v5181
    %v5190 = vcombine.high %v5188, %v5188
    %v5191 = vcombine.high %v4503, %v4503
    %v5193 = vunpack.c.l.s4 1983009808
    %v5194 = vunpack.c.0.s8 %v5193
    %v5195 = vlaneseq
    %v5196 = vshrl.u32 %v5195, 7
    %v5197 = vsub.s32 %v5194, %v5196
    %v5198 = vrot.slane %v4503, %v5197
    %v5200 = vunpack.c.l.s4 1983009808
    %v5201 = vunpack.c.0.s8 %v5200
    %v5202 = vlaneseq
    %v5203 = vshrl.u32 %v5202, 7
    %v5204 = vsub.s32 %v5201, %v5203
    %v5205 = vrot.slane %v5191, %v5204
    %v5206 = vcombine.high %v5198, %v5198
    %v5207 = vcombine.high %v5205, %v5205
    %v5208 = vcombine.high %v4504, %v4504
    %v5210 = vunpack.c.l.s4 1983009808
    %v5211 = vunpack.c.0.s8 %v5210
    %v5212 = vlaneseq
    %v5213 = vshrl.u32 %v5212, 7
    %v5214 = vsub.s32 %v5211, %v5213
    %v5215 = vrot.slane %v4504, %v5214
    %v5217 = vunpack.c.l.s4 1983009808
    %v5218 = vunpack.c.0.s8 %v5217
    %v5219 = vlaneseq
    %v5220 = vshrl.u32 %v5219, 7
    %v5221 = vsub.s32 %v5218, %v5220
    %v5222 = vrot.slane %v5208, %v5221
    %v5223 = vcombine.high %v5215, %v5215
    %v5224 = vcombine.high %v5222, %v5222
    %v5225 = vcombine.high %v4505, %v4505
    %v5227 = vunpack.c.l.s4 1983009808
    %v5228 = vunpack.c.0.s8 %v5227
    %v5229 = vlaneseq
    %v5230 = vshrl.u32 %v5229, 7
    %v5231 = vsub.s32 %v5228, %v5230
    %v5232 = vrot.slane %v4505, %v5231
    %v5234 = vunpack.c.l.s4 1983009808
    %v5235 = vunpack.c.0.s8 %v5234
    %v5236 = vlaneseq
    %v5237 = vshrl.u32 %v5236, 7
    %v5238 = vsub.s32 %v5235, %v5237
    %v5239 = vrot.slane %v5225, %v5238
    %v5240 = vcombine.high %v5232, %v5232
    %v5241 = vcombine.high %v5239, %v5239
    %v5242 = vcombine.high %v4506, %v4506
    %v5244 = vunpack.c.l.s4 1983009808
    %v5245 = vunpack.c.0.s8 %v5244
    %v5246 = vlaneseq
    %v5247 = vshrl.u32 %v5246, 7
    %v5248 = vsub.s32 %v5245, %v5247
    %v5249 = vrot.slane %v4506, %v5248
    %v5251 = vunpack.c.l.s4 1983009808
    %v5252 = vunpack.c.0.s8 %v5251
    %v5253 = vlaneseq
    %v5254 = vshrl.u32 %v5253, 7
    %v5255 = vsub.s32 %v5252, %v5254
    %v5256 = vrot.slane %v5242, %v5255
    %v5257 = vcombine.high %v5249, %v5249
    %v5258 = vcombine.high %v5256, %v5256
    %v5259 = vcombine.high %v4507, %v4507
    %v5261 = vunpack.c.l.s4 1983009808
    %v5262 = vunpack.c.0.s8 %v5261
    %v5263 = vlaneseq
    %v5264 = vshrl.u32 %v5263, 7
    %v5265 = vsub.s32 %v5262, %v5264
    %v5266 = vrot.slane %v4507, %v5265
    %v5268 = vunpack.c.l.s4 1983009808
    %v5269 = vunpack.c.0.s8 %v5268
    %v5270 = vlaneseq
    %v5271 = vshrl.u32 %v5270, 7
    %v5272 = vsub.s32 %v5269, %v5271
    %v5273 = vrot.slane %v5259, %v5272
    %v5274 = vcombine.high %v5266, %v5266
    %v5275 = vcombine.high %v5273, %v5273
    %v5276 = vcombine.high %v4508, %v4508
    %v5278 = vunpack.c.l.s4 1983009808
    %v5279 = vunpack.c.0.s8 %v5278
    %v5280 = vlaneseq
    %v5281 = vshrl.u32 %v5280, 7
    %v5282 = vsub.s32 %v5279, %v5281
    %v5283 = vrot.slane %v4508, %v5282
    %v5285 = vunpack.c.l.s4 1983009808
    %v5286 = vunpack.c.0.s8 %v5285
    %v5287 = vlaneseq
    %v5288 = vshrl.u32 %v5287, 7
    %v5289 = vsub.s32 %v5286, %v5288
    %v5290 = vrot.slane %v5276, %v5289
    %v5291 = vcombine.high %v5283, %v5283
    %v5292 = vcombine.high %v5290, %v5290
    %v5293 = vcombine.high %v4509, %v4509
    %v5295 = vunpack.c.l.s4 1983009808
    %v5296 = vunpack.c.0.s8 %v5295
    %v5297 = vlaneseq
    %v5298 = vshrl.u32 %v5297, 7
    %v5299 = vsub.s32 %v5296, %v5298
    %v5300 = vrot.slane %v4509, %v5299
    %v5302 = vunpack.c.l.s4 1983009808
    %v5303 = vunpack.c.0.s8 %v5302
    %v5304 = vlaneseq
    %v5305 = vshrl.u32 %v5304, 7
    %v5306 = vsub.s32 %v5303, %v5305
    %v5307 = vrot.slane %v5293, %v5306
    %v5308 = vcombine.high %v5300, %v5300
    %v5309 = vcombine.high %v5307, %v5307
    %v5310 = vcombine.high %v4510, %v4510
    %v5312 = vunpack.c.l.s4 1983009808
    %v5313 = vunpack.c.0.s8 %v5312
    %v5314 = vlaneseq
    %v5315 = vshrl.u32 %v5314, 7
    %v5316 = vsub.s32 %v5313, %v5315
    %v5317 = vrot.slane %v4510, %v5316
    %v5319 = vunpack.c.l.s4 1983009808
    %v5320 = vunpack.c.0.s8 %v5319
    %v5321 = vlaneseq
    %v5322 = vshrl.u32 %v5321, 7
    %v5323 = vsub.s32 %v5320, %v5322
    %v5324 = vrot.slane %v5310, %v5323
    %v5325 = vcombine.high %v5317, %v5317
    %v5326 = vcombine.high %v5324, %v5324
    %v5327 = vcombine.high %v4511, %v4511
    %v5329 = vunpack.c.l.s4 1983009808
    %v5330 = vunpack.c.0.s8 %v5329
    %v5331 = vlaneseq
    %v5332 = vshrl.u32 %v5331, 7
    %v5333 = vsub.s32 %v5330, %v5332
    %v5334 = vrot.slane %v4511, %v5333
    %v5336 = vunpack.c.l.s4 1983009808
    %v5337 = vunpack.c.0.s8 %v5336
    %v5338 = vlaneseq
    %v5339 = vshrl.u32 %v5338, 7
    %v5340 = vsub.s32 %v5337, %v5339
    %v5341 = vrot.slane %v5327, %v5340
    %v5342 = vcombine.high %v5334, %v5334
    %v5343 = vcombine.high %v5341, %v5341
    %v5344 = vcombine.high %v4512, %v4512
    %v5346 = vunpack.c.l.s4 1983009808
    %v5347 = vunpack.c.0.s8 %v5346
    %v5348 = vlaneseq
    %v5349 = vshrl.u32 %v5348, 7
    %v5350 = vsub.s32 %v5347, %v5349
    %v5351 = vrot.slane %v4512, %v5350
    %v5353 = vunpack.c.l.s4 1983009808
    %v5354 = vunpack.c.0.s8 %v5353
    %v5355 = vlaneseq
    %v5356 = vshrl.u32 %v5355, 7
    %v5357 = vsub.s32 %v5354, %v5356
    %v5358 = vrot.slane %v5344, %v5357
    %v5359 = vcombine.high %v5351, %v5351
    %v5360 = vcombine.high %v5358, %v5358
    %v5361 = vcombine.high %v4513, %v4513
    %v5363 = vunpack.c.l.s4 1983009808
    %v5364 = vunpack.c.0.s8 %v5363
    %v5365 = vlaneseq
    %v5366 = vshrl.u32 %v5365, 7
    %v5367 = vsub.s32 %v5364, %v5366
    %v5368 = vrot.slane %v4513, %v5367
    %v5370 = vunpack.c.l.s4 1983009808
    %v5371 = vunpack.c.0.s8 %v5370
    %v5372 = vlaneseq
    %v5373 = vshrl.u32 %v5372, 7
    %v5374 = vsub.s32 %v5371, %v5373
    %v5375 = vrot.slane %v5361, %v5374
    %v5376 = vcombine.high %v5368, %v5368
    %v5377 = vcombine.high %v5375, %v5375
    %v5378 = vcombine.high %v4514, %v4514
    %v5380 = vunpack.c.l.s4 1983009808
    %v5381 = vunpack.c.0.s8 %v5380
    %v5382 = vlaneseq
    %v5383 = vshrl.u32 %v5382, 7
    %v5384 = vsub.s32 %v5381, %v5383
    %v5385 = vrot.slane %v4514, %v5384
    %v5387 = vunpack.c.l.s4 1983009808
    %v5388 = vunpack.c.0.s8 %v5387
    %v5389 = vlaneseq
    %v5390 = vshrl.u32 %v5389, 7
    %v5391 = vsub.s32 %v5388, %v5390
    %v5392 = vrot.slane %v5378, %v5391
    %v5393 = vcombine.high %v5385, %v5385
    %v5394 = vcombine.high %v5392, %v5392
    %v5395 = vcombine.high %v4515, %v4515
    %v5397 = vunpack.c.l.s4 1983009808
    %v5398 = vunpack.c.0.s8 %v5397
    %v5399 = vlaneseq
    %v5400 = vshrl.u32 %v5399, 7
    %v5401 = vsub.s32 %v5398, %v5400
    %v5402 = vrot.slane %v4515, %v5401
    %v5404 = vunpack.c.l.s4 1983009808
    %v5405 = vunpack.c.0.s8 %v5404
    %v5406 = vlaneseq
    %v5407 = vshrl.u32 %v5406, 7
    %v5408 = vsub.s32 %v5405, %v5407
    %v5409 = vrot.slane %v5395, %v5408
    %v5410 = vcombine.high %v5402, %v5402
    %v5411 = vcombine.high %v5409, %v5409
    %v5412 = vcombine.high %v4516, %v4516
    %v5414 = vunpack.c.l.s4 1983009808
    %v5415 = vunpack.c.0.s8 %v5414
    %v5416 = vlaneseq
    %v5417 = vshrl.u32 %v5416, 7
    %v5418 = vsub.s32 %v5415, %v5417
    %v5419 = vrot.slane %v4516, %v5418
    %v5421 = vunpack.c.l.s4 1983009808
    %v5422 = vunpack.c.0.s8 %v5421
    %v5423 = vlaneseq
    %v5424 = vshrl.u32 %v5423, 7
    %v5425 = vsub.s32 %v5422, %v5424
    %v5426 = vrot.slane %v5412, %v5425
    %v5427 = vcombine.high %v5419, %v5419
    %v5428 = vcombine.high %v5426, %v5426
    %v5429 = vcombine.high %v4517, %v4517
    %v5431 = vunpack.c.l.s4 1983009808
    %v5432 = vunpack.c.0.s8 %v5431
    %v5433 = vlaneseq
    %v5434 = vshrl.u32 %v5433, 7
    %v5435 = vsub.s32 %v5432, %v5434
    %v5436 = vrot.slane %v4517, %v5435
    %v5438 = vunpack.c.l.s4 1983009808
    %v5439 = vunpack.c.0.s8 %v5438
    %v5440 = vlaneseq
    %v5441 = vshrl.u32 %v5440, 7
    %v5442 = vsub.s32 %v5439, %v5441
    %v5443 = vrot.slane %v5429, %v5442
    %v5444 = vcombine.high %v5436, %v5436
    %v5445 = vcombine.high %v5443, %v5443
    %v5446 = vcombine.high %v4518, %v4518
    %v5448 = vunpack.c.l.s4 1983009808
    %v5449 = vunpack.c.0.s8 %v5448
    %v5450 = vlaneseq
    %v5451 = vshrl.u32 %v5450, 7
    %v5452 = vsub.s32 %v5449, %v5451
    %v5453 = vrot.slane %v4518, %v5452
    %v5455 = vunpack.c.l.s4 1983009808
    %v5456 = vunpack.c.0.s8 %v5455
    %v5457 = vlaneseq
    %v5458 = vshrl.u32 %v5457, 7
    %v5459 = vsub.s32 %v5456, %v5458
    %v5460 = vrot.slane %v5446, %v5459
    %v5461 = vcombine.high %v5453, %v5453
    %v5462 = vcombine.high %v5460, %v5460
    %v5463 = vcombine.high %v4519, %v4519
    %v5465 = vunpack.c.l.s4 1983009808
    %v5466 = vunpack.c.0.s8 %v5465
    %v5467 = vlaneseq
    %v5468 = vshrl.u32 %v5467, 7
    %v5469 = vsub.s32 %v5466, %v5468
    %v5470 = vrot.slane %v4519, %v5469
    %v5472 = vunpack.c.l.s4 1983009808
    %v5473 = vunpack.c.0.s8 %v5472
    %v5474 = vlaneseq
    %v5475 = vshrl.u32 %v5474, 7
    %v5476 = vsub.s32 %v5473, %v5475
    %v5477 = vrot.slane %v5463, %v5476
    %v5478 = vcombine.high %v5470, %v5470
    %v5479 = vcombine.high %v5477, %v5477
    %v5480 = vcombine.high %v4520, %v4520
    %v5482 = vunpack.c.l.s4 1983009808
    %v5483 = vunpack.c.0.s8 %v5482
    %v5484 = vlaneseq
    %v5485 = vshrl.u32 %v5484, 7
    %v5486 = vsub.s32 %v5483, %v5485
    %v5487 = vrot.slane %v4520, %v5486
    %v5489 = vunpack.c.l.s4 1983009808
    %v5490 = vunpack.c.0.s8 %v5489
    %v5491 = vlaneseq
    %v5492 = vshrl.u32 %v5491, 7
    %v5493 = vsub.s32 %v5490, %v5492
    %v5494 = vrot.slane %v5480, %v5493
    %v5495 = vcombine.high %v5487, %v5487
    %v5496 = vcombine.high %v5494, %v5494
    %v5497 = vcombine.high %v4521, %v4521
    %v5499 = vunpack.c.l.s4 1983009808
    %v5500 = vunpack.c.0.s8 %v5499
    %v5501 = vlaneseq
    %v5502 = vshrl.u32 %v5501, 7
    %v5503 = vsub.s32 %v5500, %v5502
    %v5504 = vrot.slane %v4521, %v5503
    %v5506 = vunpack.c.l.s4 1983009808
    %v5507 = vunpack.c.0.s8 %v5506
    %v5508 = vlaneseq
    %v5509 = vshrl.u32 %v5508, 7
    %v5510 = vsub.s32 %v5507, %v5509
    %v5511 = vrot.slane %v5497, %v5510
    %v5512 = vcombine.high %v5504, %v5504
    %v5513 = vcombine.high %v5511, %v5511
    %v5514 = vcombine.high %v4522, %v4522
    %v5516 = vunpack.c.l.s4 1983009808
    %v5517 = vunpack.c.0.s8 %v5516
    %v5518 = vlaneseq
    %v5519 = vshrl.u32 %v5518, 7
    %v5520 = vsub.s32 %v5517, %v5519
    %v5521 = vrot.slane %v4522, %v5520
    %v5523 = vunpack.c.l.s4 1983009808
    %v5524 = vunpack.c.0.s8 %v5523
    %v5525 = vlaneseq
    %v5526 = vshrl.u32 %v5525, 7
    %v5527 = vsub.s32 %v5524, %v5526
    %v5528 = vrot.slane %v5514, %v5527
    %v5529 = vcombine.high %v5521, %v5521
    %v5530 = vcombine.high %v5528, %v5528
    %v5531 = vcombine.high %v4523, %v4523
    %v5533 = vunpack.c.l.s4 1983009808
    %v5534 = vunpack.c.0.s8 %v5533
    %v5535 = vlaneseq
    %v5536 = vshrl.u32 %v5535, 7
    %v5537 = vsub.s32 %v5534, %v5536
    %v5538 = vrot.slane %v4523, %v5537
    %v5540 = vunpack.c.l.s4 1983009808
    %v5541 = vunpack.c.0.s8 %v5540
    %v5542 = vlaneseq
    %v5543 = vshrl.u32 %v5542, 7
    %v5544 = vsub.s32 %v5541, %v5543
    %v5545 = vrot.slane %v5531, %v5544
    %v5546 = vcombine.high %v5538, %v5538
    %v5547 = vcombine.high %v5545, %v5545
    %v5548 = vcombine.high %v4524, %v4524
    %v5550 = vunpack.c.l.s4 1983009808
    %v5551 = vunpack.c.0.s8 %v5550
    %v5552 = vlaneseq
    %v5553 = vshrl.u32 %v5552, 7
    %v5554 = vsub.s32 %v5551, %v5553
    %v5555 = vrot.slane %v4524, %v5554
    %v5557 = vunpack.c.l.s4 1983009808
    %v5558 = vunpack.c.0.s8 %v5557
    %v5559 = vlaneseq
    %v5560 = vshrl.u32 %v5559, 7
    %v5561 = vsub.s32 %v5558, %v5560
    %v5562 = vrot.slane %v5548, %v5561
    %v5563 = vcombine.high %v5555, %v5555
    %v5564 = vcombine.high %v5562, %v5562
    %v5565 = vcombine.high %v4525, %v4525
    %v5567 = vunpack.c.l.s4 1983009808
    %v5568 = vunpack.c.0.s8 %v5567
    %v5569 = vlaneseq
    %v5570 = vshrl.u32 %v5569, 7
    %v5571 = vsub.s32 %v5568, %v5570
    %v5572 = vrot.slane %v4525, %v5571
    %v5574 = vunpack.c.l.s4 1983009808
    %v5575 = vunpack.c.0.s8 %v5574
    %v5576 = vlaneseq
    %v5577 = vshrl.u32 %v5576, 7
    %v5578 = vsub.s32 %v5575, %v5577
    %v5579 = vrot.slane %v5565, %v5578
    %v5580 = vcombine.high %v5572, %v5572
    %v5581 = vcombine.high %v5579, %v5579
    %v5582 = vcombine.high %v4526, %v4526
    %v5584 = vunpack.c.l.s4 1983009808
    %v5585 = vunpack.c.0.s8 %v5584
    %v5586 = vlaneseq
    %v5587 = vshrl.u32 %v5586, 7
    %v5588 = vsub.s32 %v5585, %v5587
    %v5589 = vrot.slane %v4526, %v5588
    %v5591 = vunpack.c.l.s4 1983009808
    %v5592 = vunpack.c.0.s8 %v5591
    %v5593 = vlaneseq
    %v5594 = vshrl.u32 %v5593, 7
    %v5595 = vsub.s32 %v5592, %v5594
    %v5596 = vrot.slane %v5582, %v5595
    %v5597 = vcombine.high %v5589, %v5589
    %v5598 = vcombine.high %v5596, %v5596
    %v5599 = vcombine.high %v4527, %v4527
    %v5601 = vunpack.c.l.s4 1983009808
    %v5602 = vunpack.c.0.s8 %v5601
    %v5603 = vlaneseq
    %v5604 = vshrl.u32 %v5603, 7
    %v5605 = vsub.s32 %v5602, %v5604
    %v5606 = vrot.slane %v4527, %v5605
    %v5608 = vunpack.c.l.s4 1983009808
    %v5609 = vunpack.c.0.s8 %v5608
    %v5610 = vlaneseq
    %v5611 = vshrl.u32 %v5610, 7
    %v5612 = vsub.s32 %v5609, %v5611
    %v5613 = vrot.slane %v5599, %v5612
    %v5614 = vcombine.high %v5606, %v5606
    %v5615 = vcombine.high %v5613, %v5613
    %v5616 = vcombine.high %v4528, %v4528
    %v5618 = vunpack.c.l.s4 1983009808
    %v5619 = vunpack.c.0.s8 %v5618
    %v5620 = vlaneseq
    %v5621 = vshrl.u32 %v5620, 7
    %v5622 = vsub.s32 %v5619, %v5621
    %v5623 = vrot.slane %v4528, %v5622
    %v5625 = vunpack.c.l.s4 1983009808
    %v5626 = vunpack.c.0.s8 %v5625
    %v5627 = vlaneseq
    %v5628 = vshrl.u32 %v5627, 7
    %v5629 = vsub.s32 %v5626, %v5628
    %v5630 = vrot.slane %v5616, %v5629
    %v5631 = vcombine.high %v5623, %v5623
    %v5632 = vcombine.high %v5630, %v5630
    %v5633 = vcombine.high %v4529, %v4529
    %v5635 = vunpack.c.l.s4 1983009808
    %v5636 = vunpack.c.0.s8 %v5635
    %v5637 = vlaneseq
    %v5638 = vshrl.u32 %v5637, 7
    %v5639 = vsub.s32 %v5636, %v5638
    %v5640 = vrot.slane %v4529, %v5639
    %v5642 = vunpack.c.l.s4 1983009808
    %v5643 = vunpack.c.0.s8 %v5642
    %v5644 = vlaneseq
    %v5645 = vshrl.u32 %v5644, 7
    %v5646 = vsub.s32 %v5643, %v5645
    %v5647 = vrot.slane %v5633, %v5646
    %v5648 = vcombine.high %v5640, %v5640
    %v5649 = vcombine.high %v5647, %v5647
    %v5650 = vcombine.high %v4530, %v4530
    %v5652 = vunpack.c.l.s4 1983009808
    %v5653 = vunpack.c.0.s8 %v5652
    %v5654 = vlaneseq
    %v5655 = vshrl.u32 %v5654, 7
    %v5656 = vsub.s32 %v5653, %v5655
    %v5657 = vrot.slane %v4530, %v5656
    %v5659 = vunpack.c.l.s4 1983009808
    %v5660 = vunpack.c.0.s8 %v5659
    %v5661 = vlaneseq
    %v5662 = vshrl.u32 %v5661, 7
    %v5663 = vsub.s32 %v5660, %v5662
    %v5664 = vrot.slane %v5650, %v5663
    %v5665 = vcombine.high %v5657, %v5657
    %v5666 = vcombine.high %v5664, %v5664
    %v5667 = vcombine.high %v4531, %v4531
    %v5669 = vunpack.c.l.s4 1983009808
    %v5670 = vunpack.c.0.s8 %v5669
    %v5671 = vlaneseq
    %v5672 = vshrl.u32 %v5671, 7
    %v5673 = vsub.s32 %v5670, %v5672
    %v5674 = vrot.slane %v4531, %v5673
    %v5676 = vunpack.c.l.s4 1983009808
    %v5677 = vunpack.c.0.s8 %v5676
    %v5678 = vlaneseq
    %v5679 = vshrl.u32 %v5678, 7
    %v5680 = vsub.s32 %v5677, %v5679
    %v5681 = vrot.slane %v5667, %v5680
    %v5682 = vcombine.high %v5674, %v5674
    %v5683 = vcombine.high %v5681, %v5681
    %v5684 = vcombine.high %v4532, %v4532
    %v5686 = vunpack.c.l.s4 1983009808
    %v5687 = vunpack.c.0.s8 %v5686
    %v5688 = vlaneseq
    %v5689 = vshrl.u32 %v5688, 7
    %v5690 = vsub.s32 %v5687, %v5689
    %v5691 = vrot.slane %v4532, %v5690
    %v5693 = vunpack.c.l.s4 1983009808
    %v5694 = vunpack.c.0.s8 %v5693
    %v5695 = vlaneseq
    %v5696 = vshrl.u32 %v5695, 7
    %v5697 = vsub.s32 %v5694, %v5696
    %v5698 = vrot.slane %v5684, %v5697
    %v5699 = vcombine.high %v5691, %v5691
    %v5700 = vcombine.high %v5698, %v5698
    %v5701 = vcombine.high %v4533, %v4533
    %v5703 = vunpack.c.l.s4 1983009808
    %v5704 = vunpack.c.0.s8 %v5703
    %v5705 = vlaneseq
    %v5706 = vshrl.u32 %v5705, 7
    %v5707 = vsub.s32 %v5704, %v5706
    %v5708 = vrot.slane %v4533, %v5707
    %v5710 = vunpack.c.l.s4 1983009808
    %v5711 = vunpack.c.0.s8 %v5710
    %v5712 = vlaneseq
    %v5713 = vshrl.u32 %v5712, 7
    %v5714 = vsub.s32 %v5711, %v5713
    %v5715 = vrot.slane %v5701, %v5714
    %v5716 = vcombine.high %v5708, %v5708
    %v5717 = vcombine.high %v5715, %v5715
    %v5718 = vcombine.high %v4534, %v4534
    %v5720 = vunpack.c.l.s4 1983009808
    %v5721 = vunpack.c.0.s8 %v5720
    %v5722 = vlaneseq
    %v5723 = vshrl.u32 %v5722, 7
    %v5724 = vsub.s32 %v5721, %v5723
    %v5725 = vrot.slane %v4534, %v5724
    %v5727 = vunpack.c.l.s4 1983009808
    %v5728 = vunpack.c.0.s8 %v5727
    %v5729 = vlaneseq
    %v5730 = vshrl.u32 %v5729, 7
    %v5731 = vsub.s32 %v5728, %v5730
    %v5732 = vrot.slane %v5718, %v5731
    %v5733 = vcombine.high %v5725, %v5725
    %v5734 = vcombine.high %v5732, %v5732
    %v5735 = vcombine.high %v4535, %v4535
    %v5737 = vunpack.c.l.s4 1983009808
    %v5738 = vunpack.c.0.s8 %v5737
    %v5739 = vlaneseq
    %v5740 = vshrl.u32 %v5739, 7
    %v5741 = vsub.s32 %v5738, %v5740
    %v5742 = vrot.slane %v4535, %v5741
    %v5744 = vunpack.c.l.s4 1983009808
    %v5745 = vunpack.c.0.s8 %v5744
    %v5746 = vlaneseq
    %v5747 = vshrl.u32 %v5746, 7
    %v5748 = vsub.s32 %v5745, %v5747
    %v5749 = vrot.slane %v5735, %v5748
    %v5750 = vcombine.high %v5742, %v5742
    %v5751 = vcombine.high %v5749, %v5749
    %v6008 = vrot.slane %v4671, 7
    %v6009 = vrot.slane %v6008, 2
    %v6010 = vrot.slane %v4679, 7
    %v6011 = vrot.slane %v6010, 2
    %v6012 = vrot.slane %v4678, 7
    %v6013 = vrot.slane %v6012, 2
    %v6014 = vrot.slane %v4680, 7
    %v6015 = vrot.slane %v6014, 2
    %v6016 = vrot.slane %v4688, 7
    %v6017 = vrot.slane %v6016, 2
    %v6018 = vrot.slane %v4696, 7
    %v6019 = vrot.slane %v6018, 2
    %v6020 = vrot.slane %v4695, 7
    %v6021 = vrot.slane %v6020, 2
    %v6022 = vrot.slane %v4697, 7
    %v6023 = vrot.slane %v6022, 2
    %v6024 = vrot.slane %v4705, 7
    %v6025 = vrot.slane %v6024, 2
    %v6026 = vrot.slane %v4713, 7
    %v6027 = vrot.slane %v6026, 2
    %v6028 = vrot.slane %v4712, 7
    %v6029 = vrot.slane %v6028, 2
    %v6030 = vrot.slane %v4714, 7
    %v6031 = vrot.slane %v6030, 2
    %v6032 = vrot.slane %v4722, 7
    %v6033 = vrot.slane %v6032, 2
    %v6034 = vrot.slane %v4730, 7
    %v6035 = vrot.slane %v6034, 2
    %v6036 = vrot.slane %v4729, 7
    %v6037 = vrot.slane %v6036, 2
    %v6038 = vrot.slane %v4731, 7
    %v6039 = vrot.slane %v6038, 2
    %v6040 = vrot.slane %v4739, 7
    %v6041 = vrot.slane %v6040, 2
    %v6042 = vrot.slane %v4747, 7
    %v6043 = vrot.slane %v6042, 2
    %v6044 = vrot.slane %v4746, 7
    %v6045 = vrot.slane %v6044, 2
    %v6046 = vrot.slane %v4748, 7
    %v6047 = vrot.slane %v6046, 2
    %v6048 = vrot.slane %v4756, 7
    %v6049 = vrot.slane %v6048, 2
    %v6050 = vrot.slane %v4764, 7
    %v6051 = vrot.slane %v6050, 2
    %v6052 = vrot.slane %v4763, 7
    %v6053 = vrot.slane %v6052, 2
    %v6054 = vrot.slane %v4765, 7
    %v6055 = vrot.slane %v6054, 2
    %v6056 = vrot.slane %v4773, 7
    %v6057 = vrot.slane %v6056, 2
    %v6058 = vrot.slane %v4781, 7
    %v6059 = vrot.slane %v6058, 2
    %v6060 = vrot.slane %v4780, 7
    %v6061 = vrot.slane %v6060, 2
    %v6062 = vrot.slane %v4782, 7
    %v6063 = vrot.slane %v6062, 2
    %v6064 = vrot.slane %v4790, 7
    %v6065 = vrot.slane %v6064, 2
    %v6066 = vrot.slane %v4798, 7
    %v6067 = vrot.slane %v6066, 2
    %v6068 = vrot.slane %v4797, 7
    %v6069 = vrot.slane %v6068, 2
    %v6070 = vrot.slane %v4799, 7
    %v6071 = vrot.slane %v6070, 2
    %v6072 = vrot.slane %v4807, 7
    %v6073 = vrot.slane %v6072, 2
    %v6074 = vrot.slane %v4815, 7
    %v6075 = vrot.slane %v6074, 2
    %v6076 = vrot.slane %v4814, 7
    %v6077 = vrot.slane %v6076, 2
    %v6078 = vrot.slane %v4816, 7
    %v6079 = vrot.slane %v6078, 2
    %v6080 = vrot.slane %v4824, 7
    %v6081 = vrot.slane %v6080, 2
    %v6082 = vrot.slane %v4832, 7
    %v6083 = vrot.slane %v6082, 2
    %v6084 = vrot.slane %v4831, 7
    %v6085 = vrot.slane %v6084, 2
    %v6086 = vrot.slane %v4833, 7
    %v6087 = vrot.slane %v6086, 2
    %v6088 = vrot.slane %v4841, 7
    %v6089 = vrot.slane %v6088, 2
    %v6090 = vrot.slane %v4849, 7
    %v6091 = vrot.slane %v6090, 2
    %v6092 = vrot.slane %v4848, 7
    %v6093 = vrot.slane %v6092, 2
    %v6094 = vrot.slane %v4850, 7
    %v6095 = vrot.slane %v6094, 2
    %v6096 = vrot.slane %v4858, 7
    %v6097 = vrot.slane %v6096, 2
    %v6098 = vrot.slane %v4866, 7
    %v6099 = vrot.slane %v6098, 2
    %v6100 = vrot.slane %v4865, 7
    %v6101 = vrot.slane %v6100, 2
    %v6102 = vrot.slane %v4867, 7
    %v6103 = vrot.slane %v6102, 2
    %v6104 = vrot.slane %v4875, 7
    %v6105 = vrot.slane %v6104, 2
    %v6106 = vrot.slane %v4883, 7
    %v6107 = vrot.slane %v6106, 2
    %v6108 = vrot.slane %v4882, 7
    %v6109 = vrot.slane %v6108, 2
    %v6110 = vrot.slane %v4884, 7
    %v6111 = vrot.slane %v6110, 2
    %v6112 = vrot.slane %v4892, 7
    %v6113 = vrot.slane %v6112, 2
    %v6114 = vrot.slane %v4900, 7
    %v6115 = vrot.slane %v6114, 2
    %v6116 = vrot.slane %v4899, 7
    %v6117 = vrot.slane %v6116, 2
    %v6118 = vrot.slane %v4901, 7
    %v6119 = vrot.slane %v6118, 2
    %v6120 = vrot.slane %v4909, 7
    %v6121 = vrot.slane %v6120, 2
    %v6122 = vrot.slane %v4917, 7
    %v6123 = vrot.slane %v6122, 2
    %v6124 = vrot.slane %v4916, 7
    %v6125 = vrot.slane %v6124, 2
    %v6126 = vrot.slane %v4918, 7
    %v6127 = vrot.slane %v6126, 2
    %v6128 = vrot.slane %v4926, 7
    %v6129 = vrot.slane %v6128, 2
    %v6130 = vrot.slane %v4934, 7
    %v6131 = vrot.slane %v6130, 2
    %v6132 = vrot.slane %v4933, 7
    %v6133 = vrot.slane %v6132, 2
    %v6134 = vrot.slane %v4935, 7
    %v6135 = vrot.slane %v6134, 2
    %v6136 = vrot.slane %v4943, 7
    %v6137 = vrot.slane %v6136, 2
    %v6138 = vrot.slane %v4951, 7
    %v6139 = vrot.slane %v6138, 2
    %v6140 = vrot.slane %v4950, 7
    %v6141 = vrot.slane %v6140, 2
    %v6142 = vrot.slane %v4952, 7
    %v6143 = vrot.slane %v6142, 2
    %v6144 = vrot.slane %v4960, 7
    %v6145 = vrot.slane %v6144, 2
    %v6146 = vrot.slane %v4968, 7
    %v6147 = vrot.slane %v6146, 2
    %v6148 = vrot.slane %v4967, 7
    %v6149 = vrot.slane %v6148, 2
    %v6150 = vrot.slane %v4969, 7
    %v6151 = vrot.slane %v6150, 2
    %v6152 = vrot.slane %v4977, 7
    %v6153 = vrot.slane %v6152, 2
    %v6154 = vrot.slane %v4985, 7
    %v6155 = vrot.slane %v6154, 2
    %v6156 = vrot.slane %v4984, 7
    %v6157 = vrot.slane %v6156, 2
    %v6158 = vrot.slane %v4986, 7
    %v6159 = vrot.slane %v6158, 2
    %v6160 = vrot.slane %v4994, 7
    %v6161 = vrot.slane %v6160, 2
    %v6162 = vrot.slane %v5002, 7
    %v6163 = vrot.slane %v6162, 2
    %v6164 = vrot.slane %v5001, 7
    %v6165 = vrot.slane %v6164, 2
    %v6166 = vrot.slane %v5003, 7
    %v6167 = vrot.slane %v6166, 2
    %v6168 = vrot.slane %v5011, 7
    %v6169 = vrot.slane %v6168, 2
    %v6170 = vrot.slane %v5019, 7
    %v6171 = vrot.slane %v6170, 2
    %v6172 = vrot.slane %v5018, 7
    %v6173 = vrot.slane %v6172, 2
    %v6174 = vrot.slane %v5020, 7
    %v6175 = vrot.slane %v6174, 2
    %v6176 = vrot.slane %v5028, 7
    %v6177 = vrot.slane %v6176, 2
    %v6178 = vrot.slane %v5036, 7
    %v6179 = vrot.slane %v6178, 2
    %v6180 = vrot.slane %v5035, 7
    %v6181 = vrot.slane %v6180, 2
    %v6182 = vrot.slane %v5037, 7
    %v6183 = vrot.slane %v6182, 2
    %v6184 = vrot.slane %v5045, 7
    %v6185 = vrot.slane %v6184, 2
    %v6186 = vrot.slane %v5053, 7
    %v6187 = vrot.slane %v6186, 2
    %v6188 = vrot.slane %v5052, 7
    %v6189 = vrot.slane %v6188, 2
    %v6190 = vrot.slane %v5054, 7
    %v6191 = vrot.slane %v6190, 2
    %v6192 = vrot.slane %v5062, 7
    %v6193 = vrot.slane %v6192, 2
    %v6194 = vrot.slane %v5070, 7
    %v6195 = vrot.slane %v6194, 2
    %v6196 = vrot.slane %v5069, 7
    %v6197 = vrot.slane %v6196, 2
    %v6198 = vrot.slane %v5071, 7
    %v6199 = vrot.slane %v6198, 2
    %v6200 = vrot.slane %v5079, 7
    %v6201 = vrot.slane %v6200, 2
    %v6202 = vrot.slane %v5087, 7
    %v6203 = vrot.slane %v6202, 2
    %v6204 = vrot.slane %v5086, 7
    %v6205 = vrot.slane %v6204, 2
    %v6206 = vrot.slane %v5088, 7
    %v6207 = vrot.slane %v6206, 2
    %v6208 = vrot.slane %v5096, 7
    %v6209 = vrot.slane %v6208, 2
    %v6210 = vrot.slane %v5104, 7
    %v6211 = vrot.slane %v6210, 2
    %v6212 = vrot.slane %v5103, 7
    %v6213 = vrot.slane %v6212, 2
    %v6214 = vrot.slane %v5105, 7
    %v6215 = vrot.slane %v6214, 2
    %v6216 = vrot.slane %v5113, 7
    %v6217 = vrot.slane %v6216, 2
    %v6218 = vrot.slane %v5121, 7
    %v6219 = vrot.slane %v6218, 2
    %v6220 = vrot.slane %v5120, 7
    %v6221 = vrot.slane %v6220, 2
    %v6222 = vrot.slane %v5122, 7
    %v6223 = vrot.slane %v6222, 2
    %v6224 = vrot.slane %v5130, 7
    %v6225 = vrot.slane %v6224, 2
    %v6226 = vrot.slane %v5138, 7
    %v6227 = vrot.slane %v6226, 2
    %v6228 = vrot.slane %v5137, 7
    %v6229 = vrot.slane %v6228, 2
    %v6230 = vrot.slane %v5139, 7
    %v6231 = vrot.slane %v6230, 2
    %v6232 = vrot.slane %v5147, 7
    %v6233 = vrot.slane %v6232, 2
    %v6234 = vrot.slane %v5155, 7
    %v6235 = vrot.slane %v6234, 2
    %v6236 = vrot.slane %v5154, 7
    %v6237 = vrot.slane %v6236, 2
    %v6238 = vrot.slane %v5156, 7
    %v6239 = vrot.slane %v6238, 2
    %v6240 = vrot.slane %v5164, 7
    %v6241 = vrot.slane %v6240, 2
    %v6242 = vrot.slane %v5172, 7
    %v6243 = vrot.slane %v6242, 2
    %v6244 = vrot.slane %v5171, 7
    %v6245 = vrot.slane %v6244, 2
    %v6246 = vrot.slane %v5173, 7
    %v6247 = vrot.slane %v6246, 2
    %v6248 = vrot.slane %v5181, 7
    %v6249 = vrot.slane %v6248, 2
    %v6250 = vrot.slane %v5189, 7
    %v6251 = vrot.slane %v6250, 2
    %v6252 = vrot.slane %v5188, 7
    %v6253 = vrot.slane %v6252, 2
    %v6254 = vrot.slane %v5190, 7
    %v6255 = vrot.slane %v6254, 2
    %v6256 = vrot.slane %v5198, 7
    %v6257 = vrot.slane %v6256, 2
    %v6258 = vrot.slane %v5206, 7
    %v6259 = vrot.slane %v6258, 2
    %v6260 = vrot.slane %v5205, 7
    %v6261 = vrot.slane %v6260, 2
    %v6262 = vrot.slane %v5207, 7
    %v6263 = vrot.slane %v6262, 2
    %v6264 = vrot.slane %v5215, 7
    %v6265 = vrot.slane %v6264, 2
    %v6266 = vrot.slane %v5223, 7
    %v6267 = vrot.slane %v6266, 2
    %v6268 = vrot.slane %v5222, 7
    %v6269 = vrot.slane %v6268, 2
    %v6270 = vrot.slane %v5224, 7
    %v6271 = vrot.slane %v6270, 2
    %v6272 = vrot.slane %v5232, 7
    %v6273 = vrot.slane %v6272, 2
    %v6274 = vrot.slane %v5240, 7
    %v6275 = vrot.slane %v6274, 2
    %v6276 = vrot.slane %v5239, 7
    %v6277 = vrot.slane %v6276, 2
    %v6278 = vrot.slane %v5241, 7
    %v6279 = vrot.slane %v6278, 2
    %v6280 = vrot.slane %v5249, 7
    %v6281 = vrot.slane %v6280, 2
    %v6282 = vrot.slane %v5257, 7
    %v6283 = vrot.slane %v6282, 2
    %v6284 = vrot.slane %v5256, 7
    %v6285 = vrot.slane %v6284, 2
    %v6286 = vrot.slane %v5258, 7
    %v6287 = vrot.slane %v6286, 2
    %v6288 = vrot.slane %v5266, 7
    %v6289 = vrot.slane %v6288, 2
    %v6290 = vrot.slane %v5274, 7
    %v6291 = vrot.slane %v6290, 2
    %v6292 = vrot.slane %v5273, 7
    %v6293 = vrot.slane %v6292, 2
    %v6294 = vrot.slane %v5275, 7
    %v6295 = vrot.slane %v6294, 2
    %v6296 = vrot.slane %v5283, 7
    %v6297 = vrot.slane %v6296, 2
    %v6298 = vrot.slane %v5291, 7
    %v6299 = vrot.slane %v6298, 2
    %v6300 = vrot.slane %v5290, 7
    %v6301 = vrot.slane %v6300, 2
    %v6302 = vrot.slane %v5292, 7
    %v6303 = vrot.slane %v6302, 2
    %v6304 = vrot.slane %v5300, 7
    %v6305 = vrot.slane %v6304, 2
    %v6306 = vrot.slane %v5308, 7
    %v6307 = vrot.slane %v6306, 2
    %v6308 = vrot.slane %v5307, 7
    %v6309 = vrot.slane %v6308, 2
    %v6310 = vrot.slane %v5309, 7
    %v6311 = vrot.slane %v6310, 2
    %v6312 = vrot.slane %v5317, 7
    %v6313 = vrot.slane %v6312, 2
    %v6314 = vrot.slane %v5325, 7
    %v6315 = vrot.slane %v6314, 2
    %v6316 = vrot.slane %v5324, 7
    %v6317 = vrot.slane %v6316, 2
    %v6318 = vrot.slane %v5326, 7
    %v6319 = vrot.slane %v6318, 2
    %v6320 = vrot.slane %v5334, 7
    %v6321 = vrot.slane %v6320, 2
    %v6322 = vrot.slane %v5342, 7
    %v6323 = vrot.slane %v6322, 2
    %v6324 = vrot.slane %v5341, 7
    %v6325 = vrot.slane %v6324, 2
    %v6326 = vrot.slane %v5343, 7
    %v6327 = vrot.slane %v6326, 2
    %v6328 = vrot.slane %v5351, 7
    %v6329 = vrot.slane %v6328, 2
    %v6330 = vrot.slane %v5359, 7
    %v6331 = vrot.slane %v6330, 2
    %v6332 = vrot.slane %v5358, 7
    %v6333 = vrot.slane %v6332, 2
    %v6334 = vrot.slane %v5360, 7
    %v6335 = vrot.slane %v6334, 2
    %v6336 = vrot.slane %v5368, 7
    %v6337 = vrot.slane %v6336, 2
    %v6338 = vrot.slane %v5376, 7
    %v6339 = vrot.slane %v6338, 2
    %v6340 = vrot.slane %v5375, 7
    %v6341 = vrot.slane %v6340, 2
    %v6342 = vrot.slane %v5377, 7
    %v6343 = vrot.slane %v6342, 2
    %v6344 = vrot.slane %v5385, 7
    %v6345 = vrot.slane %v6344, 2
    %v6346 = vrot.slane %v5393, 7
    %v6347 = vrot.slane %v6346, 2
    %v6348 = vrot.slane %v5392, 7
    %v6349 = vrot.slane %v6348, 2
    %v6350 = vrot.slane %v5394, 7
    %v6351 = vrot.slane %v6350, 2
    %v6352 = vrot.slane %v5402, 7
    %v6353 = vrot.slane %v6352, 2
    %v6354 = vrot.slane %v5410, 7
    %v6355 = vrot.slane %v6354, 2
    %v6356 = vrot.slane %v5409, 7
    %v6357 = vrot.slane %v6356, 2
    %v6358 = vrot.slane %v5411, 7
    %v6359 = vrot.slane %v6358, 2
    %v6360 = vrot.slane %v5419, 7
    %v6361 = vrot.slane %v6360, 2
    %v6362 = vrot.slane %v5427, 7
    %v6363 = vrot.slane %v6362, 2
    %v6364 = vrot.slane %v5426, 7
    %v6365 = vrot.slane %v6364, 2
    %v6366 = vrot.slane %v5428, 7
    %v6367 = vrot.slane %v6366, 2
    %v6368 = vrot.slane %v5436, 7
    %v6369 = vrot.slane %v6368, 2
    %v6370 = vrot.slane %v5444, 7
    %v6371 = vrot.slane %v6370, 2
    %v6372 = vrot.slane %v5443, 7
    %v6373 = vrot.slane %v6372, 2
    %v6374 = vrot.slane %v5445, 7
    %v6375 = vrot.slane %v6374, 2
    %v6376 = vrot.slane %v5453, 7
    %v6377 = vrot.slane %v6376, 2
    %v6378 = vrot.slane %v5461, 7
    %v6379 = vrot.slane %v6378, 2
    %v6380 = vrot.slane %v5460, 7
    %v6381 = vrot.slane %v6380, 2
    %v6382 = vrot.slane %v5462, 7
    %v6383 = vrot.slane %v6382, 2
    %v6384 = vrot.slane %v5470, 7
    %v6385 = vrot.slane %v6384, 2
    %v6386 = vrot.slane %v5478, 7
    %v6387 = vrot.slane %v6386, 2
    %v6388 = vrot.slane %v5477, 7
    %v6389 = vrot.slane %v6388, 2
    %v6390 = vrot.slane %v5479, 7
    %v6391 = vrot.slane %v6390, 2
    %v6392 = vrot.slane %v5487, 7
    %v6393 = vrot.slane %v6392, 2
    %v6394 = vrot.slane %v5495, 7
    %v6395 = vrot.slane %v6394, 2
    %v6396 = vrot.slane %v5494, 7
    %v6397 = vrot.slane %v6396, 2
    %v6398 = vrot.slane %v5496, 7
    %v6399 = vrot.slane %v6398, 2
    %v6400 = vrot.slane %v5504, 7
    %v6401 = vrot.slane %v6400, 2
    %v6402 = vrot.slane %v5512, 7
    %v6403 = vrot.slane %v6402, 2
    %v6404 = vrot.slane %v5511, 7
    %v6405 = vrot.slane %v6404, 2
    %v6406 = vrot.slane %v5513, 7
    %v6407 = vrot.slane %v6406, 2
    %v6408 = vrot.slane %v5521, 7
    %v6409 = vrot.slane %v6408, 2
    %v6410 = vrot.slane %v5529, 7
    %v6411 = vrot.slane %v6410, 2
    %v6412 = vrot.slane %v5528, 7
    %v6413 = vrot.slane %v6412, 2
    %v6414 = vrot.slane %v5530, 7
    %v6415 = vrot.slane %v6414, 2
    %v6416 = vrot.slane %v5538, 7
    %v6417 = vrot.slane %v6416, 2
    %v6418 = vrot.slane %v5546, 7
    %v6419 = vrot.slane %v6418, 2
    %v6420 = vrot.slane %v5545, 7
    %v6421 = vrot.slane %v6420, 2
    %v6422 = vrot.slane %v5547, 7
    %v6423 = vrot.slane %v6422, 2
    %v6424 = vrot.slane %v5555, 7
    %v6425 = vrot.slane %v6424, 2
    %v6426 = vrot.slane %v5563, 7
    %v6427 = vrot.slane %v6426, 2
    %v6428 = vrot.slane %v5562, 7
    %v6429 = vrot.slane %v6428, 2
    %v6430 = vrot.slane %v5564, 7
    %v6431 = vrot.slane %v6430, 2
    %v6432 = vrot.slane %v5572, 7
    %v6433 = vrot.slane %v6432, 2
    %v6434 = vrot.slane %v5580, 7
    %v6435 = vrot.slane %v6434, 2
    %v6436 = vrot.slane %v5579, 7
    %v6437 = vrot.slane %v6436, 2
    %v6438 = vrot.slane %v5581, 7
    %v6439 = vrot.slane %v6438, 2
    %v6440 = vrot.slane %v5589, 7
    %v6441 = vrot.slane %v6440, 2
    %v6442 = vrot.slane %v5597, 7
    %v6443 = vrot.slane %v6442, 2
    %v6444 = vrot.slane %v5596, 7
    %v6445 = vrot.slane %v6444, 2
    %v6446 = vrot.slane %v5598, 7
    %v6447 = vrot.slane %v6446, 2
    %v6448 = vrot.slane %v5606, 7
    %v6449 = vrot.slane %v6448, 2
    %v6450 = vrot.slane %v5614, 7
    %v6451 = vrot.slane %v6450, 2
    %v6452 = vrot.slane %v5613, 7
    %v6453 = vrot.slane %v6452, 2
    %v6454 = vrot.slane %v5615, 7
    %v6455 = vrot.slane %v6454, 2
    %v6456 = vrot.slane %v5623, 7
    %v6457 = vrot.slane %v6456, 2
    %v6458 = vrot.slane %v5631, 7
    %v6459 = vrot.slane %v6458, 2
    %v6460 = vrot.slane %v5630, 7
    %v6461 = vrot.slane %v6460, 2
    %v6462 = vrot.slane %v5632, 7
    %v6463 = vrot.slane %v6462, 2
    %v6464 = vrot.slane %v5640, 7
    %v6465 = vrot.slane %v6464, 2
    %v6466 = vrot.slane %v5648, 7
    %v6467 = vrot.slane %v6466, 2
    %v6468 = vrot.slane %v5647, 7
    %v6469 = vrot.slane %v6468, 2
    %v6470 = vrot.slane %v5649, 7
    %v6471 = vrot.slane %v6470, 2
    %v6472 = vrot.slane %v5657, 7
    %v6473 = vrot.slane %v6472, 2
    %v6474 = vrot.slane %v5665, 7
    %v6475 = vrot.slane %v6474, 2
    %v6476 = vrot.slane %v5664, 7
    %v6477 = vrot.slane %v6476, 2
    %v6478 = vrot.slane %v5666, 7
    %v6479 = vrot.slane %v6478, 2
    %v6480 = vrot.slane %v5674, 7
    %v6481 = vrot.slane %v6480, 2
    %v6482 = vrot.slane %v5682, 7
    %v6483 = vrot.slane %v6482, 2
    %v6484 = vrot.slane %v5681, 7
    %v6485 = vrot.slane %v6484, 2
    %v6486 = vrot.slane %v5683, 7
    %v6487 = vrot.slane %v6486, 2
    %v6488 = vrot.slane %v5691, 7
    %v6489 = vrot.slane %v6488, 2
    %v6490 = vrot.slane %v5699, 7
    %v6491 = vrot.slane %v6490, 2
    %v6492 = vrot.slane %v5698, 7
    %v6493 = vrot.slane %v6492, 2
    %v6494 = vrot.slane %v5700, 7
    %v6495 = vrot.slane %v6494, 2
    %v6496 = vrot.slane %v5708, 7
    %v6497 = vrot.slane %v6496, 2
    %v6498 = vrot.slane %v5716, 7
    %v6499 = vrot.slane %v6498, 2
    %v6500 = vrot.slane %v5715, 7
    %v6501 = vrot.slane %v6500, 2
    %v6502 = vrot.slane %v5717, 7
    %v6503 = vrot.slane %v6502, 2
    %v6504 = vrot.slane %v5725, 7
    %v6505 = vrot.slane %v6504, 2
    %v6506 = vrot.slane %v5733, 7
    %v6507 = vrot.slane %v6506, 2
    %v6508 = vrot.slane %v5732, 7
    %v6509 = vrot.slane %v6508, 2
    %v6510 = vrot.slane %v5734, 7
    %v6511 = vrot.slane %v6510, 2
    %v6512 = vrot.slane %v5742, 7
    %v6513 = vrot.slane %v6512, 2
    %v6514 = vrot.slane %v5750, 7
    %v6515 = vrot.slane %v6514, 2
    %v6516 = vrot.slane %v5749, 7
    %v6517 = vrot.slane %v6516, 2
    %v6518 = vrot.slane %v5751, 7
    %v6519 = vrot.slane %v6518, 2
    %v6776 = vmax.f32 %v4671, %v6009
    %v6777 = vmax.f32 %v4679, %v6011
    %v6778 = vmax.f32 %v4678, %v6013
    %v6779 = vmax.f32 %v4680, %v6015
    %v6780 = vmax.f32 %v4688, %v6017
    %v6781 = vmax.f32 %v4696, %v6019
    %v6782 = vmax.f32 %v4695, %v6021
    %v6783 = vmax.f32 %v4697, %v6023
    %v6784 = vmax.f32 %v4705, %v6025
    %v6785 = vmax.f32 %v4713, %v6027
    %v6786 = vmax.f32 %v4712, %v6029
    %v6787 = vmax.f32 %v4714, %v6031
    %v6788 = vmax.f32 %v4722, %v6033
    %v6789 = vmax.f32 %v4730, %v6035
    %v6790 = vmax.f32 %v4729, %v6037
    %v6791 = vmax.f32 %v4731, %v6039
    %v6792 = vmax.f32 %v4739, %v6041
    %v6793 = vmax.f32 %v4747, %v6043
    %v6794 = vmax.f32 %v4746, %v6045
    %v6795 = vmax.f32 %v4748, %v6047
    %v6796 = vmax.f32 %v4756, %v6049
    %v6797 = vmax.f32 %v4764, %v6051
    %v6798 = vmax.f32 %v4763, %v6053
    %v6799 = vmax.f32 %v4765, %v6055
    %v6800 = vmax.f32 %v4773, %v6057
    %v6801 = vmax.f32 %v4781, %v6059
    %v6802 = vmax.f32 %v4780, %v6061
    %v6803 = vmax.f32 %v4782, %v6063
    %v6804 = vmax.f32 %v4790, %v6065
    %v6805 = vmax.f32 %v4798, %v6067
    %v6806 = vmax.f32 %v4797, %v6069
    %v6807 = vmax.f32 %v4799, %v6071
    %v6808 = vmax.f32 %v4807, %v6073
    %v6809 = vmax.f32 %v4815, %v6075
    %v6810 = vmax.f32 %v4814, %v6077
    %v6811 = vmax.f32 %v4816, %v6079
    %v6812 = vmax.f32 %v4824, %v6081
    %v6813 = vmax.f32 %v4832, %v6083
    %v6814 = vmax.f32 %v4831, %v6085
    %v6815 = vmax.f32 %v4833, %v6087
    %v6816 = vmax.f32 %v4841, %v6089
    %v6817 = vmax.f32 %v4849, %v6091
    %v6818 = vmax.f32 %v4848, %v6093
    %v6819 = vmax.f32 %v4850, %v6095
    %v6820 = vmax.f32 %v4858, %v6097
    %v6821 = vmax.f32 %v4866, %v6099
    %v6822 = vmax.f32 %v4865, %v6101
    %v6823 = vmax.f32 %v4867, %v6103
    %v6824 = vmax.f32 %v4875, %v6105
    %v6825 = vmax.f32 %v4883, %v6107
    %v6826 = vmax.f32 %v4882, %v6109
    %v6827 = vmax.f32 %v4884, %v6111
    %v6828 = vmax.f32 %v4892, %v6113
    %v6829 = vmax.f32 %v4900, %v6115
    %v6830 = vmax.f32 %v4899, %v6117
    %v6831 = vmax.f32 %v4901, %v6119
    %v6832 = vmax.f32 %v4909, %v6121
    %v6833 = vmax.f32 %v4917, %v6123
    %v6834 = vmax.f32 %v4916, %v6125
    %v6835 = vmax.f32 %v4918, %v6127
    %v6836 = vmax.f32 %v4926, %v6129
    %v6837 = vmax.f32 %v4934, %v6131
    %v6838 = vmax.f32 %v4933, %v6133
    %v6839 = vmax.f32 %v4935, %v6135
    %v6840 = vmax.f32 %v4943, %v6137
    %v6841 = vmax.f32 %v4951, %v6139
    %v6842 = vmax.f32 %v4950, %v6141
    %v6843 = vmax.f32 %v4952, %v6143
    %v6844 = vmax.f32 %v4960, %v6145
    %v6845 = vmax.f32 %v4968, %v6147
    %v6846 = vmax.f32 %v4967, %v6149
    %v6847 = vmax.f32 %v4969, %v6151
    %v6848 = vmax.f32 %v4977, %v6153
    %v6849 = vmax.f32 %v4985, %v6155
    %v6850 = vmax.f32 %v4984, %v6157
    %v6851 = vmax.f32 %v4986, %v6159
    %v6852 = vmax.f32 %v4994, %v6161
    %v6853 = vmax.f32 %v5002, %v6163
    %v6854 = vmax.f32 %v5001, %v6165
    %v6855 = vmax.f32 %v5003, %v6167
    %v6856 = vmax.f32 %v5011, %v6169
    %v6857 = vmax.f32 %v5019, %v6171
    %v6858 = vmax.f32 %v5018, %v6173
    %v6859 = vmax.f32 %v5020, %v6175
    %v6860 = vmax.f32 %v5028, %v6177
    %v6861 = vmax.f32 %v5036, %v6179
    %v6862 = vmax.f32 %v5035, %v6181
    %v6863 = vmax.f32 %v5037, %v6183
    %v6864 = vmax.f32 %v5045, %v6185
    %v6865 = vmax.f32 %v5053, %v6187
    %v6866 = vmax.f32 %v5052, %v6189
    %v6867 = vmax.f32 %v5054, %v6191
    %v6868 = vmax.f32 %v5062, %v6193
    %v6869 = vmax.f32 %v5070, %v6195
    %v6870 = vmax.f32 %v5069, %v6197
    %v6871 = vmax.f32 %v5071, %v6199
    %v6872 = vmax.f32 %v5079, %v6201
    %v6873 = vmax.f32 %v5087, %v6203
    %v6874 = vmax.f32 %v5086, %v6205
    %v6875 = vmax.f32 %v5088, %v6207
    %v6876 = vmax.f32 %v5096, %v6209
    %v6877 = vmax.f32 %v5104, %v6211
    %v6878 = vmax.f32 %v5103, %v6213
    %v6879 = vmax.f32 %v5105, %v6215
    %v6880 = vmax.f32 %v5113, %v6217
    %v6881 = vmax.f32 %v5121, %v6219
    %v6882 = vmax.f32 %v5120, %v6221
    %v6883 = vmax.f32 %v5122, %v6223
    %v6884 = vmax.f32 %v5130, %v6225
    %v6885 = vmax.f32 %v5138, %v6227
    %v6886 = vmax.f32 %v5137, %v6229
    %v6887 = vmax.f32 %v5139, %v6231
    %v6888 = vmax.f32 %v5147, %v6233
    %v6889 = vmax.f32 %v5155, %v6235
    %v6890 = vmax.f32 %v5154, %v6237
    %v6891 = vmax.f32 %v5156, %v6239
    %v6892 = vmax.f32 %v5164, %v6241
    %v6893 = vmax.f32 %v5172, %v6243
    %v6894 = vmax.f32 %v5171, %v6245
    %v6895 = vmax.f32 %v5173, %v6247
    %v6896 = vmax.f32 %v5181, %v6249
    %v6897 = vmax.f32 %v5189, %v6251
    %v6898 = vmax.f32 %v5188, %v6253
    %v6899 = vmax.f32 %v5190, %v6255
    %v6900 = vmax.f32 %v5198, %v6257
    %v6901 = vmax.f32 %v5206, %v6259
    %v6902 = vmax.f32 %v5205, %v6261
    %v6903 = vmax.f32 %v5207, %v6263
    %v6904 = vmax.f32 %v5215, %v6265
    %v6905 = vmax.f32 %v5223, %v6267
    %v6906 = vmax.f32 %v5222, %v6269
    %v6907 = vmax.f32 %v5224, %v6271
    %v6908 = vmax.f32 %v5232, %v6273
    %v6909 = vmax.f32 %v5240, %v6275
    %v6910 = vmax.f32 %v5239, %v6277
    %v6911 = vmax.f32 %v5241, %v6279
    %v6912 = vmax.f32 %v5249, %v6281
    %v6913 = vmax.f32 %v5257, %v6283
    %v6914 = vmax.f32 %v5256, %v6285
    %v6915 = vmax.f32 %v5258, %v6287
    %v6916 = vmax.f32 %v5266, %v6289
    %v6917 = vmax.f32 %v5274, %v6291
    %v6918 = vmax.f32 %v5273, %v6293
    %v6919 = vmax.f32 %v5275, %v6295
    %v6920 = vmax.f32 %v5283, %v6297
    %v6921 = vmax.f32 %v5291, %v6299
    %v6922 = vmax.f32 %v5290, %v6301
    %v6923 = vmax.f32 %v5292, %v6303
    %v6924 = vmax.f32 %v5300, %v6305
    %v6925 = vmax.f32 %v5308, %v6307
    %v6926 = vmax.f32 %v5307, %v6309
    %v6927 = vmax.f32 %v5309, %v6311
    %v6928 = vmax.f32 %v5317, %v6313
    %v6929 = vmax.f32 %v5325, %v6315
    %v6930 = vmax.f32 %v5324, %v6317
    %v6931 = vmax.f32 %v5326, %v6319
    %v6932 = vmax.f32 %v5334, %v6321
    %v6933 = vmax.f32 %v5342, %v6323
    %v6934 = vmax.f32 %v5341, %v6325
    %v6935 = vmax.f32 %v5343, %v6327
    %v6936 = vmax.f32 %v5351, %v6329
    %v6937 = vmax.f32 %v5359, %v6331
    %v6938 = vmax.f32 %v5358, %v6333
    %v6939 = vmax.f32 %v5360, %v6335
    %v6940 = vmax.f32 %v5368, %v6337
    %v6941 = vmax.f32 %v5376, %v6339
    %v6942 = vmax.f32 %v5375, %v6341
    %v6943 = vmax.f32 %v5377, %v6343
    %v6944 = vmax.f32 %v5385, %v6345
    %v6945 = vmax.f32 %v5393, %v6347
    %v6946 = vmax.f32 %v5392, %v6349
    %v6947 = vmax.f32 %v5394, %v6351
    %v6948 = vmax.f32 %v5402, %v6353
    %v6949 = vmax.f32 %v5410, %v6355
    %v6950 = vmax.f32 %v5409, %v6357
    %v6951 = vmax.f32 %v5411, %v6359
    %v6952 = vmax.f32 %v5419, %v6361
    %v6953 = vmax.f32 %v5427, %v6363
    %v6954 = vmax.f32 %v5426, %v6365
    %v6955 = vmax.f32 %v5428, %v6367
    %v6956 = vmax.f32 %v5436, %v6369
    %v6957 = vmax.f32 %v5444, %v6371
    %v6958 = vmax.f32 %v5443, %v6373
    %v6959 = vmax.f32 %v5445, %v6375
    %v6960 = vmax.f32 %v5453, %v6377
    %v6961 = vmax.f32 %v5461, %v6379
    %v6962 = vmax.f32 %v5460, %v6381
    %v6963 = vmax.f32 %v5462, %v6383
    %v6964 = vmax.f32 %v5470, %v6385
    %v6965 = vmax.f32 %v5478, %v6387
    %v6966 = vmax.f32 %v5477, %v6389
    %v6967 = vmax.f32 %v5479, %v6391
    %v6968 = vmax.f32 %v5487, %v6393
    %v6969 = vmax.f32 %v5495, %v6395
    %v6970 = vmax.f32 %v5494, %v6397
    %v6971 = vmax.f32 %v5496, %v6399
    %v6972 = vmax.f32 %v5504, %v6401
    %v6973 = vmax.f32 %v5512, %v6403
    %v6974 = vmax.f32 %v5511, %v6405
    %v6975 = vmax.f32 %v5513, %v6407
    %v6976 = vmax.f32 %v5521, %v6409
    %v6977 = vmax.f32 %v5529, %v6411
    %v6978 = vmax.f32 %v5528, %v6413
    %v6979 = vmax.f32 %v5530, %v6415
    %v6980 = vmax.f32 %v5538, %v6417
    %v6981 = vmax.f32 %v5546, %v6419
    %v6982 = vmax.f32 %v5545, %v6421
    %v6983 = vmax.f32 %v5547, %v6423
    %v6984 = vmax.f32 %v5555, %v6425
    %v6985 = vmax.f32 %v5563, %v6427
    %v6986 = vmax.f32 %v5562, %v6429
    %v6987 = vmax.f32 %v5564, %v6431
    %v6988 = vmax.f32 %v5572, %v6433
    %v6989 = vmax.f32 %v5580, %v6435
    %v6990 = vmax.f32 %v5579, %v6437
    %v6991 = vmax.f32 %v5581, %v6439
    %v6992 = vmax.f32 %v5589, %v6441
    %v6993 = vmax.f32 %v5597, %v6443
    %v6994 = vmax.f32 %v5596, %v6445
    %v6995 = vmax.f32 %v5598, %v6447
    %v6996 = vmax.f32 %v5606, %v6449
    %v6997 = vmax.f32 %v5614, %v6451
    %v6998 = vmax.f32 %v5613, %v6453
    %v6999 = vmax.f32 %v5615, %v6455
    %v7000 = vmax.f32 %v5623, %v6457
    %v7001 = vmax.f32 %v5631, %v6459
    %v7002 = vmax.f32 %v5630, %v6461
    %v7003 = vmax.f32 %v5632, %v6463
    %v7004 = vmax.f32 %v5640, %v6465
    %v7005 = vmax.f32 %v5648, %v6467
    %v7006 = vmax.f32 %v5647, %v6469
    %v7007 = vmax.f32 %v5649, %v6471
    %v7008 = vmax.f32 %v5657, %v6473
    %v7009 = vmax.f32 %v5665, %v6475
    %v7010 = vmax.f32 %v5664, %v6477
    %v7011 = vmax.f32 %v5666, %v6479
    %v7012 = vmax.f32 %v5674, %v6481
    %v7013 = vmax.f32 %v5682, %v6483
    %v7014 = vmax.f32 %v5681, %v6485
    %v7015 = vmax.f32 %v5683, %v6487
    %v7016 = vmax.f32 %v5691, %v6489
    %v7017 = vmax.f32 %v5699, %v6491
    %v7018 = vmax.f32 %v5698, %v6493
    %v7019 = vmax.f32 %v5700, %v6495
    %v7020 = vmax.f32 %v5708, %v6497
    %v7021 = vmax.f32 %v5716, %v6499
    %v7022 = vmax.f32 %v5715, %v6501
    %v7023 = vmax.f32 %v5717, %v6503
    %v7024 = vmax.f32 %v5725, %v6505
    %v7025 = vmax.f32 %v5733, %v6507
    %v7026 = vmax.f32 %v5732, %v6509
    %v7027 = vmax.f32 %v5734, %v6511
    %v7028 = vmax.f32 %v5742, %v6513
    %v7029 = vmax.f32 %v5750, %v6515
    %v7030 = vmax.f32 %v5749, %v6517
    %v7031 = vmax.f32 %v5751, %v6519
    %v7032 = vmax.f32 %v6776, %v6784
    %v7033 = vmax.f32 %v6777, %v6785
    %v7034 = vmax.f32 %v6778, %v6786
    %v7035 = vmax.f32 %v6779, %v6787
    %v7036 = vmax.f32 %v6780, %v6788
    %v7037 = vmax.f32 %v6781, %v6789
    %v7038 = vmax.f32 %v6782, %v6790
    %v7039 = vmax.f32 %v6783, %v6791
    %v7040 = vmax.f32 %v6792, %v6800
    %v7041 = vmax.f32 %v6793, %v6801
    %v7042 = vmax.f32 %v6794, %v6802
    %v7043 = vmax.f32 %v6795, %v6803
    %v7044 = vmax.f32 %v6796, %v6804
    %v7045 = vmax.f32 %v6797, %v6805
    %v7046 = vmax.f32 %v6798, %v6806
    %v7047 = vmax.f32 %v6799, %v6807
    %v7048 = vmax.f32 %v6808, %v6816
    %v7049 = vmax.f32 %v6809, %v6817
    %v7050 = vmax.f32 %v6810, %v6818
    %v7051 = vmax.f32 %v6811, %v6819
    %v7052 = vmax.f32 %v6812, %v6820
    %v7053 = vmax.f32 %v6813, %v6821
    %v7054 = vmax.f32 %v6814, %v6822
    %v7055 = vmax.f32 %v6815, %v6823
    %v7056 = vmax.f32 %v6824, %v6832
    %v7057 = vmax.f32 %v6825, %v6833
    %v7058 = vmax.f32 %v6826, %v6834
    %v7059 = vmax.f32 %v6827, %v6835
    %v7060 = vmax.f32 %v6828, %v6836
    %v7061 = vmax.f32 %v6829, %v6837
    %v7062 = vmax.f32 %v6830, %v6838
    %v7063 = vmax.f32 %v6831, %v6839
    %v7064 = vmax.f32 %v6840, %v6848
    %v7065 = vmax.f32 %v6841, %v6849
    %v7066 = vmax.f32 %v6842, %v6850
    %v7067 = vmax.f32 %v6843, %v6851
    %v7068 = vmax.f32 %v6844, %v6852
    %v7069 = vmax.f32 %v6845, %v6853
    %v7070 = vmax.f32 %v6846, %v6854
    %v7071 = vmax.f32 %v6847, %v6855
    %v7072 = vmax.f32 %v6856, %v6864
    %v7073 = vmax.f32 %v6857, %v6865
    %v7074 = vmax.f32 %v6858, %v6866
    %v7075 = vmax.f32 %v6859, %v6867
    %v7076 = vmax.f32 %v6860, %v6868
    %v7077 = vmax.f32 %v6861, %v6869
    %v7078 = vmax.f32 %v6862, %v6870
    %v7079 = vmax.f32 %v6863, %v6871
    %v7080 = vmax.f32 %v6872, %v6880
    %v7081 = vmax.f32 %v6873, %v6881
    %v7082 = vmax.f32 %v6874, %v6882
    %v7083 = vmax.f32 %v6875, %v6883
    %v7084 = vmax.f32 %v6876, %v6884
    %v7085 = vmax.f32 %v6877, %v6885
    %v7086 = vmax.f32 %v6878, %v6886
    %v7087 = vmax.f32 %v6879, %v6887
    %v7088 = vmax.f32 %v6888, %v6896
    %v7089 = vmax.f32 %v6889, %v6897
    %v7090 = vmax.f32 %v6890, %v6898
    %v7091 = vmax.f32 %v6891, %v6899
    %v7092 = vmax.f32 %v6892, %v6900
    %v7093 = vmax.f32 %v6893, %v6901
    %v7094 = vmax.f32 %v6894, %v6902
    %v7095 = vmax.f32 %v6895, %v6903
    %v7096 = vmax.f32 %v6904, %v6912
    %v7097 = vmax.f32 %v6905, %v6913
    %v7098 = vmax.f32 %v6906, %v6914
    %v7099 = vmax.f32 %v6907, %v6915
    %v7100 = vmax.f32 %v6908, %v6916
    %v7101 = vmax.f32 %v6909, %v6917
    %v7102 = vmax.f32 %v6910, %v6918
    %v7103 = vmax.f32 %v6911, %v6919
    %v7104 = vmax.f32 %v6920, %v6928
    %v7105 = vmax.f32 %v6921, %v6929
    %v7106 = vmax.f32 %v6922, %v6930
    %v7107 = vmax.f32 %v6923, %v6931
    %v7108 = vmax.f32 %v6924, %v6932
    %v7109 = vmax.f32 %v6925, %v6933
    %v7110 = vmax.f32 %v6926, %v6934
    %v7111 = vmax.f32 %v6927, %v6935
    %v7112 = vmax.f32 %v6936, %v6944
    %v7113 = vmax.f32 %v6937, %v6945
    %v7114 = vmax.f32 %v6938, %v6946
    %v7115 = vmax.f32 %v6939, %v6947
    %v7116 = vmax.f32 %v6940, %v6948
    %v7117 = vmax.f32 %v6941, %v6949
    %v7118 = vmax.f32 %v6942, %v6950
    %v7119 = vmax.f32 %v6943, %v6951
    %v7120 = vmax.f32 %v6952, %v6960
    %v7121 = vmax.f32 %v6953, %v6961
    %v7122 = vmax.f32 %v6954, %v6962
    %v7123 = vmax.f32 %v6955, %v6963
    %v7124 = vmax.f32 %v6956, %v6964
    %v7125 = vmax.f32 %v6957, %v6965
    %v7126 = vmax.f32 %v6958, %v6966
    %v7127 = vmax.f32 %v6959, %v6967
    %v7128 = vmax.f32 %v6968, %v6976
    %v7129 = vmax.f32 %v6969, %v6977
    %v7130 = vmax.f32 %v6970, %v6978
    %v7131 = vmax.f32 %v6971, %v6979
    %v7132 = vmax.f32 %v6972, %v6980
    %v7133 = vmax.f32 %v6973, %v6981
    %v7134 = vmax.f32 %v6974, %v6982
    %v7135 = vmax.f32 %v6975, %v6983
    %v7136 = vmax.f32 %v6984, %v6992
    %v7137 = vmax.f32 %v6985, %v6993
    %v7138 = vmax.f32 %v6986, %v6994
    %v7139 = vmax.f32 %v6987, %v6995
    %v7140 = vmax.f32 %v6988, %v6996
    %v7141 = vmax.f32 %v6989, %v6997
    %v7142 = vmax.f32 %v6990, %v6998
    %v7143 = vmax.f32 %v6991, %v6999
    %v7144 = vmax.f32 %v7000, %v7008
    %v7145 = vmax.f32 %v7001, %v7009
    %v7146 = vmax.f32 %v7002, %v7010
    %v7147 = vmax.f32 %v7003, %v7011
    %v7148 = vmax.f32 %v7004, %v7012
    %v7149 = vmax.f32 %v7005, %v7013
    %v7150 = vmax.f32 %v7006, %v7014
    %v7151 = vmax.f32 %v7007, %v7015
    %v7152 = vmax.f32 %v7016, %v7024
    %v7153 = vmax.f32 %v7017, %v7025
    %v7154 = vmax.f32 %v7018, %v7026
    %v7155 = vmax.f32 %v7019, %v7027
    %v7156 = vmax.f32 %v7020, %v7028
    %v7157 = vmax.f32 %v7021, %v7029
    %v7158 = vmax.f32 %v7022, %v7030
    %v7159 = vmax.f32 %v7023, %v7031
    %7160 = vst.msk [vmem:[#allocation3] sm:$0xff] %vm2948, 0.0
    %vm7161 = vcmask 58368
    %7162 = vst.msk [vmem:[#allocation3 + $0x8] sm:$0x3] %vm7161, 0.0
    %7163 = vst.msk [vmem:[#allocation3 + $0xa0] sm:$0xff] %vm2948, 0.0
    %7164 = vst.msk [vmem:[#allocation3 + $0xa8] sm:$0x3] %vm7161, 0.0
    %s7165 = scalar_lea.vmem [#allocation3], 144
    %7166 = vst.msk [vmem:[%s7165] sm:$0xff] %vm2948, 0.0
    %7167 = vst.msk [vmem:[%s7165 + $0x8] sm:$0x3] %vm7161, 0.0
    %7168 = vst.msk [vmem:[%s7165 + $0xa0] sm:$0xff] %vm2948, 0.0
    %7169 = vst.msk [vmem:[%s7165 + $0xa8] sm:$0x3] %vm7161, 0.0
    %s7170 = scalar_lea.vmem [#allocation3], 16
    %vm7171 = vcmask 57344
    %7172 = vst.msk [vmem:[%s7170] sm:$0x1] %vm7171, 0.0
    %7173 = vst.msk [vmem:[%s7170 + $0x10] sm:$0x1] %vm7171, 0.0
    %7174 = vst.msk [vmem:[%s7170 + $0x20] sm:$0x1] %vm7171, 0.0
    %7175 = vst.msk [vmem:[%s7170 + $0x30] sm:$0x1] %vm7171, 0.0
    %7176 = vst.msk [vmem:[%s7170 + $0x40] sm:$0x1] %vm7171, 0.0
    %7177 = vst.msk [vmem:[%s7170 + $0x50] sm:$0x1] %vm7171, 0.0
    %7178 = vst.msk [vmem:[%s7170 + $0x60] sm:$0x1] %vm7171, 0.0
    %7179 = vst.msk [vmem:[%s7170 + $0x70] sm:$0x1] %vm7171, 0.0
    %7180 = vst.msk [vmem:[%s7170 + $0xa0] sm:$0x1] %vm7171, 0.0
    %7181 = vst.msk [vmem:[%s7170 + $0xb0] sm:$0x1] %vm7171, 0.0
    %7182 = vst.msk [vmem:[%s7170 + $0xc0] sm:$0x1] %vm7171, 0.0
    %7183 = vst.msk [vmem:[%s7170 + $0xd0] sm:$0x1] %vm7171, 0.0
    %7184 = vst.msk [vmem:[%s7170 + $0xe0] sm:$0x1] %vm7171, 0.0
    %7185 = vst.msk [vmem:[%s7170 + $0xf0] sm:$0x1] %vm7171, 0.0
    %7186 = vst.msk [vmem:[%s7170 + $0x100] sm:$0x1] %vm7171, 0.0
    %7187 = vst.msk [vmem:[%s7170 + $0x110] sm:$0x1] %vm7171, 0.0
    %7188 = vst.msk [vmem:[%s7170 + $0x9] sm:$0x1] %vm7171, 0.0
    %7189 = vst.msk [vmem:[%s7170 + $0x19] sm:$0x1] %vm7171, 0.0
    %7190 = vst.msk [vmem:[%s7170 + $0x29] sm:$0x1] %vm7171, 0.0
    %7191 = vst.msk [vmem:[%s7170 + $0x39] sm:$0x1] %vm7171, 0.0
    %7192 = vst.msk [vmem:[%s7170 + $0x49] sm:$0x1] %vm7171, 0.0
    %7193 = vst.msk [vmem:[%s7170 + $0x59] sm:$0x1] %vm7171, 0.0
    %7194 = vst.msk [vmem:[%s7170 + $0x69] sm:$0x1] %vm7171, 0.0
    %7195 = vst.msk [vmem:[%s7170 + $0x79] sm:$0x1] %vm7171, 0.0
    %7196 = vst.msk [vmem:[%s7170 + $0xa9] sm:$0x1] %vm7171, 0.0
    %7197 = vst.msk [vmem:[%s7170 + $0xb9] sm:$0x1] %vm7171, 0.0
    %7198 = vst.msk [vmem:[%s7170 + $0xc9] sm:$0x1] %vm7171, 0.0
    %7199 = vst.msk [vmem:[%s7170 + $0xd9] sm:$0x1] %vm7171, 0.0
    %7200 = vst.msk [vmem:[%s7170 + $0xe9] sm:$0x1] %vm7171, 0.0
    %7201 = vst.msk [vmem:[%s7170 + $0xf9] sm:$0x1] %vm7171, 0.0
    %7202 = vst.msk [vmem:[%s7170 + $0x109] sm:$0x1] %vm7171, 0.0
    %7203 = vst.msk [vmem:[%s7170 + $0x119] sm:$0x1] %vm7171, 0.0
    %v7332 = vlaneseq
    %v7333 = vshrl.u32 %v7332, 7
    %v7334 = vsub.s32 0, %v7333
    %v7335 = vrot.slane %v7032, %v7334
    %v7336 = vlaneseq
    %v7337 = vshrl.u32 %v7336, 7
    %v7338 = vsub.s32 0, %v7337
    %v7339 = vrot.slane %v7033, %v7338
    %v7340 = vlaneseq
    %v7341 = vshrl.u32 %v7340, 7
    %v7342 = vsub.s32 0, %v7341
    %v7343 = vrot.slane %v7034, %v7342
    %v7344 = vlaneseq
    %v7345 = vshrl.u32 %v7344, 7
    %v7346 = vsub.s32 0, %v7345
    %v7347 = vrot.slane %v7035, %v7346
    %v7348 = vlaneseq
    %v7349 = vshrl.u32 %v7348, 7
    %v7350 = vsub.s32 0, %v7349
    %v7351 = vrot.slane %v7036, %v7350
    %v7352 = vlaneseq
    %v7353 = vshrl.u32 %v7352, 7
    %v7354 = vsub.s32 0, %v7353
    %v7355 = vrot.slane %v7037, %v7354
    %v7356 = vlaneseq
    %v7357 = vshrl.u32 %v7356, 7
    %v7358 = vsub.s32 0, %v7357
    %v7359 = vrot.slane %v7038, %v7358
    %v7360 = vlaneseq
    %v7361 = vshrl.u32 %v7360, 7
    %v7362 = vsub.s32 0, %v7361
    %v7363 = vrot.slane %v7039, %v7362
    %v7364 = vlaneseq
    %v7365 = vshrl.u32 %v7364, 7
    %v7366 = vsub.s32 0, %v7365
    %v7367 = vrot.slane %v7040, %v7366
    %v7368 = vlaneseq
    %v7369 = vshrl.u32 %v7368, 7
    %v7370 = vsub.s32 0, %v7369
    %v7371 = vrot.slane %v7041, %v7370
    %v7372 = vlaneseq
    %v7373 = vshrl.u32 %v7372, 7
    %v7374 = vsub.s32 0, %v7373
    %v7375 = vrot.slane %v7042, %v7374
    %v7376 = vlaneseq
    %v7377 = vshrl.u32 %v7376, 7
    %v7378 = vsub.s32 0, %v7377
    %v7379 = vrot.slane %v7043, %v7378
    %v7380 = vlaneseq
    %v7381 = vshrl.u32 %v7380, 7
    %v7382 = vsub.s32 0, %v7381
    %v7383 = vrot.slane %v7044, %v7382
    %v7384 = vlaneseq
    %v7385 = vshrl.u32 %v7384, 7
    %v7386 = vsub.s32 0, %v7385
    %v7387 = vrot.slane %v7045, %v7386
    %v7388 = vlaneseq
    %v7389 = vshrl.u32 %v7388, 7
    %v7390 = vsub.s32 0, %v7389
    %v7391 = vrot.slane %v7046, %v7390
    %v7392 = vlaneseq
    %v7393 = vshrl.u32 %v7392, 7
    %v7394 = vsub.s32 0, %v7393
    %v7395 = vrot.slane %v7047, %v7394
    %v7396 = vlaneseq
    %v7397 = vshrl.u32 %v7396, 7
    %v7398 = vsub.s32 0, %v7397
    %v7399 = vrot.slane %v7048, %v7398
    %v7400 = vlaneseq
    %v7401 = vshrl.u32 %v7400, 7
    %v7402 = vsub.s32 0, %v7401
    %v7403 = vrot.slane %v7049, %v7402
    %v7404 = vlaneseq
    %v7405 = vshrl.u32 %v7404, 7
    %v7406 = vsub.s32 0, %v7405
    %v7407 = vrot.slane %v7050, %v7406
    %v7408 = vlaneseq
    %v7409 = vshrl.u32 %v7408, 7
    %v7410 = vsub.s32 0, %v7409
    %v7411 = vrot.slane %v7051, %v7410
    %v7412 = vlaneseq
    %v7413 = vshrl.u32 %v7412, 7
    %v7414 = vsub.s32 0, %v7413
    %v7415 = vrot.slane %v7052, %v7414
    %v7416 = vlaneseq
    %v7417 = vshrl.u32 %v7416, 7
    %v7418 = vsub.s32 0, %v7417
    %v7419 = vrot.slane %v7053, %v7418
    %v7420 = vlaneseq
    %v7421 = vshrl.u32 %v7420, 7
    %v7422 = vsub.s32 0, %v7421
    %v7423 = vrot.slane %v7054, %v7422
    %v7424 = vlaneseq
    %v7425 = vshrl.u32 %v7424, 7
    %v7426 = vsub.s32 0, %v7425
    %v7427 = vrot.slane %v7055, %v7426
    %v7428 = vlaneseq
    %v7429 = vshrl.u32 %v7428, 7
    %v7430 = vsub.s32 0, %v7429
    %v7431 = vrot.slane %v7056, %v7430
    %v7432 = vlaneseq
    %v7433 = vshrl.u32 %v7432, 7
    %v7434 = vsub.s32 0, %v7433
    %v7435 = vrot.slane %v7057, %v7434
    %v7436 = vlaneseq
    %v7437 = vshrl.u32 %v7436, 7
    %v7438 = vsub.s32 0, %v7437
    %v7439 = vrot.slane %v7058, %v7438
    %v7440 = vlaneseq
    %v7441 = vshrl.u32 %v7440, 7
    %v7442 = vsub.s32 0, %v7441
    %v7443 = vrot.slane %v7059, %v7442
    %v7444 = vlaneseq
    %v7445 = vshrl.u32 %v7444, 7
    %v7446 = vsub.s32 0, %v7445
    %v7447 = vrot.slane %v7060, %v7446
    %v7448 = vlaneseq
    %v7449 = vshrl.u32 %v7448, 7
    %v7450 = vsub.s32 0, %v7449
    %v7451 = vrot.slane %v7061, %v7450
    %v7452 = vlaneseq
    %v7453 = vshrl.u32 %v7452, 7
    %v7454 = vsub.s32 0, %v7453
    %v7455 = vrot.slane %v7062, %v7454
    %v7456 = vlaneseq
    %v7457 = vshrl.u32 %v7456, 7
    %v7458 = vsub.s32 0, %v7457
    %v7459 = vrot.slane %v7063, %v7458
    %v7460 = vlaneseq
    %v7461 = vshrl.u32 %v7460, 7
    %v7462 = vsub.s32 0, %v7461
    %v7463 = vrot.slane %v7064, %v7462
    %v7464 = vlaneseq
    %v7465 = vshrl.u32 %v7464, 7
    %v7466 = vsub.s32 0, %v7465
    %v7467 = vrot.slane %v7065, %v7466
    %v7468 = vlaneseq
    %v7469 = vshrl.u32 %v7468, 7
    %v7470 = vsub.s32 0, %v7469
    %v7471 = vrot.slane %v7066, %v7470
    %v7472 = vlaneseq
    %v7473 = vshrl.u32 %v7472, 7
    %v7474 = vsub.s32 0, %v7473
    %v7475 = vrot.slane %v7067, %v7474
    %v7476 = vlaneseq
    %v7477 = vshrl.u32 %v7476, 7
    %v7478 = vsub.s32 0, %v7477
    %v7479 = vrot.slane %v7068, %v7478
    %v7480 = vlaneseq
    %v7481 = vshrl.u32 %v7480, 7
    %v7482 = vsub.s32 0, %v7481
    %v7483 = vrot.slane %v7069, %v7482
    %v7484 = vlaneseq
    %v7485 = vshrl.u32 %v7484, 7
    %v7486 = vsub.s32 0, %v7485
    %v7487 = vrot.slane %v7070, %v7486
    %v7488 = vlaneseq
    %v7489 = vshrl.u32 %v7488, 7
    %v7490 = vsub.s32 0, %v7489
    %v7491 = vrot.slane %v7071, %v7490
    %v7492 = vlaneseq
    %v7493 = vshrl.u32 %v7492, 7
    %v7494 = vsub.s32 0, %v7493
    %v7495 = vrot.slane %v7072, %v7494
    %v7496 = vlaneseq
    %v7497 = vshrl.u32 %v7496, 7
    %v7498 = vsub.s32 0, %v7497
    %v7499 = vrot.slane %v7073, %v7498
    %v7500 = vlaneseq
    %v7501 = vshrl.u32 %v7500, 7
    %v7502 = vsub.s32 0, %v7501
    %v7503 = vrot.slane %v7074, %v7502
    %v7504 = vlaneseq
    %v7505 = vshrl.u32 %v7504, 7
    %v7506 = vsub.s32 0, %v7505
    %v7507 = vrot.slane %v7075, %v7506
    %v7508 = vlaneseq
    %v7509 = vshrl.u32 %v7508, 7
    %v7510 = vsub.s32 0, %v7509
    %v7511 = vrot.slane %v7076, %v7510
    %v7512 = vlaneseq
    %v7513 = vshrl.u32 %v7512, 7
    %v7514 = vsub.s32 0, %v7513
    %v7515 = vrot.slane %v7077, %v7514
    %v7516 = vlaneseq
    %v7517 = vshrl.u32 %v7516, 7
    %v7518 = vsub.s32 0, %v7517
    %v7519 = vrot.slane %v7078, %v7518
    %v7520 = vlaneseq
    %v7521 = vshrl.u32 %v7520, 7
    %v7522 = vsub.s32 0, %v7521
    %v7523 = vrot.slane %v7079, %v7522
    %v7524 = vlaneseq
    %v7525 = vshrl.u32 %v7524, 7
    %v7526 = vsub.s32 0, %v7525
    %v7527 = vrot.slane %v7080, %v7526
    %v7528 = vlaneseq
    %v7529 = vshrl.u32 %v7528, 7
    %v7530 = vsub.s32 0, %v7529
    %v7531 = vrot.slane %v7081, %v7530
    %v7532 = vlaneseq
    %v7533 = vshrl.u32 %v7532, 7
    %v7534 = vsub.s32 0, %v7533
    %v7535 = vrot.slane %v7082, %v7534
    %v7536 = vlaneseq
    %v7537 = vshrl.u32 %v7536, 7
    %v7538 = vsub.s32 0, %v7537
    %v7539 = vrot.slane %v7083, %v7538
    %v7540 = vlaneseq
    %v7541 = vshrl.u32 %v7540, 7
    %v7542 = vsub.s32 0, %v7541
    %v7543 = vrot.slane %v7084, %v7542
    %v7544 = vlaneseq
    %v7545 = vshrl.u32 %v7544, 7
    %v7546 = vsub.s32 0, %v7545
    %v7547 = vrot.slane %v7085, %v7546
    %v7548 = vlaneseq
    %v7549 = vshrl.u32 %v7548, 7
    %v7550 = vsub.s32 0, %v7549
    %v7551 = vrot.slane %v7086, %v7550
    %v7552 = vlaneseq
    %v7553 = vshrl.u32 %v7552, 7
    %v7554 = vsub.s32 0, %v7553
    %v7555 = vrot.slane %v7087, %v7554
    %v7556 = vlaneseq
    %v7557 = vshrl.u32 %v7556, 7
    %v7558 = vsub.s32 0, %v7557
    %v7559 = vrot.slane %v7088, %v7558
    %v7560 = vlaneseq
    %v7561 = vshrl.u32 %v7560, 7
    %v7562 = vsub.s32 0, %v7561
    %v7563 = vrot.slane %v7089, %v7562
    %v7564 = vlaneseq
    %v7565 = vshrl.u32 %v7564, 7
    %v7566 = vsub.s32 0, %v7565
    %v7567 = vrot.slane %v7090, %v7566
    %v7568 = vlaneseq
    %v7569 = vshrl.u32 %v7568, 7
    %v7570 = vsub.s32 0, %v7569
    %v7571 = vrot.slane %v7091, %v7570
    %v7572 = vlaneseq
    %v7573 = vshrl.u32 %v7572, 7
    %v7574 = vsub.s32 0, %v7573
    %v7575 = vrot.slane %v7092, %v7574
    %v7576 = vlaneseq
    %v7577 = vshrl.u32 %v7576, 7
    %v7578 = vsub.s32 0, %v7577
    %v7579 = vrot.slane %v7093, %v7578
    %v7580 = vlaneseq
    %v7581 = vshrl.u32 %v7580, 7
    %v7582 = vsub.s32 0, %v7581
    %v7583 = vrot.slane %v7094, %v7582
    %v7584 = vlaneseq
    %v7585 = vshrl.u32 %v7584, 7
    %v7586 = vsub.s32 0, %v7585
    %v7587 = vrot.slane %v7095, %v7586
    %v7588 = vlaneseq
    %v7589 = vshrl.u32 %v7588, 7
    %v7590 = vsub.s32 0, %v7589
    %v7591 = vrot.slane %v7096, %v7590
    %v7592 = vlaneseq
    %v7593 = vshrl.u32 %v7592, 7
    %v7594 = vsub.s32 0, %v7593
    %v7595 = vrot.slane %v7097, %v7594
    %v7596 = vlaneseq
    %v7597 = vshrl.u32 %v7596, 7
    %v7598 = vsub.s32 0, %v7597
    %v7599 = vrot.slane %v7098, %v7598
    %v7600 = vlaneseq
    %v7601 = vshrl.u32 %v7600, 7
    %v7602 = vsub.s32 0, %v7601
    %v7603 = vrot.slane %v7099, %v7602
    %v7604 = vlaneseq
    %v7605 = vshrl.u32 %v7604, 7
    %v7606 = vsub.s32 0, %v7605
    %v7607 = vrot.slane %v7100, %v7606
    %v7608 = vlaneseq
    %v7609 = vshrl.u32 %v7608, 7
    %v7610 = vsub.s32 0, %v7609
    %v7611 = vrot.slane %v7101, %v7610
    %v7612 = vlaneseq
    %v7613 = vshrl.u32 %v7612, 7
    %v7614 = vsub.s32 0, %v7613
    %v7615 = vrot.slane %v7102, %v7614
    %v7616 = vlaneseq
    %v7617 = vshrl.u32 %v7616, 7
    %v7618 = vsub.s32 0, %v7617
    %v7619 = vrot.slane %v7103, %v7618
    %v7620 = vlaneseq
    %v7621 = vshrl.u32 %v7620, 7
    %v7622 = vsub.s32 0, %v7621
    %v7623 = vrot.slane %v7104, %v7622
    %v7624 = vlaneseq
    %v7625 = vshrl.u32 %v7624, 7
    %v7626 = vsub.s32 0, %v7625
    %v7627 = vrot.slane %v7105, %v7626
    %v7628 = vlaneseq
    %v7629 = vshrl.u32 %v7628, 7
    %v7630 = vsub.s32 0, %v7629
    %v7631 = vrot.slane %v7106, %v7630
    %v7632 = vlaneseq
    %v7633 = vshrl.u32 %v7632, 7
    %v7634 = vsub.s32 0, %v7633
    %v7635 = vrot.slane %v7107, %v7634
    %v7636 = vlaneseq
    %v7637 = vshrl.u32 %v7636, 7
    %v7638 = vsub.s32 0, %v7637
    %v7639 = vrot.slane %v7108, %v7638
    %v7640 = vlaneseq
    %v7641 = vshrl.u32 %v7640, 7
    %v7642 = vsub.s32 0, %v7641
    %v7643 = vrot.slane %v7109, %v7642
    %v7644 = vlaneseq
    %v7645 = vshrl.u32 %v7644, 7
    %v7646 = vsub.s32 0, %v7645
    %v7647 = vrot.slane %v7110, %v7646
    %v7648 = vlaneseq
    %v7649 = vshrl.u32 %v7648, 7
    %v7650 = vsub.s32 0, %v7649
    %v7651 = vrot.slane %v7111, %v7650
    %v7652 = vlaneseq
    %v7653 = vshrl.u32 %v7652, 7
    %v7654 = vsub.s32 0, %v7653
    %v7655 = vrot.slane %v7112, %v7654
    %v7656 = vlaneseq
    %v7657 = vshrl.u32 %v7656, 7
    %v7658 = vsub.s32 0, %v7657
    %v7659 = vrot.slane %v7113, %v7658
    %v7660 = vlaneseq
    %v7661 = vshrl.u32 %v7660, 7
    %v7662 = vsub.s32 0, %v7661
    %v7663 = vrot.slane %v7114, %v7662
    %v7664 = vlaneseq
    %v7665 = vshrl.u32 %v7664, 7
    %v7666 = vsub.s32 0, %v7665
    %v7667 = vrot.slane %v7115, %v7666
    %v7668 = vlaneseq
    %v7669 = vshrl.u32 %v7668, 7
    %v7670 = vsub.s32 0, %v7669
    %v7671 = vrot.slane %v7116, %v7670
    %v7672 = vlaneseq
    %v7673 = vshrl.u32 %v7672, 7
    %v7674 = vsub.s32 0, %v7673
    %v7675 = vrot.slane %v7117, %v7674
    %v7676 = vlaneseq
    %v7677 = vshrl.u32 %v7676, 7
    %v7678 = vsub.s32 0, %v7677
    %v7679 = vrot.slane %v7118, %v7678
    %v7680 = vlaneseq
    %v7681 = vshrl.u32 %v7680, 7
    %v7682 = vsub.s32 0, %v7681
    %v7683 = vrot.slane %v7119, %v7682
    %v7684 = vlaneseq
    %v7685 = vshrl.u32 %v7684, 7
    %v7686 = vsub.s32 0, %v7685
    %v7687 = vrot.slane %v7120, %v7686
    %v7688 = vlaneseq
    %v7689 = vshrl.u32 %v7688, 7
    %v7690 = vsub.s32 0, %v7689
    %v7691 = vrot.slane %v7121, %v7690
    %v7692 = vlaneseq
    %v7693 = vshrl.u32 %v7692, 7
    %v7694 = vsub.s32 0, %v7693
    %v7695 = vrot.slane %v7122, %v7694
    %v7696 = vlaneseq
    %v7697 = vshrl.u32 %v7696, 7
    %v7698 = vsub.s32 0, %v7697
    %v7699 = vrot.slane %v7123, %v7698
    %v7700 = vlaneseq
    %v7701 = vshrl.u32 %v7700, 7
    %v7702 = vsub.s32 0, %v7701
    %v7703 = vrot.slane %v7124, %v7702
    %v7704 = vlaneseq
    %v7705 = vshrl.u32 %v7704, 7
    %v7706 = vsub.s32 0, %v7705
    %v7707 = vrot.slane %v7125, %v7706
    %v7708 = vlaneseq
    %v7709 = vshrl.u32 %v7708, 7
    %v7710 = vsub.s32 0, %v7709
    %v7711 = vrot.slane %v7126, %v7710
    %v7712 = vlaneseq
    %v7713 = vshrl.u32 %v7712, 7
    %v7714 = vsub.s32 0, %v7713
    %v7715 = vrot.slane %v7127, %v7714
    %v7716 = vlaneseq
    %v7717 = vshrl.u32 %v7716, 7
    %v7718 = vsub.s32 0, %v7717
    %v7719 = vrot.slane %v7128, %v7718
    %v7720 = vlaneseq
    %v7721 = vshrl.u32 %v7720, 7
    %v7722 = vsub.s32 0, %v7721
    %v7723 = vrot.slane %v7129, %v7722
    %v7724 = vlaneseq
    %v7725 = vshrl.u32 %v7724, 7
    %v7726 = vsub.s32 0, %v7725
    %v7727 = vrot.slane %v7130, %v7726
    %v7728 = vlaneseq
    %v7729 = vshrl.u32 %v7728, 7
    %v7730 = vsub.s32 0, %v7729
    %v7731 = vrot.slane %v7131, %v7730
    %v7732 = vlaneseq
    %v7733 = vshrl.u32 %v7732, 7
    %v7734 = vsub.s32 0, %v7733
    %v7735 = vrot.slane %v7132, %v7734
    %v7736 = vlaneseq
    %v7737 = vshrl.u32 %v7736, 7
    %v7738 = vsub.s32 0, %v7737
    %v7739 = vrot.slane %v7133, %v7738
    %v7740 = vlaneseq
    %v7741 = vshrl.u32 %v7740, 7
    %v7742 = vsub.s32 0, %v7741
    %v7743 = vrot.slane %v7134, %v7742
    %v7744 = vlaneseq
    %v7745 = vshrl.u32 %v7744, 7
    %v7746 = vsub.s32 0, %v7745
    %v7747 = vrot.slane %v7135, %v7746
    %v7748 = vlaneseq
    %v7749 = vshrl.u32 %v7748, 7
    %v7750 = vsub.s32 0, %v7749
    %v7751 = vrot.slane %v7136, %v7750
    %v7752 = vlaneseq
    %v7753 = vshrl.u32 %v7752, 7
    %v7754 = vsub.s32 0, %v7753
    %v7755 = vrot.slane %v7137, %v7754
    %v7756 = vlaneseq
    %v7757 = vshrl.u32 %v7756, 7
    %v7758 = vsub.s32 0, %v7757
    %v7759 = vrot.slane %v7138, %v7758
    %v7760 = vlaneseq
    %v7761 = vshrl.u32 %v7760, 7
    %v7762 = vsub.s32 0, %v7761
    %v7763 = vrot.slane %v7139, %v7762
    %v7764 = vlaneseq
    %v7765 = vshrl.u32 %v7764, 7
    %v7766 = vsub.s32 0, %v7765
    %v7767 = vrot.slane %v7140, %v7766
    %v7768 = vlaneseq
    %v7769 = vshrl.u32 %v7768, 7
    %v7770 = vsub.s32 0, %v7769
    %v7771 = vrot.slane %v7141, %v7770
    %v7772 = vlaneseq
    %v7773 = vshrl.u32 %v7772, 7
    %v7774 = vsub.s32 0, %v7773
    %v7775 = vrot.slane %v7142, %v7774
    %v7776 = vlaneseq
    %v7777 = vshrl.u32 %v7776, 7
    %v7778 = vsub.s32 0, %v7777
    %v7779 = vrot.slane %v7143, %v7778
    %v7780 = vlaneseq
    %v7781 = vshrl.u32 %v7780, 7
    %v7782 = vsub.s32 0, %v7781
    %v7783 = vrot.slane %v7144, %v7782
    %v7784 = vlaneseq
    %v7785 = vshrl.u32 %v7784, 7
    %v7786 = vsub.s32 0, %v7785
    %v7787 = vrot.slane %v7145, %v7786
    %v7788 = vlaneseq
    %v7789 = vshrl.u32 %v7788, 7
    %v7790 = vsub.s32 0, %v7789
    %v7791 = vrot.slane %v7146, %v7790
    %v7792 = vlaneseq
    %v7793 = vshrl.u32 %v7792, 7
    %v7794 = vsub.s32 0, %v7793
    %v7795 = vrot.slane %v7147, %v7794
    %v7796 = vlaneseq
    %v7797 = vshrl.u32 %v7796, 7
    %v7798 = vsub.s32 0, %v7797
    %v7799 = vrot.slane %v7148, %v7798
    %v7800 = vlaneseq
    %v7801 = vshrl.u32 %v7800, 7
    %v7802 = vsub.s32 0, %v7801
    %v7803 = vrot.slane %v7149, %v7802
    %v7804 = vlaneseq
    %v7805 = vshrl.u32 %v7804, 7
    %v7806 = vsub.s32 0, %v7805
    %v7807 = vrot.slane %v7150, %v7806
    %v7808 = vlaneseq
    %v7809 = vshrl.u32 %v7808, 7
    %v7810 = vsub.s32 0, %v7809
    %v7811 = vrot.slane %v7151, %v7810
    %v7812 = vlaneseq
    %v7813 = vshrl.u32 %v7812, 7
    %v7814 = vsub.s32 0, %v7813
    %v7815 = vrot.slane %v7152, %v7814
    %v7816 = vlaneseq
    %v7817 = vshrl.u32 %v7816, 7
    %v7818 = vsub.s32 0, %v7817
    %v7819 = vrot.slane %v7153, %v7818
    %v7820 = vlaneseq
    %v7821 = vshrl.u32 %v7820, 7
    %v7822 = vsub.s32 0, %v7821
    %v7823 = vrot.slane %v7154, %v7822
    %v7824 = vlaneseq
    %v7825 = vshrl.u32 %v7824, 7
    %v7826 = vsub.s32 0, %v7825
    %v7827 = vrot.slane %v7155, %v7826
    %v7828 = vlaneseq
    %v7829 = vshrl.u32 %v7828, 7
    %v7830 = vsub.s32 0, %v7829
    %v7831 = vrot.slane %v7156, %v7830
    %v7832 = vlaneseq
    %v7833 = vshrl.u32 %v7832, 7
    %v7834 = vsub.s32 0, %v7833
    %v7835 = vrot.slane %v7157, %v7834
    %v7836 = vlaneseq
    %v7837 = vshrl.u32 %v7836, 7
    %v7838 = vsub.s32 0, %v7837
    %v7839 = vrot.slane %v7158, %v7838
    %v7840 = vlaneseq
    %v7841 = vshrl.u32 %v7840, 7
    %v7842 = vsub.s32 0, %v7841
    %v7843 = vrot.slane %v7159, %v7842
    %vm7844 = vcmask 1041409
    %v7845 = vsel %vm7844, %v7339, %v7335
    %vm7846 = vcmask 1042434
    %v7847 = vsel %vm7846, %v7343, %v7845
    %vm7848 = vcmask 1043459
    %v7849 = vsel %vm7848, %v7347, %v7847
    %vm7850 = vcmask 1044484
    %v7851 = vsel %vm7850, %v7351, %v7849
    %vm7852 = vcmask 1045509
    %v7853 = vsel %vm7852, %v7355, %v7851
    %vm7854 = vcmask 1046534
    %v7855 = vsel %vm7854, %v7359, %v7853
    %vm7856 = vcmask 1047559
    %v7857 = vsel %vm7856, %v7363, %v7855
    %v7858 = vsel %vm7844, %v7371, %v7367
    %v7859 = vsel %vm7846, %v7375, %v7858
    %v7860 = vsel %vm7848, %v7379, %v7859
    %v7861 = vsel %vm7850, %v7383, %v7860
    %v7862 = vsel %vm7852, %v7387, %v7861
    %v7863 = vsel %vm7854, %v7391, %v7862
    %v7864 = vsel %vm7856, %v7395, %v7863
    %v7865 = vsel %vm7844, %v7403, %v7399
    %v7866 = vsel %vm7846, %v7407, %v7865
    %v7867 = vsel %vm7848, %v7411, %v7866
    %v7868 = vsel %vm7850, %v7415, %v7867
    %v7869 = vsel %vm7852, %v7419, %v7868
    %v7870 = vsel %vm7854, %v7423, %v7869
    %v7871 = vsel %vm7856, %v7427, %v7870
    %v7872 = vsel %vm7844, %v7435, %v7431
    %v7873 = vsel %vm7846, %v7439, %v7872
    %v7874 = vsel %vm7848, %v7443, %v7873
    %v7875 = vsel %vm7850, %v7447, %v7874
    %v7876 = vsel %vm7852, %v7451, %v7875
    %v7877 = vsel %vm7854, %v7455, %v7876
    %v7878 = vsel %vm7856, %v7459, %v7877
    %v7879 = vsel %vm7844, %v7467, %v7463
    %v7880 = vsel %vm7846, %v7471, %v7879
    %v7881 = vsel %vm7848, %v7475, %v7880
    %v7882 = vsel %vm7850, %v7479, %v7881
    %v7883 = vsel %vm7852, %v7483, %v7882
    %v7884 = vsel %vm7854, %v7487, %v7883
    %v7885 = vsel %vm7856, %v7491, %v7884
    %v7886 = vsel %vm7844, %v7499, %v7495
    %v7887 = vsel %vm7846, %v7503, %v7886
    %v7888 = vsel %vm7848, %v7507, %v7887
    %v7889 = vsel %vm7850, %v7511, %v7888
    %v7890 = vsel %vm7852, %v7515, %v7889
    %v7891 = vsel %vm7854, %v7519, %v7890
    %v7892 = vsel %vm7856, %v7523, %v7891
    %v7893 = vsel %vm7844, %v7531, %v7527
    %v7894 = vsel %vm7846, %v7535, %v7893
    %v7895 = vsel %vm7848, %v7539, %v7894
    %v7896 = vsel %vm7850, %v7543, %v7895
    %v7897 = vsel %vm7852, %v7547, %v7896
    %v7898 = vsel %vm7854, %v7551, %v7897
    %v7899 = vsel %vm7856, %v7555, %v7898
    %v7900 = vsel %vm7844, %v7563, %v7559
    %v7901 = vsel %vm7846, %v7567, %v7900
    %v7902 = vsel %vm7848, %v7571, %v7901
    %v7903 = vsel %vm7850, %v7575, %v7902
    %v7904 = vsel %vm7852, %v7579, %v7903
    %v7905 = vsel %vm7854, %v7583, %v7904
    %v7906 = vsel %vm7856, %v7587, %v7905
    %v7907 = vsel %vm7844, %v7595, %v7591
    %v7908 = vsel %vm7846, %v7599, %v7907
    %v7909 = vsel %vm7848, %v7603, %v7908
    %v7910 = vsel %vm7850, %v7607, %v7909
    %v7911 = vsel %vm7852, %v7611, %v7910
    %v7912 = vsel %vm7854, %v7615, %v7911
    %v7913 = vsel %vm7856, %v7619, %v7912
    %v7914 = vsel %vm7844, %v7627, %v7623
    %v7915 = vsel %vm7846, %v7631, %v7914
    %v7916 = vsel %vm7848, %v7635, %v7915
    %v7917 = vsel %vm7850, %v7639, %v7916
    %v7918 = vsel %vm7852, %v7643, %v7917
    %v7919 = vsel %vm7854, %v7647, %v7918
    %v7920 = vsel %vm7856, %v7651, %v7919
    %v7921 = vsel %vm7844, %v7659, %v7655
    %v7922 = vsel %vm7846, %v7663, %v7921
    %v7923 = vsel %vm7848, %v7667, %v7922
    %v7924 = vsel %vm7850, %v7671, %v7923
    %v7925 = vsel %vm7852, %v7675, %v7924
    %v7926 = vsel %vm7854, %v7679, %v7925
    %v7927 = vsel %vm7856, %v7683, %v7926
    %v7928 = vsel %vm7844, %v7691, %v7687
    %v7929 = vsel %vm7846, %v7695, %v7928
    %v7930 = vsel %vm7848, %v7699, %v7929
    %v7931 = vsel %vm7850, %v7703, %v7930
    %v7932 = vsel %vm7852, %v7707, %v7931
    %v7933 = vsel %vm7854, %v7711, %v7932
    %v7934 = vsel %vm7856, %v7715, %v7933
    %v7935 = vsel %vm7844, %v7723, %v7719
    %v7936 = vsel %vm7846, %v7727, %v7935
    %v7937 = vsel %vm7848, %v7731, %v7936
    %v7938 = vsel %vm7850, %v7735, %v7937
    %v7939 = vsel %vm7852, %v7739, %v7938
    %v7940 = vsel %vm7854, %v7743, %v7939
    %v7941 = vsel %vm7856, %v7747, %v7940
    %v7942 = vsel %vm7844, %v7755, %v7751
    %v7943 = vsel %vm7846, %v7759, %v7942
    %v7944 = vsel %vm7848, %v7763, %v7943
    %v7945 = vsel %vm7850, %v7767, %v7944
    %v7946 = vsel %vm7852, %v7771, %v7945
    %v7947 = vsel %vm7854, %v7775, %v7946
    %v7948 = vsel %vm7856, %v7779, %v7947
    %v7949 = vsel %vm7844, %v7787, %v7783
    %v7950 = vsel %vm7846, %v7791, %v7949
    %v7951 = vsel %vm7848, %v7795, %v7950
    %v7952 = vsel %vm7850, %v7799, %v7951
    %v7953 = vsel %vm7852, %v7803, %v7952
    %v7954 = vsel %vm7854, %v7807, %v7953
    %v7955 = vsel %vm7856, %v7811, %v7954
    %v7956 = vsel %vm7844, %v7819, %v7815
    %v7957 = vsel %vm7846, %v7823, %v7956
    %v7958 = vsel %vm7848, %v7827, %v7957
    %v7959 = vsel %vm7850, %v7831, %v7958
    %v7960 = vsel %vm7852, %v7835, %v7959
    %v7961 = vsel %vm7854, %v7839, %v7960
    %v7962 = vsel %vm7856, %v7843, %v7961
    %7979 = vst.msk [vmem:[%s7170 + $0x1] sm:$0xff] %vm2948, %v7857
    %7980 = vst.msk [vmem:[%s7170 + $0x11] sm:$0xff] %vm2948, %v7864
    %7981 = vst.msk [vmem:[%s7170 + $0x21] sm:$0xff] %vm2948, %v7871
    %7982 = vst.msk [vmem:[%s7170 + $0x31] sm:$0xff] %vm2948, %v7878
    %7983 = vst.msk [vmem:[%s7170 + $0x41] sm:$0xff] %vm2948, %v7885
    %7984 = vst.msk [vmem:[%s7170 + $0x51] sm:$0xff] %vm2948, %v7892
    %7985 = vst.msk [vmem:[%s7170 + $0x61] sm:$0xff] %vm2948, %v7899
    %7986 = vst.msk [vmem:[%s7170 + $0x71] sm:$0xff] %vm2948, %v7906
    %7987 = vst.msk [vmem:[%s7170 + $0xa1] sm:$0xff] %vm2948, %v7913
    %7988 = vst.msk [vmem:[%s7170 + $0xb1] sm:$0xff] %vm2948, %v7920
    %7989 = vst.msk [vmem:[%s7170 + $0xc1] sm:$0xff] %vm2948, %v7927
    %7990 = vst.msk [vmem:[%s7170 + $0xd1] sm:$0xff] %vm2948, %v7934
    %7991 = vst.msk [vmem:[%s7170 + $0xe1] sm:$0xff] %vm2948, %v7941
    %7992 = vst.msk [vmem:[%s7170 + $0xf1] sm:$0xff] %vm2948, %v7948
    %7993 = vst.msk [vmem:[%s7170 + $0x101] sm:$0xff] %vm2948, %v7955
    %7994 = vst.msk [vmem:[%s7170 + $0x111] sm:$0xff] %vm2948, %v7962
    %v7995 = vld [vmem:[#allocation3] sm:$0xff]
    %v7996 = vld [vmem:[#allocation3 + $0x10] sm:$0xff]
    %v7997 = vld [vmem:[#allocation3 + $0x20] sm:$0xff]
    %v7998 = vld [vmem:[#allocation3 + $0x30] sm:$0xff]
    %v7999 = vld [vmem:[#allocation3 + $0x40] sm:$0xff]
    %v8000 = vld [vmem:[#allocation3 + $0x50] sm:$0xff]
    %v8001 = vld [vmem:[#allocation3 + $0x60] sm:$0xff]
    %v8002 = vld [vmem:[#allocation3 + $0x70] sm:$0xff]
    %v8003 = vld [vmem:[#allocation3 + $0xa0] sm:$0xff]
    %v8004 = vld [vmem:[#allocation3 + $0xb0] sm:$0xff]
    %v8005 = vld [vmem:[#allocation3 + $0xc0] sm:$0xff]
    %v8006 = vld [vmem:[#allocation3 + $0xd0] sm:$0xff]
    %v8007 = vld [vmem:[#allocation3 + $0xe0] sm:$0xff]
    %v8008 = vld [vmem:[#allocation3 + $0xf0] sm:$0xff]
    %v8009 = vld [vmem:[#allocation3 + $0x100] sm:$0xff]
    %v8010 = vld [vmem:[#allocation3 + $0x110] sm:$0xff]
    %v8011 = vld [vmem:[#allocation3 + $0x1] sm:$0xff]
    %v8012 = vld [vmem:[#allocation3 + $0x11] sm:$0xff]
    %v8013 = vld [vmem:[#allocation3 + $0x21] sm:$0xff]
    %v8014 = vld [vmem:[#allocation3 + $0x31] sm:$0xff]
    %v8015 = vld [vmem:[#allocation3 + $0x41] sm:$0xff]
    %v8016 = vld [vmem:[#allocation3 + $0x51] sm:$0xff]
    %v8017 = vld [vmem:[#allocation3 + $0x61] sm:$0xff]
    %v8018 = vld [vmem:[#allocation3 + $0x71] sm:$0xff]
    %v8019 = vld [vmem:[#allocation3 + $0xa1] sm:$0xff]
    %v8020 = vld [vmem:[#allocation3 + $0xb1] sm:$0xff]
    %v8021 = vld [vmem:[#allocation3 + $0xc1] sm:$0xff]
    %v8022 = vld [vmem:[#allocation3 + $0xd1] sm:$0xff]
    %v8023 = vld [vmem:[#allocation3 + $0xe1] sm:$0xff]
    %v8024 = vld [vmem:[#allocation3 + $0xf1] sm:$0xff]
    %v8025 = vld [vmem:[#allocation3 + $0x101] sm:$0xff]
    %v8026 = vld [vmem:[#allocation3 + $0x111] sm:$0xff]
    %v8027 = vld [vmem:[#allocation3 + $0x2] sm:$0xff]
    %v8028 = vld [vmem:[#allocation3 + $0x12] sm:$0xff]
    %v8029 = vld [vmem:[#allocation3 + $0x22] sm:$0xff]
    %v8030 = vld [vmem:[#allocation3 + $0x32] sm:$0xff]
    %v8031 = vld [vmem:[#allocation3 + $0x42] sm:$0xff]
    %v8032 = vld [vmem:[#allocation3 + $0x52] sm:$0xff]
    %v8033 = vld [vmem:[#allocation3 + $0x62] sm:$0xff]
    %v8034 = vld [vmem:[#allocation3 + $0x72] sm:$0xff]
    %v8035 = vld [vmem:[#allocation3 + $0xa2] sm:$0xff]
    %v8036 = vld [vmem:[#allocation3 + $0xb2] sm:$0xff]
    %v8037 = vld [vmem:[#allocation3 + $0xc2] sm:$0xff]
    %v8038 = vld [vmem:[#allocation3 + $0xd2] sm:$0xff]
    %v8039 = vld [vmem:[#allocation3 + $0xe2] sm:$0xff]
    %v8040 = vld [vmem:[#allocation3 + $0xf2] sm:$0xff]
    %v8041 = vld [vmem:[#allocation3 + $0x102] sm:$0xff]
    %v8042 = vld [vmem:[#allocation3 + $0x112] sm:$0xff]
    %v8043 = vld [vmem:[%s7170] sm:$0xff]
    %v8044 = vld [vmem:[%s7170 + $0x10] sm:$0xff]
    %v8045 = vld [vmem:[%s7170 + $0x20] sm:$0xff]
    %v8046 = vld [vmem:[%s7170 + $0x30] sm:$0xff]
    %v8047 = vld [vmem:[%s7170 + $0x40] sm:$0xff]
    %v8048 = vld [vmem:[%s7170 + $0x50] sm:$0xff]
    %v8049 = vld [vmem:[%s7170 + $0x60] sm:$0xff]
    %v8050 = vld [vmem:[%s7170 + $0x70] sm:$0xff]
    %v8051 = vld [vmem:[%s7170 + $0xa0] sm:$0xff]
    %v8052 = vld [vmem:[%s7170 + $0xb0] sm:$0xff]
    %v8053 = vld [vmem:[%s7170 + $0xc0] sm:$0xff]
    %v8054 = vld [vmem:[%s7170 + $0xd0] sm:$0xff]
    %v8055 = vld [vmem:[%s7170 + $0xe0] sm:$0xff]
    %v8056 = vld [vmem:[%s7170 + $0xf0] sm:$0xff]
    %v8057 = vld [vmem:[%s7170 + $0x100] sm:$0xff]
    %v8058 = vld [vmem:[%s7170 + $0x110] sm:$0xff]
    %v8059 = vld [vmem:[%s7170 + $0x1] sm:$0xff]
    %v8060 = vld [vmem:[%s7170 + $0x11] sm:$0xff]
    %v8061 = vld [vmem:[%s7170 + $0x21] sm:$0xff]
    %v8062 = vld [vmem:[%s7170 + $0x31] sm:$0xff]
    %v8063 = vld [vmem:[%s7170 + $0x41] sm:$0xff]
    %v8064 = vld [vmem:[%s7170 + $0x51] sm:$0xff]
    %v8065 = vld [vmem:[%s7170 + $0x61] sm:$0xff]
    %v8066 = vld [vmem:[%s7170 + $0x71] sm:$0xff]
    %v8067 = vld [vmem:[%s7170 + $0xa1] sm:$0xff]
    %v8068 = vld [vmem:[%s7170 + $0xb1] sm:$0xff]
    %v8069 = vld [vmem:[%s7170 + $0xc1] sm:$0xff]
    %v8070 = vld [vmem:[%s7170 + $0xd1] sm:$0xff]
    %v8071 = vld [vmem:[%s7170 + $0xe1] sm:$0xff]
    %v8072 = vld [vmem:[%s7170 + $0xf1] sm:$0xff]
    %v8073 = vld [vmem:[%s7170 + $0x101] sm:$0xff]
    %v8074 = vld [vmem:[%s7170 + $0x111] sm:$0xff]
    %v8075 = vld [vmem:[%s7170 + $0x2] sm:$0xff]
    %v8076 = vld [vmem:[%s7170 + $0x12] sm:$0xff]
    %v8077 = vld [vmem:[%s7170 + $0x22] sm:$0xff]
    %v8078 = vld [vmem:[%s7170 + $0x32] sm:$0xff]
    %v8079 = vld [vmem:[%s7170 + $0x42] sm:$0xff]
    %v8080 = vld [vmem:[%s7170 + $0x52] sm:$0xff]
    %v8081 = vld [vmem:[%s7170 + $0x62] sm:$0xff]
    %v8082 = vld [vmem:[%s7170 + $0x72] sm:$0xff]
    %v8083 = vld [vmem:[%s7170 + $0xa2] sm:$0xff]
    %v8084 = vld [vmem:[%s7170 + $0xb2] sm:$0xff]
    %v8085 = vld [vmem:[%s7170 + $0xc2] sm:$0xff]
    %v8086 = vld [vmem:[%s7170 + $0xd2] sm:$0xff]
    %v8087 = vld [vmem:[%s7170 + $0xe2] sm:$0xff]
    %v8088 = vld [vmem:[%s7170 + $0xf2] sm:$0xff]
    %v8089 = vld [vmem:[%s7170 + $0x102] sm:$0xff]
    %v8090 = vld [vmem:[%s7170 + $0x112] sm:$0xff]
    %s8091 = scalar_lea.vmem [#allocation3], 32
    %v8092 = vld [vmem:[%s8091] sm:$0xff]
    %v8093 = vld [vmem:[%s8091 + $0x10] sm:$0xff]
    %v8094 = vld [vmem:[%s8091 + $0x20] sm:$0xff]
    %v8095 = vld [vmem:[%s8091 + $0x30] sm:$0xff]
    %v8096 = vld [vmem:[%s8091 + $0x40] sm:$0xff]
    %v8097 = vld [vmem:[%s8091 + $0x50] sm:$0xff]
    %v8098 = vld [vmem:[%s8091 + $0x60] sm:$0xff]
    %v8099 = vld [vmem:[%s8091 + $0x70] sm:$0xff]
    %v8100 = vld [vmem:[%s8091 + $0xa0] sm:$0xff]
    %v8101 = vld [vmem:[%s8091 + $0xb0] sm:$0xff]
    %v8102 = vld [vmem:[%s8091 + $0xc0] sm:$0xff]
    %v8103 = vld [vmem:[%s8091 + $0xd0] sm:$0xff]
    %v8104 = vld [vmem:[%s8091 + $0xe0] sm:$0xff]
    %v8105 = vld [vmem:[%s8091 + $0xf0] sm:$0xff]
    %v8106 = vld [vmem:[%s8091 + $0x100] sm:$0xff]
    %v8107 = vld [vmem:[%s8091 + $0x110] sm:$0xff]
    %v8108 = vld [vmem:[%s8091 + $0x1] sm:$0xff]
    %v8109 = vld [vmem:[%s8091 + $0x11] sm:$0xff]
    %v8110 = vld [vmem:[%s8091 + $0x21] sm:$0xff]
    %v8111 = vld [vmem:[%s8091 + $0x31] sm:$0xff]
    %v8112 = vld [vmem:[%s8091 + $0x41] sm:$0xff]
    %v8113 = vld [vmem:[%s8091 + $0x51] sm:$0xff]
    %v8114 = vld [vmem:[%s8091 + $0x61] sm:$0xff]
    %v8115 = vld [vmem:[%s8091 + $0x71] sm:$0xff]
    %v8116 = vld [vmem:[%s8091 + $0xa1] sm:$0xff]
    %v8117 = vld [vmem:[%s8091 + $0xb1] sm:$0xff]
    %v8118 = vld [vmem:[%s8091 + $0xc1] sm:$0xff]
    %v8119 = vld [vmem:[%s8091 + $0xd1] sm:$0xff]
    %v8120 = vld [vmem:[%s8091 + $0xe1] sm:$0xff]
    %v8121 = vld [vmem:[%s8091 + $0xf1] sm:$0xff]
    %v8122 = vld [vmem:[%s8091 + $0x101] sm:$0xff]
    %v8123 = vld [vmem:[%s8091 + $0x111] sm:$0xff]
    %v8124 = vld [vmem:[%s8091 + $0x2] sm:$0xff]
    %v8125 = vld [vmem:[%s8091 + $0x12] sm:$0xff]
    %v8126 = vld [vmem:[%s8091 + $0x22] sm:$0xff]
    %v8127 = vld [vmem:[%s8091 + $0x32] sm:$0xff]
    %v8128 = vld [vmem:[%s8091 + $0x42] sm:$0xff]
    %v8129 = vld [vmem:[%s8091 + $0x52] sm:$0xff]
    %v8130 = vld [vmem:[%s8091 + $0x62] sm:$0xff]
    %v8131 = vld [vmem:[%s8091 + $0x72] sm:$0xff]
    %v8132 = vld [vmem:[%s8091 + $0xa2] sm:$0xff]
    %v8133 = vld [vmem:[%s8091 + $0xb2] sm:$0xff]
    %v8134 = vld [vmem:[%s8091 + $0xc2] sm:$0xff]
    %v8135 = vld [vmem:[%s8091 + $0xd2] sm:$0xff]
    %v8136 = vld [vmem:[%s8091 + $0xe2] sm:$0xff]
    %v8137 = vld [vmem:[%s8091 + $0xf2] sm:$0xff]
    %v8138 = vld [vmem:[%s8091 + $0x102] sm:$0xff]
    %v8139 = vld [vmem:[%s8091 + $0x112] sm:$0xff]
    %8156 = vrot.lane.b32.xlu0 %v8011, 8
    %v8157 = vpop.permute.xlu0 %8156
    %8158 = vrot.lane.b32.xlu0 %v8012, 8
    %v8159 = vpop.permute.xlu0 %8158
    %8160 = vrot.lane.b32.xlu0 %v8013, 8
    %v8161 = vpop.permute.xlu0 %8160
    %8162 = vrot.lane.b32.xlu0 %v8014, 8
    %v8163 = vpop.permute.xlu0 %8162
    %8164 = vrot.lane.b32.xlu0 %v8015, 8
    %v8165 = vpop.permute.xlu0 %8164
    %8166 = vrot.lane.b32.xlu0 %v8016, 8
    %v8167 = vpop.permute.xlu0 %8166
    %8168 = vrot.lane.b32.xlu0 %v8017, 8
    %v8169 = vpop.permute.xlu0 %8168
    %8170 = vrot.lane.b32.xlu0 %v8018, 8
    %v8171 = vpop.permute.xlu0 %8170
    %8172 = vrot.lane.b32.xlu0 %v8019, 8
    %v8173 = vpop.permute.xlu0 %8172
    %8174 = vrot.lane.b32.xlu0 %v8020, 8
    %v8175 = vpop.permute.xlu0 %8174
    %8176 = vrot.lane.b32.xlu0 %v8021, 8
    %v8177 = vpop.permute.xlu0 %8176
    %8178 = vrot.lane.b32.xlu0 %v8022, 8
    %v8179 = vpop.permute.xlu0 %8178
    %8180 = vrot.lane.b32.xlu0 %v8023, 8
    %v8181 = vpop.permute.xlu0 %8180
    %8182 = vrot.lane.b32.xlu0 %v8024, 8
    %v8183 = vpop.permute.xlu0 %8182
    %8184 = vrot.lane.b32.xlu0 %v8025, 8
    %v8185 = vpop.permute.xlu0 %8184
    %8186 = vrot.lane.b32.xlu0 %v8026, 8
    %v8187 = vpop.permute.xlu0 %8186
    %8220 = vrot.lane.b32.xlu0 %v8027, 16
    %v8221 = vpop.permute.xlu0 %8220
    %8222 = vrot.lane.b32.xlu0 %v8028, 16
    %v8223 = vpop.permute.xlu0 %8222
    %8224 = vrot.lane.b32.xlu0 %v8029, 16
    %v8225 = vpop.permute.xlu0 %8224
    %8226 = vrot.lane.b32.xlu0 %v8030, 16
    %v8227 = vpop.permute.xlu0 %8226
    %8228 = vrot.lane.b32.xlu0 %v8031, 16
    %v8229 = vpop.permute.xlu0 %8228
    %8230 = vrot.lane.b32.xlu0 %v8032, 16
    %v8231 = vpop.permute.xlu0 %8230
    %8232 = vrot.lane.b32.xlu0 %v8033, 16
    %v8233 = vpop.permute.xlu0 %8232
    %8234 = vrot.lane.b32.xlu0 %v8034, 16
    %v8235 = vpop.permute.xlu0 %8234
    %8236 = vrot.lane.b32.xlu0 %v8035, 16
    %v8237 = vpop.permute.xlu0 %8236
    %8238 = vrot.lane.b32.xlu0 %v8036, 16
    %v8239 = vpop.permute.xlu0 %8238
    %8240 = vrot.lane.b32.xlu0 %v8037, 16
    %v8241 = vpop.permute.xlu0 %8240
    %8242 = vrot.lane.b32.xlu0 %v8038, 16
    %v8243 = vpop.permute.xlu0 %8242
    %8244 = vrot.lane.b32.xlu0 %v8039, 16
    %v8245 = vpop.permute.xlu0 %8244
    %8246 = vrot.lane.b32.xlu0 %v8040, 16
    %v8247 = vpop.permute.xlu0 %8246
    %8248 = vrot.lane.b32.xlu0 %v8041, 16
    %v8249 = vpop.permute.xlu0 %8248
    %8250 = vrot.lane.b32.xlu0 %v8042, 16
    %v8251 = vpop.permute.xlu0 %8250
    %8284 = vrot.lane.b32.xlu0 %v8043, 24
    %v8285 = vpop.permute.xlu0 %8284
    %8286 = vrot.lane.b32.xlu0 %v8044, 24
    %v8287 = vpop.permute.xlu0 %8286
    %8288 = vrot.lane.b32.xlu0 %v8045, 24
    %v8289 = vpop.permute.xlu0 %8288
    %8290 = vrot.lane.b32.xlu0 %v8046, 24
    %v8291 = vpop.permute.xlu0 %8290
    %8292 = vrot.lane.b32.xlu0 %v8047, 24
    %v8293 = vpop.permute.xlu0 %8292
    %8294 = vrot.lane.b32.xlu0 %v8048, 24
    %v8295 = vpop.permute.xlu0 %8294
    %8296 = vrot.lane.b32.xlu0 %v8049, 24
    %v8297 = vpop.permute.xlu0 %8296
    %8298 = vrot.lane.b32.xlu0 %v8050, 24
    %v8299 = vpop.permute.xlu0 %8298
    %8300 = vrot.lane.b32.xlu0 %v8051, 24
    %v8301 = vpop.permute.xlu0 %8300
    %8302 = vrot.lane.b32.xlu0 %v8052, 24
    %v8303 = vpop.permute.xlu0 %8302
    %8304 = vrot.lane.b32.xlu0 %v8053, 24
    %v8305 = vpop.permute.xlu0 %8304
    %8306 = vrot.lane.b32.xlu0 %v8054, 24
    %v8307 = vpop.permute.xlu0 %8306
    %8308 = vrot.lane.b32.xlu0 %v8055, 24
    %v8309 = vpop.permute.xlu0 %8308
    %8310 = vrot.lane.b32.xlu0 %v8056, 24
    %v8311 = vpop.permute.xlu0 %8310
    %8312 = vrot.lane.b32.xlu0 %v8057, 24
    %v8313 = vpop.permute.xlu0 %8312
    %8314 = vrot.lane.b32.xlu0 %v8058, 24
    %v8315 = vpop.permute.xlu0 %8314
    %8348 = vrot.lane.b32.xlu0 %v8059, 32
    %v8349 = vpop.permute.xlu0 %8348
    %8350 = vrot.lane.b32.xlu0 %v8060, 32
    %v8351 = vpop.permute.xlu0 %8350
    %8352 = vrot.lane.b32.xlu0 %v8061, 32
    %v8353 = vpop.permute.xlu0 %8352
    %8354 = vrot.lane.b32.xlu0 %v8062, 32
    %v8355 = vpop.permute.xlu0 %8354
    %8356 = vrot.lane.b32.xlu0 %v8063, 32
    %v8357 = vpop.permute.xlu0 %8356
    %8358 = vrot.lane.b32.xlu0 %v8064, 32
    %v8359 = vpop.permute.xlu0 %8358
    %8360 = vrot.lane.b32.xlu0 %v8065, 32
    %v8361 = vpop.permute.xlu0 %8360
    %8362 = vrot.lane.b32.xlu0 %v8066, 32
    %v8363 = vpop.permute.xlu0 %8362
    %8364 = vrot.lane.b32.xlu0 %v8067, 32
    %v8365 = vpop.permute.xlu0 %8364
    %8366 = vrot.lane.b32.xlu0 %v8068, 32
    %v8367 = vpop.permute.xlu0 %8366
    %8368 = vrot.lane.b32.xlu0 %v8069, 32
    %v8369 = vpop.permute.xlu0 %8368
    %8370 = vrot.lane.b32.xlu0 %v8070, 32
    %v8371 = vpop.permute.xlu0 %8370
    %8372 = vrot.lane.b32.xlu0 %v8071, 32
    %v8373 = vpop.permute.xlu0 %8372
    %8374 = vrot.lane.b32.xlu0 %v8072, 32
    %v8375 = vpop.permute.xlu0 %8374
    %8376 = vrot.lane.b32.xlu0 %v8073, 32
    %v8377 = vpop.permute.xlu0 %8376
    %8378 = vrot.lane.b32.xlu0 %v8074, 32
    %v8379 = vpop.permute.xlu0 %8378
    %8412 = vrot.lane.b32.xlu0 %v8075, 40
    %v8413 = vpop.permute.xlu0 %8412
    %8414 = vrot.lane.b32.xlu0 %v8076, 40
    %v8415 = vpop.permute.xlu0 %8414
    %8416 = vrot.lane.b32.xlu0 %v8077, 40
    %v8417 = vpop.permute.xlu0 %8416
    %8418 = vrot.lane.b32.xlu0 %v8078, 40
    %v8419 = vpop.permute.xlu0 %8418
    %8420 = vrot.lane.b32.xlu0 %v8079, 40
    %v8421 = vpop.permute.xlu0 %8420
    %8422 = vrot.lane.b32.xlu0 %v8080, 40
    %v8423 = vpop.permute.xlu0 %8422
    %8424 = vrot.lane.b32.xlu0 %v8081, 40
    %v8425 = vpop.permute.xlu0 %8424
    %8426 = vrot.lane.b32.xlu0 %v8082, 40
    %v8427 = vpop.permute.xlu0 %8426
    %8428 = vrot.lane.b32.xlu0 %v8083, 40
    %v8429 = vpop.permute.xlu0 %8428
    %8430 = vrot.lane.b32.xlu0 %v8084, 40
    %v8431 = vpop.permute.xlu0 %8430
    %8432 = vrot.lane.b32.xlu0 %v8085, 40
    %v8433 = vpop.permute.xlu0 %8432
    %8434 = vrot.lane.b32.xlu0 %v8086, 40
    %v8435 = vpop.permute.xlu0 %8434
    %8436 = vrot.lane.b32.xlu0 %v8087, 40
    %v8437 = vpop.permute.xlu0 %8436
    %8438 = vrot.lane.b32.xlu0 %v8088, 40
    %v8439 = vpop.permute.xlu0 %8438
    %8440 = vrot.lane.b32.xlu0 %v8089, 40
    %v8441 = vpop.permute.xlu0 %8440
    %8442 = vrot.lane.b32.xlu0 %v8090, 40
    %v8443 = vpop.permute.xlu0 %8442
    %8476 = vrot.lane.b32.xlu0 %v8092, 48
    %v8477 = vpop.permute.xlu0 %8476
    %8478 = vrot.lane.b32.xlu0 %v8093, 48
    %v8479 = vpop.permute.xlu0 %8478
    %8480 = vrot.lane.b32.xlu0 %v8094, 48
    %v8481 = vpop.permute.xlu0 %8480
    %8482 = vrot.lane.b32.xlu0 %v8095, 48
    %v8483 = vpop.permute.xlu0 %8482
    %8484 = vrot.lane.b32.xlu0 %v8096, 48
    %v8485 = vpop.permute.xlu0 %8484
    %8486 = vrot.lane.b32.xlu0 %v8097, 48
    %v8487 = vpop.permute.xlu0 %8486
    %8488 = vrot.lane.b32.xlu0 %v8098, 48
    %v8489 = vpop.permute.xlu0 %8488
    %8490 = vrot.lane.b32.xlu0 %v8099, 48
    %v8491 = vpop.permute.xlu0 %8490
    %8492 = vrot.lane.b32.xlu0 %v8100, 48
    %v8493 = vpop.permute.xlu0 %8492
    %8494 = vrot.lane.b32.xlu0 %v8101, 48
    %v8495 = vpop.permute.xlu0 %8494
    %8496 = vrot.lane.b32.xlu0 %v8102, 48
    %v8497 = vpop.permute.xlu0 %8496
    %8498 = vrot.lane.b32.xlu0 %v8103, 48
    %v8499 = vpop.permute.xlu0 %8498
    %8500 = vrot.lane.b32.xlu0 %v8104, 48
    %v8501 = vpop.permute.xlu0 %8500
    %8502 = vrot.lane.b32.xlu0 %v8105, 48
    %v8503 = vpop.permute.xlu0 %8502
    %8504 = vrot.lane.b32.xlu0 %v8106, 48
    %v8505 = vpop.permute.xlu0 %8504
    %8506 = vrot.lane.b32.xlu0 %v8107, 48
    %v8507 = vpop.permute.xlu0 %8506
    %8540 = vrot.lane.b32.xlu0 %v8108, 56
    %v8541 = vpop.permute.xlu0 %8540
    %8542 = vrot.lane.b32.xlu0 %v8109, 56
    %v8543 = vpop.permute.xlu0 %8542
    %8544 = vrot.lane.b32.xlu0 %v8110, 56
    %v8545 = vpop.permute.xlu0 %8544
    %8546 = vrot.lane.b32.xlu0 %v8111, 56
    %v8547 = vpop.permute.xlu0 %8546
    %8548 = vrot.lane.b32.xlu0 %v8112, 56
    %v8549 = vpop.permute.xlu0 %8548
    %8550 = vrot.lane.b32.xlu0 %v8113, 56
    %v8551 = vpop.permute.xlu0 %8550
    %8552 = vrot.lane.b32.xlu0 %v8114, 56
    %v8553 = vpop.permute.xlu0 %8552
    %8554 = vrot.lane.b32.xlu0 %v8115, 56
    %v8555 = vpop.permute.xlu0 %8554
    %8556 = vrot.lane.b32.xlu0 %v8116, 56
    %v8557 = vpop.permute.xlu0 %8556
    %8558 = vrot.lane.b32.xlu0 %v8117, 56
    %v8559 = vpop.permute.xlu0 %8558
    %8560 = vrot.lane.b32.xlu0 %v8118, 56
    %v8561 = vpop.permute.xlu0 %8560
    %8562 = vrot.lane.b32.xlu0 %v8119, 56
    %v8563 = vpop.permute.xlu0 %8562
    %8564 = vrot.lane.b32.xlu0 %v8120, 56
    %v8565 = vpop.permute.xlu0 %8564
    %8566 = vrot.lane.b32.xlu0 %v8121, 56
    %v8567 = vpop.permute.xlu0 %8566
    %8568 = vrot.lane.b32.xlu0 %v8122, 56
    %v8569 = vpop.permute.xlu0 %8568
    %8570 = vrot.lane.b32.xlu0 %v8123, 56
    %v8571 = vpop.permute.xlu0 %8570
    %8604 = vrot.lane.b32.xlu0 %v8124, 64
    %v8605 = vpop.permute.xlu0 %8604
    %8606 = vrot.lane.b32.xlu0 %v8125, 64
    %v8607 = vpop.permute.xlu0 %8606
    %8608 = vrot.lane.b32.xlu0 %v8126, 64
    %v8609 = vpop.permute.xlu0 %8608
    %8610 = vrot.lane.b32.xlu0 %v8127, 64
    %v8611 = vpop.permute.xlu0 %8610
    %8612 = vrot.lane.b32.xlu0 %v8128, 64
    %v8613 = vpop.permute.xlu0 %8612
    %8614 = vrot.lane.b32.xlu0 %v8129, 64
    %v8615 = vpop.permute.xlu0 %8614
    %8616 = vrot.lane.b32.xlu0 %v8130, 64
    %v8617 = vpop.permute.xlu0 %8616
    %8618 = vrot.lane.b32.xlu0 %v8131, 64
    %v8619 = vpop.permute.xlu0 %8618
    %8620 = vrot.lane.b32.xlu0 %v8132, 64
    %v8621 = vpop.permute.xlu0 %8620
    %8622 = vrot.lane.b32.xlu0 %v8133, 64
    %v8623 = vpop.permute.xlu0 %8622
    %8624 = vrot.lane.b32.xlu0 %v8134, 64
    %v8625 = vpop.permute.xlu0 %8624
    %8626 = vrot.lane.b32.xlu0 %v8135, 64
    %v8627 = vpop.permute.xlu0 %8626
    %8628 = vrot.lane.b32.xlu0 %v8136, 64
    %v8629 = vpop.permute.xlu0 %8628
    %8630 = vrot.lane.b32.xlu0 %v8137, 64
    %v8631 = vpop.permute.xlu0 %8630
    %8632 = vrot.lane.b32.xlu0 %v8138, 64
    %v8633 = vpop.permute.xlu0 %8632
    %8634 = vrot.lane.b32.xlu0 %v8139, 64
    %v8635 = vpop.permute.xlu0 %8634
    %v8652 = vsel %vm2948, %v7995, %v8157
    %v8653 = vsel %vm2948, %v7996, %v8159
    %v8654 = vsel %vm2948, %v7997, %v8161
    %v8655 = vsel %vm2948, %v7998, %v8163
    %v8656 = vsel %vm2948, %v7999, %v8165
    %v8657 = vsel %vm2948, %v8000, %v8167
    %v8658 = vsel %vm2948, %v8001, %v8169
    %v8659 = vsel %vm2948, %v8002, %v8171
    %v8660 = vsel %vm2948, %v8003, %v8173
    %v8661 = vsel %vm2948, %v8004, %v8175
    %v8662 = vsel %vm2948, %v8005, %v8177
    %v8663 = vsel %vm2948, %v8006, %v8179
    %v8664 = vsel %vm2948, %v8007, %v8181
    %v8665 = vsel %vm2948, %v8008, %v8183
    %v8666 = vsel %vm2948, %v8009, %v8185
    %v8667 = vsel %vm2948, %v8010, %v8187
    %v8668 = vsel %vm3078, %v8652, %v8221
    %v8669 = vsel %vm3078, %v8653, %v8223
    %v8670 = vsel %vm3078, %v8654, %v8225
    %v8671 = vsel %vm3078, %v8655, %v8227
    %v8672 = vsel %vm3078, %v8656, %v8229
    %v8673 = vsel %vm3078, %v8657, %v8231
    %v8674 = vsel %vm3078, %v8658, %v8233
    %v8675 = vsel %vm3078, %v8659, %v8235
    %v8676 = vsel %vm3078, %v8660, %v8237
    %v8677 = vsel %vm3078, %v8661, %v8239
    %v8678 = vsel %vm3078, %v8662, %v8241
    %v8679 = vsel %vm3078, %v8663, %v8243
    %v8680 = vsel %vm3078, %v8664, %v8245
    %v8681 = vsel %vm3078, %v8665, %v8247
    %v8682 = vsel %vm3078, %v8666, %v8249
    %v8683 = vsel %vm3078, %v8667, %v8251
    %v8684 = vsel %vm3208, %v8668, %v8285
    %v8685 = vsel %vm3208, %v8669, %v8287
    %v8686 = vsel %vm3208, %v8670, %v8289
    %v8687 = vsel %vm3208, %v8671, %v8291
    %v8688 = vsel %vm3208, %v8672, %v8293
    %v8689 = vsel %vm3208, %v8673, %v8295
    %v8690 = vsel %vm3208, %v8674, %v8297
    %v8691 = vsel %vm3208, %v8675, %v8299
    %v8692 = vsel %vm3208, %v8676, %v8301
    %v8693 = vsel %vm3208, %v8677, %v8303
    %v8694 = vsel %vm3208, %v8678, %v8305
    %v8695 = vsel %vm3208, %v8679, %v8307
    %v8696 = vsel %vm3208, %v8680, %v8309
    %v8697 = vsel %vm3208, %v8681, %v8311
    %v8698 = vsel %vm3208, %v8682, %v8313
    %v8699 = vsel %vm3208, %v8683, %v8315
    %v8700 = vsel %vm3338, %v8684, %v8349
    %v8701 = vsel %vm3338, %v8685, %v8351
    %v8702 = vsel %vm3338, %v8686, %v8353
    %v8703 = vsel %vm3338, %v8687, %v8355
    %v8704 = vsel %vm3338, %v8688, %v8357
    %v8705 = vsel %vm3338, %v8689, %v8359
    %v8706 = vsel %vm3338, %v8690, %v8361
    %v8707 = vsel %vm3338, %v8691, %v8363
    %v8708 = vsel %vm3338, %v8692, %v8365
    %v8709 = vsel %vm3338, %v8693, %v8367
    %v8710 = vsel %vm3338, %v8694, %v8369
    %v8711 = vsel %vm3338, %v8695, %v8371
    %v8712 = vsel %vm3338, %v8696, %v8373
    %v8713 = vsel %vm3338, %v8697, %v8375
    %v8714 = vsel %vm3338, %v8698, %v8377
    %v8715 = vsel %vm3338, %v8699, %v8379
    %vm8716 = vcmask 326656
    %v8717 = vsel %vm8716, %v8700, %v8413
    %v8718 = vsel %vm8716, %v8701, %v8415
    %v8719 = vsel %vm8716, %v8702, %v8417
    %v8720 = vsel %vm8716, %v8703, %v8419
    %v8721 = vsel %vm8716, %v8704, %v8421
    %v8722 = vsel %vm8716, %v8705, %v8423
    %v8723 = vsel %vm8716, %v8706, %v8425
    %v8724 = vsel %vm8716, %v8707, %v8427
    %v8725 = vsel %vm8716, %v8708, %v8429
    %v8726 = vsel %vm8716, %v8709, %v8431
    %v8727 = vsel %vm8716, %v8710, %v8433
    %v8728 = vsel %vm8716, %v8711, %v8435
    %v8729 = vsel %vm8716, %v8712, %v8437
    %v8730 = vsel %vm8716, %v8713, %v8439
    %v8731 = vsel %vm8716, %v8714, %v8441
    %v8732 = vsel %vm8716, %v8715, %v8443
    %vm8733 = vcmask 392192
    %v8734 = vsel %vm8733, %v8717, %v8477
    %v8735 = vsel %vm8733, %v8718, %v8479
    %v8736 = vsel %vm8733, %v8719, %v8481
    %v8737 = vsel %vm8733, %v8720, %v8483
    %v8738 = vsel %vm8733, %v8721, %v8485
    %v8739 = vsel %vm8733, %v8722, %v8487
    %v8740 = vsel %vm8733, %v8723, %v8489
    %v8741 = vsel %vm8733, %v8724, %v8491
    %v8742 = vsel %vm8733, %v8725, %v8493
    %v8743 = vsel %vm8733, %v8726, %v8495
    %v8744 = vsel %vm8733, %v8727, %v8497
    %v8745 = vsel %vm8733, %v8728, %v8499
    %v8746 = vsel %vm8733, %v8729, %v8501
    %v8747 = vsel %vm8733, %v8730, %v8503
    %v8748 = vsel %vm8733, %v8731, %v8505
    %v8749 = vsel %vm8733, %v8732, %v8507
    %vm8750 = vcmask 457728
    %v8751 = vsel %vm8750, %v8734, %v8541
    %v8752 = vsel %vm8750, %v8735, %v8543
    %v8753 = vsel %vm8750, %v8736, %v8545
    %v8754 = vsel %vm8750, %v8737, %v8547
    %v8755 = vsel %vm8750, %v8738, %v8549
    %v8756 = vsel %vm8750, %v8739, %v8551
    %v8757 = vsel %vm8750, %v8740, %v8553
    %v8758 = vsel %vm8750, %v8741, %v8555
    %v8759 = vsel %vm8750, %v8742, %v8557
    %v8760 = vsel %vm8750, %v8743, %v8559
    %v8761 = vsel %vm8750, %v8744, %v8561
    %v8762 = vsel %vm8750, %v8745, %v8563
    %v8763 = vsel %vm8750, %v8746, %v8565
    %v8764 = vsel %vm8750, %v8747, %v8567
    %v8765 = vsel %vm8750, %v8748, %v8569
    %v8766 = vsel %vm8750, %v8749, %v8571
    %vm8767 = vcmask 523264
    %v8768 = vsel %vm8767, %v8751, %v8605
    %v8769 = vsel %vm8767, %v8752, %v8607
    %v8770 = vsel %vm8767, %v8753, %v8609
    %v8771 = vsel %vm8767, %v8754, %v8611
    %v8772 = vsel %vm8767, %v8755, %v8613
    %v8773 = vsel %vm8767, %v8756, %v8615
    %v8774 = vsel %vm8767, %v8757, %v8617
    %v8775 = vsel %vm8767, %v8758, %v8619
    %v8776 = vsel %vm8767, %v8759, %v8621
    %v8777 = vsel %vm8767, %v8760, %v8623
    %v8778 = vsel %vm8767, %v8761, %v8625
    %v8779 = vsel %vm8767, %v8762, %v8627
    %v8780 = vsel %vm8767, %v8763, %v8629
    %v8781 = vsel %vm8767, %v8764, %v8631
    %v8782 = vsel %vm8767, %v8765, %v8633
    %v8783 = vsel %vm8767, %v8766, %v8635
    %v8784 = vld [vmem:[%s4] sm:$0xff]
    %v8785 = vld [vmem:[%s4 + $0x8] sm:$0xff]
    %v8786 = vld [vmem:[%s4 + $0x10] sm:$0xff]
    %v8787 = vld [vmem:[%s4 + $0x18] sm:$0xff]
    %v8788 = vld [vmem:[%s4 + $0x20] sm:$0xff]
    %v8789 = vld [vmem:[%s4 + $0x28] sm:$0xff]
    %v8790 = vld [vmem:[%s4 + $0x30] sm:$0xff]
    %v8791 = vld [vmem:[%s4 + $0x38] sm:$0xff]
    %v8792 = vld [vmem:[%s4 + $0x40] sm:$0xff]
    %vm8793 = vcmask 588800
    %v8795 = vsel %vm8793, %v8768, 0
    %v8798 = vsel %vm8793, %v8769, 0
    %v8801 = vsel %vm8793, %v8770, 0
    %v8804 = vsel %vm8793, %v8771, 0
    %v8807 = vsel %vm8793, %v8772, 0
    %v8810 = vsel %vm8793, %v8773, 0
    %v8813 = vsel %vm8793, %v8774, 0
    %v8816 = vsel %vm8793, %v8775, 0
    %v8819 = vsel %vm8793, %v8776, 0
    %v8822 = vsel %vm8793, %v8777, 0
    %v8825 = vsel %vm8793, %v8778, 0
    %v8828 = vsel %vm8793, %v8779, 0
    %v8831 = vsel %vm8793, %v8780, 0
    %v8834 = vsel %vm8793, %v8781, 0
    %v8837 = vsel %vm8793, %v8782, 0
    %v8840 = vsel %vm8793, %v8783, 0
    %8842 = vmatprep.subr.mxu0 0.0
    %8843 = vmatpush1.msra.mxu0 %v8784
    %8844 = vmatprep.subr.mxu0 0.0
    %8845 = vmatpush1.msra.mxu0 %v8785
    %8846 = vmatprep.subr.mxu0 0.0
    %8847 = vmatpush1.msra.mxu0 %v8786
    %8848 = vmatprep.subr.mxu0 0.0
    %8849 = vmatpush1.msra.mxu0 %v8787
    %8850 = vmatprep.subr.mxu0 0.0
    %8851 = vmatpush1.msra.mxu0 %v8788
    %8852 = vmatprep.subr.mxu0 0.0
    %8853 = vmatpush1.msra.mxu0 %v8789
    %8854 = vmatprep.subr.mxu0 0.0
    %8855 = vmatpush1.msra.mxu0 %v8790
    %8856 = vmatprep.subr.mxu0 0.0
    %8857 = vmatpush1.msra.mxu0 %v8791
    %8858 = vmatprep.subr.mxu0 0.0
    %8859 = vmatpush1.msra.mxu0 %v8792
    %8860 = vmatprep.subr.mxu0 0.0
    %8861 = vmatpush1.msra.mxu0 0.0
    %8862 = vmatprep.subr.mxu0 0.0
    %8863 = vmatpush1.msra.mxu0 0.0
    %8864 = vmatprep.subr.mxu0 0.0
    %8865 = vmatpush1.msra.mxu0 0.0
    %8866 = vmatprep.subr.mxu0 0.0
    %8867 = vmatpush1.msra.mxu0 0.0
    %8868 = vmatprep.subr.mxu0 0.0
    %8869 = vmatpush1.msra.mxu0 0.0
    %8870 = vmatprep.subr.mxu0 0.0
    %8871 = vmatpush1.msra.mxu0 0.0
    %8872 = vmatprep.subr.mxu0 0.0
    %8873 = vmatpush1.msra.mxu0 0.0
    %8874 = vmatprep.subr.mxu0 0.0
    %8875 = vmatpush1.msra.mxu0 0.0
    %8876 = vmatprep.subr.mxu0 0.0
    %8877 = vmatpush1.msra.mxu0 0.0
    %8878 = vmatprep.subr.mxu0 0.0
    %8879 = vmatpush1.msra.mxu0 0.0
    %8880 = vmatprep.subr.mxu0 0.0
    %8881 = vmatpush1.msra.mxu0 0.0
    %8882 = vmatprep.subr.mxu0 0.0
    %8883 = vmatpush1.msra.mxu0 0.0
    %8884 = vmatprep.subr.mxu0 0.0
    %8885 = vmatpush1.msra.mxu0 0.0
    %8886 = vmatprep.subr.mxu0 0.0
    %8887 = vmatpush1.msra.mxu0 0.0
    %8888 = vmatprep.subr.mxu0 0.0
    %8889 = vmatpush1.msra.mxu0 0.0
    %8890 = vmatprep.subr.mxu0 0.0
    %8891 = vmatpush1.msra.mxu0 0.0
    %8892 = vmatprep.subr.mxu0 0.0
    %8893 = vmatpush1.msra.mxu0 0.0
    %8894 = vmatprep.subr.mxu0 0.0
    %8895 = vmatpush1.msra.mxu0 0.0
    %8896 = vmatprep.subr.mxu0 0.0
    %8897 = vmatpush1.msra.mxu0 0.0
    %8898 = vmatprep.subr.mxu0 0.0
    %8899 = vmatpush1.msra.mxu0 0.0
    %8900 = vmatprep.subr.mxu0 0.0
    %8901 = vmatpush1.msra.mxu0 0.0
    %8902 = vmatprep.subr.mxu0 0.0
    %8903 = vmatpush1.msra.mxu0 0.0
    %8904 = vmatprep.subr.mxu0 0.0
    %8905 = vmatpush1.msra.mxu0 0.0
    %8906 = vmatprep.mubr.f32.mxu0 0.0
    %8907 = vmatmul.mubr.f32.gmra.mrb[0].mxu0 %v8795
    %v8908 = vpop.f32.mrb[0].mxu0
    %v8909 = vadd.f32 0.0, %v8908
    %v8910 = vpop.f32.mrb[0].mxu0
    %8911 = vmatprep.mubr.f32.mxu0 0.0
    %8912 = vmatmul.mubr.f32.gmra.mrb[0].mxu0 %v8798
    %v8913 = vpop.f32.mrb[0].mxu0
    %v8914 = vadd.f32 0.0, %v8913
    %v8915 = vpop.f32.mrb[0].mxu0
    %8916 = vmatprep.mubr.f32.mxu0 0.0
    %8917 = vmatmul.mubr.f32.gmra.mrb[0].mxu0 %v8801
    %v8918 = vpop.f32.mrb[0].mxu0
    %v8919 = vadd.f32 0.0, %v8918
    %v8920 = vpop.f32.mrb[0].mxu0
    %8921 = vmatprep.mubr.f32.mxu0 0.0
    %8922 = vmatmul.mubr.f32.gmra.mrb[0].mxu0 %v8804
    %v8923 = vpop.f32.mrb[0].mxu0
    %v8924 = vadd.f32 0.0, %v8923
    %v8925 = vpop.f32.mrb[0].mxu0
    %8926 = vmatprep.mubr.f32.mxu0 0.0
    %8927 = vmatmul.mubr.f32.gmra.mrb[0].mxu0 %v8807
    %v8928 = vpop.f32.mrb[0].mxu0
    %v8929 = vadd.f32 0.0, %v8928
    %v8930 = vpop.f32.mrb[0].mxu0
    %8931 = vmatprep.mubr.f32.mxu0 0.0
    %8932 = vmatmul.mubr.f32.gmra.mrb[0].mxu0 %v8810
    %v8933 = vpop.f32.mrb[0].mxu0
    %v8934 = vadd.f32 0.0, %v8933
    %v8935 = vpop.f32.mrb[0].mxu0
    %8936 = vmatprep.mubr.f32.mxu0 0.0
    %8937 = vmatmul.mubr.f32.gmra.mrb[0].mxu0 %v8813
    %v8938 = vpop.f32.mrb[0].mxu0
    %v8939 = vadd.f32 0.0, %v8938
    %v8940 = vpop.f32.mrb[0].mxu0
    %8941 = vmatprep.mubr.f32.mxu0 0.0
    %8942 = vmatmul.mubr.f32.gmra.mrb[0].mxu0 %v8816
    %v8943 = vpop.f32.mrb[0].mxu0
    %v8944 = vadd.f32 0.0, %v8943
    %v8945 = vpop.f32.mrb[0].mxu0
    %8946 = vmatprep.mubr.f32.mxu0 0.0
    %8947 = vmatmul.mubr.f32.gmra.mrb[0].mxu0 %v8819
    %v8948 = vpop.f32.mrb[0].mxu0
    %v8949 = vadd.f32 0.0, %v8948
    %v8950 = vpop.f32.mrb[0].mxu0
    %8951 = vmatprep.mubr.f32.mxu0 0.0
    %8952 = vmatmul.mubr.f32.gmra.mrb[0].mxu0 %v8822
    %v8953 = vpop.f32.mrb[0].mxu0
    %v8954 = vadd.f32 0.0, %v8953
    %v8955 = vpop.f32.mrb[0].mxu0
    %8956 = vmatprep.mubr.f32.mxu0 0.0
    %8957 = vmatmul.mubr.f32.gmra.mrb[0].mxu0 %v8825
    %v8958 = vpop.f32.mrb[0].mxu0
    %v8959 = vadd.f32 0.0, %v8958
    %v8960 = vpop.f32.mrb[0].mxu0
    %8961 = vmatprep.mubr.f32.mxu0 0.0
    %8962 = vmatmul.mubr.f32.gmra.mrb[0].mxu0 %v8828
    %v8963 = vpop.f32.mrb[0].mxu0
    %v8964 = vadd.f32 0.0, %v8963
    %v8965 = vpop.f32.mrb[0].mxu0
    %8966 = vmatprep.mubr.f32.mxu0 0.0
    %8967 = vmatmul.mubr.f32.gmra.mrb[0].mxu0 %v8831
    %v8968 = vpop.f32.mrb[0].mxu0
    %v8969 = vadd.f32 0.0, %v8968
    %v8970 = vpop.f32.mrb[0].mxu0
    %8971 = vmatprep.mubr.f32.mxu0 0.0
    %8972 = vmatmul.mubr.f32.gmra.mrb[0].mxu0 %v8834
    %v8973 = vpop.f32.mrb[0].mxu0
    %v8974 = vadd.f32 0.0, %v8973
    %v8975 = vpop.f32.mrb[0].mxu0
    %8976 = vmatprep.mubr.f32.mxu0 0.0
    %8977 = vmatmul.mubr.f32.gmra.mrb[0].mxu0 %v8837
    %v8978 = vpop.f32.mrb[0].mxu0
    %v8979 = vadd.f32 0.0, %v8978
    %v8980 = vpop.f32.mrb[0].mxu0
    %8981 = vmatprep.mubr.f32.mxu0 0.0
    %8982 = vmatmul.mubr.f32.gmra.mrb[0].mxu0 %v8840
    %v8983 = vpop.f32.mrb[0].mxu0
    %v8984 = vadd.f32 0.0, %v8983
    %v8985 = vpop.f32.mrb[0].mxu0
    %8986 = vdwg.mxu0
    %v8987 = vsel %vm3078, %v8909, 0.0
    %v8988 = vsel %vm3078, %v8914, 0.0
    %v8989 = vadd.f32 %v8987, %v8988
    %v8990 = vsel %vm3078, %v8919, 0.0
    %v8991 = vadd.f32 %v8989, %v8990
    %v8992 = vsel %vm3078, %v8924, 0.0
    %v8993 = vadd.f32 %v8991, %v8992
    %v8994 = vsel %vm3078, %v8929, 0.0
    %v8995 = vadd.f32 %v8993, %v8994
    %v8996 = vsel %vm3078, %v8934, 0.0
    %v8997 = vadd.f32 %v8995, %v8996
    %v8998 = vsel %vm3078, %v8939, 0.0
    %v8999 = vadd.f32 %v8997, %v8998
    %v9000 = vsel %vm3078, %v8944, 0.0
    %v9001 = vadd.f32 %v8999, %v9000
    %v9002 = vsel %vm3078, %v8949, 0.0
    %v9003 = vadd.f32 %v9001, %v9002
    %v9004 = vsel %vm3078, %v8954, 0.0
    %v9005 = vadd.f32 %v9003, %v9004
    %v9006 = vsel %vm3078, %v8959, 0.0
    %v9007 = vadd.f32 %v9005, %v9006
    %v9008 = vsel %vm3078, %v8964, 0.0
    %v9009 = vadd.f32 %v9007, %v9008
    %v9010 = vsel %vm3078, %v8969, 0.0
    %v9011 = vadd.f32 %v9009, %v9010
    %v9012 = vsel %vm3078, %v8974, 0.0
    %v9013 = vadd.f32 %v9011, %v9012
    %v9014 = vsel %vm3078, %v8979, 0.0
    %v9015 = vadd.f32 %v9013, %v9014
    %v9016 = vsel %vm3078, %v8984, 0.0
    %v9017 = vadd.f32 %v9015, %v9016
    %v9018 = vrot.slane %v9017, 4
    %v9019 = vadd.f32 %v9017, %v9018
    %v9020 = vrot.slane %v9019, 2
    %v9021 = vadd.f32 %v9019, %v9020
    %v9022 = vrot.slane %v9021, 1
    %v9023 = vadd.f32 %v9021, %v9022
    %v9024 = vmul.f32 %v9023, 0.0078125
    %v9025 = vmul.f32 %v8909, %v8909
    %v9026 = vmul.f32 %v8914, %v8914
    %v9027 = vmul.f32 %v8919, %v8919
    %v9028 = vmul.f32 %v8924, %v8924
    %v9029 = vmul.f32 %v8929, %v8929
    %v9030 = vmul.f32 %v8934, %v8934
    %v9031 = vmul.f32 %v8939, %v8939
    %v9032 = vmul.f32 %v8944, %v8944
    %v9033 = vmul.f32 %v8949, %v8949
    %v9034 = vmul.f32 %v8954, %v8954
    %v9035 = vmul.f32 %v8959, %v8959
    %v9036 = vmul.f32 %v8964, %v8964
    %v9037 = vmul.f32 %v8969, %v8969
    %v9038 = vmul.f32 %v8974, %v8974
    %v9039 = vmul.f32 %v8979, %v8979
    %v9040 = vmul.f32 %v8984, %v8984
    %v9041 = vsel %vm3078, %v9025, 0.0
    %v9042 = vsel %vm3078, %v9026, 0.0
    %v9043 = vadd.f32 %v9041, %v9042
    %v9044 = vsel %vm3078, %v9027, 0.0
    %v9045 = vadd.f32 %v9043, %v9044
    %v9046 = vsel %vm3078, %v9028, 0.0
    %v9047 = vadd.f32 %v9045, %v9046
    %v9048 = vsel %vm3078, %v9029, 0.0
    %v9049 = vadd.f32 %v9047, %v9048
    %v9050 = vsel %vm3078, %v9030, 0.0
    %v9051 = vadd.f32 %v9049, %v9050
    %v9052 = vsel %vm3078, %v9031, 0.0
    %v9053 = vadd.f32 %v9051, %v9052
    %v9054 = vsel %vm3078, %v9032, 0.0
    %v9055 = vadd.f32 %v9053, %v9054
    %v9056 = vsel %vm3078, %v9033, 0.0
    %v9057 = vadd.f32 %v9055, %v9056
    %v9058 = vsel %vm3078, %v9034, 0.0
    %v9059 = vadd.f32 %v9057, %v9058
    %v9060 = vsel %vm3078, %v9035, 0.0
    %v9061 = vadd.f32 %v9059, %v9060
    %v9062 = vsel %vm3078, %v9036, 0.0
    %v9063 = vadd.f32 %v9061, %v9062
    %v9064 = vsel %vm3078, %v9037, 0.0
    %v9065 = vadd.f32 %v9063, %v9064
    %v9066 = vsel %vm3078, %v9038, 0.0
    %v9067 = vadd.f32 %v9065, %v9066
    %v9068 = vsel %vm3078, %v9039, 0.0
    %v9069 = vadd.f32 %v9067, %v9068
    %v9070 = vsel %vm3078, %v9040, 0.0
    %v9071 = vadd.f32 %v9069, %v9070
    %v9072 = vrot.slane %v9071, 4
    %v9073 = vadd.f32 %v9071, %v9072
    %v9074 = vrot.slane %v9073, 2
    %v9075 = vadd.f32 %v9073, %v9074
    %v9076 = vrot.slane %v9075, 1
    %v9077 = vadd.f32 %v9075, %v9076
    %v9078 = vmul.f32 %v9077, 0.0078125
    %v9079 = vmul.f32 %v9024, %v9024
    %v9080 = vsub.f32 %v9078, %v9079
    %v9081 = vmax.f32 %v9080, 0.0
    %v9082 = vld [vmem:[%s5] sm:$0x1]
    %v9083 = vadd.f32 %v9081, 1e-05
    %v9084 = vrsqrt.pop %v9083
    %v9085 = vmul.f32 %v9082, %v9084
    %v9086 = vld [vmem:[%s6] sm:$0x1]
    %v9087 = vmul.f32 %v9024, %v9085
    %v9088 = vsub.f32 %v9086, %v9087
    %v9090 = vlaneseq
    %v9091 = vshrl.u32 %v9090, 7
    %v9092 = vsub.s32 0, %v9091
    %v9093 = vrot.slane %v9085, %v9092
    %v9095 = vmul.f32 %v8909, %v9093
    %v9096 = vmul.f32 %v8914, %v9093
    %v9097 = vmul.f32 %v8919, %v9093
    %v9098 = vmul.f32 %v8924, %v9093
    %v9099 = vmul.f32 %v8929, %v9093
    %v9100 = vmul.f32 %v8934, %v9093
    %v9101 = vmul.f32 %v8939, %v9093
    %v9102 = vmul.f32 %v8944, %v9093
    %v9103 = vmul.f32 %v8949, %v9093
    %v9104 = vmul.f32 %v8954, %v9093
    %v9105 = vmul.f32 %v8959, %v9093
    %v9106 = vmul.f32 %v8964, %v9093
    %v9107 = vmul.f32 %v8969, %v9093
    %v9108 = vmul.f32 %v8974, %v9093
    %v9109 = vmul.f32 %v8979, %v9093
    %v9110 = vmul.f32 %v8984, %v9093
    %v9112 = vlaneseq
    %v9113 = vshrl.u32 %v9112, 7
    %v9114 = vsub.s32 0, %v9113
    %v9115 = vrot.slane %v9088, %v9114
    %v9117 = vadd.f32 %v9095, %v9115
    %v9118 = vadd.f32 %v9096, %v9115
    %v9119 = vadd.f32 %v9097, %v9115
    %v9120 = vadd.f32 %v9098, %v9115
    %v9121 = vadd.f32 %v9099, %v9115
    %v9122 = vadd.f32 %v9100, %v9115
    %v9123 = vadd.f32 %v9101, %v9115
    %v9124 = vadd.f32 %v9102, %v9115
    %v9125 = vadd.f32 %v9103, %v9115
    %v9126 = vadd.f32 %v9104, %v9115
    %v9127 = vadd.f32 %v9105, %v9115
    %v9128 = vadd.f32 %v9106, %v9115
    %v9129 = vadd.f32 %v9107, %v9115
    %v9130 = vadd.f32 %v9108, %v9115
    %v9131 = vadd.f32 %v9109, %v9115
    %v9132 = vadd.f32 %v9110, %v9115
    %v9133 = vmax.f32 %v9117, 0.0
    %v9134 = vmax.f32 %v9118, 0.0
    %v9135 = vmax.f32 %v9119, 0.0
    %v9136 = vmax.f32 %v9120, 0.0
    %v9137 = vmax.f32 %v9121, 0.0
    %v9138 = vmax.f32 %v9122, 0.0
    %v9139 = vmax.f32 %v9123, 0.0
    %v9140 = vmax.f32 %v9124, 0.0
    %v9141 = vmax.f32 %v9125, 0.0
    %v9142 = vmax.f32 %v9126, 0.0
    %v9143 = vmax.f32 %v9127, 0.0
    %v9144 = vmax.f32 %v9128, 0.0
    %v9145 = vmax.f32 %v9129, 0.0
    %v9146 = vmax.f32 %v9130, 0.0
    %v9147 = vmax.f32 %v9131, 0.0
    %v9148 = vmax.f32 %v9132, 0.0
    %9149 = vst.msk [vmem:[%s14] sm:$0xff] %vm3078, %v9133
    %9150 = vst.msk [vmem:[%s14 + $0x8] sm:$0xff] %vm3078, %v9134
    %9151 = vst.msk [vmem:[%s14 + $0x10] sm:$0xff] %vm3078, %v9135
    %9152 = vst.msk [vmem:[%s14 + $0x18] sm:$0xff] %vm3078, %v9136
    %9153 = vst.msk [vmem:[%s14 + $0x20] sm:$0xff] %vm3078, %v9137
    %9154 = vst.msk [vmem:[%s14 + $0x28] sm:$0xff] %vm3078, %v9138
    %9155 = vst.msk [vmem:[%s14 + $0x30] sm:$0xff] %vm3078, %v9139
    %9156 = vst.msk [vmem:[%s14 + $0x38] sm:$0xff] %vm3078, %v9140
    %9157 = vst.msk [vmem:[%s14 + $0x40] sm:$0xff] %vm3078, %v9141
    %9158 = vst.msk [vmem:[%s14 + $0x48] sm:$0xff] %vm3078, %v9142
    %9159 = vst.msk [vmem:[%s14 + $0x50] sm:$0xff] %vm3078, %v9143
    %9160 = vst.msk [vmem:[%s14 + $0x58] sm:$0xff] %vm3078, %v9144
    %9161 = vst.msk [vmem:[%s14 + $0x60] sm:$0xff] %vm3078, %v9145
    %9162 = vst.msk [vmem:[%s14 + $0x68] sm:$0xff] %vm3078, %v9146
    %9163 = vst.msk [vmem:[%s14 + $0x70] sm:$0xff] %vm3078, %v9147
    %9164 = vst.msk [vmem:[%s14 + $0x78] sm:$0xff] %vm3078, %v9148
    %v9181 = vcombine.high %v9133, %v9133
    %v9183 = vunpack.c.l.s4 1983009808
    %v9184 = vunpack.c.0.s8 %v9183
    %v9185 = vlaneseq
    %v9186 = vshrl.u32 %v9185, 7
    %v9187 = vsub.s32 %v9184, %v9186
    %v9188 = vrot.slane %v9133, %v9187
    %v9190 = vunpack.c.l.s4 1983009808
    %v9191 = vunpack.c.0.s8 %v9190
    %v9192 = vlaneseq
    %v9193 = vshrl.u32 %v9192, 7
    %v9194 = vsub.s32 %v9191, %v9193
    %v9195 = vrot.slane %v9181, %v9194
    %v9196 = vcombine.high %v9188, %v9188
    %v9197 = vcombine.high %v9195, %v9195
    %v9198 = vcombine.high %v9134, %v9134
    %v9200 = vunpack.c.l.s4 1983009808
    %v9201 = vunpack.c.0.s8 %v9200
    %v9202 = vlaneseq
    %v9203 = vshrl.u32 %v9202, 7
    %v9204 = vsub.s32 %v9201, %v9203
    %v9205 = vrot.slane %v9134, %v9204
    %v9207 = vunpack.c.l.s4 1983009808
    %v9208 = vunpack.c.0.s8 %v9207
    %v9209 = vlaneseq
    %v9210 = vshrl.u32 %v9209, 7
    %v9211 = vsub.s32 %v9208, %v9210
    %v9212 = vrot.slane %v9198, %v9211
    %v9213 = vcombine.high %v9205, %v9205
    %v9214 = vcombine.high %v9212, %v9212
    %v9215 = vcombine.high %v9135, %v9135
    %v9217 = vunpack.c.l.s4 1983009808
    %v9218 = vunpack.c.0.s8 %v9217
    %v9219 = vlaneseq
    %v9220 = vshrl.u32 %v9219, 7
    %v9221 = vsub.s32 %v9218, %v9220
    %v9222 = vrot.slane %v9135, %v9221
    %v9224 = vunpack.c.l.s4 1983009808
    %v9225 = vunpack.c.0.s8 %v9224
    %v9226 = vlaneseq
    %v9227 = vshrl.u32 %v9226, 7
    %v9228 = vsub.s32 %v9225, %v9227
    %v9229 = vrot.slane %v9215, %v9228
    %v9230 = vcombine.high %v9222, %v9222
    %v9231 = vcombine.high %v9229, %v9229
    %v9232 = vcombine.high %v9136, %v9136
    %v9234 = vunpack.c.l.s4 1983009808
    %v9235 = vunpack.c.0.s8 %v9234
    %v9236 = vlaneseq
    %v9237 = vshrl.u32 %v9236, 7
    %v9238 = vsub.s32 %v9235, %v9237
    %v9239 = vrot.slane %v9136, %v9238
    %v9241 = vunpack.c.l.s4 1983009808
    %v9242 = vunpack.c.0.s8 %v9241
    %v9243 = vlaneseq
    %v9244 = vshrl.u32 %v9243, 7
    %v9245 = vsub.s32 %v9242, %v9244
    %v9246 = vrot.slane %v9232, %v9245
    %v9247 = vcombine.high %v9239, %v9239
    %v9248 = vcombine.high %v9246, %v9246
    %v9249 = vcombine.high %v9137, %v9137
    %v9251 = vunpack.c.l.s4 1983009808
    %v9252 = vunpack.c.0.s8 %v9251
    %v9253 = vlaneseq
    %v9254 = vshrl.u32 %v9253, 7
    %v9255 = vsub.s32 %v9252, %v9254
    %v9256 = vrot.slane %v9137, %v9255
    %v9258 = vunpack.c.l.s4 1983009808
    %v9259 = vunpack.c.0.s8 %v9258
    %v9260 = vlaneseq
    %v9261 = vshrl.u32 %v9260, 7
    %v9262 = vsub.s32 %v9259, %v9261
    %v9263 = vrot.slane %v9249, %v9262
    %v9264 = vcombine.high %v9256, %v9256
    %v9265 = vcombine.high %v9263, %v9263
    %v9266 = vcombine.high %v9138, %v9138
    %v9268 = vunpack.c.l.s4 1983009808
    %v9269 = vunpack.c.0.s8 %v9268
    %v9270 = vlaneseq
    %v9271 = vshrl.u32 %v9270, 7
    %v9272 = vsub.s32 %v9269, %v9271
    %v9273 = vrot.slane %v9138, %v9272
    %v9275 = vunpack.c.l.s4 1983009808
    %v9276 = vunpack.c.0.s8 %v9275
    %v9277 = vlaneseq
    %v9278 = vshrl.u32 %v9277, 7
    %v9279 = vsub.s32 %v9276, %v9278
    %v9280 = vrot.slane %v9266, %v9279
    %v9281 = vcombine.high %v9273, %v9273
    %v9282 = vcombine.high %v9280, %v9280
    %v9283 = vcombine.high %v9139, %v9139
    %v9285 = vunpack.c.l.s4 1983009808
    %v9286 = vunpack.c.0.s8 %v9285
    %v9287 = vlaneseq
    %v9288 = vshrl.u32 %v9287, 7
    %v9289 = vsub.s32 %v9286, %v9288
    %v9290 = vrot.slane %v9139, %v9289
    %v9292 = vunpack.c.l.s4 1983009808
    %v9293 = vunpack.c.0.s8 %v9292
    %v9294 = vlaneseq
    %v9295 = vshrl.u32 %v9294, 7
    %v9296 = vsub.s32 %v9293, %v9295
    %v9297 = vrot.slane %v9283, %v9296
    %v9298 = vcombine.high %v9290, %v9290
    %v9299 = vcombine.high %v9297, %v9297
    %v9300 = vcombine.high %v9140, %v9140
    %v9302 = vunpack.c.l.s4 1983009808
    %v9303 = vunpack.c.0.s8 %v9302
    %v9304 = vlaneseq
    %v9305 = vshrl.u32 %v9304, 7
    %v9306 = vsub.s32 %v9303, %v9305
    %v9307 = vrot.slane %v9140, %v9306
    %v9309 = vunpack.c.l.s4 1983009808
    %v9310 = vunpack.c.0.s8 %v9309
    %v9311 = vlaneseq
    %v9312 = vshrl.u32 %v9311, 7
    %v9313 = vsub.s32 %v9310, %v9312
    %v9314 = vrot.slane %v9300, %v9313
    %v9315 = vcombine.high %v9307, %v9307
    %v9316 = vcombine.high %v9314, %v9314
    %v9317 = vcombine.high %v9141, %v9141
    %v9319 = vunpack.c.l.s4 1983009808
    %v9320 = vunpack.c.0.s8 %v9319
    %v9321 = vlaneseq
    %v9322 = vshrl.u32 %v9321, 7
    %v9323 = vsub.s32 %v9320, %v9322
    %v9324 = vrot.slane %v9141, %v9323
    %v9326 = vunpack.c.l.s4 1983009808
    %v9327 = vunpack.c.0.s8 %v9326
    %v9328 = vlaneseq
    %v9329 = vshrl.u32 %v9328, 7
    %v9330 = vsub.s32 %v9327, %v9329
    %v9331 = vrot.slane %v9317, %v9330
    %v9332 = vcombine.high %v9324, %v9324
    %v9333 = vcombine.high %v9331, %v9331
    %v9334 = vcombine.high %v9142, %v9142
    %v9336 = vunpack.c.l.s4 1983009808
    %v9337 = vunpack.c.0.s8 %v9336
    %v9338 = vlaneseq
    %v9339 = vshrl.u32 %v9338, 7
    %v9340 = vsub.s32 %v9337, %v9339
    %v9341 = vrot.slane %v9142, %v9340
    %v9343 = vunpack.c.l.s4 1983009808
    %v9344 = vunpack.c.0.s8 %v9343
    %v9345 = vlaneseq
    %v9346 = vshrl.u32 %v9345, 7
    %v9347 = vsub.s32 %v9344, %v9346
    %v9348 = vrot.slane %v9334, %v9347
    %v9349 = vcombine.high %v9341, %v9341
    %v9350 = vcombine.high %v9348, %v9348
    %v9351 = vcombine.high %v9143, %v9143
    %v9353 = vunpack.c.l.s4 1983009808
    %v9354 = vunpack.c.0.s8 %v9353
    %v9355 = vlaneseq
    %v9356 = vshrl.u32 %v9355, 7
    %v9357 = vsub.s32 %v9354, %v9356
    %v9358 = vrot.slane %v9143, %v9357
    %v9360 = vunpack.c.l.s4 1983009808
    %v9361 = vunpack.c.0.s8 %v9360
    %v9362 = vlaneseq
    %v9363 = vshrl.u32 %v9362, 7
    %v9364 = vsub.s32 %v9361, %v9363
    %v9365 = vrot.slane %v9351, %v9364
    %v9366 = vcombine.high %v9358, %v9358
    %v9367 = vcombine.high %v9365, %v9365
    %v9368 = vcombine.high %v9144, %v9144
    %v9370 = vunpack.c.l.s4 1983009808
    %v9371 = vunpack.c.0.s8 %v9370
    %v9372 = vlaneseq
    %v9373 = vshrl.u32 %v9372, 7
    %v9374 = vsub.s32 %v9371, %v9373
    %v9375 = vrot.slane %v9144, %v9374
    %v9377 = vunpack.c.l.s4 1983009808
    %v9378 = vunpack.c.0.s8 %v9377
    %v9379 = vlaneseq
    %v9380 = vshrl.u32 %v9379, 7
    %v9381 = vsub.s32 %v9378, %v9380
    %v9382 = vrot.slane %v9368, %v9381
    %v9383 = vcombine.high %v9375, %v9375
    %v9384 = vcombine.high %v9382, %v9382
    %v9385 = vcombine.high %v9145, %v9145
    %v9387 = vunpack.c.l.s4 1983009808
    %v9388 = vunpack.c.0.s8 %v9387
    %v9389 = vlaneseq
    %v9390 = vshrl.u32 %v9389, 7
    %v9391 = vsub.s32 %v9388, %v9390
    %v9392 = vrot.slane %v9145, %v9391
    %v9394 = vunpack.c.l.s4 1983009808
    %v9395 = vunpack.c.0.s8 %v9394
    %v9396 = vlaneseq
    %v9397 = vshrl.u32 %v9396, 7
    %v9398 = vsub.s32 %v9395, %v9397
    %v9399 = vrot.slane %v9385, %v9398
    %v9400 = vcombine.high %v9392, %v9392
    %v9401 = vcombine.high %v9399, %v9399
    %v9402 = vcombine.high %v9146, %v9146
    %v9404 = vunpack.c.l.s4 1983009808
    %v9405 = vunpack.c.0.s8 %v9404
    %v9406 = vlaneseq
    %v9407 = vshrl.u32 %v9406, 7
    %v9408 = vsub.s32 %v9405, %v9407
    %v9409 = vrot.slane %v9146, %v9408
    %v9411 = vunpack.c.l.s4 1983009808
    %v9412 = vunpack.c.0.s8 %v9411
    %v9413 = vlaneseq
    %v9414 = vshrl.u32 %v9413, 7
    %v9415 = vsub.s32 %v9412, %v9414
    %v9416 = vrot.slane %v9402, %v9415
    %v9417 = vcombine.high %v9409, %v9409
    %v9418 = vcombine.high %v9416, %v9416
    %v9419 = vcombine.high %v9147, %v9147
    %v9421 = vunpack.c.l.s4 1983009808
    %v9422 = vunpack.c.0.s8 %v9421
    %v9423 = vlaneseq
    %v9424 = vshrl.u32 %v9423, 7
    %v9425 = vsub.s32 %v9422, %v9424
    %v9426 = vrot.slane %v9147, %v9425
    %v9428 = vunpack.c.l.s4 1983009808
    %v9429 = vunpack.c.0.s8 %v9428
    %v9430 = vlaneseq
    %v9431 = vshrl.u32 %v9430, 7
    %v9432 = vsub.s32 %v9429, %v9431
    %v9433 = vrot.slane %v9419, %v9432
    %v9434 = vcombine.high %v9426, %v9426
    %v9435 = vcombine.high %v9433, %v9433
    %v9436 = vcombine.high %v9148, %v9148
    %v9438 = vunpack.c.l.s4 1983009808
    %v9439 = vunpack.c.0.s8 %v9438
    %v9440 = vlaneseq
    %v9441 = vshrl.u32 %v9440, 7
    %v9442 = vsub.s32 %v9439, %v9441
    %v9443 = vrot.slane %v9148, %v9442
    %v9445 = vunpack.c.l.s4 1983009808
    %v9446 = vunpack.c.0.s8 %v9445
    %v9447 = vlaneseq
    %v9448 = vshrl.u32 %v9447, 7
    %v9449 = vsub.s32 %v9446, %v9448
    %v9450 = vrot.slane %v9436, %v9449
    %v9451 = vcombine.high %v9443, %v9443
    %v9452 = vcombine.high %v9450, %v9450
    %v9517 = vrot.slane %v9188, 7
    %v9518 = vrot.slane %v9517, 2
    %v9519 = vrot.slane %v9196, 7
    %v9520 = vrot.slane %v9519, 2
    %v9521 = vrot.slane %v9195, 7
    %v9522 = vrot.slane %v9521, 2
    %v9523 = vrot.slane %v9197, 7
    %v9524 = vrot.slane %v9523, 2
    %v9525 = vrot.slane %v9205, 7
    %v9526 = vrot.slane %v9525, 2
    %v9527 = vrot.slane %v9213, 7
    %v9528 = vrot.slane %v9527, 2
    %v9529 = vrot.slane %v9212, 7
    %v9530 = vrot.slane %v9529, 2
    %v9531 = vrot.slane %v9214, 7
    %v9532 = vrot.slane %v9531, 2
    %v9533 = vrot.slane %v9222, 7
    %v9534 = vrot.slane %v9533, 2
    %v9535 = vrot.slane %v9230, 7
    %v9536 = vrot.slane %v9535, 2
    %v9537 = vrot.slane %v9229, 7
    %v9538 = vrot.slane %v9537, 2
    %v9539 = vrot.slane %v9231, 7
    %v9540 = vrot.slane %v9539, 2
    %v9541 = vrot.slane %v9239, 7
    %v9542 = vrot.slane %v9541, 2
    %v9543 = vrot.slane %v9247, 7
    %v9544 = vrot.slane %v9543, 2
    %v9545 = vrot.slane %v9246, 7
    %v9546 = vrot.slane %v9545, 2
    %v9547 = vrot.slane %v9248, 7
    %v9548 = vrot.slane %v9547, 2
    %v9549 = vrot.slane %v9256, 7
    %v9550 = vrot.slane %v9549, 2
    %v9551 = vrot.slane %v9264, 7
    %v9552 = vrot.slane %v9551, 2
    %v9553 = vrot.slane %v9263, 7
    %v9554 = vrot.slane %v9553, 2
    %v9555 = vrot.slane %v9265, 7
    %v9556 = vrot.slane %v9555, 2
    %v9557 = vrot.slane %v9273, 7
    %v9558 = vrot.slane %v9557, 2
    %v9559 = vrot.slane %v9281, 7
    %v9560 = vrot.slane %v9559, 2
    %v9561 = vrot.slane %v9280, 7
    %v9562 = vrot.slane %v9561, 2
    %v9563 = vrot.slane %v9282, 7
    %v9564 = vrot.slane %v9563, 2
    %v9565 = vrot.slane %v9290, 7
    %v9566 = vrot.slane %v9565, 2
    %v9567 = vrot.slane %v9298, 7
    %v9568 = vrot.slane %v9567, 2
    %v9569 = vrot.slane %v9297, 7
    %v9570 = vrot.slane %v9569, 2
    %v9571 = vrot.slane %v9299, 7
    %v9572 = vrot.slane %v9571, 2
    %v9573 = vrot.slane %v9307, 7
    %v9574 = vrot.slane %v9573, 2
    %v9575 = vrot.slane %v9315, 7
    %v9576 = vrot.slane %v9575, 2
    %v9577 = vrot.slane %v9314, 7
    %v9578 = vrot.slane %v9577, 2
    %v9579 = vrot.slane %v9316, 7
    %v9580 = vrot.slane %v9579, 2
    %v9581 = vrot.slane %v9324, 7
    %v9582 = vrot.slane %v9581, 2
    %v9583 = vrot.slane %v9332, 7
    %v9584 = vrot.slane %v9583, 2
    %v9585 = vrot.slane %v9331, 7
    %v9586 = vrot.slane %v9585, 2
    %v9587 = vrot.slane %v9333, 7
    %v9588 = vrot.slane %v9587, 2
    %v9589 = vrot.slane %v9341, 7
    %v9590 = vrot.slane %v9589, 2
    %v9591 = vrot.slane %v9349, 7
    %v9592 = vrot.slane %v9591, 2
    %v9593 = vrot.slane %v9348, 7
    %v9594 = vrot.slane %v9593, 2
    %v9595 = vrot.slane %v9350, 7
    %v9596 = vrot.slane %v9595, 2
    %v9597 = vrot.slane %v9358, 7
    %v9598 = vrot.slane %v9597, 2
    %v9599 = vrot.slane %v9366, 7
    %v9600 = vrot.slane %v9599, 2
    %v9601 = vrot.slane %v9365, 7
    %v9602 = vrot.slane %v9601, 2
    %v9603 = vrot.slane %v9367, 7
    %v9604 = vrot.slane %v9603, 2
    %v9605 = vrot.slane %v9375, 7
    %v9606 = vrot.slane %v9605, 2
    %v9607 = vrot.slane %v9383, 7
    %v9608 = vrot.slane %v9607, 2
    %v9609 = vrot.slane %v9382, 7
    %v9610 = vrot.slane %v9609, 2
    %v9611 = vrot.slane %v9384, 7
    %v9612 = vrot.slane %v9611, 2
    %v9613 = vrot.slane %v9392, 7
    %v9614 = vrot.slane %v9613, 2
    %v9615 = vrot.slane %v9400, 7
    %v9616 = vrot.slane %v9615, 2
    %v9617 = vrot.slane %v9399, 7
    %v9618 = vrot.slane %v9617, 2
    %v9619 = vrot.slane %v9401, 7
    %v9620 = vrot.slane %v9619, 2
    %v9621 = vrot.slane %v9409, 7
    %v9622 = vrot.slane %v9621, 2
    %v9623 = vrot.slane %v9417, 7
    %v9624 = vrot.slane %v9623, 2
    %v9625 = vrot.slane %v9416, 7
    %v9626 = vrot.slane %v9625, 2
    %v9627 = vrot.slane %v9418, 7
    %v9628 = vrot.slane %v9627, 2
    %v9629 = vrot.slane %v9426, 7
    %v9630 = vrot.slane %v9629, 2
    %v9631 = vrot.slane %v9434, 7
    %v9632 = vrot.slane %v9631, 2
    %v9633 = vrot.slane %v9433, 7
    %v9634 = vrot.slane %v9633, 2
    %v9635 = vrot.slane %v9435, 7
    %v9636 = vrot.slane %v9635, 2
    %v9637 = vrot.slane %v9443, 7
    %v9638 = vrot.slane %v9637, 2
    %v9639 = vrot.slane %v9451, 7
    %v9640 = vrot.slane %v9639, 2
    %v9641 = vrot.slane %v9450, 7
    %v9642 = vrot.slane %v9641, 2
    %v9643 = vrot.slane %v9452, 7
    %v9644 = vrot.slane %v9643, 2
    %v9709 = vmax.f32 %v9188, %v9518
    %v9710 = vmax.f32 %v9196, %v9520
    %v9711 = vmax.f32 %v9195, %v9522
    %v9712 = vmax.f32 %v9197, %v9524
    %v9713 = vmax.f32 %v9205, %v9526
    %v9714 = vmax.f32 %v9213, %v9528
    %v9715 = vmax.f32 %v9212, %v9530
    %v9716 = vmax.f32 %v9214, %v9532
    %v9717 = vmax.f32 %v9222, %v9534
    %v9718 = vmax.f32 %v9230, %v9536
    %v9719 = vmax.f32 %v9229, %v9538
    %v9720 = vmax.f32 %v9231, %v9540
    %v9721 = vmax.f32 %v9239, %v9542
    %v9722 = vmax.f32 %v9247, %v9544
    %v9723 = vmax.f32 %v9246, %v9546
    %v9724 = vmax.f32 %v9248, %v9548
    %v9725 = vmax.f32 %v9256, %v9550
    %v9726 = vmax.f32 %v9264, %v9552
    %v9727 = vmax.f32 %v9263, %v9554
    %v9728 = vmax.f32 %v9265, %v9556
    %v9729 = vmax.f32 %v9273, %v9558
    %v9730 = vmax.f32 %v9281, %v9560
    %v9731 = vmax.f32 %v9280, %v9562
    %v9732 = vmax.f32 %v9282, %v9564
    %v9733 = vmax.f32 %v9290, %v9566
    %v9734 = vmax.f32 %v9298, %v9568
    %v9735 = vmax.f32 %v9297, %v9570
    %v9736 = vmax.f32 %v9299, %v9572
    %v9737 = vmax.f32 %v9307, %v9574
    %v9738 = vmax.f32 %v9315, %v9576
    %v9739 = vmax.f32 %v9314, %v9578
    %v9740 = vmax.f32 %v9316, %v9580
    %v9741 = vmax.f32 %v9324, %v9582
    %v9742 = vmax.f32 %v9332, %v9584
    %v9743 = vmax.f32 %v9331, %v9586
    %v9744 = vmax.f32 %v9333, %v9588
    %v9745 = vmax.f32 %v9341, %v9590
    %v9746 = vmax.f32 %v9349, %v9592
    %v9747 = vmax.f32 %v9348, %v9594
    %v9748 = vmax.f32 %v9350, %v9596
    %v9749 = vmax.f32 %v9358, %v9598
    %v9750 = vmax.f32 %v9366, %v9600
    %v9751 = vmax.f32 %v9365, %v9602
    %v9752 = vmax.f32 %v9367, %v9604
    %v9753 = vmax.f32 %v9375, %v9606
    %v9754 = vmax.f32 %v9383, %v9608
    %v9755 = vmax.f32 %v9382, %v9610
    %v9756 = vmax.f32 %v9384, %v9612
    %v9757 = vmax.f32 %v9392, %v9614
    %v9758 = vmax.f32 %v9400, %v9616
    %v9759 = vmax.f32 %v9399, %v9618
    %v9760 = vmax.f32 %v9401, %v9620
    %v9761 = vmax.f32 %v9409, %v9622
    %v9762 = vmax.f32 %v9417, %v9624
    %v9763 = vmax.f32 %v9416, %v9626
    %v9764 = vmax.f32 %v9418, %v9628
    %v9765 = vmax.f32 %v9426, %v9630
    %v9766 = vmax.f32 %v9434, %v9632
    %v9767 = vmax.f32 %v9433, %v9634
    %v9768 = vmax.f32 %v9435, %v9636
    %v9769 = vmax.f32 %v9443, %v9638
    %v9770 = vmax.f32 %v9451, %v9640
    %v9771 = vmax.f32 %v9450, %v9642
    %v9772 = vmax.f32 %v9452, %v9644
    %v9773 = vmax.f32 %v9709, %v9713
    %v9774 = vmax.f32 %v9710, %v9714
    %v9775 = vmax.f32 %v9711, %v9715
    %v9776 = vmax.f32 %v9712, %v9716
    %v9777 = vmax.f32 %v9717, %v9721
    %v9778 = vmax.f32 %v9718, %v9722
    %v9779 = vmax.f32 %v9719, %v9723
    %v9780 = vmax.f32 %v9720, %v9724
    %v9781 = vmax.f32 %v9725, %v9729
    %v9782 = vmax.f32 %v9726, %v9730
    %v9783 = vmax.f32 %v9727, %v9731
    %v9784 = vmax.f32 %v9728, %v9732
    %v9785 = vmax.f32 %v9733, %v9737
    %v9786 = vmax.f32 %v9734, %v9738
    %v9787 = vmax.f32 %v9735, %v9739
    %v9788 = vmax.f32 %v9736, %v9740
    %v9789 = vmax.f32 %v9741, %v9745
    %v9790 = vmax.f32 %v9742, %v9746
    %v9791 = vmax.f32 %v9743, %v9747
    %v9792 = vmax.f32 %v9744, %v9748
    %v9793 = vmax.f32 %v9749, %v9753
    %v9794 = vmax.f32 %v9750, %v9754
    %v9795 = vmax.f32 %v9751, %v9755
    %v9796 = vmax.f32 %v9752, %v9756
    %v9797 = vmax.f32 %v9757, %v9761
    %v9798 = vmax.f32 %v9758, %v9762
    %v9799 = vmax.f32 %v9759, %v9763
    %v9800 = vmax.f32 %v9760, %v9764
    %v9801 = vmax.f32 %v9765, %v9769
    %v9802 = vmax.f32 %v9766, %v9770
    %v9803 = vmax.f32 %v9767, %v9771
    %v9804 = vmax.f32 %v9768, %v9772
    %vm9805 = vcmask 128000
    %9806 = vst.msk [vmem:[#allocation4] sm:$0x3f] %vm9805, 0.0
    %9807 = vst.msk [vmem:[#allocation4 + $0x30] sm:$0x3f] %vm9805, 0.0
    %s9808 = scalar_lea.vmem [#allocation4], 40
    %9809 = vst.msk [vmem:[%s9808] sm:$0x3f] %vm9805, 0.0
    %9810 = vst.msk [vmem:[%s9808 + $0x30] sm:$0x3f] %vm9805, 0.0
    %s9811 = scalar_lea.vmem [#allocation4], 8
    %vm9812 = vcmask 122880
    %9813 = vst.msk [vmem:[%s9811] sm:$0x1] %vm9812, 0.0
    %9814 = vst.msk [vmem:[%s9811 + $0x8] sm:$0x1] %vm9812, 0.0
    %9815 = vst.msk [vmem:[%s9811 + $0x10] sm:$0x1] %vm9812, 0.0
    %9816 = vst.msk [vmem:[%s9811 + $0x18] sm:$0x1] %vm9812, 0.0
    %9817 = vst.msk [vmem:[%s9811 + $0x30] sm:$0x1] %vm9812, 0.0
    %9818 = vst.msk [vmem:[%s9811 + $0x38] sm:$0x1] %vm9812, 0.0
    %9819 = vst.msk [vmem:[%s9811 + $0x40] sm:$0x1] %vm9812, 0.0
    %9820 = vst.msk [vmem:[%s9811 + $0x48] sm:$0x1] %vm9812, 0.0
    %9821 = vst.msk [vmem:[%s9811 + $0x5] sm:$0x1] %vm9812, 0.0
    %9822 = vst.msk [vmem:[%s9811 + $0xd] sm:$0x1] %vm9812, 0.0
    %9823 = vst.msk [vmem:[%s9811 + $0x15] sm:$0x1] %vm9812, 0.0
    %9824 = vst.msk [vmem:[%s9811 + $0x1d] sm:$0x1] %vm9812, 0.0
    %9825 = vst.msk [vmem:[%s9811 + $0x35] sm:$0x1] %vm9812, 0.0
    %9826 = vst.msk [vmem:[%s9811 + $0x3d] sm:$0x1] %vm9812, 0.0
    %9827 = vst.msk [vmem:[%s9811 + $0x45] sm:$0x1] %vm9812, 0.0
    %9828 = vst.msk [vmem:[%s9811 + $0x4d] sm:$0x1] %vm9812, 0.0
    %v9861 = vlaneseq
    %v9862 = vshrl.u32 %v9861, 7
    %v9863 = vsub.s32 0, %v9862
    %v9864 = vrot.slane %v9773, %v9863
    %v9865 = vlaneseq
    %v9866 = vshrl.u32 %v9865, 7
    %v9867 = vsub.s32 0, %v9866
    %v9868 = vrot.slane %v9774, %v9867
    %v9869 = vlaneseq
    %v9870 = vshrl.u32 %v9869, 7
    %v9871 = vsub.s32 0, %v9870
    %v9872 = vrot.slane %v9775, %v9871
    %v9873 = vlaneseq
    %v9874 = vshrl.u32 %v9873, 7
    %v9875 = vsub.s32 0, %v9874
    %v9876 = vrot.slane %v9776, %v9875
    %v9877 = vlaneseq
    %v9878 = vshrl.u32 %v9877, 7
    %v9879 = vsub.s32 0, %v9878
    %v9880 = vrot.slane %v9777, %v9879
    %v9881 = vlaneseq
    %v9882 = vshrl.u32 %v9881, 7
    %v9883 = vsub.s32 0, %v9882
    %v9884 = vrot.slane %v9778, %v9883
    %v9885 = vlaneseq
    %v9886 = vshrl.u32 %v9885, 7
    %v9887 = vsub.s32 0, %v9886
    %v9888 = vrot.slane %v9779, %v9887
    %v9889 = vlaneseq
    %v9890 = vshrl.u32 %v9889, 7
    %v9891 = vsub.s32 0, %v9890
    %v9892 = vrot.slane %v9780, %v9891
    %v9893 = vlaneseq
    %v9894 = vshrl.u32 %v9893, 7
    %v9895 = vsub.s32 0, %v9894
    %v9896 = vrot.slane %v9781, %v9895
    %v9897 = vlaneseq
    %v9898 = vshrl.u32 %v9897, 7
    %v9899 = vsub.s32 0, %v9898
    %v9900 = vrot.slane %v9782, %v9899
    %v9901 = vlaneseq
    %v9902 = vshrl.u32 %v9901, 7
    %v9903 = vsub.s32 0, %v9902
    %v9904 = vrot.slane %v9783, %v9903
    %v9905 = vlaneseq
    %v9906 = vshrl.u32 %v9905, 7
    %v9907 = vsub.s32 0, %v9906
    %v9908 = vrot.slane %v9784, %v9907
    %v9909 = vlaneseq
    %v9910 = vshrl.u32 %v9909, 7
    %v9911 = vsub.s32 0, %v9910
    %v9912 = vrot.slane %v9785, %v9911
    %v9913 = vlaneseq
    %v9914 = vshrl.u32 %v9913, 7
    %v9915 = vsub.s32 0, %v9914
    %v9916 = vrot.slane %v9786, %v9915
    %v9917 = vlaneseq
    %v9918 = vshrl.u32 %v9917, 7
    %v9919 = vsub.s32 0, %v9918
    %v9920 = vrot.slane %v9787, %v9919
    %v9921 = vlaneseq
    %v9922 = vshrl.u32 %v9921, 7
    %v9923 = vsub.s32 0, %v9922
    %v9924 = vrot.slane %v9788, %v9923
    %v9925 = vlaneseq
    %v9926 = vshrl.u32 %v9925, 7
    %v9927 = vsub.s32 0, %v9926
    %v9928 = vrot.slane %v9789, %v9927
    %v9929 = vlaneseq
    %v9930 = vshrl.u32 %v9929, 7
    %v9931 = vsub.s32 0, %v9930
    %v9932 = vrot.slane %v9790, %v9931
    %v9933 = vlaneseq
    %v9934 = vshrl.u32 %v9933, 7
    %v9935 = vsub.s32 0, %v9934
    %v9936 = vrot.slane %v9791, %v9935
    %v9937 = vlaneseq
    %v9938 = vshrl.u32 %v9937, 7
    %v9939 = vsub.s32 0, %v9938
    %v9940 = vrot.slane %v9792, %v9939
    %v9941 = vlaneseq
    %v9942 = vshrl.u32 %v9941, 7
    %v9943 = vsub.s32 0, %v9942
    %v9944 = vrot.slane %v9793, %v9943
    %v9945 = vlaneseq
    %v9946 = vshrl.u32 %v9945, 7
    %v9947 = vsub.s32 0, %v9946
    %v9948 = vrot.slane %v9794, %v9947
    %v9949 = vlaneseq
    %v9950 = vshrl.u32 %v9949, 7
    %v9951 = vsub.s32 0, %v9950
    %v9952 = vrot.slane %v9795, %v9951
    %v9953 = vlaneseq
    %v9954 = vshrl.u32 %v9953, 7
    %v9955 = vsub.s32 0, %v9954
    %v9956 = vrot.slane %v9796, %v9955
    %v9957 = vlaneseq
    %v9958 = vshrl.u32 %v9957, 7
    %v9959 = vsub.s32 0, %v9958
    %v9960 = vrot.slane %v9797, %v9959
    %v9961 = vlaneseq
    %v9962 = vshrl.u32 %v9961, 7
    %v9963 = vsub.s32 0, %v9962
    %v9964 = vrot.slane %v9798, %v9963
    %v9965 = vlaneseq
    %v9966 = vshrl.u32 %v9965, 7
    %v9967 = vsub.s32 0, %v9966
    %v9968 = vrot.slane %v9799, %v9967
    %v9969 = vlaneseq
    %v9970 = vshrl.u32 %v9969, 7
    %v9971 = vsub.s32 0, %v9970
    %v9972 = vrot.slane %v9800, %v9971
    %v9973 = vlaneseq
    %v9974 = vshrl.u32 %v9973, 7
    %v9975 = vsub.s32 0, %v9974
    %v9976 = vrot.slane %v9801, %v9975
    %v9977 = vlaneseq
    %v9978 = vshrl.u32 %v9977, 7
    %v9979 = vsub.s32 0, %v9978
    %v9980 = vrot.slane %v9802, %v9979
    %v9981 = vlaneseq
    %v9982 = vshrl.u32 %v9981, 7
    %v9983 = vsub.s32 0, %v9982
    %v9984 = vrot.slane %v9803, %v9983
    %v9985 = vlaneseq
    %v9986 = vshrl.u32 %v9985, 7
    %v9987 = vsub.s32 0, %v9986
    %v9988 = vrot.slane %v9804, %v9987
    %v9989 = vsel %vm7844, %v9868, %v9864
    %v9990 = vsel %vm7846, %v9872, %v9989
    %v9991 = vsel %vm7848, %v9876, %v9990
    %v9992 = vsel %vm7844, %v9884, %v9880
    %v9993 = vsel %vm7846, %v9888, %v9992
    %v9994 = vsel %vm7848, %v9892, %v9993
    %v9995 = vsel %vm7844, %v9900, %v9896
    %v9996 = vsel %vm7846, %v9904, %v9995
    %v9997 = vsel %vm7848, %v9908, %v9996
    %v9998 = vsel %vm7844, %v9916, %v9912
    %v9999 = vsel %vm7846, %v9920, %v9998
    %v10000 = vsel %vm7848, %v9924, %v9999
    %v10001 = vsel %vm7844, %v9932, %v9928
    %v10002 = vsel %vm7846, %v9936, %v10001
    %v10003 = vsel %vm7848, %v9940, %v10002
    %v10004 = vsel %vm7844, %v9948, %v9944
    %v10005 = vsel %vm7846, %v9952, %v10004
    %v10006 = vsel %vm7848, %v9956, %v10005
    %v10007 = vsel %vm7844, %v9964, %v9960
    %v10008 = vsel %vm7846, %v9968, %v10007
    %v10009 = vsel %vm7848, %v9972, %v10008
    %v10010 = vsel %vm7844, %v9980, %v9976
    %v10011 = vsel %vm7846, %v9984, %v10010
    %v10012 = vsel %vm7848, %v9988, %v10011
    %vm10021 = vcmask 125952
    %10022 = vst.msk [vmem:[%s9811 + $0x1] sm:$0xf] %vm10021, %v9991
    %10023 = vst.msk [vmem:[%s9811 + $0x9] sm:$0xf] %vm10021, %v9994
    %10024 = vst.msk [vmem:[%s9811 + $0x11] sm:$0xf] %vm10021, %v9997
    %10025 = vst.msk [vmem:[%s9811 + $0x19] sm:$0xf] %vm10021, %v10000
    %10026 = vst.msk [vmem:[%s9811 + $0x31] sm:$0xf] %vm10021, %v10003
    %10027 = vst.msk [vmem:[%s9811 + $0x39] sm:$0xf] %vm10021, %v10006
    %10028 = vst.msk [vmem:[%s9811 + $0x41] sm:$0xf] %vm10021, %v10009
    %10029 = vst.msk [vmem:[%s9811 + $0x49] sm:$0xf] %vm10021, %v10012
    %v10030 = vld [vmem:[#allocation4] sm:$0xf]
    %v10031 = vld [vmem:[#allocation4 + $0x8] sm:$0xf]
    %v10032 = vld [vmem:[#allocation4 + $0x10] sm:$0xf]
    %v10033 = vld [vmem:[#allocation4 + $0x18] sm:$0xf]
    %v10034 = vld [vmem:[#allocation4 + $0x30] sm:$0xf]
    %v10035 = vld [vmem:[#allocation4 + $0x38] sm:$0xf]
    %v10036 = vld [vmem:[#allocation4 + $0x40] sm:$0xf]
    %v10037 = vld [vmem:[#allocation4 + $0x48] sm:$0xf]
    %v10038 = vld [vmem:[#allocation4 + $0x1] sm:$0xf]
    %v10039 = vld [vmem:[#allocation4 + $0x9] sm:$0xf]
    %v10040 = vld [vmem:[#allocation4 + $0x11] sm:$0xf]
    %v10041 = vld [vmem:[#allocation4 + $0x19] sm:$0xf]
    %v10042 = vld [vmem:[#allocation4 + $0x31] sm:$0xf]
    %v10043 = vld [vmem:[#allocation4 + $0x39] sm:$0xf]
    %v10044 = vld [vmem:[#allocation4 + $0x41] sm:$0xf]
    %v10045 = vld [vmem:[#allocation4 + $0x49] sm:$0xf]
    %v10046 = vld [vmem:[#allocation4 + $0x2] sm:$0xf]
    %v10047 = vld [vmem:[#allocation4 + $0xa] sm:$0xf]
    %v10048 = vld [vmem:[#allocation4 + $0x12] sm:$0xf]
    %v10049 = vld [vmem:[#allocation4 + $0x1a] sm:$0xf]
    %v10050 = vld [vmem:[#allocation4 + $0x32] sm:$0xf]
    %v10051 = vld [vmem:[#allocation4 + $0x3a] sm:$0xf]
    %v10052 = vld [vmem:[#allocation4 + $0x42] sm:$0xf]
    %v10053 = vld [vmem:[#allocation4 + $0x4a] sm:$0xf]
    %v10054 = vld [vmem:[%s9811] sm:$0xf]
    %v10055 = vld [vmem:[%s9811 + $0x8] sm:$0xf]
    %v10056 = vld [vmem:[%s9811 + $0x10] sm:$0xf]
    %v10057 = vld [vmem:[%s9811 + $0x18] sm:$0xf]
    %v10058 = vld [vmem:[%s9811 + $0x30] sm:$0xf]
    %v10059 = vld [vmem:[%s9811 + $0x38] sm:$0xf]
    %v10060 = vld [vmem:[%s9811 + $0x40] sm:$0xf]
    %v10061 = vld [vmem:[%s9811 + $0x48] sm:$0xf]
    %v10062 = vld [vmem:[%s9811 + $0x1] sm:$0xf]
    %v10063 = vld [vmem:[%s9811 + $0x9] sm:$0xf]
    %v10064 = vld [vmem:[%s9811 + $0x11] sm:$0xf]
    %v10065 = vld [vmem:[%s9811 + $0x19] sm:$0xf]
    %v10066 = vld [vmem:[%s9811 + $0x31] sm:$0xf]
    %v10067 = vld [vmem:[%s9811 + $0x39] sm:$0xf]
    %v10068 = vld [vmem:[%s9811 + $0x41] sm:$0xf]
    %v10069 = vld [vmem:[%s9811 + $0x49] sm:$0xf]
    %v10070 = vld [vmem:[%s9811 + $0x2] sm:$0xf]
    %v10071 = vld [vmem:[%s9811 + $0xa] sm:$0xf]
    %v10072 = vld [vmem:[%s9811 + $0x12] sm:$0xf]
    %v10073 = vld [vmem:[%s9811 + $0x1a] sm:$0xf]
    %v10074 = vld [vmem:[%s9811 + $0x32] sm:$0xf]
    %v10075 = vld [vmem:[%s9811 + $0x3a] sm:$0xf]
    %v10076 = vld [vmem:[%s9811 + $0x42] sm:$0xf]
    %v10077 = vld [vmem:[%s9811 + $0x4a] sm:$0xf]
    %s10078 = scalar_lea.vmem [#allocation4], 16
    %v10079 = vld [vmem:[%s10078] sm:$0xf]
    %v10080 = vld [vmem:[%s10078 + $0x8] sm:$0xf]
    %v10081 = vld [vmem:[%s10078 + $0x10] sm:$0xf]
    %v10082 = vld [vmem:[%s10078 + $0x18] sm:$0xf]
    %v10083 = vld [vmem:[%s10078 + $0x30] sm:$0xf]
    %v10084 = vld [vmem:[%s10078 + $0x38] sm:$0xf]
    %v10085 = vld [vmem:[%s10078 + $0x40] sm:$0xf]
    %v10086 = vld [vmem:[%s10078 + $0x48] sm:$0xf]
    %v10087 = vld [vmem:[%s10078 + $0x1] sm:$0xf]
    %v10088 = vld [vmem:[%s10078 + $0x9] sm:$0xf]
    %v10089 = vld [vmem:[%s10078 + $0x11] sm:$0xf]
    %v10090 = vld [vmem:[%s10078 + $0x19] sm:$0xf]
    %v10091 = vld [vmem:[%s10078 + $0x31] sm:$0xf]
    %v10092 = vld [vmem:[%s10078 + $0x39] sm:$0xf]
    %v10093 = vld [vmem:[%s10078 + $0x41] sm:$0xf]
    %v10094 = vld [vmem:[%s10078 + $0x49] sm:$0xf]
    %v10095 = vld [vmem:[%s10078 + $0x2] sm:$0xf]
    %v10096 = vld [vmem:[%s10078 + $0xa] sm:$0xf]
    %v10097 = vld [vmem:[%s10078 + $0x12] sm:$0xf]
    %v10098 = vld [vmem:[%s10078 + $0x1a] sm:$0xf]
    %v10099 = vld [vmem:[%s10078 + $0x32] sm:$0xf]
    %v10100 = vld [vmem:[%s10078 + $0x3a] sm:$0xf]
    %v10101 = vld [vmem:[%s10078 + $0x42] sm:$0xf]
    %v10102 = vld [vmem:[%s10078 + $0x4a] sm:$0xf]
    %10111 = vrot.lane.b32.xlu0 %v10038, 16
    %v10112 = vpop.permute.xlu0 %10111
    %10113 = vrot.lane.b32.xlu0 %v10039, 16
    %v10114 = vpop.permute.xlu0 %10113
    %10115 = vrot.lane.b32.xlu0 %v10040, 16
    %v10116 = vpop.permute.xlu0 %10115
    %10117 = vrot.lane.b32.xlu0 %v10041, 16
    %v10118 = vpop.permute.xlu0 %10117
    %10119 = vrot.lane.b32.xlu0 %v10042, 16
    %v10120 = vpop.permute.xlu0 %10119
    %10121 = vrot.lane.b32.xlu0 %v10043, 16
    %v10122 = vpop.permute.xlu0 %10121
    %10123 = vrot.lane.b32.xlu0 %v10044, 16
    %v10124 = vpop.permute.xlu0 %10123
    %10125 = vrot.lane.b32.xlu0 %v10045, 16
    %v10126 = vpop.permute.xlu0 %10125
    %10143 = vrot.lane.b32.xlu0 %v10046, 32
    %v10144 = vpop.permute.xlu0 %10143
    %10145 = vrot.lane.b32.xlu0 %v10047, 32
    %v10146 = vpop.permute.xlu0 %10145
    %10147 = vrot.lane.b32.xlu0 %v10048, 32
    %v10148 = vpop.permute.xlu0 %10147
    %10149 = vrot.lane.b32.xlu0 %v10049, 32
    %v10150 = vpop.permute.xlu0 %10149
    %10151 = vrot.lane.b32.xlu0 %v10050, 32
    %v10152 = vpop.permute.xlu0 %10151
    %10153 = vrot.lane.b32.xlu0 %v10051, 32
    %v10154 = vpop.permute.xlu0 %10153
    %10155 = vrot.lane.b32.xlu0 %v10052, 32
    %v10156 = vpop.permute.xlu0 %10155
    %10157 = vrot.lane.b32.xlu0 %v10053, 32
    %v10158 = vpop.permute.xlu0 %10157
    %10175 = vrot.lane.b32.xlu0 %v10054, 48
    %v10176 = vpop.permute.xlu0 %10175
    %10177 = vrot.lane.b32.xlu0 %v10055, 48
    %v10178 = vpop.permute.xlu0 %10177
    %10179 = vrot.lane.b32.xlu0 %v10056, 48
    %v10180 = vpop.permute.xlu0 %10179
    %10181 = vrot.lane.b32.xlu0 %v10057, 48
    %v10182 = vpop.permute.xlu0 %10181
    %10183 = vrot.lane.b32.xlu0 %v10058, 48
    %v10184 = vpop.permute.xlu0 %10183
    %10185 = vrot.lane.b32.xlu0 %v10059, 48
    %v10186 = vpop.permute.xlu0 %10185
    %10187 = vrot.lane.b32.xlu0 %v10060, 48
    %v10188 = vpop.permute.xlu0 %10187
    %10189 = vrot.lane.b32.xlu0 %v10061, 48
    %v10190 = vpop.permute.xlu0 %10189
    %10207 = vrot.lane.b32.xlu0 %v10062, 64
    %v10208 = vpop.permute.xlu0 %10207
    %10209 = vrot.lane.b32.xlu0 %v10063, 64
    %v10210 = vpop.permute.xlu0 %10209
    %10211 = vrot.lane.b32.xlu0 %v10064, 64
    %v10212 = vpop.permute.xlu0 %10211
    %10213 = vrot.lane.b32.xlu0 %v10065, 64
    %v10214 = vpop.permute.xlu0 %10213
    %10215 = vrot.lane.b32.xlu0 %v10066, 64
    %v10216 = vpop.permute.xlu0 %10215
    %10217 = vrot.lane.b32.xlu0 %v10067, 64
    %v10218 = vpop.permute.xlu0 %10217
    %10219 = vrot.lane.b32.xlu0 %v10068, 64
    %v10220 = vpop.permute.xlu0 %10219
    %10221 = vrot.lane.b32.xlu0 %v10069, 64
    %v10222 = vpop.permute.xlu0 %10221
    %10239 = vrot.lane.b32.xlu0 %v10070, 80
    %v10240 = vpop.permute.xlu0 %10239
    %10241 = vrot.lane.b32.xlu0 %v10071, 80
    %v10242 = vpop.permute.xlu0 %10241
    %10243 = vrot.lane.b32.xlu0 %v10072, 80
    %v10244 = vpop.permute.xlu0 %10243
    %10245 = vrot.lane.b32.xlu0 %v10073, 80
    %v10246 = vpop.permute.xlu0 %10245
    %10247 = vrot.lane.b32.xlu0 %v10074, 80
    %v10248 = vpop.permute.xlu0 %10247
    %10249 = vrot.lane.b32.xlu0 %v10075, 80
    %v10250 = vpop.permute.xlu0 %10249
    %10251 = vrot.lane.b32.xlu0 %v10076, 80
    %v10252 = vpop.permute.xlu0 %10251
    %10253 = vrot.lane.b32.xlu0 %v10077, 80
    %v10254 = vpop.permute.xlu0 %10253
    %10271 = vrot.lane.b32.xlu0 %v10079, 96
    %v10272 = vpop.permute.xlu0 %10271
    %10273 = vrot.lane.b32.xlu0 %v10080, 96
    %v10274 = vpop.permute.xlu0 %10273
    %10275 = vrot.lane.b32.xlu0 %v10081, 96
    %v10276 = vpop.permute.xlu0 %10275
    %10277 = vrot.lane.b32.xlu0 %v10082, 96
    %v10278 = vpop.permute.xlu0 %10277
    %10279 = vrot.lane.b32.xlu0 %v10083, 96
    %v10280 = vpop.permute.xlu0 %10279
    %10281 = vrot.lane.b32.xlu0 %v10084, 96
    %v10282 = vpop.permute.xlu0 %10281
    %10283 = vrot.lane.b32.xlu0 %v10085, 96
    %v10284 = vpop.permute.xlu0 %10283
    %10285 = vrot.lane.b32.xlu0 %v10086, 96
    %v10286 = vpop.permute.xlu0 %10285
    %10303 = vrot.lane.b32.xlu0 %v10087, 112
    %v10304 = vpop.permute.xlu0 %10303
    %10305 = vrot.lane.b32.xlu0 %v10088, 112
    %v10306 = vpop.permute.xlu0 %10305
    %10307 = vrot.lane.b32.xlu0 %v10089, 112
    %v10308 = vpop.permute.xlu0 %10307
    %10309 = vrot.lane.b32.xlu0 %v10090, 112
    %v10310 = vpop.permute.xlu0 %10309
    %10311 = vrot.lane.b32.xlu0 %v10091, 112
    %v10312 = vpop.permute.xlu0 %10311
    %10313 = vrot.lane.b32.xlu0 %v10092, 112
    %v10314 = vpop.permute.xlu0 %10313
    %10315 = vrot.lane.b32.xlu0 %v10093, 112
    %v10316 = vpop.permute.xlu0 %10315
    %10317 = vrot.lane.b32.xlu0 %v10094, 112
    %v10318 = vpop.permute.xlu0 %10317
    %v10327 = vsel %vm3078, %v10030, %v10112
    %v10328 = vsel %vm3078, %v10031, %v10114
    %v10329 = vsel %vm3078, %v10032, %v10116
    %v10330 = vsel %vm3078, %v10033, %v10118
    %v10331 = vsel %vm3078, %v10034, %v10120
    %v10332 = vsel %vm3078, %v10035, %v10122
    %v10333 = vsel %vm3078, %v10036, %v10124
    %v10334 = vsel %vm3078, %v10037, %v10126
    %v10335 = vsel %vm3338, %v10327, %v10144
    %v10336 = vsel %vm3338, %v10328, %v10146
    %v10337 = vsel %vm3338, %v10329, %v10148
    %v10338 = vsel %vm3338, %v10330, %v10150
    %v10339 = vsel %vm3338, %v10331, %v10152
    %v10340 = vsel %vm3338, %v10332, %v10154
    %v10341 = vsel %vm3338, %v10333, %v10156
    %v10342 = vsel %vm3338, %v10334, %v10158
    %v10343 = vsel %vm8733, %v10335, %v10176
    %v10344 = vsel %vm8733, %v10336, %v10178
    %v10345 = vsel %vm8733, %v10337, %v10180
    %v10346 = vsel %vm8733, %v10338, %v10182
    %v10347 = vsel %vm8733, %v10339, %v10184
    %v10348 = vsel %vm8733, %v10340, %v10186
    %v10349 = vsel %vm8733, %v10341, %v10188
    %v10350 = vsel %vm8733, %v10342, %v10190
    %v10351 = vsel %vm8767, %v10343, %v10208
    %v10352 = vsel %vm8767, %v10344, %v10210
    %v10353 = vsel %vm8767, %v10345, %v10212
    %v10354 = vsel %vm8767, %v10346, %v10214
    %v10355 = vsel %vm8767, %v10347, %v10216
    %v10356 = vsel %vm8767, %v10348, %v10218
    %v10357 = vsel %vm8767, %v10349, %v10220
    %v10358 = vsel %vm8767, %v10350, %v10222
    %vm10359 = vcmask 654336
    %v10360 = vsel %vm10359, %v10351, %v10240
    %v10361 = vsel %vm10359, %v10352, %v10242
    %v10362 = vsel %vm10359, %v10353, %v10244
    %v10363 = vsel %vm10359, %v10354, %v10246
    %v10364 = vsel %vm10359, %v10355, %v10248
    %v10365 = vsel %vm10359, %v10356, %v10250
    %v10366 = vsel %vm10359, %v10357, %v10252
    %v10367 = vsel %vm10359, %v10358, %v10254
    %vm10368 = vcmask 785408
    %v10369 = vsel %vm10368, %v10360, %v10272
    %v10370 = vsel %vm10368, %v10361, %v10274
    %v10371 = vsel %vm10368, %v10362, %v10276
    %v10372 = vsel %vm10368, %v10363, %v10278
    %v10373 = vsel %vm10368, %v10364, %v10280
    %v10374 = vsel %vm10368, %v10365, %v10282
    %v10375 = vsel %vm10368, %v10366, %v10284
    %v10376 = vsel %vm10368, %v10367, %v10286
    %vm10377 = vcmask 916480
    %v10378 = vsel %vm10377, %v10369, %v10304
    %v10379 = vsel %vm10377, %v10370, %v10306
    %v10380 = vsel %vm10377, %v10371, %v10308
    %v10381 = vsel %vm10377, %v10372, %v10310
    %v10382 = vsel %vm10377, %v10373, %v10312
    %v10383 = vsel %vm10377, %v10374, %v10314
    %v10384 = vsel %vm10377, %v10375, %v10316
    %v10385 = vsel %vm10377, %v10376, %v10318
    %v10402 = vcombine.low %v10378, %v10095
    %v10403 = vcombine.low %v10379, %v10096
    %v10404 = vcombine.low %v10380, %v10097
    %v10405 = vcombine.low %v10381, %v10098
    %v10406 = vcombine.low %v10382, %v10099
    %v10407 = vcombine.low %v10383, %v10100
    %v10408 = vcombine.low %v10384, %v10101
    %v10409 = vcombine.low %v10385, %v10102
    %v10410 = vld [vmem:[%s7] sm:$0xff]
    %v10411 = vld [vmem:[%s7 + $0x8] sm:$0xff]
    %v10412 = vld [vmem:[%s7 + $0x10] sm:$0xff]
    %v10413 = vld [vmem:[%s7 + $0x18] sm:$0xff]
    %v10414 = vld [vmem:[%s7 + $0x20] sm:$0xff]
    %v10415 = vld [vmem:[%s7 + $0x28] sm:$0xff]
    %v10416 = vld [vmem:[%s7 + $0x30] sm:$0xff]
    %v10417 = vld [vmem:[%s7 + $0x38] sm:$0xff]
    %v10418 = vld [vmem:[%s7 + $0x40] sm:$0xff]
    %v10419 = vld [vmem:[%s7 + $0x48] sm:$0xff]
    %v10420 = vld [vmem:[%s7 + $0x50] sm:$0xff]
    %v10421 = vld [vmem:[%s7 + $0x58] sm:$0xff]
    %v10422 = vld [vmem:[%s7 + $0x60] sm:$0xff]
    %v10423 = vld [vmem:[%s7 + $0x68] sm:$0xff]
    %v10424 = vld [vmem:[%s7 + $0x70] sm:$0xff]
    %v10425 = vld [vmem:[%s7 + $0x78] sm:$0xff]
    %v10426 = vld [vmem:[%s7 + $0x80] sm:$0xff]
    %v10427 = vld [vmem:[%s7 + $0x88] sm:$0xff]
    %v10428 = vcombine.low %v10402, %v10403
    %v10429 = vcombine.high %v10402, %v10403
    %v10430 = vcombine.low %v10404, %v10405
    %v10431 = vcombine.high %v10404, %v10405
    %v10432 = vcombine.low %v10406, %v10407
    %v10433 = vcombine.high %v10406, %v10407
    %v10434 = vcombine.low %v10408, %v10409
    %v10435 = vcombine.high %v10408, %v10409
    %v10440 = vsel %vm3078, %v10429, 0
    %v10442 = vsel %vm3078, %v10431, 0
    %v10444 = vsel %vm3078, %v10433, 0
    %v10446 = vsel %vm3078, %v10435, 0
    %10448 = vmatprep.subr.mxu0 0.0
    %10449 = vmatpush1.msra.mxu0 %v10410
    %10450 = vmatprep.subr.mxu0 0.0
    %10451 = vmatpush1.msra.mxu0 %v10411
    %10452 = vmatprep.subr.mxu0 0.0
    %10453 = vmatpush1.msra.mxu0 %v10412
    %10454 = vmatprep.subr.mxu0 0.0
    %10455 = vmatpush1.msra.mxu0 %v10413
    %10456 = vmatprep.subr.mxu0 0.0
    %10457 = vmatpush1.msra.mxu0 %v10414
    %10458 = vmatprep.subr.mxu0 0.0
    %10459 = vmatpush1.msra.mxu0 %v10415
    %10460 = vmatprep.subr.mxu0 0.0
    %10461 = vmatpush1.msra.mxu0 %v10416
    %10462 = vmatprep.subr.mxu0 0.0
    %10463 = vmatpush1.msra.mxu0 %v10417
    %10464 = vmatprep.subr.mxu0 0.0
    %10465 = vmatpush1.msra.mxu0 %v10418
    %10466 = vmatprep.subr.mxu0 0.0
    %10467 = vmatpush1.msra.mxu0 %v10419
    %10468 = vmatprep.subr.mxu0 0.0
    %10469 = vmatpush1.msra.mxu0 %v10420
    %10470 = vmatprep.subr.mxu0 0.0
    %10471 = vmatpush1.msra.mxu0 %v10421
    %10472 = vmatprep.subr.mxu0 0.0
    %10473 = vmatpush1.msra.mxu0 %v10422
    %10474 = vmatprep.subr.mxu0 0.0
    %10475 = vmatpush1.msra.mxu0 %v10423
    %10476 = vmatprep.subr.mxu0 0.0
    %10477 = vmatpush1.msra.mxu0 %v10424
    %10478 = vmatprep.subr.mxu0 0.0
    %10479 = vmatpush1.msra.mxu0 %v10425
    %10480 = vmatprep.subr.mxu0 0.0
    %10481 = vmatpush1.msra.mxu0 %v10426
    %10482 = vmatprep.subr.mxu0 0.0
    %10483 = vmatpush1.msra.mxu0 %v10427
    %10484 = vmatprep.subr.mxu0 0.0
    %10485 = vmatpush1.msra.mxu0 0.0
    %10486 = vmatprep.subr.mxu0 0.0
    %10487 = vmatpush1.msra.mxu0 0.0
    %10488 = vmatprep.subr.mxu0 0.0
    %10489 = vmatpush1.msra.mxu0 0.0
    %10490 = vmatprep.subr.mxu0 0.0
    %10491 = vmatpush1.msra.mxu0 0.0
    %10492 = vmatprep.subr.mxu0 0.0
    %10493 = vmatpush1.msra.mxu0 0.0
    %10494 = vmatprep.subr.mxu0 0.0
    %10495 = vmatpush1.msra.mxu0 0.0
    %10496 = vmatprep.subr.mxu0 0.0
    %10497 = vmatpush1.msra.mxu0 0.0
    %10498 = vmatprep.subr.mxu0 0.0
    %10499 = vmatpush1.msra.mxu0 0.0
    %10500 = vmatprep.subr.mxu0 0.0
    %10501 = vmatpush1.msra.mxu0 0.0
    %10502 = vmatprep.subr.mxu0 0.0
    %10503 = vmatpush1.msra.mxu0 0.0
    %10504 = vmatprep.subr.mxu0 0.0
    %10505 = vmatpush1.msra.mxu0 0.0
    %10506 = vmatprep.subr.mxu0 0.0
    %10507 = vmatpush1.msra.mxu0 0.0
    %10508 = vmatprep.subr.mxu0 0.0
    %10509 = vmatpush1.msra.mxu0 0.0
    %10510 = vmatprep.subr.mxu0 0.0
    %10511 = vmatpush1.msra.mxu0 0.0
    %10512 = vmatprep.mubr.f32.mxu0 %v10440
    %10513 = vmatmul.mubr.f32.gmra.mrb[0].mxu0 %v10428
    %v10514 = vpop.f32.mrb[0].mxu0
    %v10515 = vadd.f32 0.0, %v10514
    %v10516 = vpop.f32.mrb[0].mxu0
    %10517 = vmatprep.mubr.f32.mxu0 %v10442
    %10518 = vmatmul.mubr.f32.gmra.mrb[0].mxu0 %v10430
    %v10519 = vpop.f32.mrb[0].mxu0
    %v10520 = vadd.f32 0.0, %v10519
    %v10521 = vpop.f32.mrb[0].mxu0
    %10522 = vmatprep.mubr.f32.mxu0 %v10444
    %10523 = vmatmul.mubr.f32.gmra.mrb[0].mxu0 %v10432
    %v10524 = vpop.f32.mrb[0].mxu0
    %v10525 = vadd.f32 0.0, %v10524
    %v10526 = vpop.f32.mrb[0].mxu0
    %10527 = vmatprep.mubr.f32.mxu0 %v10446
    %10528 = vmatmul.mubr.f32.gmra.mrb[0].mxu0 %v10434
    %v10529 = vpop.f32.mrb[0].mxu0
    %v10530 = vadd.f32 0.0, %v10529
    %v10531 = vpop.f32.mrb[0].mxu0
    %10532 = vdwg.mxu0
    %v10533 = vsel %vm3338, %v10515, 0.0
    %v10534 = vsel %vm3338, %v10520, 0.0
    %v10535 = vadd.f32 %v10533, %v10534
    %v10536 = vsel %vm3338, %v10525, 0.0
    %v10537 = vadd.f32 %v10535, %v10536
    %v10538 = vsel %vm3338, %v10530, 0.0
    %v10539 = vadd.f32 %v10537, %v10538
    %v10540 = vrot.slane %v10539, 4
    %v10541 = vadd.f32 %v10539, %v10540
    %v10542 = vrot.slane %v10541, 2
    %v10543 = vadd.f32 %v10541, %v10542
    %v10544 = vrot.slane %v10543, 1
    %v10545 = vadd.f32 %v10543, %v10544
    %v10546 = vmul.f32 %v10545, 0.03125
    %v10547 = vmul.f32 %v10515, %v10515
    %v10548 = vmul.f32 %v10520, %v10520
    %v10549 = vmul.f32 %v10525, %v10525
    %v10550 = vmul.f32 %v10530, %v10530
    %v10551 = vsel %vm3338, %v10547, 0.0
    %v10552 = vsel %vm3338, %v10548, 0.0
    %v10553 = vadd.f32 %v10551, %v10552
    %v10554 = vsel %vm3338, %v10549, 0.0
    %v10555 = vadd.f32 %v10553, %v10554
    %v10556 = vsel %vm3338, %v10550, 0.0
    %v10557 = vadd.f32 %v10555, %v10556
    %v10558 = vrot.slane %v10557, 4
    %v10559 = vadd.f32 %v10557, %v10558
    %v10560 = vrot.slane %v10559, 2
    %v10561 = vadd.f32 %v10559, %v10560
    %v10562 = vrot.slane %v10561, 1
    %v10563 = vadd.f32 %v10561, %v10562
    %v10564 = vmul.f32 %v10563, 0.03125
    %v10565 = vmul.f32 %v10546, %v10546
    %v10566 = vsub.f32 %v10564, %v10565
    %v10567 = vmax.f32 %v10566, 0.0
    %v10568 = vld [vmem:[%s8] sm:$0x1]
    %v10569 = vadd.f32 %v10567, 1e-05
    %v10570 = vrsqrt.pop %v10569
    %v10571 = vmul.f32 %v10568, %v10570
    %v10572 = vld [vmem:[%s9] sm:$0x1]
    %v10573 = vmul.f32 %v10546, %v10571
    %v10574 = vsub.f32 %v10572, %v10573
    %v10576 = vlaneseq
    %v10577 = vshrl.u32 %v10576, 7
    %v10578 = vsub.s32 0, %v10577
    %v10579 = vrot.slane %v10571, %v10578
    %v10581 = vmul.f32 %v10515, %v10579
    %v10582 = vmul.f32 %v10520, %v10579
    %v10583 = vmul.f32 %v10525, %v10579
    %v10584 = vmul.f32 %v10530, %v10579
    %v10586 = vlaneseq
    %v10587 = vshrl.u32 %v10586, 7
    %v10588 = vsub.s32 0, %v10587
    %v10589 = vrot.slane %v10574, %v10588
    %v10591 = vadd.f32 %v10581, %v10589
    %v10592 = vadd.f32 %v10582, %v10589
    %v10593 = vadd.f32 %v10583, %v10589
    %v10594 = vadd.f32 %v10584, %v10589
    %v10595 = vmax.f32 %v10591, 0.0
    %v10596 = vmax.f32 %v10592, 0.0
    %v10597 = vmax.f32 %v10593, 0.0
    %v10598 = vmax.f32 %v10594, 0.0
    %10599 = vst.msk [vmem:[#allocation6] sm:$0xff] %vm3338, %v10595
    %10600 = vst.msk [vmem:[#allocation6 + $0x8] sm:$0xff] %vm3338, %v10596
    %10601 = vst.msk [vmem:[#allocation6 + $0x10] sm:$0xff] %vm3338, %v10597
    %10602 = vst.msk [vmem:[#allocation6 + $0x18] sm:$0xff] %vm3338, %v10598
    %v10607 = vcombine.high %v10595, %v10595
    %v10609 = vunpack.c.l.s4 1983009808
    %v10610 = vunpack.c.0.s8 %v10609
    %v10611 = vlaneseq
    %v10612 = vshrl.u32 %v10611, 7
    %v10613 = vsub.s32 %v10610, %v10612
    %v10614 = vrot.slane %v10595, %v10613
    %v10616 = vunpack.c.l.s4 1983009808
    %v10617 = vunpack.c.0.s8 %v10616
    %v10618 = vlaneseq
    %v10619 = vshrl.u32 %v10618, 7
    %v10620 = vsub.s32 %v10617, %v10619
    %v10621 = vrot.slane %v10607, %v10620
    %v10622 = vcombine.high %v10614, %v10614
    %v10623 = vcombine.high %v10621, %v10621
    %v10624 = vcombine.high %v10596, %v10596
    %v10626 = vunpack.c.l.s4 1983009808
    %v10627 = vunpack.c.0.s8 %v10626
    %v10628 = vlaneseq
    %v10629 = vshrl.u32 %v10628, 7
    %v10630 = vsub.s32 %v10627, %v10629
    %v10631 = vrot.slane %v10596, %v10630
    %v10633 = vunpack.c.l.s4 1983009808
    %v10634 = vunpack.c.0.s8 %v10633
    %v10635 = vlaneseq
    %v10636 = vshrl.u32 %v10635, 7
    %v10637 = vsub.s32 %v10634, %v10636
    %v10638 = vrot.slane %v10624, %v10637
    %v10639 = vcombine.high %v10631, %v10631
    %v10640 = vcombine.high %v10638, %v10638
    %v10641 = vcombine.high %v10597, %v10597
    %v10643 = vunpack.c.l.s4 1983009808
    %v10644 = vunpack.c.0.s8 %v10643
    %v10645 = vlaneseq
    %v10646 = vshrl.u32 %v10645, 7
    %v10647 = vsub.s32 %v10644, %v10646
    %v10648 = vrot.slane %v10597, %v10647
    %v10650 = vunpack.c.l.s4 1983009808
    %v10651 = vunpack.c.0.s8 %v10650
    %v10652 = vlaneseq
    %v10653 = vshrl.u32 %v10652, 7
    %v10654 = vsub.s32 %v10651, %v10653
    %v10655 = vrot.slane %v10641, %v10654
    %v10656 = vcombine.high %v10648, %v10648
    %v10657 = vcombine.high %v10655, %v10655
    %v10658 = vcombine.high %v10598, %v10598
    %v10660 = vunpack.c.l.s4 1983009808
    %v10661 = vunpack.c.0.s8 %v10660
    %v10662 = vlaneseq
    %v10663 = vshrl.u32 %v10662, 7
    %v10664 = vsub.s32 %v10661, %v10663
    %v10665 = vrot.slane %v10598, %v10664
    %v10667 = vunpack.c.l.s4 1983009808
    %v10668 = vunpack.c.0.s8 %v10667
    %v10669 = vlaneseq
    %v10670 = vshrl.u32 %v10669, 7
    %v10671 = vsub.s32 %v10668, %v10670
    %v10672 = vrot.slane %v10658, %v10671
    %v10673 = vcombine.high %v10665, %v10665
    %v10674 = vcombine.high %v10672, %v10672
    %v10691 = vrot.slane %v10614, 7
    %v10692 = vrot.slane %v10691, 2
    %v10693 = vrot.slane %v10622, 7
    %v10694 = vrot.slane %v10693, 2
    %v10695 = vrot.slane %v10621, 7
    %v10696 = vrot.slane %v10695, 2
    %v10697 = vrot.slane %v10623, 7
    %v10698 = vrot.slane %v10697, 2
    %v10699 = vrot.slane %v10631, 7
    %v10700 = vrot.slane %v10699, 2
    %v10701 = vrot.slane %v10639, 7
    %v10702 = vrot.slane %v10701, 2
    %v10703 = vrot.slane %v10638, 7
    %v10704 = vrot.slane %v10703, 2
    %v10705 = vrot.slane %v10640, 7
    %v10706 = vrot.slane %v10705, 2
    %v10707 = vrot.slane %v10648, 7
    %v10708 = vrot.slane %v10707, 2
    %v10709 = vrot.slane %v10656, 7
    %v10710 = vrot.slane %v10709, 2
    %v10711 = vrot.slane %v10655, 7
    %v10712 = vrot.slane %v10711, 2
    %v10713 = vrot.slane %v10657, 7
    %v10714 = vrot.slane %v10713, 2
    %v10715 = vrot.slane %v10665, 7
    %v10716 = vrot.slane %v10715, 2
    %v10717 = vrot.slane %v10673, 7
    %v10718 = vrot.slane %v10717, 2
    %v10719 = vrot.slane %v10672, 7
    %v10720 = vrot.slane %v10719, 2
    %v10721 = vrot.slane %v10674, 7
    %v10722 = vrot.slane %v10721, 2
    %v10739 = vmax.f32 %v10614, %v10692
    %v10740 = vmax.f32 %v10622, %v10694
    %v10741 = vmax.f32 %v10621, %v10696
    %v10742 = vmax.f32 %v10623, %v10698
    %v10743 = vmax.f32 %v10631, %v10700
    %v10744 = vmax.f32 %v10639, %v10702
    %v10745 = vmax.f32 %v10638, %v10704
    %v10746 = vmax.f32 %v10640, %v10706
    %v10747 = vmax.f32 %v10648, %v10708
    %v10748 = vmax.f32 %v10656, %v10710
    %v10749 = vmax.f32 %v10655, %v10712
    %v10750 = vmax.f32 %v10657, %v10714
    %v10751 = vmax.f32 %v10665, %v10716
    %v10752 = vmax.f32 %v10673, %v10718
    %v10753 = vmax.f32 %v10672, %v10720
    %v10754 = vmax.f32 %v10674, %v10722
    %v10755 = vmax.f32 %v10739, %v10741
    %v10756 = vmax.f32 %v10740, %v10742
    %v10757 = vmax.f32 %v10743, %v10745
    %v10758 = vmax.f32 %v10744, %v10746
    %v10759 = vmax.f32 %v10747, %v10749
    %v10760 = vmax.f32 %v10748, %v10750
    %v10761 = vmax.f32 %v10751, %v10753
    %v10762 = vmax.f32 %v10752, %v10754
    %vm10763 = vcmask 257024
    %10764 = vst.msk [vmem:[#allocation5] sm:$0xf] %vm10763, 0.0
    %10765 = vst.msk [vmem:[#allocation5 + $0x10] sm:$0xf] %vm10763, 0.0
    %s10766 = scalar_lea.vmem [#allocation5], 12
    %10767 = vst.msk [vmem:[%s10766] sm:$0xf] %vm10763, 0.0
    %10768 = vst.msk [vmem:[%s10766 + $0x10] sm:$0xf] %vm10763, 0.0
    %s10769 = scalar_lea.vmem [#allocation5], 4
    %vm10770 = vcmask 253952
    %10771 = vst.msk [vmem:[%s10769] sm:$0x1] %vm10770, 0.0
    %10772 = vst.msk [vmem:[%s10769 + $0x4] sm:$0x1] %vm10770, 0.0
    %10773 = vst.msk [vmem:[%s10769 + $0x10] sm:$0x1] %vm10770, 0.0
    %10774 = vst.msk [vmem:[%s10769 + $0x14] sm:$0x1] %vm10770, 0.0
    %10775 = vst.msk [vmem:[%s10769 + $0x3] sm:$0x1] %vm10770, 0.0
    %10776 = vst.msk [vmem:[%s10769 + $0x7] sm:$0x1] %vm10770, 0.0
    %10777 = vst.msk [vmem:[%s10769 + $0x13] sm:$0x1] %vm10770, 0.0
    %10778 = vst.msk [vmem:[%s10769 + $0x17] sm:$0x1] %vm10770, 0.0
    %v10787 = vlaneseq
    %v10788 = vshrl.u32 %v10787, 7
    %v10789 = vsub.s32 0, %v10788
    %v10790 = vrot.slane %v10755, %v10789
    %v10791 = vlaneseq
    %v10792 = vshrl.u32 %v10791, 7
    %v10793 = vsub.s32 0, %v10792
    %v10794 = vrot.slane %v10756, %v10793
    %v10795 = vlaneseq
    %v10796 = vshrl.u32 %v10795, 7
    %v10797 = vsub.s32 0, %v10796
    %v10798 = vrot.slane %v10757, %v10797
    %v10799 = vlaneseq
    %v10800 = vshrl.u32 %v10799, 7
    %v10801 = vsub.s32 0, %v10800
    %v10802 = vrot.slane %v10758, %v10801
    %v10803 = vlaneseq
    %v10804 = vshrl.u32 %v10803, 7
    %v10805 = vsub.s32 0, %v10804
    %v10806 = vrot.slane %v10759, %v10805
    %v10807 = vlaneseq
    %v10808 = vshrl.u32 %v10807, 7
    %v10809 = vsub.s32 0, %v10808
    %v10810 = vrot.slane %v10760, %v10809
    %v10811 = vlaneseq
    %v10812 = vshrl.u32 %v10811, 7
    %v10813 = vsub.s32 0, %v10812
    %v10814 = vrot.slane %v10761, %v10813
    %v10815 = vlaneseq
    %v10816 = vshrl.u32 %v10815, 7
    %v10817 = vsub.s32 0, %v10816
    %v10818 = vrot.slane %v10762, %v10817
    %v10819 = vsel %vm7844, %v10794, %v10790
    %v10820 = vsel %vm7844, %v10802, %v10798
    %v10821 = vsel %vm7844, %v10810, %v10806
    %v10822 = vsel %vm7844, %v10818, %v10814
    %vm10827 = vcmask 254976
    %10828 = vst.msk [vmem:[%s10769 + $0x1] sm:$0x3] %vm10827, %v10819
    %10829 = vst.msk [vmem:[%s10769 + $0x5] sm:$0x3] %vm10827, %v10820
    %10830 = vst.msk [vmem:[%s10769 + $0x11] sm:$0x3] %vm10827, %v10821
    %10831 = vst.msk [vmem:[%s10769 + $0x15] sm:$0x3] %vm10827, %v10822
    %v10832 = vld [vmem:[#allocation5] sm:$0x3]
    %v10833 = vld [vmem:[#allocation5 + $0x4] sm:$0x3]
    %v10834 = vld [vmem:[#allocation5 + $0x10] sm:$0x3]
    %v10835 = vld [vmem:[#allocation5 + $0x14] sm:$0x3]
    %v10836 = vld [vmem:[#allocation5 + $0x1] sm:$0x3]
    %v10837 = vld [vmem:[#allocation5 + $0x5] sm:$0x3]
    %v10838 = vld [vmem:[#allocation5 + $0x11] sm:$0x3]
    %v10839 = vld [vmem:[#allocation5 + $0x15] sm:$0x3]
    %v10840 = vld [vmem:[#allocation5 + $0x2] sm:$0x3]
    %v10841 = vld [vmem:[#allocation5 + $0x6] sm:$0x3]
    %v10842 = vld [vmem:[#allocation5 + $0x12] sm:$0x3]
    %v10843 = vld [vmem:[#allocation5 + $0x16] sm:$0x3]
    %v10844 = vld [vmem:[%s10769] sm:$0x3]
    %v10845 = vld [vmem:[%s10769 + $0x4] sm:$0x3]
    %v10846 = vld [vmem:[%s10769 + $0x10] sm:$0x3]
    %v10847 = vld [vmem:[%s10769 + $0x14] sm:$0x3]
    %v10848 = vld [vmem:[%s10769 + $0x1] sm:$0x3]
    %v10849 = vld [vmem:[%s10769 + $0x5] sm:$0x3]
    %v10850 = vld [vmem:[%s10769 + $0x11] sm:$0x3]
    %v10851 = vld [vmem:[%s10769 + $0x15] sm:$0x3]
    %v10852 = vld [vmem:[%s10769 + $0x2] sm:$0x3]
    %v10853 = vld [vmem:[%s10769 + $0x6] sm:$0x3]
    %v10854 = vld [vmem:[%s10769 + $0x12] sm:$0x3]
    %v10855 = vld [vmem:[%s10769 + $0x16] sm:$0x3]
    %s10856 = scalar_lea.vmem [#allocation5], 8
    %v10857 = vld [vmem:[%s10856] sm:$0x3]
    %v10858 = vld [vmem:[%s10856 + $0x4] sm:$0x3]
    %v10859 = vld [vmem:[%s10856 + $0x10] sm:$0x3]
    %v10860 = vld [vmem:[%s10856 + $0x14] sm:$0x3]
    %v10861 = vld [vmem:[%s10856 + $0x1] sm:$0x3]
    %v10862 = vld [vmem:[%s10856 + $0x5] sm:$0x3]
    %v10863 = vld [vmem:[%s10856 + $0x11] sm:$0x3]
    %v10864 = vld [vmem:[%s10856 + $0x15] sm:$0x3]
    %v10865 = vld [vmem:[%s10856 + $0x2] sm:$0x3]
    %v10866 = vld [vmem:[%s10856 + $0x6] sm:$0x3]
    %v10867 = vld [vmem:[%s10856 + $0x12] sm:$0x3]
    %v10868 = vld [vmem:[%s10856 + $0x16] sm:$0x3]
    %10873 = vrot.lane.b32.xlu0 %v10836, 32
    %v10874 = vpop.permute.xlu0 %10873
    %10875 = vrot.lane.b32.xlu0 %v10837, 32
    %v10876 = vpop.permute.xlu0 %10875
    %10877 = vrot.lane.b32.xlu0 %v10838, 32
    %v10878 = vpop.permute.xlu0 %10877
    %10879 = vrot.lane.b32.xlu0 %v10839, 32
    %v10880 = vpop.permute.xlu0 %10879
    %10889 = vrot.lane.b32.xlu0 %v10840, 64
    %v10890 = vpop.permute.xlu0 %10889
    %10891 = vrot.lane.b32.xlu0 %v10841, 64
    %v10892 = vpop.permute.xlu0 %10891
    %10893 = vrot.lane.b32.xlu0 %v10842, 64
    %v10894 = vpop.permute.xlu0 %10893
    %10895 = vrot.lane.b32.xlu0 %v10843, 64
    %v10896 = vpop.permute.xlu0 %10895
    %10905 = vrot.lane.b32.xlu0 %v10844, 96
    %v10906 = vpop.permute.xlu0 %10905
    %10907 = vrot.lane.b32.xlu0 %v10845, 96
    %v10908 = vpop.permute.xlu0 %10907
    %10909 = vrot.lane.b32.xlu0 %v10846, 96
    %v10910 = vpop.permute.xlu0 %10909
    %10911 = vrot.lane.b32.xlu0 %v10847, 96
    %v10912 = vpop.permute.xlu0 %10911
    %10921 = vrot.lane.b32.xlu0 %v10852, 32
    %v10922 = vpop.permute.xlu0 %10921
    %10923 = vrot.lane.b32.xlu0 %v10853, 32
    %v10924 = vpop.permute.xlu0 %10923
    %10925 = vrot.lane.b32.xlu0 %v10854, 32
    %v10926 = vpop.permute.xlu0 %10925
    %10927 = vrot.lane.b32.xlu0 %v10855, 32
    %v10928 = vpop.permute.xlu0 %10927
    %10937 = vrot.lane.b32.xlu0 %v10857, 64
    %v10938 = vpop.permute.xlu0 %10937
    %10939 = vrot.lane.b32.xlu0 %v10858, 64
    %v10940 = vpop.permute.xlu0 %10939
    %10941 = vrot.lane.b32.xlu0 %v10859, 64
    %v10942 = vpop.permute.xlu0 %10941
    %10943 = vrot.lane.b32.xlu0 %v10860, 64
    %v10944 = vpop.permute.xlu0 %10943
    %10953 = vrot.lane.b32.xlu0 %v10861, 96
    %v10954 = vpop.permute.xlu0 %10953
    %10955 = vrot.lane.b32.xlu0 %v10862, 96
    %v10956 = vpop.permute.xlu0 %10955
    %10957 = vrot.lane.b32.xlu0 %v10863, 96
    %v10958 = vpop.permute.xlu0 %10957
    %10959 = vrot.lane.b32.xlu0 %v10864, 96
    %v10960 = vpop.permute.xlu0 %10959
    %v10965 = vsel %vm3338, %v10832, %v10874
    %v10966 = vsel %vm3338, %v10833, %v10876
    %v10967 = vsel %vm3338, %v10834, %v10878
    %v10968 = vsel %vm3338, %v10835, %v10880
    %v10969 = vsel %vm8767, %v10965, %v10890
    %v10970 = vsel %vm8767, %v10966, %v10892
    %v10971 = vsel %vm8767, %v10967, %v10894
    %v10972 = vsel %vm8767, %v10968, %v10896
    %v10973 = vsel %vm10368, %v10969, %v10906
    %v10974 = vsel %vm10368, %v10970, %v10908
    %v10975 = vsel %vm10368, %v10971, %v10910
    %v10976 = vsel %vm10368, %v10972, %v10912
    %v10977 = vsel %vm3338, %v10848, %v10922
    %v10978 = vsel %vm3338, %v10849, %v10924
    %v10979 = vsel %vm3338, %v10850, %v10926
    %v10980 = vsel %vm3338, %v10851, %v10928
    %v10981 = vsel %vm8767, %v10977, %v10938
    %v10982 = vsel %vm8767, %v10978, %v10940
    %v10983 = vsel %vm8767, %v10979, %v10942
    %v10984 = vsel %vm8767, %v10980, %v10944
    %v10985 = vsel %vm10368, %v10981, %v10954
    %v10986 = vsel %vm10368, %v10982, %v10956
    %v10987 = vsel %vm10368, %v10983, %v10958
    %v10988 = vsel %vm10368, %v10984, %v10960
    %v11001 = vcombine.low %v10973, %v10985
    %v11003 = vunpack.c.l.s4 1983009808
    %v11004 = vunpack.c.0.s8 %v11003
    %v11005 = vlaneseq
    %v11006 = vshrl.u32 %v11005, 7
    %v11007 = vsub.s32 %v11004, %v11006
    %v11008 = vrot.slane %v11001, %v11007
    %v11010 = vunpack.c.l.s4 1983009808
    %v11011 = vunpack.c.0.s8 %v11010
    %v11012 = vlaneseq
    %v11013 = vshrl.u32 %v11012, 7
    %v11014 = vsub.s32 %v11011, %v11013
    %v11015 = vrot.slane %v10865, %v11014
    %v11016 = vcombine.low %v11008, %v11015
    %v11017 = vcombine.low %v10974, %v10986
    %v11019 = vunpack.c.l.s4 1983009808
    %v11020 = vunpack.c.0.s8 %v11019
    %v11021 = vlaneseq
    %v11022 = vshrl.u32 %v11021, 7
    %v11023 = vsub.s32 %v11020, %v11022
    %v11024 = vrot.slane %v11017, %v11023
    %v11026 = vunpack.c.l.s4 1983009808
    %v11027 = vunpack.c.0.s8 %v11026
    %v11028 = vlaneseq
    %v11029 = vshrl.u32 %v11028, 7
    %v11030 = vsub.s32 %v11027, %v11029
    %v11031 = vrot.slane %v10866, %v11030
    %v11032 = vcombine.low %v11024, %v11031
    %v11033 = vcombine.low %v10975, %v10987
    %v11035 = vunpack.c.l.s4 1983009808
    %v11036 = vunpack.c.0.s8 %v11035
    %v11037 = vlaneseq
    %v11038 = vshrl.u32 %v11037, 7
    %v11039 = vsub.s32 %v11036, %v11038
    %v11040 = vrot.slane %v11033, %v11039
    %v11042 = vunpack.c.l.s4 1983009808
    %v11043 = vunpack.c.0.s8 %v11042
    %v11044 = vlaneseq
    %v11045 = vshrl.u32 %v11044, 7
    %v11046 = vsub.s32 %v11043, %v11045
    %v11047 = vrot.slane %v10867, %v11046
    %v11048 = vcombine.low %v11040, %v11047
    %v11049 = vcombine.low %v10976, %v10988
    %v11051 = vunpack.c.l.s4 1983009808
    %v11052 = vunpack.c.0.s8 %v11051
    %v11053 = vlaneseq
    %v11054 = vshrl.u32 %v11053, 7
    %v11055 = vsub.s32 %v11052, %v11054
    %v11056 = vrot.slane %v11049, %v11055
    %v11058 = vunpack.c.l.s4 1983009808
    %v11059 = vunpack.c.0.s8 %v11058
    %v11060 = vlaneseq
    %v11061 = vshrl.u32 %v11060, 7
    %v11062 = vsub.s32 %v11059, %v11061
    %v11063 = vrot.slane %v10868, %v11062
    %v11064 = vcombine.low %v11056, %v11063
    %v11065 = vld [vmem:[%s10] sm:$0xff]
    %v11066 = vld [vmem:[%s10 + $0x8] sm:$0xff]
    %v11067 = vld [vmem:[%s10 + $0x10] sm:$0xff]
    %v11068 = vld [vmem:[%s10 + $0x18] sm:$0xff]
    %v11069 = vld [vmem:[%s10 + $0x20] sm:$0xff]
    %v11070 = vld [vmem:[%s10 + $0x28] sm:$0xff]
    %v11071 = vld [vmem:[%s10 + $0x30] sm:$0xff]
    %v11072 = vld [vmem:[%s10 + $0x38] sm:$0xff]
    %v11073 = vld [vmem:[%s10 + $0x40] sm:$0xff]
    %v11074 = vld [vmem:[%s10 + $0x48] sm:$0xff]
    %v11075 = vld [vmem:[%s10 + $0x50] sm:$0xff]
    %v11076 = vld [vmem:[%s10 + $0x58] sm:$0xff]
    %v11077 = vld [vmem:[%s10 + $0x60] sm:$0xff]
    %v11078 = vld [vmem:[%s10 + $0x68] sm:$0xff]
    %v11079 = vld [vmem:[%s10 + $0x70] sm:$0xff]
    %v11080 = vld [vmem:[%s10 + $0x78] sm:$0xff]
    %v11081 = vld [vmem:[%s10 + $0x80] sm:$0xff]
    %v11082 = vld [vmem:[%s10 + $0x88] sm:$0xff]
    %v11083 = vld [vmem:[%s10 + $0x90] sm:$0xff]
    %v11084 = vld [vmem:[%s10 + $0x98] sm:$0xff]
    %v11085 = vld [vmem:[%s10 + $0xa0] sm:$0xff]
    %v11086 = vld [vmem:[%s10 + $0xa8] sm:$0xff]
    %v11087 = vld [vmem:[%s10 + $0xb0] sm:$0xff]
    %v11088 = vld [vmem:[%s10 + $0xb8] sm:$0xff]
    %v11089 = vld [vmem:[%s10 + $0xc0] sm:$0xff]
    %v11090 = vld [vmem:[%s10 + $0xc8] sm:$0xff]
    %v11091 = vld [vmem:[%s10 + $0xd0] sm:$0xff]
    %v11092 = vld [vmem:[%s10 + $0xd8] sm:$0xff]
    %v11093 = vld [vmem:[%s10 + $0xe0] sm:$0xff]
    %v11094 = vld [vmem:[%s10 + $0xe8] sm:$0xff]
    %v11095 = vld [vmem:[%s10 + $0xf0] sm:$0xff]
    %v11096 = vld [vmem:[%s10 + $0xf8] sm:$0xff]
    %v11097 = vld [vmem:[%s10 + $0x100] sm:$0xff]
    %v11098 = vld [vmem:[%s10 + $0x108] sm:$0xff]
    %v11099 = vld [vmem:[%s10 + $0x110] sm:$0xff]
    %v11100 = vld [vmem:[%s10 + $0x118] sm:$0xff]
    %v11101 = vcombine.low %v11016, %v11032
    %v11102 = vcombine.high %v11016, %v11032
    %v11103 = vcombine.low %v11048, %v11064
    %v11104 = vcombine.high %v11048, %v11064
    %v11106 = vunpack.c.l.s4 1983009808
    %v11107 = vunpack.c.0.s8 %v11106
    %v11108 = vlaneseq
    %v11109 = vshrl.u32 %v11108, 7
    %v11110 = vsub.s32 %v11107, %v11109
    %v11111 = vrot.slane %v11101, %v11110
    %v11113 = vunpack.c.l.s4 1983009808
    %v11114 = vunpack.c.0.s8 %v11113
    %v11115 = vlaneseq
    %v11116 = vshrl.u32 %v11115, 7
    %v11117 = vsub.s32 %v11114, %v11116
    %v11118 = vrot.slane %v11102, %v11117
    %v11120 = vunpack.c.l.s4 1983009808
    %v11121 = vunpack.c.0.s8 %v11120
    %v11122 = vlaneseq
    %v11123 = vshrl.u32 %v11122, 7
    %v11124 = vsub.s32 %v11121, %v11123
    %v11125 = vrot.slane %v11103, %v11124
    %v11127 = vunpack.c.l.s4 1983009808
    %v11128 = vunpack.c.0.s8 %v11127
    %v11129 = vlaneseq
    %v11130 = vshrl.u32 %v11129, 7
    %v11131 = vsub.s32 %v11128, %v11130
    %v11132 = vrot.slane %v11104, %v11131
    %v11133 = vcombine.low %v11111, %v11125
    %v11134 = vcombine.high %v11111, %v11125
    %v11135 = vcombine.low %v11118, %v11132
    %v11138 = vsel %vm3338, %v11135, 0
    %11140 = vmatprep.subr.mxu0 0.0
    %11141 = vmatpush1.msra.mxu0 %v11065
    %11142 = vmatprep.subr.mxu0 0.0
    %11143 = vmatpush1.msra.mxu0 %v11066
    %11144 = vmatprep.subr.mxu0 0.0
    %11145 = vmatpush1.msra.mxu0 %v11067
    %11146 = vmatprep.subr.mxu0 0.0
    %11147 = vmatpush1.msra.mxu0 %v11068
    %11148 = vmatprep.subr.mxu0 0.0
    %11149 = vmatpush1.msra.mxu0 %v11069
    %11150 = vmatprep.subr.mxu0 0.0
    %11151 = vmatpush1.msra.mxu0 %v11070
    %11152 = vmatprep.subr.mxu0 0.0
    %11153 = vmatpush1.msra.mxu0 %v11071
    %11154 = vmatprep.subr.mxu0 0.0
    %11155 = vmatpush1.msra.mxu0 %v11072
    %11156 = vmatprep.subr.mxu0 0.0
    %11157 = vmatpush1.msra.mxu0 %v11073
    %11158 = vmatprep.subr.mxu0 0.0
    %11159 = vmatpush1.msra.mxu0 %v11074
    %11160 = vmatprep.subr.mxu0 0.0
    %11161 = vmatpush1.msra.mxu0 %v11075
    %11162 = vmatprep.subr.mxu0 0.0
    %11163 = vmatpush1.msra.mxu0 %v11076
    %11164 = vmatprep.subr.mxu0 0.0
    %11165 = vmatpush1.msra.mxu0 %v11077
    %11166 = vmatprep.subr.mxu0 0.0
    %11167 = vmatpush1.msra.mxu0 %v11078
    %11168 = vmatprep.subr.mxu0 0.0
    %11169 = vmatpush1.msra.mxu0 %v11079
    %11170 = vmatprep.subr.mxu0 0.0
    %11171 = vmatpush1.msra.mxu0 %v11080
    %11172 = vmatprep.subr.mxu0 0.0
    %11173 = vmatpush1.msra.mxu0 %v11081
    %11174 = vmatprep.subr.mxu0 0.0
    %11175 = vmatpush1.msra.mxu0 %v11082
    %11176 = vmatprep.subr.mxu0 0.0
    %11177 = vmatpush1.msra.mxu0 %v11083
    %11178 = vmatprep.subr.mxu0 0.0
    %11179 = vmatpush1.msra.mxu0 %v11084
    %11180 = vmatprep.subr.mxu0 0.0
    %11181 = vmatpush1.msra.mxu0 %v11085
    %11182 = vmatprep.subr.mxu0 0.0
    %11183 = vmatpush1.msra.mxu0 %v11086
    %11184 = vmatprep.subr.mxu0 0.0
    %11185 = vmatpush1.msra.mxu0 %v11087
    %11186 = vmatprep.subr.mxu0 0.0
    %11187 = vmatpush1.msra.mxu0 %v11088
    %11188 = vmatprep.subr.mxu0 0.0
    %11189 = vmatpush1.msra.mxu0 %v11089
    %11190 = vmatprep.subr.mxu0 0.0
    %11191 = vmatpush1.msra.mxu0 %v11090
    %11192 = vmatprep.subr.mxu0 0.0
    %11193 = vmatpush1.msra.mxu0 %v11091
    %11194 = vmatprep.subr.mxu0 0.0
    %11195 = vmatpush1.msra.mxu0 %v11092
    %11196 = vmatprep.subr.mxu0 0.0
    %11197 = vmatpush1.msra.mxu0 %v11093
    %11198 = vmatprep.subr.mxu0 0.0
    %11199 = vmatpush1.msra.mxu0 %v11094
    %11200 = vmatprep.subr.mxu0 0.0
    %11201 = vmatpush1.msra.mxu0 %v11095
    %11202 = vmatprep.subr.mxu0 0.0
    %11203 = vmatpush1.msra.mxu0 %v11096
    %11204 = vmatprep.mubr.f32.mxu0 %v11134
    %11205 = vmatmul.mubr.f32.gmra.mrb[0].mxu0 %v11133
    %v11206 = vpop.f32.mrb[0].mxu0
    %v11207 = vadd.f32 0.0, %v11206
    %v11208 = vpop.f32.mrb[0].mxu0
    %11209 = vdwg.mxu0
    %11210 = vmatprep.subr.mxu0 0.0
    %11211 = vmatpush1.msra.mxu0 %v11097
    %11212 = vmatprep.subr.mxu0 0.0
    %11213 = vmatpush1.msra.mxu0 %v11098
    %11214 = vmatprep.subr.mxu0 0.0
    %11215 = vmatpush1.msra.mxu0 %v11099
    %11216 = vmatprep.subr.mxu0 0.0
    %11217 = vmatpush1.msra.mxu0 %v11100
    %11218 = vmatprep.subr.mxu0 0.0
    %11219 = vmatpush1.msra.mxu0 0.0
    %11220 = vmatprep.subr.mxu0 0.0
    %11221 = vmatpush1.msra.mxu0 0.0
    %11222 = vmatprep.subr.mxu0 0.0
    %11223 = vmatpush1.msra.mxu0 0.0
    %11224 = vmatprep.subr.mxu0 0.0
    %11225 = vmatpush1.msra.mxu0 0.0
    %11226 = vmatprep.subr.mxu0 0.0
    %11227 = vmatpush1.msra.mxu0 0.0
    %11228 = vmatprep.subr.mxu0 0.0
    %11229 = vmatpush1.msra.mxu0 0.0
    %11230 = vmatprep.subr.mxu0 0.0
    %11231 = vmatpush1.msra.mxu0 0.0
    %11232 = vmatprep.subr.mxu0 0.0
    %11233 = vmatpush1.msra.mxu0 0.0
    %11234 = vmatprep.subr.mxu0 0.0
    %11235 = vmatpush1.msra.mxu0 0.0
    %11236 = vmatprep.subr.mxu0 0.0
    %11237 = vmatpush1.msra.mxu0 0.0
    %11238 = vmatprep.subr.mxu0 0.0
    %11239 = vmatpush1.msra.mxu0 0.0
    %11240 = vmatprep.subr.mxu0 0.0
    %11241 = vmatpush1.msra.mxu0 0.0
    %11242 = vmatprep.subr.mxu0 0.0
    %11243 = vmatpush1.msra.mxu0 0.0
    %11244 = vmatprep.subr.mxu0 0.0
    %11245 = vmatpush1.msra.mxu0 0.0
    %11246 = vmatprep.subr.mxu0 0.0
    %11247 = vmatpush1.msra.mxu0 0.0
    %11248 = vmatprep.subr.mxu0 0.0
    %11249 = vmatpush1.msra.mxu0 0.0
    %11250 = vmatprep.subr.mxu0 0.0
    %11251 = vmatpush1.msra.mxu0 0.0
    %11252 = vmatprep.subr.mxu0 0.0
    %11253 = vmatpush1.msra.mxu0 0.0
    %11254 = vmatprep.subr.mxu0 0.0
    %11255 = vmatpush1.msra.mxu0 0.0
    %11256 = vmatprep.subr.mxu0 0.0
    %11257 = vmatpush1.msra.mxu0 0.0
    %11258 = vmatprep.subr.mxu0 0.0
    %11259 = vmatpush1.msra.mxu0 0.0
    %11260 = vmatprep.subr.mxu0 0.0
    %11261 = vmatpush1.msra.mxu0 0.0
    %11262 = vmatprep.subr.mxu0 0.0
    %11263 = vmatpush1.msra.mxu0 0.0
    %11264 = vmatprep.subr.mxu0 0.0
    %11265 = vmatpush1.msra.mxu0 0.0
    %11266 = vmatprep.subr.mxu0 0.0
    %11267 = vmatpush1.msra.mxu0 0.0
    %11268 = vmatprep.subr.mxu0 0.0
    %11269 = vmatpush1.msra.mxu0 0.0
    %11270 = vmatprep.subr.mxu0 0.0
    %11271 = vmatpush1.msra.mxu0 0.0
    %11272 = vmatprep.subr.mxu0 0.0
    %11273 = vmatpush1.msra.mxu0 0.0
    %11274 = vmatprep.mubr.f32.mxu0 0.0
    %11275 = vmatmul.mubr.f32.gmra.mrb[0].mxu0 %v11138
    %v11276 = vpop.f32.mrb[0].mxu0
    %v11277 = vadd.f32 %v11207, %v11276
    %v11278 = vpop.f32.mrb[0].mxu0
    %11279 = vdwg.mxu0
    %v11280 = vsel %vm8767, %v11277, 0.0
    %v11281 = vrot.slane %v11280, 4
    %v11282 = vadd.f32 %v11280, %v11281
    %v11283 = vrot.slane %v11282, 2
    %v11284 = vadd.f32 %v11282, %v11283
    %v11285 = vrot.slane %v11284, 1
    %v11286 = vadd.f32 %v11284, %v11285
    %v11287 = vmul.f32 %v11286, 0.125
    %v11288 = vmul.f32 %v11277, %v11277
    %v11289 = vsel %vm8767, %v11288, 0.0
    %v11290 = vrot.slane %v11289, 4
    %v11291 = vadd.f32 %v11289, %v11290
    %v11292 = vrot.slane %v11291, 2
    %v11293 = vadd.f32 %v11291, %v11292
    %v11294 = vrot.slane %v11293, 1
    %v11295 = vadd.f32 %v11293, %v11294
    %v11296 = vmul.f32 %v11295, 0.125
    %v11297 = vmul.f32 %v11287, %v11287
    %v11298 = vsub.f32 %v11296, %v11297
    %v11299 = vmax.f32 %v11298, 0.0
    %v11300 = vld [vmem:[%s11] sm:$0x1]
    %v11301 = vadd.f32 %v11299, 1e-05
    %v11302 = vrsqrt.pop %v11301
    %v11303 = vmul.f32 %v11300, %v11302
    %v11304 = vld [vmem:[%s12] sm:$0x1]
    %v11305 = vmul.f32 %v11287, %v11303
    %v11306 = vsub.f32 %v11304, %v11305
    %v11308 = vlaneseq
    %v11309 = vshrl.u32 %v11308, 7
    %v11310 = vsub.s32 0, %v11309
    %v11311 = vrot.slane %v11303, %v11310
    %v11313 = vmul.f32 %v11277, %v11311
    %v11315 = vlaneseq
    %v11316 = vshrl.u32 %v11315, 7
    %v11317 = vsub.s32 0, %v11316
    %v11318 = vrot.slane %v11306, %v11317
    %v11320 = vadd.f32 %v11313, %v11318
    %v11321 = vmax.f32 %v11320, 0.0
    %11322 = vst.msk [vmem:[#allocation8] sm:$0xff] %vm8767, %v11321
    // Predicated region
    $region54: #{tpu_custom_call.1} parent=1 // pred_check
      _
    $region55: #{tpu_custom_call.1} parent=1 // pred_check_branch
      %11324 = sbr.rel (0) target = $region57
    $region56: #{tpu_custom_call.1} parent=1 // pred_region
      _
    $region57: #{tpu_custom_call.1} parent=1 // pred_fallthru
      _
    // Predicated region
    $region58: #{tpu_custom_call.1} parent=1 // pred_check
      _
    $region59: #{tpu_custom_call.1} parent=1 // pred_check_branch
      %11326 = sbr.rel (0) target = $region61
    $region60: #{tpu_custom_call.1} parent=1 // pred_region
      _
    $region61: #{tpu_custom_call.1} parent=1 // pred_fallthru
      _
    // Predicated region
    $region62: #{tpu_custom_call.1} parent=1 // pred_check
      _
    $region63: #{tpu_custom_call.1} parent=1 // pred_check_branch
      %11328 = sbr.rel (0) target = $region65
    $region64: #{tpu_custom_call.1} parent=1 // pred_region
      %s11330 = ssub.s32 512, 512
      %11331 = vsyncadd [#allocation7], %s11330
      %s11332 = sshll.u32 [#allocation6], 4
      %s11333 = int_to_ptr.vmem [resolvable:$true] %s11332
      %11338 = dma.vmem_to_hbm [thread:$0]  %s11333, 512, %s15, [#allocation7], 128, 128, 8
    $region65: #{tpu_custom_call.1} parent=1 // pred_fallthru
      _
    // Predicated region
    $region66: #{tpu_custom_call.1} parent=1 // pred_check
      _
    $region67: #{tpu_custom_call.1} parent=1 // pred_check_branch
      %11340 = sbr.rel (0) target = $region69
    $region68: #{tpu_custom_call.1} parent=1 // pred_region
      %s11342 = ssub.s32 128, 128
      %11343 = vsyncadd [#allocation9], %s11342
      %s11345 = sshll.u32 [#allocation8], 4
      %s11346 = int_to_ptr.vmem [resolvable:$true] %s11345
      %11348 = dma.vmem_to_hbm [thread:$0]  %s11346, 128, %s16, [#allocation9]
    $region69: #{tpu_custom_call.1} parent=1 // pred_fallthru
      _
    // Predicated region
    $region70: #{tpu_custom_call.1} parent=1 // pred_check
      _
    $region71: #{tpu_custom_call.1} parent=1 // pred_check_branch
      %11350 = sbr.rel (0) target = $region73
    $region72: #{tpu_custom_call.1} parent=1 // pred_region
      _
    $region73: #{tpu_custom_call.1} parent=1 // pred_fallthru
      _
    // Predicated region
    $region74: #{tpu_custom_call.1} parent=1 // pred_check
      _
    $region75: #{tpu_custom_call.1} parent=1 // pred_check_branch
      %11352 = sbr.rel (0) target = $region77
    $region76: #{tpu_custom_call.1} parent=1 // pred_region
      _
    $region77: #{tpu_custom_call.1} parent=1 // pred_fallthru
      _
    // Predicated region
    $region78: #{tpu_custom_call.1} parent=1 // pred_check
      _
    $region79: #{tpu_custom_call.1} parent=1 // pred_check_branch
      %11354 = sbr.rel (0) target = $region81
    $region80: #{tpu_custom_call.1} parent=1 // pred_region
      %11355 = dma.done [#allocation7], 512
    $region81: #{tpu_custom_call.1} parent=1 // pred_fallthru
      _
    // Predicated region
    $region82: #{tpu_custom_call.1} parent=1 // pred_check
      _
    $region83: #{tpu_custom_call.1} parent=1 // pred_check_branch
      %11357 = sbr.rel (0) target = $region85
    $region84: #{tpu_custom_call.1} parent=1 // pred_region
      %11358 = dma.done [#allocation9], 128
    $region85: #{tpu_custom_call.1} parent=1 // pred_fallthru
      _
    %11359 = vsyncpa [#allocation7], 1
    %11360 = vsyncpa [#allocation9], 1

</llo_original>
